<compile_context>
chip_gen: v7x
topology: tpu7x:2x2x1
jax: 0.10.0
libtpu: 0.0.40
codegen_flags: <defaults>
</compile_context>

<pallas_src>
import functools

import jax
import jax.numpy as jnp
from jax.experimental import pallas as pl
from jax.experimental.pallas import tpu as pltpu

# ------------------------- static model dimensions -------------------------
FA, FB = 37, 6            # molecule atom / bond features (43 = 37 + 6)
FA_PAD, FB_PAD = 40, 8    # sublane-aligned K dims
HM = 128                  # molecule GraphConv width
F1, F2 = 200, 100         # protein GraphCore widths
F1P, F2P = 256, 128       # lane-dense padded widths
HFC = 100                 # fc width (folded away offline)
OUT_PAD = 128             # lane-dense output slab, sliced back in the wrapper

# packed bias / attention-vector layout (single (1, VEC_LEN) f32 input)
OFF_BM1 = 0
OFF_BM2 = OFF_BM1 + HM
OFF_A1S = OFF_BM2 + HM
OFF_A1D = OFF_A1S + F1P
OFF_A2S = OFF_A1D + F1P
OFF_A2D = OFF_A2S + F2P
OFF_BFC = OFF_A2D + F2P
VEC_LEN = OFF_BFC + OUT_PAD          # = 1152 (9 * 128 lanes)


# ---------------------------------------------------------------------------
# Fused forward kernel: one grid step == Bt graphs (block-diagonal structure).
# ---------------------------------------------------------------------------
def _gch_fin_kernel(
    # per-tile (Bt graphs) inputs, flattened to 2-D slabs
    m_atoms_ref, m_adj_ref, m_bsum_ref, p_atoms_ref, p_khop_ref,
    # constant per-tile graph-segment indicators (f32)
    bmask_ref, gmt_ref, gpt_ref,
    # weights (compute dtype), packed f32 vectors
    wm1a_ref, wm1b_ref, wm2a_ref, wm2b_ref,
    wp1_ref, wp2_ref, wi_ref, w1m_ref, w1p_ref, vecs_ref,
    # output
    o_ref,
    *, alpha, inv_nm, inv_np):
  f32 = jnp.float32
  cdt = m_atoms_ref.dtype            # compute dtype for MXU operands (f32 or bf16)

  # ---- packed bias / attention vectors (always f32, static lane slices) ----
  bm1 = vecs_ref[:, OFF_BM1:OFF_BM1 + HM]
  bm2 = vecs_ref[:, OFF_BM2:OFF_BM2 + HM]
  a1s = vecs_ref[:, OFF_A1S:OFF_A1S + F1P]
  a1d = vecs_ref[:, OFF_A1D:OFF_A1D + F1P]
  a2s = vecs_ref[:, OFF_A2S:OFF_A2S + F2P]
  a2d = vecs_ref[:, OFF_A2D:OFF_A2D + F2P]
  b_fc = vecs_ref[:, OFF_BFC:OFF_BFC + OUT_PAD]

  # ------------------- molecule branch: 2 x GraphConv + ReLU -------------------
  a_self = m_adj_ref[...]            # (Rm, Rm) block-diag neighbour matrix + self loops
  bsum = m_bsum_ref[...]             # (Rm, FB_PAD) masked bond sums

  def mol_conv(x, wa_ref, wb_ref, b):
    sa = jnp.dot(a_self, x.astype(cdt), preferred_element_type=f32)   # self + neighbour sum
    h = jnp.dot(sa.astype(cdt), wa_ref[...], preferred_element_type=f32)
    h = h + jnp.dot(bsum, wb_ref[...], preferred_element_type=f32)
    return jnp.maximum(h + b, 0.0)                                    # fused ReLU (f32)

  m1 = mol_conv(m_atoms_ref[...], wm1a_ref, wm1b_ref, bm1)            # (Rm, 128)
  m2 = mol_conv(m1, wm2a_ref, wm2b_ref, bm2)                          # (Rm, 128)

  # ------------------- protein branch: 2 x GraphCore (GAT) + ReLU -------------------
  khop = p_khop_ref[...].astype(f32)                                  # (Rp, Rp) block-diag 0/1

  def gat_layer(x, w_ref, asrc, adst):
    wh = jnp.dot(x.astype(cdt), w_ref[...], preferred_element_type=f32)   # (Rp, Fo)
    e_src = jnp.sum(wh * asrc, axis=-1, keepdims=True)                    # (Rp, 1)  VPU
    e_dst = jax.lax.dot_general(adst, wh, (((1,), (1,)), ((), ())),
                                preferred_element_type=f32)               # (1, Rp)
    e = e_src + e_dst
    e = jnp.where(e > 0, e, alpha * e)                                    # LeakyReLU (f32)
    e = jnp.where(khop > 0, e, -1e30)                                     # precomputed k-hop mask
    e = e - jnp.max(e, axis=-1, keepdims=True)
    p = jnp.exp(e)
    att = p * pl.reciprocal(jnp.sum(p, axis=-1, keepdims=True), approx=True)
    return jnp.maximum(
        jnp.dot(att.astype(cdt), wh.astype(cdt), preferred_element_type=f32), 0.0)

  p1 = gat_layer(p_atoms_ref[...], wp1_ref, a1s, a1d)                 # (Rp, 256)
  p2 = gat_layer(p1, wp2_ref, a2s, a2d)                               # (Rp, 128)

  # -------------- interaction aggregation (segmented per graph) --------------
  mw = jnp.dot(m2.astype(cdt), wi_ref[...], preferred_element_type=f32)        # (Rm, 128)
  inter = jnp.tanh(jax.lax.dot_general(mw.astype(cdt), p2.astype(cdt),
                                       (((1,), (1,)), ((), ())),
                                       preferred_element_type=f32))            # (Rm, Rp)
  imask = inter * bmask_ref[...]                       # zero out cross-graph pairs
  sm = jnp.sum(imask, axis=-1, keepdims=True) * inv_np                         # (Rm, 1)
  sp = jnp.sum(imask, axis=0, keepdims=True) * inv_nm                          # (1, Rp)

  gmt = gmt_ref[...]                                   # (Bt, Rm) graph indicator
  gpt = gpt_ref[...]                                   # (Bt, Rp)

  # |sm|,|sp| <= 1 (means of tanh) => segmented softmax needs no max shift.
  em = jnp.exp(sm)                                                             # (Rm, 1)
  num_m = jnp.dot(gmt, em * m2, preferred_element_type=f32)                    # (Bt, 128)
  den_m = jnp.dot(gmt, jnp.broadcast_to(em, m2.shape),
                  preferred_element_type=f32)                                  # (Bt, 128) (uniform lanes)
  fp_m = num_m * pl.reciprocal(den_m, approx=True)

  ep = jnp.exp(sp)                                                             # (1, Rp)
  gpw = gpt * ep                                                               # (Bt, Rp)
  num_p = jnp.dot(gpw, p2, preferred_element_type=f32)                         # (Bt, 128)
  den_p = jnp.sum(gpw, axis=-1, keepdims=True)                                 # (Bt, 1)
  fp_p = num_p * pl.reciprocal(den_p, approx=True)

  # -------------- folded fc head (fc1@fc2@fc3 precomputed offline) + sigmoid --------------
  h = (jnp.dot(fp_m.astype(cdt), w1m_ref[...], preferred_element_type=f32)
       + jnp.dot(fp_p.astype(cdt), w1p_ref[...], preferred_element_type=f32)
       + b_fc)
  o_ref[...] = jax.nn.sigmoid(h).astype(o_ref.dtype)                           # (Bt, OUT_PAD)


# ---------------------------------------------------------------------------
# Wrapper: graph-structure preprocessing + one fused pallas_call over B//Bt tiles.
# ---------------------------------------------------------------------------
def gch_fin_forward(kp, m_atoms, m_bonds, m_edges, p_atoms, p_edges, *,
                    alpha=0.2, n_class=1, graphs_per_step=8,
                    compute_dtype=jnp.float32):
  cdt = compute_dtype
  B, Nm, Fa = m_atoms.shape
  Fb = m_bonds.shape[-1]
  Np, Fp = p_atoms.shape[1], p_atoms.shape[2]
  Bt = graphs_per_step
  assert (Bt * Nm) % 8 == 0 and (Bt * Np) % 8 == 0, "tile rows must be sublane-aligned"

  T = pl.cdiv(B, Bt)
  Bp = T * Bt
  pad_b = Bp - B
  if pad_b:
    zpad = lambda x: jnp.pad(x, ((0, pad_b),) + ((0, 0),) * (x.ndim - 1))
    m_atoms, m_bonds, p_atoms, p_edges = map(zpad, (m_atoms, m_bonds, p_atoms, p_edges))
    m_edges = jnp.pad(m_edges, ((0, pad_b), (0, 0), (0, 0)), constant_values=-1)

  Rm, Rp = Bt * Nm, Bt * Np

  # ---- molecule structure: dense adjacency (+ self loops) and masked bond sums
  mask = (m_edges >= 0)
  adj = jax.nn.one_hot(jnp.where(mask, m_edges, -1), Nm, dtype=jnp.float32).sum(axis=2)
  adj = adj + jnp.eye(Nm, dtype=jnp.float32)[None]                     # (Bp, Nm, Nm)
  bsum = (m_bonds * mask[..., None].astype(m_bonds.dtype)).sum(axis=2) # (Bp, Nm, Fb)

  # ---- protein structure: k-hop(=2) adjacency mask precomputed once (perf review)
  eye_p = jnp.eye(Np, dtype=jnp.float32)[None]
  khop = ((p_edges + jnp.einsum("bij,bjk->bik", p_edges, p_edges) + eye_p) > 0
          ).astype(jnp.float32)                                        # (Bp, Np, Np)

  def block_diag(x):  # (Bp, n, n) -> (T * Bt*n, Bt*n), block-diagonal per tile
    n = x.shape[-1]
    x = x.reshape(T, Bt, n, n)
    eye_g = jnp.eye(Bt, dtype=x.dtype)
    bd = jnp.einsum("tgij,gh->tgihj", x, eye_g).reshape(T, Bt * n, Bt * n)
    return bd.reshape(T * Bt * n, Bt * n)

  adj_bd = block_diag(adj).astype(cdt)                                 # (T*Rm, Rm)
  khop_bd = block_diag(khop).astype(cdt)                               # (T*Rp, Rp)

  # flattened, lane/sublane-aligned per-tile node features
  m_atoms_f = jnp.pad(m_atoms, ((0, 0), (0, 0), (0, FA_PAD - Fa))
                      ).reshape(Bp * Nm, FA_PAD).astype(cdt)
  bsum_f = jnp.pad(bsum, ((0, 0), (0, 0), (0, FB_PAD - Fb))
                   ).reshape(Bp * Nm, FB_PAD).astype(cdt)
  p_atoms_f = p_atoms.reshape(Bp * Np, Fp).astype(cdt)

  # constant per-tile graph-segment indicators (f32: used in VPU / f32 matmuls)
  bmask = jnp.kron(jnp.eye(Bt, dtype=jnp.float32), jnp.ones((Nm, Np), jnp.float32))
  gmt = jnp.kron(jnp.eye(Bt, dtype=jnp.float32), jnp.ones((1, Nm), jnp.float32))
  gpt = jnp.kron(jnp.eye(Bt, dtype=jnp.float32), jnp.ones((1, Np), jnp.float32))

  def tile_spec(rows, cols):
    return pl.BlockSpec((rows, cols), lambda t: (t, 0))

  def const_spec(arr):
    shape = arr.shape
    return pl.BlockSpec(shape, lambda t: (0,) * len(shape))

  consts = (bmask, gmt, gpt,
            kp["wm1a"], kp["wm1b"], kp["wm2a"], kp["wm2b"],
            kp["wp1"], kp["wp2"], kp["wi"], kp["w1m"], kp["w1p"], kp["vecs"])

  out = pl.pallas_call(
      functools.partial(_gch_fin_kernel, alpha=alpha,
                        inv_nm=1.0 / Nm, inv_np=1.0 / Np),
      out_shape=jax.ShapeDtypeStruct((Bp, OUT_PAD), jnp.float32),
      grid=(T,),
      in_specs=[
          tile_spec(Rm, FA_PAD), tile_spec(Rm, Rm), tile_spec(Rm, FB_PAD),
          tile_spec(Rp, Fp), tile_spec(Rp, Rp),
      ] + [const_spec(c) for c in consts],
      out_specs=pl.BlockSpec((Bt, OUT_PAD), lambda t: (t, 0)),
      compiler_params=pltpu.CompilerParams(dimension_semantics=("parallel",)),
  )(m_atoms_f, adj_bd, bsum_f, p_atoms_f, khop_bd, *consts)

  return out[:B, :n_class]


# ---------------------------------------------------------------------------
# Parameters: logical (PyTorch-shaped) init + padding / folding into kernel layout.
# ---------------------------------------------------------------------------
def init_logical_params(key, n_class=1):
  ks = jax.random.split(key, 20)
  w = lambda k, shape, s=0.05: jax.random.normal(k, shape, jnp.float32) * s
  return {
      "wm1": w(ks[0], (FA + FB, HM)), "bm1": w(ks[12], (HM,)),
      "wm2": w(ks[1], (HM + FB, HM)), "bm2": w(ks[13], (HM,)),
      "wp1": w(ks[2], (480, F1)), "ap1s": w(ks[3], (F1,)), "ap1d": w(ks[4], (F1,)),
      "wp2": w(ks[5], (F1, F2)), "ap2s": w(ks[6], (F2,)), "ap2d": w(ks[7], (F2,)),
      "wi": w(ks[8], (HM, F2)),
      "w1": w(ks[9], (HM + F2, HFC)), "b1": w(ks[14], (HFC,)),
      "w2": w(ks[10], (HFC, HFC)), "b2": w(ks[15], (HFC,)),
      "w3": w(ks[11], (HFC, n_class)), "b3": w(ks[16], (n_class,)),
  }


def prepare_kernel_params(p, compute_dtype=jnp.float32):
  cdt = compute_dtype

  def pad2(a, r, c):
    return jnp.pad(a, ((0, r - a.shape[0]), (0, c - a.shape[1])))

  def padv(v, c):
    return jnp.pad(v, (0, c - v.shape[0]))

  # fold fc1@fc2@fc3 (no activation between them in the PyTorch forward)
  w1m_fold = p["w1"][:HM] @ p["w2"] @ p["w3"]          # (128, n_class)
  w1p_fold = p["w1"][HM:] @ p["w2"] @ p["w3"]          # (100, n_class)
  b_fold = p["b1"] @ p["w2"] @ p["w3"] + p["b2"] @ p["w3"] + p["b3"]

  vecs = jnp.concatenate([
      p["bm1"], p["bm2"],
      padv(p["ap1s"], F1P), padv(p["ap1d"], F1P),
      padv(p["ap2s"], F2P), padv(p["ap2d"], F2P),
      padv(b_fold, OUT_PAD)]).reshape(1, VEC_LEN).astype(jnp.float32)

  return {
      "wm1a": pad2(p["wm1"][:FA], FA_PAD, HM).astype(cdt),
      "wm1b": pad2(p["wm1"][FA:], FB_PAD, HM).astype(cdt),
      "wm2a": p["wm2"][:HM].astype(cdt),
      "wm2b": pad2(p["wm2"][HM:], FB_PAD, HM).astype(cdt),
      "wp1": pad2(p["wp1"], 480, F1P).astype(cdt),
      "wp2": pad2(p["wp2"], F1P, F2P).astype(cdt),
      "wi": pad2(p["wi"], HM, F2P).astype(cdt),
      "w1m": pad2(w1m_fold, HM, OUT_PAD).astype(cdt),
      "w1p": pad2(w1p_fold, F2P, OUT_PAD).astype(cdt),
      "vecs": vecs,
  }


# ---------------------------------------------------------------------------
# Pure-JAX reference (same semantics, unpadded / unfolded) for correctness check.
# ---------------------------------------------------------------------------
def reference_forward(p, m_atoms, m_bonds, m_edges, p_atoms, p_edges, alpha=0.2):
  B, Nm, _ = m_atoms.shape
  Deg = m_edges.shape[-1]
  Np = p_atoms.shape[1]
  mask = (m_edges >= 0)
  idx = jnp.where(mask, m_edges, 0)

  def graph_conv(atoms, w, b):
    neigh = jnp.take_along_axis(atoms, idx.reshape(B, Nm * Deg)[..., None], axis=1)
    neigh = neigh.reshape(B, Nm, Deg, atoms.shape[-1]) * mask[..., None]
    sa = atoms + neigh.sum(axis=2)
    sb = (m_bonds * mask[..., None]).sum(axis=2)
    feats = jnp.concatenate([sa, sb], axis=-1)
    return jax.nn.relu(feats @ w + b)

  m = graph_conv(m_atoms, p["wm1"], p["bm1"])
  m = graph_conv(m, p["wm2"], p["bm2"])

  eye = jnp.eye(Np, dtype=jnp.float32)[None]
  adj_k = (p_edges + jnp.einsum("bij,bjk->bik", p_edges, p_edges) + eye) > 0

  def gat(x, w, a_s, a_d):
    wh = x @ w
    e = wh @ a_s[:, None] + (wh @ a_d[:, None]).swapaxes(1, 2)
    e = jnp.where(e > 0, e, alpha * e)
    e = jnp.where(adj_k, e, -1e30)
    att = jax.nn.softmax(e, axis=-1)
    return jax.nn.relu(att @ wh)

  pr = gat(p_atoms, p["wp1"], p["ap1s"], p["ap1d"])
  pr = gat(pr, p["wp2"], p["ap2s"], p["ap2d"])

  mw = m @ p["wi"]
  inter = jnp.tanh(jnp.einsum("bnd,bpd->bnp", mw, pr))
  am = jax.nn.softmax(inter.mean(axis=2, keepdims=True), axis=1)
  apw = jax.nn.softmax(inter.mean(axis=1, keepdims=True), axis=2)
  fp_m = (am * m).sum(axis=1)
  fp_p = jnp.einsum("bop,bpd->bod", apw, pr)[:, 0]
  fp = jnp.concatenate([fp_m, fp_p], axis=1)
  h = fp @ p["w1"] + p["b1"]
  h = h @ p["w2"] + p["b2"]
  return jax.nn.sigmoid(h @ p["w3"] + p["b3"])


# ---------------------------------------------------------------------------
if __name__ == "__main__":
  key = jax.random.PRNGKey(0)
  B, Nm, Deg = 16, 16, 4       # molecule graphs (43 = 37 atom + 6 bond feats)
  Np, Fp = 24, 480             # protein graphs
  n_class = 1
  Bt = 8                       # graphs per grid step -> Rm=128, Rp=192; grid=(2,)

  kk = jax.random.split(key, 8)
  m_atoms = jax.random.normal(kk[0], (B, Nm, FA), jnp.float32)
  m_bonds = jax.random.normal(kk[1], (B, Nm, Deg, FB), jnp.float32)
  m_edges = jax.random.randint(kk[2], (B, Nm, Deg), 0, Nm)
  m_edges = jnp.where(jax.random.uniform(kk[3], (B, Nm, Deg)) < 0.3, -1, m_edges)
  p_atoms = jax.random.normal(kk[4], (B, Np, Fp), jnp.float32)
  a = (jax.random.uniform(kk[5], (B, Np, Np)) < 0.2).astype(jnp.float32)
  p_edges = ((a + jnp.swapaxes(a, 1, 2)) > 0).astype(jnp.float32)  # symmetric

  logical = init_logical_params(kk[6], n_class)
  ref = reference_forward(logical, m_atoms, m_bonds, m_edges, p_atoms, p_edges)

  # f32 path: validates the batched / block-diagonal / folded-head semantics.
  kp32 = prepare_kernel_params(logical, jnp.float32)
  fwd32 = jax.jit(functools.partial(gch_fin_forward, n_class=n_class,
                                    graphs_per_step=Bt,
                                    compute_dtype=jnp.float32))
  out32 = jax.block_until_ready(
      fwd32(kp32, m_atoms, m_bonds, m_edges, p_atoms, p_edges))

  # bf16 MXU path: the main performance configuration.
  kp16 = prepare_kernel_params(logical, jnp.bfloat16)
  fwd16 = jax.jit(functools.partial(gch_fin_forward, n_class=n_class,
                                    graphs_per_step=Bt,
                                    compute_dtype=jnp.bfloat16))
  out16 = jax.block_until_ready(
      fwd16(kp16, m_atoms, m_bonds, m_edges, p_atoms, p_edges))

  assert out32.shape == (B, n_class) and out16.shape == (B, n_class)
  for o in (out32, out16):
    assert bool(jnp.all(jnp.isfinite(o)))
    assert bool(jnp.all((o >= 0.0) & (o <= 1.0)))
  assert bool(jnp.allclose(out32, ref, rtol=1e-2, atol=1e-2))
  assert bool(jnp.allclose(out16, ref, rtol=6e-2, atol=6e-2))
  print("KERNEL_OK")
</pallas_src>

<mosaic_0001>
module attributes {stable_mosaic.version = 11 : i64} {
  func.func @_gch_fin_kernel(%arg0: i32, %arg1: memref<128x40xf32, #tpu.memory_space<vmem>>, %arg2: memref<128x128xf32, #tpu.memory_space<vmem>>, %arg3: memref<128x8xf32, #tpu.memory_space<vmem>>, %arg4: memref<192x480xf32, #tpu.memory_space<vmem>>, %arg5: memref<192x192xf32, #tpu.memory_space<vmem>>, %arg6: memref<128x192xf32, #tpu.memory_space<vmem>>, %arg7: memref<8x128xf32, #tpu.memory_space<vmem>>, %arg8: memref<8x192xf32, #tpu.memory_space<vmem>>, %arg9: memref<40x128xf32, #tpu.memory_space<vmem>>, %arg10: memref<8x128xf32, #tpu.memory_space<vmem>>, %arg11: memref<128x128xf32, #tpu.memory_space<vmem>>, %arg12: memref<8x128xf32, #tpu.memory_space<vmem>>, %arg13: memref<480x256xf32, #tpu.memory_space<vmem>>, %arg14: memref<256x128xf32, #tpu.memory_space<vmem>>, %arg15: memref<128x128xf32, #tpu.memory_space<vmem>>, %arg16: memref<128x128xf32, #tpu.memory_space<vmem>>, %arg17: memref<128x128xf32, #tpu.memory_space<vmem>>, %arg18: memref<1x1152xf32, #tpu.memory_space<vmem>>, %arg19: memref<8x128xf32, #tpu.memory_space<vmem>>) attributes {dimension_semantics = [#tpu.dimension_semantics<parallel>], iteration_bounds = array<i64: 2>, scalar_prefetch = 0 : i64, scratch_operands = 0 : i64, tpu.core_type = #tpu.core_type<tc>, window_params = [{transform_indices = @transform_0, window_bounds = array<i64: 128, 40>}, {transform_indices = @transform_1, window_bounds = array<i64: 128, 128>}, {transform_indices = @transform_2, window_bounds = array<i64: 128, 8>}, {transform_indices = @transform_3, window_bounds = array<i64: 192, 480>}, {transform_indices = @transform_4, window_bounds = array<i64: 192, 192>}, {pipeline_mode = #tpu.pipeline_mode<synchronous>, transform_indices = @transform_5, window_bounds = array<i64: 128, 192>}, {pipeline_mode = #tpu.pipeline_mode<synchronous>, transform_indices = @transform_6, window_bounds = array<i64: 8, 128>}, {pipeline_mode = #tpu.pipeline_mode<synchronous>, transform_indices = @transform_7, window_bounds = array<i64: 8, 192>}, {pipeline_mode = #tpu.pipeline_mode<synchronous>, transform_indices = @transform_8, window_bounds = array<i64: 40, 128>}, {pipeline_mode = #tpu.pipeline_mode<synchronous>, transform_indices = @transform_9, window_bounds = array<i64: 8, 128>}, {pipeline_mode = #tpu.pipeline_mode<synchronous>, transform_indices = @transform_10, window_bounds = array<i64: 128, 128>}, {pipeline_mode = #tpu.pipeline_mode<synchronous>, transform_indices = @transform_11, window_bounds = array<i64: 8, 128>}, {pipeline_mode = #tpu.pipeline_mode<synchronous>, transform_indices = @transform_12, window_bounds = array<i64: 480, 256>}, {pipeline_mode = #tpu.pipeline_mode<synchronous>, transform_indices = @transform_13, window_bounds = array<i64: 256, 128>}, {pipeline_mode = #tpu.pipeline_mode<synchronous>, transform_indices = @transform_14, window_bounds = array<i64: 128, 128>}, {pipeline_mode = #tpu.pipeline_mode<synchronous>, transform_indices = @transform_15, window_bounds = array<i64: 128, 128>}, {pipeline_mode = #tpu.pipeline_mode<synchronous>, transform_indices = @transform_16, window_bounds = array<i64: 128, 128>}, {pipeline_mode = #tpu.pipeline_mode<synchronous>, transform_indices = @transform_17, window_bounds = array<i64: 1, 1152>}, {transform_indices = @transform_18, window_bounds = array<i64: 8, 128>}]} {
    %c0 = arith.constant 0 : index
    %c0_0 = arith.constant 0 : index
    %0 = vector.load %arg18[%c0, %c0_0] : memref<1x1152xf32, #tpu.memory_space<vmem>>, vector<1x128xf32>
    %c0_1 = arith.constant 0 : index
    %c128 = arith.constant 128 : index
    %1 = vector.load %arg18[%c0_1, %c128] : memref<1x1152xf32, #tpu.memory_space<vmem>>, vector<1x128xf32>
    %c0_2 = arith.constant 0 : index
    %c256 = arith.constant 256 : index
    %2 = vector.load %arg18[%c0_2, %c256] : memref<1x1152xf32, #tpu.memory_space<vmem>>, vector<1x256xf32>
    %c0_3 = arith.constant 0 : index
    %c512 = arith.constant 512 : index
    %3 = vector.load %arg18[%c0_3, %c512] : memref<1x1152xf32, #tpu.memory_space<vmem>>, vector<1x256xf32>
    %c0_4 = arith.constant 0 : index
    %c768 = arith.constant 768 : index
    %4 = vector.load %arg18[%c0_4, %c768] : memref<1x1152xf32, #tpu.memory_space<vmem>>, vector<1x128xf32>
    %c0_5 = arith.constant 0 : index
    %c896 = arith.constant 896 : index
    %5 = vector.load %arg18[%c0_5, %c896] : memref<1x1152xf32, #tpu.memory_space<vmem>>, vector<1x128xf32>
    %c0_6 = arith.constant 0 : index
    %c1024 = arith.constant 1024 : index
    %6 = vector.load %arg18[%c0_6, %c1024] : memref<1x1152xf32, #tpu.memory_space<vmem>>, vector<1x128xf32>
    %c0_7 = arith.constant 0 : index
    %c0_8 = arith.constant 0 : index
    %7 = vector.load %arg2[%c0_7, %c0_8] : memref<128x128xf32, #tpu.memory_space<vmem>>, vector<128x128xf32>
    %c0_9 = arith.constant 0 : index
    %c0_10 = arith.constant 0 : index
    %8 = vector.load %arg3[%c0_9, %c0_10] : memref<128x8xf32, #tpu.memory_space<vmem>>, vector<128x8xf32>
    %c0_11 = arith.constant 0 : index
    %c0_12 = arith.constant 0 : index
    %9 = vector.load %arg1[%c0_11, %c0_12] : memref<128x40xf32, #tpu.memory_space<vmem>>, vector<128x40xf32>
    %cst = arith.constant dense<0.000000e+00> : vector<128x40xf32>
    %10 = tpu.matmul %7, %9, %cst {dimension_numbers = #tpu.dot_dimension_numbers<[1], [0], [0], [1], [0, 0, 1, 1], [], []>} : vector<128x128xf32>, vector<128x40xf32>, vector<128x40xf32> -> vector<128x40xf32>
    %c0_13 = arith.constant 0 : index
    %c0_14 = arith.constant 0 : index
    %11 = vector.load %arg9[%c0_13, %c0_14] : memref<40x128xf32, #tpu.memory_space<vmem>>, vector<40x128xf32>
    %cst_15 = arith.constant dense<0.000000e+00> : vector<128x128xf32>
    %12 = tpu.matmul %10, %11, %cst_15 {dimension_numbers = #tpu.dot_dimension_numbers<[1], [0], [0], [1], [0, 0, 1, 1], [], []>} : vector<128x40xf32>, vector<40x128xf32>, vector<128x128xf32> -> vector<128x128xf32>
    %c0_16 = arith.constant 0 : index
    %c0_17 = arith.constant 0 : index
    %13 = vector.load %arg10[%c0_16, %c0_17] : memref<8x128xf32, #tpu.memory_space<vmem>>, vector<8x128xf32>
    %cst_18 = arith.constant dense<0.000000e+00> : vector<128x128xf32>
    %14 = tpu.matmul %8, %13, %cst_18 {dimension_numbers = #tpu.dot_dimension_numbers<[1], [0], [0], [1], [0, 0, 1, 1], [], []>} : vector<128x8xf32>, vector<8x128xf32>, vector<128x128xf32> -> vector<128x128xf32>
    %15 = arith.addf %12, %14 : vector<128x128xf32>
    %16 = vector.broadcast %0 : vector<1x128xf32> to vector<128x128xf32>
    %17 = arith.addf %15, %16 : vector<128x128xf32>
    %cst_19 = arith.constant 0.000000e+00 : f32
    %18 = vector.broadcast %cst_19 : f32 to vector<128x128xf32>
    %19 = arith.maximumf %17, %18 : vector<128x128xf32>
    %cst_20 = arith.constant dense<0.000000e+00> : vector<128x128xf32>
    %20 = tpu.matmul %7, %19, %cst_20 {dimension_numbers = #tpu.dot_dimension_numbers<[1], [0], [0], [1], [0, 0, 1, 1], [], []>} : vector<128x128xf32>, vector<128x128xf32>, vector<128x128xf32> -> vector<128x128xf32>
    %c0_21 = arith.constant 0 : index
    %c0_22 = arith.constant 0 : index
    %21 = vector.load %arg11[%c0_21, %c0_22] : memref<128x128xf32, #tpu.memory_space<vmem>>, vector<128x128xf32>
    %cst_23 = arith.constant dense<0.000000e+00> : vector<128x128xf32>
    %22 = tpu.matmul %20, %21, %cst_23 {dimension_numbers = #tpu.dot_dimension_numbers<[1], [0], [0], [1], [0, 0, 1, 1], [], []>} : vector<128x128xf32>, vector<128x128xf32>, vector<128x128xf32> -> vector<128x128xf32>
    %c0_24 = arith.constant 0 : index
    %c0_25 = arith.constant 0 : index
    %23 = vector.load %arg12[%c0_24, %c0_25] : memref<8x128xf32, #tpu.memory_space<vmem>>, vector<8x128xf32>
    %cst_26 = arith.constant dense<0.000000e+00> : vector<128x128xf32>
    %24 = tpu.matmul %8, %23, %cst_26 {dimension_numbers = #tpu.dot_dimension_numbers<[1], [0], [0], [1], [0, 0, 1, 1], [], []>} : vector<128x8xf32>, vector<8x128xf32>, vector<128x128xf32> -> vector<128x128xf32>
    %25 = arith.addf %22, %24 : vector<128x128xf32>
    %26 = vector.broadcast %1 : vector<1x128xf32> to vector<128x128xf32>
    %27 = arith.addf %25, %26 : vector<128x128xf32>
    %cst_27 = arith.constant 0.000000e+00 : f32
    %28 = vector.broadcast %cst_27 : f32 to vector<128x128xf32>
    %29 = arith.maximumf %27, %28 : vector<128x128xf32>
    %c0_28 = arith.constant 0 : index
    %c0_29 = arith.constant 0 : index
    %30 = vector.load %arg5[%c0_28, %c0_29] : memref<192x192xf32, #tpu.memory_space<vmem>>, vector<192x192xf32>
    %c0_30 = arith.constant 0 : index
    %c0_31 = arith.constant 0 : index
    %31 = vector.load %arg4[%c0_30, %c0_31] : memref<192x480xf32, #tpu.memory_space<vmem>>, vector<192x480xf32>
    %c0_32 = arith.constant 0 : index
    %c0_33 = arith.constant 0 : index
    %32 = vector.load %arg13[%c0_32, %c0_33] : memref<480x256xf32, #tpu.memory_space<vmem>>, vector<480x256xf32>
    %cst_34 = arith.constant dense<0.000000e+00> : vector<192x256xf32>
    %33 = tpu.matmul %31, %32, %cst_34 {dimension_numbers = #tpu.dot_dimension_numbers<[1], [0], [0], [1], [0, 0, 1, 1], [], []>} : vector<192x480xf32>, vector<480x256xf32>, vector<192x256xf32> -> vector<192x256xf32>
    %34 = vector.broadcast %2 : vector<1x256xf32> to vector<192x256xf32>
    %35 = arith.mulf %33, %34 : vector<192x256xf32>
    %cst_35 = arith.constant dense<0.000000e+00> : vector<192xf32>
    %36 = vector.multi_reduction <add>, %35, %cst_35 [1] : vector<192x256xf32> to vector<192xf32>
    %37 = vector.shape_cast %36 : vector<192xf32> to vector<192x1xf32>
    %cst_36 = arith.constant dense<0.000000e+00> : vector<1x192xf32>
    %38 = tpu.matmul %3, %33, %cst_36 {dimension_numbers = #tpu.dot_dimension_numbers<[1], [1], [0], [0], [0, 0, 1, 0], [], []>} : vector<1x256xf32>, vector<192x256xf32>, vector<1x192xf32> -> vector<1x192xf32>
    %39 = vector.broadcast %37 : vector<192x1xf32> to vector<192x192xf32>
    %40 = vector.broadcast %38 : vector<1x192xf32> to vector<192x192xf32>
    %41 = arith.addf %39, %40 : vector<192x192xf32>
    %cst_37 = arith.constant 0.000000e+00 : f32
    %42 = vector.broadcast %cst_37 : f32 to vector<192x192xf32>
    %43 = arith.cmpf ogt, %41, %42 : vector<192x192xf32>
    %cst_38 = arith.constant 2.000000e-01 : f32
    %44 = vector.broadcast %cst_38 : f32 to vector<192x192xf32>
    %45 = arith.mulf %44, %41 : vector<192x192xf32>
    %46 = arith.select %43, %41, %45 : vector<192x192xi1>, vector<192x192xf32>
    %cst_39 = arith.constant 0.000000e+00 : f32
    %47 = vector.broadcast %cst_39 : f32 to vector<192x192xf32>
    %48 = arith.cmpf ogt, %30, %47 : vector<192x192xf32>
    %cst_40 = arith.constant -1.000000e+30 : f32
    %49 = vector.broadcast %cst_40 : f32 to vector<192x192xf32>
    %50 = arith.select %48, %46, %49 : vector<192x192xi1>, vector<192x192xf32>
    %cst_41 = arith.constant dense<0xFF800000> : vector<192xf32>
    %51 = vector.multi_reduction <maximumf>, %50, %cst_41 [1] : vector<192x192xf32> to vector<192xf32>
    %52 = vector.shape_cast %51 : vector<192xf32> to vector<192x1xf32>
    %53 = vector.broadcast %52 : vector<192x1xf32> to vector<192x192xf32>
    %54 = arith.subf %50, %53 : vector<192x192xf32>
    %55 = math.exp %54 : vector<192x192xf32>
    %cst_42 = arith.constant dense<0.000000e+00> : vector<192xf32>
    %56 = vector.multi_reduction <add>, %55, %cst_42 [1] : vector<192x192xf32> to vector<192xf32>
    %57 = vector.shape_cast %56 : vector<192xf32> to vector<192x1xf32>
    %58 = tpu.reciprocal %57 {approx = true} : vector<192x1xf32> -> vector<192x1xf32>
    %59 = vector.broadcast %58 : vector<192x1xf32> to vector<192x192xf32>
    %60 = arith.mulf %55, %59 : vector<192x192xf32>
    %cst_43 = arith.constant dense<0.000000e+00> : vector<192x256xf32>
    %61 = tpu.matmul %60, %33, %cst_43 {dimension_numbers = #tpu.dot_dimension_numbers<[1], [0], [0], [1], [0, 0, 1, 1], [], []>} : vector<192x192xf32>, vector<192x256xf32>, vector<192x256xf32> -> vector<192x256xf32>
    %cst_44 = arith.constant 0.000000e+00 : f32
    %62 = vector.broadcast %cst_44 : f32 to vector<192x256xf32>
    %63 = arith.maximumf %61, %62 : vector<192x256xf32>
    %c0_45 = arith.constant 0 : index
    %c0_46 = arith.constant 0 : index
    %64 = vector.load %arg14[%c0_45, %c0_46] : memref<256x128xf32, #tpu.memory_space<vmem>>, vector<256x128xf32>
    %cst_47 = arith.constant dense<0.000000e+00> : vector<192x128xf32>
    %65 = tpu.matmul %63, %64, %cst_47 {dimension_numbers = #tpu.dot_dimension_numbers<[1], [0], [0], [1], [0, 0, 1, 1], [], []>} : vector<192x256xf32>, vector<256x128xf32>, vector<192x128xf32> -> vector<192x128xf32>
    %66 = vector.broadcast %4 : vector<1x128xf32> to vector<192x128xf32>
    %67 = arith.mulf %65, %66 : vector<192x128xf32>
    %cst_48 = arith.constant dense<0.000000e+00> : vector<192xf32>
    %68 = vector.multi_reduction <add>, %67, %cst_48 [1] : vector<192x128xf32> to vector<192xf32>
    %69 = vector.shape_cast %68 : vector<192xf32> to vector<192x1xf32>
    %cst_49 = arith.constant dense<0.000000e+00> : vector<1x192xf32>
    %70 = tpu.matmul %5, %65, %cst_49 {dimension_numbers = #tpu.dot_dimension_numbers<[1], [1], [0], [0], [0, 0, 1, 0], [], []>} : vector<1x128xf32>, vector<192x128xf32>, vector<1x192xf32> -> vector<1x192xf32>
    %71 = vector.broadcast %69 : vector<192x1xf32> to vector<192x192xf32>
    %72 = vector.broadcast %70 : vector<1x192xf32> to vector<192x192xf32>
    %73 = arith.addf %71, %72 : vector<192x192xf32>
    %cst_50 = arith.constant 0.000000e+00 : f32
    %74 = vector.broadcast %cst_50 : f32 to vector<192x192xf32>
    %75 = arith.cmpf ogt, %73, %74 : vector<192x192xf32>
    %cst_51 = arith.constant 2.000000e-01 : f32
    %76 = vector.broadcast %cst_51 : f32 to vector<192x192xf32>
    %77 = arith.mulf %76, %73 : vector<192x192xf32>
    %78 = arith.select %75, %73, %77 : vector<192x192xi1>, vector<192x192xf32>
    %cst_52 = arith.constant 0.000000e+00 : f32
    %79 = vector.broadcast %cst_52 : f32 to vector<192x192xf32>
    %80 = arith.cmpf ogt, %30, %79 : vector<192x192xf32>
    %cst_53 = arith.constant -1.000000e+30 : f32
    %81 = vector.broadcast %cst_53 : f32 to vector<192x192xf32>
    %82 = arith.select %80, %78, %81 : vector<192x192xi1>, vector<192x192xf32>
    %cst_54 = arith.constant dense<0xFF800000> : vector<192xf32>
    %83 = vector.multi_reduction <maximumf>, %82, %cst_54 [1] : vector<192x192xf32> to vector<192xf32>
    %84 = vector.shape_cast %83 : vector<192xf32> to vector<192x1xf32>
    %85 = vector.broadcast %84 : vector<192x1xf32> to vector<192x192xf32>
    %86 = arith.subf %82, %85 : vector<192x192xf32>
    %87 = math.exp %86 : vector<192x192xf32>
    %cst_55 = arith.constant dense<0.000000e+00> : vector<192xf32>
    %88 = vector.multi_reduction <add>, %87, %cst_55 [1] : vector<192x192xf32> to vector<192xf32>
    %89 = vector.shape_cast %88 : vector<192xf32> to vector<192x1xf32>
    %90 = tpu.reciprocal %89 {approx = true} : vector<192x1xf32> -> vector<192x1xf32>
    %91 = vector.broadcast %90 : vector<192x1xf32> to vector<192x192xf32>
    %92 = arith.mulf %87, %91 : vector<192x192xf32>
    %cst_56 = arith.constant dense<0.000000e+00> : vector<192x128xf32>
    %93 = tpu.matmul %92, %65, %cst_56 {dimension_numbers = #tpu.dot_dimension_numbers<[1], [0], [0], [1], [0, 0, 1, 1], [], []>} : vector<192x192xf32>, vector<192x128xf32>, vector<192x128xf32> -> vector<192x128xf32>
    %cst_57 = arith.constant 0.000000e+00 : f32
    %94 = vector.broadcast %cst_57 : f32 to vector<192x128xf32>
    %95 = arith.maximumf %93, %94 : vector<192x128xf32>
    %c0_58 = arith.constant 0 : index
    %c0_59 = arith.constant 0 : index
    %96 = vector.load %arg15[%c0_58, %c0_59] : memref<128x128xf32, #tpu.memory_space<vmem>>, vector<128x128xf32>
    %cst_60 = arith.constant dense<0.000000e+00> : vector<128x128xf32>
    %97 = tpu.matmul %29, %96, %cst_60 {dimension_numbers = #tpu.dot_dimension_numbers<[1], [0], [0], [1], [0, 0, 1, 1], [], []>} : vector<128x128xf32>, vector<128x128xf32>, vector<128x128xf32> -> vector<128x128xf32>
    %cst_61 = arith.constant dense<0.000000e+00> : vector<128x192xf32>
    %98 = tpu.matmul %97, %95, %cst_61 {dimension_numbers = #tpu.dot_dimension_numbers<[1], [1], [0], [0], [0, 0, 1, 0], [], []>} : vector<128x128xf32>, vector<192x128xf32>, vector<128x192xf32> -> vector<128x192xf32>
    %99 = math.tanh %98 : vector<128x192xf32>
    %c0_62 = arith.constant 0 : index
    %c0_63 = arith.constant 0 : index
    %100 = vector.load %arg6[%c0_62, %c0_63] : memref<128x192xf32, #tpu.memory_space<vmem>>, vector<128x192xf32>
    %101 = arith.mulf %99, %100 : vector<128x192xf32>
    %cst_64 = arith.constant dense<0.000000e+00> : vector<128xf32>
    %102 = vector.multi_reduction <add>, %101, %cst_64 [1] : vector<128x192xf32> to vector<128xf32>
    %103 = vector.shape_cast %102 : vector<128xf32> to vector<128x1xf32>
    %cst_65 = arith.constant 0.0416666679 : f32
    %104 = vector.broadcast %cst_65 : f32 to vector<128x1xf32>
    %105 = arith.mulf %103, %104 : vector<128x1xf32>
    %cst_66 = arith.constant dense<0.000000e+00> : vector<192xf32>
    %106 = vector.multi_reduction <add>, %101, %cst_66 [0] : vector<128x192xf32> to vector<192xf32>
    %107 = vector.shape_cast %106 : vector<192xf32> to vector<1x192xf32>
    %cst_67 = arith.constant 6.250000e-02 : f32
    %108 = vector.broadcast %cst_67 : f32 to vector<1x192xf32>
    %109 = arith.mulf %107, %108 : vector<1x192xf32>
    %c0_68 = arith.constant 0 : index
    %c0_69 = arith.constant 0 : index
    %110 = vector.load %arg7[%c0_68, %c0_69] : memref<8x128xf32, #tpu.memory_space<vmem>>, vector<8x128xf32>
    %c0_70 = arith.constant 0 : index
    %c0_71 = arith.constant 0 : index
    %111 = vector.load %arg8[%c0_70, %c0_71] : memref<8x192xf32, #tpu.memory_space<vmem>>, vector<8x192xf32>
    %112 = math.exp %105 : vector<128x1xf32>
    %113 = vector.broadcast %112 : vector<128x1xf32> to vector<128x128xf32>
    %114 = arith.mulf %113, %29 : vector<128x128xf32>
    %cst_72 = arith.constant dense<0.000000e+00> : vector<8x128xf32>
    %115 = tpu.matmul %110, %114, %cst_72 {dimension_numbers = #tpu.dot_dimension_numbers<[1], [0], [0], [1], [0, 0, 1, 1], [], []>} : vector<8x128xf32>, vector<128x128xf32>, vector<8x128xf32> -> vector<8x128xf32>
    %116 = vector.shape_cast %112 : vector<128x1xf32> to vector<128x1xf32>
    %117 = vector.broadcast %116 : vector<128x1xf32> to vector<128x128xf32>
    %cst_73 = arith.constant dense<0.000000e+00> : vector<8x128xf32>
    %118 = tpu.matmul %110, %117, %cst_73 {dimension_numbers = #tpu.dot_dimension_numbers<[1], [0], [0], [1], [0, 0, 1, 1], [], []>} : vector<8x128xf32>, vector<128x128xf32>, vector<8x128xf32> -> vector<8x128xf32>
    %119 = tpu.reciprocal %118 {approx = true} : vector<8x128xf32> -> vector<8x128xf32>
    %120 = arith.mulf %115, %119 : vector<8x128xf32>
    %121 = math.exp %109 : vector<1x192xf32>
    %122 = vector.broadcast %121 : vector<1x192xf32> to vector<8x192xf32>
    %123 = arith.mulf %111, %122 : vector<8x192xf32>
    %cst_74 = arith.constant dense<0.000000e+00> : vector<8x128xf32>
    %124 = tpu.matmul %123, %95, %cst_74 {dimension_numbers = #tpu.dot_dimension_numbers<[1], [0], [0], [1], [0, 0, 1, 1], [], []>} : vector<8x192xf32>, vector<192x128xf32>, vector<8x128xf32> -> vector<8x128xf32>
    %cst_75 = arith.constant dense<0.000000e+00> : vector<8xf32>
    %125 = vector.multi_reduction <add>, %123, %cst_75 [1] : vector<8x192xf32> to vector<8xf32>
    %126 = vector.shape_cast %125 : vector<8xf32> to vector<8x1xf32>
    %127 = tpu.reciprocal %126 {approx = true} : vector<8x1xf32> -> vector<8x1xf32>
    %128 = vector.broadcast %127 : vector<8x1xf32> to vector<8x128xf32>
    %129 = arith.mulf %124, %128 : vector<8x128xf32>
    %c0_76 = arith.constant 0 : index
    %c0_77 = arith.constant 0 : index
    %130 = vector.load %arg16[%c0_76, %c0_77] : memref<128x128xf32, #tpu.memory_space<vmem>>, vector<128x128xf32>
    %cst_78 = arith.constant dense<0.000000e+00> : vector<8x128xf32>
    %131 = tpu.matmul %120, %130, %cst_78 {dimension_numbers = #tpu.dot_dimension_numbers<[1], [0], [0], [1], [0, 0, 1, 1], [], []>} : vector<8x128xf32>, vector<128x128xf32>, vector<8x128xf32> -> vector<8x128xf32>
    %c0_79 = arith.constant 0 : index
    %c0_80 = arith.constant 0 : index
    %132 = vector.load %arg17[%c0_79, %c0_80] : memref<128x128xf32, #tpu.memory_space<vmem>>, vector<128x128xf32>
    %cst_81 = arith.constant dense<0.000000e+00> : vector<8x128xf32>
    %133 = tpu.matmul %129, %132, %cst_81 {dimension_numbers = #tpu.dot_dimension_numbers<[1], [0], [0], [1], [0, 0, 1, 1], [], []>} : vector<8x128xf32>, vector<128x128xf32>, vector<8x128xf32> -> vector<8x128xf32>
    %134 = arith.addf %131, %133 : vector<8x128xf32>
    %135 = vector.broadcast %6 : vector<1x128xf32> to vector<8x128xf32>
    %136 = arith.addf %134, %135 : vector<8x128xf32>
    %137 = arith.negf %136 : vector<8x128xf32>
    %138 = math.exp %137 : vector<8x128xf32>
    %cst_82 = arith.constant 1.000000e+00 : f32
    %139 = vector.broadcast %cst_82 : f32 to vector<8x128xf32>
    %140 = arith.addf %139, %138 : vector<8x128xf32>
    %141 = arith.divf %139, %140 : vector<8x128xf32>
    %c0_83 = arith.constant 0 : index
    %c0_84 = arith.constant 0 : index
    %142 = vector.load %arg19[%c0_83, %c0_84] : memref<8x128xf32, #tpu.memory_space<vmem>>, vector<8x128xf32>
    tpu.vector_store %arg19[%c0_83, %c0_84], %141 {strides = array<i32>} : memref<8x128xf32, #tpu.memory_space<vmem>>, vector<8x128xf32>,
    return
  }
  func.func @transform_0(%arg0: i32) -> (i32, i32) {
    %c0_i32 = arith.constant 0 : i32
    %c0_i32_0 = arith.constant 0 : i32
    return %arg0, %c0_i32 : i32, i32
  }
  func.func @transform_1(%arg0: i32) -> (i32, i32) {
    %c0_i32 = arith.constant 0 : i32
    %c0_i32_0 = arith.constant 0 : i32
    return %arg0, %c0_i32 : i32, i32
  }
  func.func @transform_2(%arg0: i32) -> (i32, i32) {
    %c0_i32 = arith.constant 0 : i32
    %c0_i32_0 = arith.constant 0 : i32
    return %arg0, %c0_i32 : i32, i32
  }
  func.func @transform_3(%arg0: i32) -> (i32, i32) {
    %c0_i32 = arith.constant 0 : i32
    %c0_i32_0 = arith.constant 0 : i32
    return %arg0, %c0_i32 : i32, i32
  }
  func.func @transform_4(%arg0: i32) -> (i32, i32) {
    %c0_i32 = arith.constant 0 : i32
    %c0_i32_0 = arith.constant 0 : i32
    return %arg0, %c0_i32 : i32, i32
  }
  func.func @transform_5(%arg0: i32) -> (i32, i32) {
    %c0_i32 = arith.constant 0 : i32
    %c0_i32_0 = arith.constant 0 : i32
    %c0_i32_1 = arith.constant 0 : i32
    return %c0_i32, %c0_i32_0 : i32, i32
  }
  func.func @transform_6(%arg0: i32) -> (i32, i32) {
    %c0_i32 = arith.constant 0 : i32
    %c0_i32_0 = arith.constant 0 : i32
    %c0_i32_1 = arith.constant 0 : i32
    return %c0_i32, %c0_i32_0 : i32, i32
  }
  func.func @transform_7(%arg0: i32) -> (i32, i32) {
    %c0_i32 = arith.constant 0 : i32
    %c0_i32_0 = arith.constant 0 : i32
    %c0_i32_1 = arith.constant 0 : i32
    return %c0_i32, %c0_i32_0 : i32, i32
  }
  func.func @transform_8(%arg0: i32) -> (i32, i32) {
    %c0_i32 = arith.constant 0 : i32
    %c0_i32_0 = arith.constant 0 : i32
    %c0_i32_1 = arith.constant 0 : i32
    return %c0_i32, %c0_i32_0 : i32, i32
  }
  func.func @transform_9(%arg0: i32) -> (i32, i32) {
    %c0_i32 = arith.constant 0 : i32
    %c0_i32_0 = arith.constant 0 : i32
    %c0_i32_1 = arith.constant 0 : i32
    return %c0_i32, %c0_i32_0 : i32, i32
  }
  func.func @transform_10(%arg0: i32) -> (i32, i32) {
    %c0_i32 = arith.constant 0 : i32
    %c0_i32_0 = arith.constant 0 : i32
    %c0_i32_1 = arith.constant 0 : i32
    return %c0_i32, %c0_i32_0 : i32, i32
  }
  func.func @transform_11(%arg0: i32) -> (i32, i32) {
    %c0_i32 = arith.constant 0 : i32
    %c0_i32_0 = arith.constant 0 : i32
    %c0_i32_1 = arith.constant 0 : i32
    return %c0_i32, %c0_i32_0 : i32, i32
  }
  func.func @transform_12(%arg0: i32) -> (i32, i32) {
    %c0_i32 = arith.constant 0 : i32
    %c0_i32_0 = arith.constant 0 : i32
    %c0_i32_1 = arith.constant 0 : i32
    return %c0_i32, %c0_i32_0 : i32, i32
  }
  func.func @transform_13(%arg0: i32) -> (i32, i32) {
    %c0_i32 = arith.constant 0 : i32
    %c0_i32_0 = arith.constant 0 : i32
    %c0_i32_1 = arith.constant 0 : i32
    return %c0_i32, %c0_i32_0 : i32, i32
  }
  func.func @transform_14(%arg0: i32) -> (i32, i32) {
    %c0_i32 = arith.constant 0 : i32
    %c0_i32_0 = arith.constant 0 : i32
    %c0_i32_1 = arith.constant 0 : i32
    return %c0_i32, %c0_i32_0 : i32, i32
  }
  func.func @transform_15(%arg0: i32) -> (i32, i32) {
    %c0_i32 = arith.constant 0 : i32
    %c0_i32_0 = arith.constant 0 : i32
    %c0_i32_1 = arith.constant 0 : i32
    return %c0_i32, %c0_i32_0 : i32, i32
  }
  func.func @transform_16(%arg0: i32) -> (i32, i32) {
    %c0_i32 = arith.constant 0 : i32
    %c0_i32_0 = arith.constant 0 : i32
    %c0_i32_1 = arith.constant 0 : i32
    return %c0_i32, %c0_i32_0 : i32, i32
  }
  func.func @transform_17(%arg0: i32) -> (i32, i32) {
    %c0_i32 = arith.constant 0 : i32
    %c0_i32_0 = arith.constant 0 : i32
    %c0_i32_1 = arith.constant 0 : i32
    return %c0_i32, %c0_i32_0 : i32, i32
  }
  func.func @transform_18(%arg0: i32) -> (i32, i32) {
    %c0_i32 = arith.constant 0 : i32
    %c0_i32_0 = arith.constant 0 : i32
    return %arg0, %c0_i32 : i32, i32
  }
}

</mosaic_0001>

<llo_original>
// kernel: gch_fin_forward.1
$region0: #{gch_fin_forward.1}
  #allocation0 [shape = 'u32[]', space=smem, size = 0x4, offset = 0x4, fixed_abs, tag = 'smem constant byte address 0x4 - core index']
  #allocation1 [shape = 'u32[144,128]{1,0:T(1,128)}', space=vmem, size = 0x12000, scoped, tag = 'internal scratch']
  %s0 = inlined_call_operand.vmem [shape: f32[256,40], index: 0, kind: input, shape index: {}]
  %s1 = inlined_call_operand.vmem [shape: f32[256,128], index: 1, kind: input, shape index: {}]
  %s2 = inlined_call_operand.vmem [shape: f32[256,8], index: 2, kind: input, shape index: {}]
  %s3 = inlined_call_operand.vmem [shape: f32[384,480], index: 3, kind: input, shape index: {}]
  %s4 = inlined_call_operand.vmem [shape: f32[384,192], index: 4, kind: input, shape index: {}]
  %s5 = inlined_call_operand.vmem [shape: f32[128,192], index: 5, kind: input, shape index: {}]
  %s6 = inlined_call_operand.vmem [shape: f32[8,128], index: 6, kind: input, shape index: {}]
  %s7 = inlined_call_operand.vmem [shape: f32[8,192], index: 7, kind: input, shape index: {}]
  %s8 = inlined_call_operand.vmem [shape: f32[40,128], index: 8, kind: input, shape index: {}]
  %s9 = inlined_call_operand.vmem [shape: f32[8,128], index: 9, kind: input, shape index: {}]
  %s10 = inlined_call_operand.vmem [shape: f32[128,128], index: 10, kind: input, shape index: {}]
  %s11 = inlined_call_operand.vmem [shape: f32[8,128], index: 11, kind: input, shape index: {}]
  %s12 = inlined_call_operand.vmem [shape: f32[480,256], index: 12, kind: input, shape index: {}]
  %s13 = inlined_call_operand.vmem [shape: f32[256,128], index: 13, kind: input, shape index: {}]
  %s14 = inlined_call_operand.vmem [shape: f32[128,128], index: 14, kind: input, shape index: {}]
  %s15 = inlined_call_operand.vmem [shape: f32[128,128], index: 15, kind: input, shape index: {}]
  %s16 = inlined_call_operand.vmem [shape: f32[128,128], index: 16, kind: input, shape index: {}]
  %s17 = inlined_call_operand.vmem [shape: f32[1,1152], index: 17, kind: input, shape index: {}]
  %s18 = inlined_call_operand.vmem [shape: f32[16,128], index: 18, kind: output, shape index: {}]
  %s19 = sld [smem:[#allocation0]]
  $region105: #{gch_fin_forward.1} parent=0
    _
  %s21 = ssub.s32 1, %s19
  %s22 = scalar_select 0, %s21, %s19
  loop: start=0, step=1, limit=4
  $region2: #{gch_fin_forward.1} parent=0 // loop_pre_header
    _
  $region3: #{gch_fin_forward.1} parent=0 // loop_header
    %s24 = sphi 0, %s28
    %p25 = scmp.ge.s32.totalorder %s24, 4
    %s34 = sphi 0, %s36
    %s37 = sphi 0, %s34
    %s38 = sphi 0, %s37
    %s54 = sphi 0, %s38
    %s60 = sphi 0, %s62
    %s63 = sphi 0, %s60
    %s64 = sphi 0, %s63
    %s80 = sphi 0, %s64
    %s86 = sphi 0, %s88
    %s89 = sphi 0, %s86
    %s90 = sphi 0, %s89
    %s106 = sphi 0, %s90
    %s112 = sphi 0, %s114
    %s115 = sphi 0, %s112
    %s116 = sphi 0, %s115
    %s132 = sphi 0, %s116
    %s138 = sphi 0, %s140
    %s141 = sphi 0, %s138
    %s142 = sphi 0, %s141
    %s158 = sphi 0, %s142
    %s162 = sphi 0, %s162
    %s164 = sphi 0, %s162
    %s165 = sphi 0, %s164
    %s179 = sphi 0, %s165
    %s183 = sphi 0, %s183
    %s185 = sphi 0, %s183
    %s186 = sphi 0, %s185
    %s200 = sphi 0, %s186
    %s204 = sphi 0, %s204
    %s206 = sphi 0, %s204
    %s207 = sphi 0, %s206
    %s221 = sphi 0, %s207
    %s225 = sphi 0, %s225
    %s227 = sphi 0, %s225
    %s228 = sphi 0, %s227
    %s242 = sphi 0, %s228
    %s246 = sphi 0, %s246
    %s248 = sphi 0, %s246
    %s249 = sphi 0, %s248
    %s263 = sphi 0, %s249
    %s267 = sphi 0, %s267
    %s269 = sphi 0, %s267
    %s270 = sphi 0, %s269
    %s284 = sphi 0, %s270
    %s288 = sphi 0, %s288
    %s290 = sphi 0, %s288
    %s291 = sphi 0, %s290
    %s305 = sphi 0, %s291
    %s309 = sphi 0, %s309
    %s311 = sphi 0, %s309
    %s312 = sphi 0, %s311
    %s326 = sphi 0, %s312
    %s330 = sphi 0, %s330
    %s332 = sphi 0, %s330
    %s333 = sphi 0, %s332
    %s347 = sphi 0, %s333
    %s351 = sphi 0, %s351
    %s353 = sphi 0, %s351
    %s354 = sphi 0, %s353
    %s368 = sphi 0, %s354
    %s372 = sphi 0, %s372
    %s374 = sphi 0, %s372
    %s375 = sphi 0, %s374
    %s389 = sphi 0, %s375
    %s393 = sphi 0, %s393
    %s395 = sphi 0, %s393
    %s396 = sphi 0, %s395
    %s410 = sphi 0, %s396
    %s414 = sphi 0, %s414
    %s416 = sphi 0, %s414
    %s417 = sphi 0, %s416
    %s431 = sphi 0, %s417
    %s437 = sphi 0, %s439
    %s440 = sphi 0, %s437
    %s441 = sphi 0, %s440
    %s457 = sphi 0, %s441
  $region4: #{gch_fin_forward.1} parent=0 // loop_header_branch
    %27 = sbr.rel (%p25) target = $region8
  $region5: #{gch_fin_forward.1} parent=0 // loop_body
    %s29 = ssub.s32 %s24, 1
    %s30 = ssub.s32 %s24, 2
    %s31 = sadd.s32 %s24, 1
    %s32 = ssub.s32 %s24, %s31
    %p33 = scmp.eq.s32.totalorder %s32, 0
    %s35 = sadd.s32 %s34, 1
    %s36 = scalar_select %p33, %s34, %s35
    %p39 = pneg %p33
    %p40 = scmp.eq.s32.totalorder %s24, 1
    %p41 = por %p39, %p40
    %p42 = scmp.ne.s32.totalorder %s34, %s37
    %p43 = scmp.eq.s32.totalorder %s24, 0
    %p44 = por %p42, %p43
    %p45 = scmp.ne.s32.totalorder %s34, %s37
    %p46 = scmp.eq.s32.totalorder %s29, 1
    %p47 = por %p45, %p46
    %p48 = scmp.ne.s32.totalorder %s37, %s38
    %p49 = scmp.eq.s32.totalorder %s29, 0
    %p50 = por %p48, %p49
    %p51 = scmp.ne.s32.totalorder %s37, %s38
    %p52 = scmp.eq.s32.totalorder %s30, 1
    %p53 = por %p51, %p52
    %p55 = scmp.ne.s32.totalorder %s38, %s54
    %p56 = scmp.eq.s32.totalorder %s30, 0
    %p57 = por %p55, %p56
    %s58 = ssub.s32 %s24, %s31
    %p59 = scmp.eq.s32.totalorder %s58, 0
    %s61 = sadd.s32 %s60, 1
    %s62 = scalar_select %p59, %s60, %s61
    %p65 = pneg %p59
    %p66 = scmp.eq.s32.totalorder %s24, 1
    %p67 = por %p65, %p66
    %p68 = scmp.ne.s32.totalorder %s60, %s63
    %p69 = scmp.eq.s32.totalorder %s24, 0
    %p70 = por %p68, %p69
    %p71 = scmp.ne.s32.totalorder %s60, %s63
    %p72 = scmp.eq.s32.totalorder %s29, 1
    %p73 = por %p71, %p72
    %p74 = scmp.ne.s32.totalorder %s63, %s64
    %p75 = scmp.eq.s32.totalorder %s29, 0
    %p76 = por %p74, %p75
    %p77 = scmp.ne.s32.totalorder %s63, %s64
    %p78 = scmp.eq.s32.totalorder %s30, 1
    %p79 = por %p77, %p78
    %p81 = scmp.ne.s32.totalorder %s64, %s80
    %p82 = scmp.eq.s32.totalorder %s30, 0
    %p83 = por %p81, %p82
    %s84 = ssub.s32 %s24, %s31
    %p85 = scmp.eq.s32.totalorder %s84, 0
    %s87 = sadd.s32 %s86, 1
    %s88 = scalar_select %p85, %s86, %s87
    %p91 = pneg %p85
    %p92 = scmp.eq.s32.totalorder %s24, 1
    %p93 = por %p91, %p92
    %p94 = scmp.ne.s32.totalorder %s86, %s89
    %p95 = scmp.eq.s32.totalorder %s24, 0
    %p96 = por %p94, %p95
    %p97 = scmp.ne.s32.totalorder %s86, %s89
    %p98 = scmp.eq.s32.totalorder %s29, 1
    %p99 = por %p97, %p98
    %p100 = scmp.ne.s32.totalorder %s89, %s90
    %p101 = scmp.eq.s32.totalorder %s29, 0
    %p102 = por %p100, %p101
    %p103 = scmp.ne.s32.totalorder %s89, %s90
    %p104 = scmp.eq.s32.totalorder %s30, 1
    %p105 = por %p103, %p104
    %p107 = scmp.ne.s32.totalorder %s90, %s106
    %p108 = scmp.eq.s32.totalorder %s30, 0
    %p109 = por %p107, %p108
    %s110 = ssub.s32 %s24, %s31
    %p111 = scmp.eq.s32.totalorder %s110, 0
    %s113 = sadd.s32 %s112, 1
    %s114 = scalar_select %p111, %s112, %s113
    %p117 = pneg %p111
    %p118 = scmp.eq.s32.totalorder %s24, 1
    %p119 = por %p117, %p118
    %p120 = scmp.ne.s32.totalorder %s112, %s115
    %p121 = scmp.eq.s32.totalorder %s24, 0
    %p122 = por %p120, %p121
    %p123 = scmp.ne.s32.totalorder %s112, %s115
    %p124 = scmp.eq.s32.totalorder %s29, 1
    %p125 = por %p123, %p124
    %p126 = scmp.ne.s32.totalorder %s115, %s116
    %p127 = scmp.eq.s32.totalorder %s29, 0
    %p128 = por %p126, %p127
    %p129 = scmp.ne.s32.totalorder %s115, %s116
    %p130 = scmp.eq.s32.totalorder %s30, 1
    %p131 = por %p129, %p130
    %p133 = scmp.ne.s32.totalorder %s116, %s132
    %p134 = scmp.eq.s32.totalorder %s30, 0
    %p135 = por %p133, %p134
    %s136 = ssub.s32 %s24, %s31
    %p137 = scmp.eq.s32.totalorder %s136, 0
    %s139 = sadd.s32 %s138, 1
    %s140 = scalar_select %p137, %s138, %s139
    %p143 = pneg %p137
    %p144 = scmp.eq.s32.totalorder %s24, 1
    %p145 = por %p143, %p144
    %p146 = scmp.ne.s32.totalorder %s138, %s141
    %p147 = scmp.eq.s32.totalorder %s24, 0
    %p148 = por %p146, %p147
    %p149 = scmp.ne.s32.totalorder %s138, %s141
    %p150 = scmp.eq.s32.totalorder %s29, 1
    %p151 = por %p149, %p150
    %p152 = scmp.ne.s32.totalorder %s141, %s142
    %p153 = scmp.eq.s32.totalorder %s29, 0
    %p154 = por %p152, %p153
    %p155 = scmp.ne.s32.totalorder %s141, %s142
    %p156 = scmp.eq.s32.totalorder %s30, 1
    %p157 = por %p155, %p156
    %p159 = scmp.ne.s32.totalorder %s142, %s158
    %p160 = scmp.eq.s32.totalorder %s30, 0
    %p161 = por %p159, %p160
    %s163 = sadd.s32 %s162, 1
    %p166 = scmp.eq.s32.totalorder %s24, 1
    %p167 = scmp.ne.s32.totalorder %s162, %s164
    %p168 = scmp.eq.s32.totalorder %s24, 0
    %p169 = por %p167, %p168
    %p170 = scmp.ne.s32.totalorder %s162, %s164
    %p171 = scmp.eq.s32.totalorder %s29, 1
    %p172 = por %p170, %p171
    %p173 = scmp.ne.s32.totalorder %s164, %s165
    %p174 = scmp.eq.s32.totalorder %s29, 0
    %p175 = por %p173, %p174
    %p176 = scmp.ne.s32.totalorder %s164, %s165
    %p177 = scmp.eq.s32.totalorder %s30, 1
    %p178 = por %p176, %p177
    %p180 = scmp.ne.s32.totalorder %s165, %s179
    %p181 = scmp.eq.s32.totalorder %s30, 0
    %p182 = por %p180, %p181
    %s184 = sadd.s32 %s183, 1
    %p187 = scmp.eq.s32.totalorder %s24, 1
    %p188 = scmp.ne.s32.totalorder %s183, %s185
    %p189 = scmp.eq.s32.totalorder %s24, 0
    %p190 = por %p188, %p189
    %p191 = scmp.ne.s32.totalorder %s183, %s185
    %p192 = scmp.eq.s32.totalorder %s29, 1
    %p193 = por %p191, %p192
    %p194 = scmp.ne.s32.totalorder %s185, %s186
    %p195 = scmp.eq.s32.totalorder %s29, 0
    %p196 = por %p194, %p195
    %p197 = scmp.ne.s32.totalorder %s185, %s186
    %p198 = scmp.eq.s32.totalorder %s30, 1
    %p199 = por %p197, %p198
    %p201 = scmp.ne.s32.totalorder %s186, %s200
    %p202 = scmp.eq.s32.totalorder %s30, 0
    %p203 = por %p201, %p202
    %s205 = sadd.s32 %s204, 1
    %p208 = scmp.eq.s32.totalorder %s24, 1
    %p209 = scmp.ne.s32.totalorder %s204, %s206
    %p210 = scmp.eq.s32.totalorder %s24, 0
    %p211 = por %p209, %p210
    %p212 = scmp.ne.s32.totalorder %s204, %s206
    %p213 = scmp.eq.s32.totalorder %s29, 1
    %p214 = por %p212, %p213
    %p215 = scmp.ne.s32.totalorder %s206, %s207
    %p216 = scmp.eq.s32.totalorder %s29, 0
    %p217 = por %p215, %p216
    %p218 = scmp.ne.s32.totalorder %s206, %s207
    %p219 = scmp.eq.s32.totalorder %s30, 1
    %p220 = por %p218, %p219
    %p222 = scmp.ne.s32.totalorder %s207, %s221
    %p223 = scmp.eq.s32.totalorder %s30, 0
    %p224 = por %p222, %p223
    %s226 = sadd.s32 %s225, 1
    %p229 = scmp.eq.s32.totalorder %s24, 1
    %p230 = scmp.ne.s32.totalorder %s225, %s227
    %p231 = scmp.eq.s32.totalorder %s24, 0
    %p232 = por %p230, %p231
    %p233 = scmp.ne.s32.totalorder %s225, %s227
    %p234 = scmp.eq.s32.totalorder %s29, 1
    %p235 = por %p233, %p234
    %p236 = scmp.ne.s32.totalorder %s227, %s228
    %p237 = scmp.eq.s32.totalorder %s29, 0
    %p238 = por %p236, %p237
    %p239 = scmp.ne.s32.totalorder %s227, %s228
    %p240 = scmp.eq.s32.totalorder %s30, 1
    %p241 = por %p239, %p240
    %p243 = scmp.ne.s32.totalorder %s228, %s242
    %p244 = scmp.eq.s32.totalorder %s30, 0
    %p245 = por %p243, %p244
    %s247 = sadd.s32 %s246, 1
    %p250 = scmp.eq.s32.totalorder %s24, 1
    %p251 = scmp.ne.s32.totalorder %s246, %s248
    %p252 = scmp.eq.s32.totalorder %s24, 0
    %p253 = por %p251, %p252
    %p254 = scmp.ne.s32.totalorder %s246, %s248
    %p255 = scmp.eq.s32.totalorder %s29, 1
    %p256 = por %p254, %p255
    %p257 = scmp.ne.s32.totalorder %s248, %s249
    %p258 = scmp.eq.s32.totalorder %s29, 0
    %p259 = por %p257, %p258
    %p260 = scmp.ne.s32.totalorder %s248, %s249
    %p261 = scmp.eq.s32.totalorder %s30, 1
    %p262 = por %p260, %p261
    %p264 = scmp.ne.s32.totalorder %s249, %s263
    %p265 = scmp.eq.s32.totalorder %s30, 0
    %p266 = por %p264, %p265
    %s268 = sadd.s32 %s267, 1
    %p271 = scmp.eq.s32.totalorder %s24, 1
    %p272 = scmp.ne.s32.totalorder %s267, %s269
    %p273 = scmp.eq.s32.totalorder %s24, 0
    %p274 = por %p272, %p273
    %p275 = scmp.ne.s32.totalorder %s267, %s269
    %p276 = scmp.eq.s32.totalorder %s29, 1
    %p277 = por %p275, %p276
    %p278 = scmp.ne.s32.totalorder %s269, %s270
    %p279 = scmp.eq.s32.totalorder %s29, 0
    %p280 = por %p278, %p279
    %p281 = scmp.ne.s32.totalorder %s269, %s270
    %p282 = scmp.eq.s32.totalorder %s30, 1
    %p283 = por %p281, %p282
    %p285 = scmp.ne.s32.totalorder %s270, %s284
    %p286 = scmp.eq.s32.totalorder %s30, 0
    %p287 = por %p285, %p286
    %s289 = sadd.s32 %s288, 1
    %p292 = scmp.eq.s32.totalorder %s24, 1
    %p293 = scmp.ne.s32.totalorder %s288, %s290
    %p294 = scmp.eq.s32.totalorder %s24, 0
    %p295 = por %p293, %p294
    %p296 = scmp.ne.s32.totalorder %s288, %s290
    %p297 = scmp.eq.s32.totalorder %s29, 1
    %p298 = por %p296, %p297
    %p299 = scmp.ne.s32.totalorder %s290, %s291
    %p300 = scmp.eq.s32.totalorder %s29, 0
    %p301 = por %p299, %p300
    %p302 = scmp.ne.s32.totalorder %s290, %s291
    %p303 = scmp.eq.s32.totalorder %s30, 1
    %p304 = por %p302, %p303
    %p306 = scmp.ne.s32.totalorder %s291, %s305
    %p307 = scmp.eq.s32.totalorder %s30, 0
    %p308 = por %p306, %p307
    %s310 = sadd.s32 %s309, 1
    %p313 = scmp.eq.s32.totalorder %s24, 1
    %p314 = scmp.ne.s32.totalorder %s309, %s311
    %p315 = scmp.eq.s32.totalorder %s24, 0
    %p316 = por %p314, %p315
    %p317 = scmp.ne.s32.totalorder %s309, %s311
    %p318 = scmp.eq.s32.totalorder %s29, 1
    %p319 = por %p317, %p318
    %p320 = scmp.ne.s32.totalorder %s311, %s312
    %p321 = scmp.eq.s32.totalorder %s29, 0
    %p322 = por %p320, %p321
    %p323 = scmp.ne.s32.totalorder %s311, %s312
    %p324 = scmp.eq.s32.totalorder %s30, 1
    %p325 = por %p323, %p324
    %p327 = scmp.ne.s32.totalorder %s312, %s326
    %p328 = scmp.eq.s32.totalorder %s30, 0
    %p329 = por %p327, %p328
    %s331 = sadd.s32 %s330, 1
    %p334 = scmp.eq.s32.totalorder %s24, 1
    %p335 = scmp.ne.s32.totalorder %s330, %s332
    %p336 = scmp.eq.s32.totalorder %s24, 0
    %p337 = por %p335, %p336
    %p338 = scmp.ne.s32.totalorder %s330, %s332
    %p339 = scmp.eq.s32.totalorder %s29, 1
    %p340 = por %p338, %p339
    %p341 = scmp.ne.s32.totalorder %s332, %s333
    %p342 = scmp.eq.s32.totalorder %s29, 0
    %p343 = por %p341, %p342
    %p344 = scmp.ne.s32.totalorder %s332, %s333
    %p345 = scmp.eq.s32.totalorder %s30, 1
    %p346 = por %p344, %p345
    %p348 = scmp.ne.s32.totalorder %s333, %s347
    %p349 = scmp.eq.s32.totalorder %s30, 0
    %p350 = por %p348, %p349
    %s352 = sadd.s32 %s351, 1
    %p355 = scmp.eq.s32.totalorder %s24, 1
    %p356 = scmp.ne.s32.totalorder %s351, %s353
    %p357 = scmp.eq.s32.totalorder %s24, 0
    %p358 = por %p356, %p357
    %p359 = scmp.ne.s32.totalorder %s351, %s353
    %p360 = scmp.eq.s32.totalorder %s29, 1
    %p361 = por %p359, %p360
    %p362 = scmp.ne.s32.totalorder %s353, %s354
    %p363 = scmp.eq.s32.totalorder %s29, 0
    %p364 = por %p362, %p363
    %p365 = scmp.ne.s32.totalorder %s353, %s354
    %p366 = scmp.eq.s32.totalorder %s30, 1
    %p367 = por %p365, %p366
    %p369 = scmp.ne.s32.totalorder %s354, %s368
    %p370 = scmp.eq.s32.totalorder %s30, 0
    %p371 = por %p369, %p370
    %s373 = sadd.s32 %s372, 1
    %p376 = scmp.eq.s32.totalorder %s24, 1
    %p377 = scmp.ne.s32.totalorder %s372, %s374
    %p378 = scmp.eq.s32.totalorder %s24, 0
    %p379 = por %p377, %p378
    %p380 = scmp.ne.s32.totalorder %s372, %s374
    %p381 = scmp.eq.s32.totalorder %s29, 1
    %p382 = por %p380, %p381
    %p383 = scmp.ne.s32.totalorder %s374, %s375
    %p384 = scmp.eq.s32.totalorder %s29, 0
    %p385 = por %p383, %p384
    %p386 = scmp.ne.s32.totalorder %s374, %s375
    %p387 = scmp.eq.s32.totalorder %s30, 1
    %p388 = por %p386, %p387
    %p390 = scmp.ne.s32.totalorder %s375, %s389
    %p391 = scmp.eq.s32.totalorder %s30, 0
    %p392 = por %p390, %p391
    %s394 = sadd.s32 %s393, 1
    %p397 = scmp.eq.s32.totalorder %s24, 1
    %p398 = scmp.ne.s32.totalorder %s393, %s395
    %p399 = scmp.eq.s32.totalorder %s24, 0
    %p400 = por %p398, %p399
    %p401 = scmp.ne.s32.totalorder %s393, %s395
    %p402 = scmp.eq.s32.totalorder %s29, 1
    %p403 = por %p401, %p402
    %p404 = scmp.ne.s32.totalorder %s395, %s396
    %p405 = scmp.eq.s32.totalorder %s29, 0
    %p406 = por %p404, %p405
    %p407 = scmp.ne.s32.totalorder %s395, %s396
    %p408 = scmp.eq.s32.totalorder %s30, 1
    %p409 = por %p407, %p408
    %p411 = scmp.ne.s32.totalorder %s396, %s410
    %p412 = scmp.eq.s32.totalorder %s30, 0
    %p413 = por %p411, %p412
    %s415 = sadd.s32 %s414, 1
    %p418 = scmp.eq.s32.totalorder %s24, 1
    %p419 = scmp.ne.s32.totalorder %s414, %s416
    %p420 = scmp.eq.s32.totalorder %s24, 0
    %p421 = por %p419, %p420
    %p422 = scmp.ne.s32.totalorder %s414, %s416
    %p423 = scmp.eq.s32.totalorder %s29, 1
    %p424 = por %p422, %p423
    %p425 = scmp.ne.s32.totalorder %s416, %s417
    %p426 = scmp.eq.s32.totalorder %s29, 0
    %p427 = por %p425, %p426
    %p428 = scmp.ne.s32.totalorder %s416, %s417
    %p429 = scmp.eq.s32.totalorder %s30, 1
    %p430 = por %p428, %p429
    %p432 = scmp.ne.s32.totalorder %s417, %s431
    %p433 = scmp.eq.s32.totalorder %s30, 0
    %p434 = por %p432, %p433
    %s435 = ssub.s32 %s24, %s31
    %p436 = scmp.eq.s32.totalorder %s435, 0
    %s438 = sadd.s32 %s437, 1
    %s439 = scalar_select %p436, %s437, %s438
    %p442 = pneg %p436
    %p443 = scmp.eq.s32.totalorder %s24, 1
    %p444 = por %p442, %p443
    %p445 = scmp.ne.s32.totalorder %s437, %s440
    %p446 = scmp.eq.s32.totalorder %s24, 0
    %p447 = por %p445, %p446
    %p448 = scmp.ne.s32.totalorder %s437, %s440
    %p449 = scmp.eq.s32.totalorder %s29, 1
    %p450 = por %p448, %p449
    %p451 = scmp.ne.s32.totalorder %s440, %s441
    %p452 = scmp.eq.s32.totalorder %s29, 0
    %p453 = por %p451, %p452
    %p454 = scmp.ne.s32.totalorder %s440, %s441
    %p455 = scmp.eq.s32.totalorder %s30, 1
    %p456 = por %p454, %p455
    %p458 = scmp.ne.s32.totalorder %s441, %s457
    %p459 = scmp.eq.s32.totalorder %s30, 0
    %p460 = por %p458, %p459
    %p461 = scmp.le.s32.totalorder 1, %s24
    %p462 = scmp.lt.s32.totalorder %s24, 3
    %p463 = pnand %p461, %p462
    %p464 = pneg %p463
    // Predicated region
    $region9: #{gch_fin_forward.1} parent=5 // pred_check
      _
    $region10: #{gch_fin_forward.1} parent=5 // pred_check_branch
      %466 = sbr.rel (%p463) target = $region12
    $region11: #{gch_fin_forward.1} parent=5 // pred_region
      %s467 = ssub.s32 %s24, 1
      // Predicated region
      $region13: #{gch_fin_forward.1} parent=11 // pred_check
        %p468 = pneg %p175
      $region14: #{gch_fin_forward.1} parent=11 // pred_check_branch
        %470 = sbr.rel (%p468) target = $region16
      $region15: #{gch_fin_forward.1} parent=11 // pred_region
        _
      $region16: #{gch_fin_forward.1} parent=11 // pred_fallthru
        _
      // Predicated region
      $region17: #{gch_fin_forward.1} parent=11 // pred_check
        %p471 = pneg %p196
      $region18: #{gch_fin_forward.1} parent=11 // pred_check_branch
        %473 = sbr.rel (%p471) target = $region20
      $region19: #{gch_fin_forward.1} parent=11 // pred_region
        _
      $region20: #{gch_fin_forward.1} parent=11 // pred_fallthru
        _
      // Predicated region
      $region21: #{gch_fin_forward.1} parent=11 // pred_check
        %p474 = pneg %p217
      $region22: #{gch_fin_forward.1} parent=11 // pred_check_branch
        %476 = sbr.rel (%p474) target = $region24
      $region23: #{gch_fin_forward.1} parent=11 // pred_region
        _
      $region24: #{gch_fin_forward.1} parent=11 // pred_fallthru
        _
      // Predicated region
      $region25: #{gch_fin_forward.1} parent=11 // pred_check
        %p477 = pneg %p238
      $region26: #{gch_fin_forward.1} parent=11 // pred_check_branch
        %479 = sbr.rel (%p477) target = $region28
      $region27: #{gch_fin_forward.1} parent=11 // pred_region
        _
      $region28: #{gch_fin_forward.1} parent=11 // pred_fallthru
        _
      // Predicated region
      $region29: #{gch_fin_forward.1} parent=11 // pred_check
        %p480 = pneg %p259
      $region30: #{gch_fin_forward.1} parent=11 // pred_check_branch
        %482 = sbr.rel (%p480) target = $region32
      $region31: #{gch_fin_forward.1} parent=11 // pred_region
        _
      $region32: #{gch_fin_forward.1} parent=11 // pred_fallthru
        _
      // Predicated region
      $region33: #{gch_fin_forward.1} parent=11 // pred_check
        %p483 = pneg %p280
      $region34: #{gch_fin_forward.1} parent=11 // pred_check_branch
        %485 = sbr.rel (%p483) target = $region36
      $region35: #{gch_fin_forward.1} parent=11 // pred_region
        _
      $region36: #{gch_fin_forward.1} parent=11 // pred_fallthru
        _
      // Predicated region
      $region37: #{gch_fin_forward.1} parent=11 // pred_check
        %p486 = pneg %p301
      $region38: #{gch_fin_forward.1} parent=11 // pred_check_branch
        %488 = sbr.rel (%p486) target = $region40
      $region39: #{gch_fin_forward.1} parent=11 // pred_region
        _
      $region40: #{gch_fin_forward.1} parent=11 // pred_fallthru
        _
      // Predicated region
      $region41: #{gch_fin_forward.1} parent=11 // pred_check
        %p489 = pneg %p322
      $region42: #{gch_fin_forward.1} parent=11 // pred_check_branch
        %491 = sbr.rel (%p489) target = $region44
      $region43: #{gch_fin_forward.1} parent=11 // pred_region
        _
      $region44: #{gch_fin_forward.1} parent=11 // pred_fallthru
        _
      // Predicated region
      $region45: #{gch_fin_forward.1} parent=11 // pred_check
        %p492 = pneg %p343
      $region46: #{gch_fin_forward.1} parent=11 // pred_check_branch
        %494 = sbr.rel (%p492) target = $region48
      $region47: #{gch_fin_forward.1} parent=11 // pred_region
        _
      $region48: #{gch_fin_forward.1} parent=11 // pred_fallthru
        _
      // Predicated region
      $region49: #{gch_fin_forward.1} parent=11 // pred_check
        %p495 = pneg %p364
      $region50: #{gch_fin_forward.1} parent=11 // pred_check_branch
        %497 = sbr.rel (%p495) target = $region52
      $region51: #{gch_fin_forward.1} parent=11 // pred_region
        _
      $region52: #{gch_fin_forward.1} parent=11 // pred_fallthru
        _
      // Predicated region
      $region53: #{gch_fin_forward.1} parent=11 // pred_check
        %p498 = pneg %p385
      $region54: #{gch_fin_forward.1} parent=11 // pred_check_branch
        %500 = sbr.rel (%p498) target = $region56
      $region55: #{gch_fin_forward.1} parent=11 // pred_region
        _
      $region56: #{gch_fin_forward.1} parent=11 // pred_fallthru
        _
      // Predicated region
      $region57: #{gch_fin_forward.1} parent=11 // pred_check
        %p501 = pneg %p406
      $region58: #{gch_fin_forward.1} parent=11 // pred_check_branch
        %503 = sbr.rel (%p501) target = $region60
      $region59: #{gch_fin_forward.1} parent=11 // pred_region
        _
      $region60: #{gch_fin_forward.1} parent=11 // pred_fallthru
        _
      // Predicated region
      $region61: #{gch_fin_forward.1} parent=11 // pred_check
        %p504 = pneg %p427
      $region62: #{gch_fin_forward.1} parent=11 // pred_check_branch
        %506 = sbr.rel (%p504) target = $region64
      $region63: #{gch_fin_forward.1} parent=11 // pred_region
        _
      $region64: #{gch_fin_forward.1} parent=11 // pred_fallthru
        _
    $region12: #{gch_fin_forward.1} parent=5 // pred_fallthru
      _
    %p507 = scmp.lt.s32.totalorder %s24, 2
    // Predicated region
    $region65: #{gch_fin_forward.1} parent=5 // pred_check
      %p508 = pneg %p507
    $region66: #{gch_fin_forward.1} parent=5 // pred_check_branch
      %510 = sbr.rel (%p508) target = $region68
    $region67: #{gch_fin_forward.1} parent=5 // pred_region
      // Predicated region
      $region69: #{gch_fin_forward.1} parent=67 // pred_check
        %p511 = pneg %p44
      $region70: #{gch_fin_forward.1} parent=67 // pred_check_branch
        %513 = sbr.rel (%p511) target = $region72
      $region71: #{gch_fin_forward.1} parent=67 // pred_region
        %s514 = smul.u32 16, %s24
        %p515 = scmp.lt.s32.totalorder %s514, 31
        %s516 = scalar_select %p515, %s514, 31
        %s517 = smul.addr %s516, 8
        %s518 = scalar_lea.vmem %s0, %s517
        %s519 = smul.u32 16, %s24
      $region72: #{gch_fin_forward.1} parent=67 // pred_fallthru
        _
      // Predicated region
      $region73: #{gch_fin_forward.1} parent=67 // pred_check
        %p520 = pneg %p70
      $region74: #{gch_fin_forward.1} parent=67 // pred_check_branch
        %522 = sbr.rel (%p520) target = $region76
      $region75: #{gch_fin_forward.1} parent=67 // pred_region
        %s523 = smul.u32 16, %s24
        %p524 = scmp.lt.s32.totalorder %s523, 31
        %s525 = scalar_select %p524, %s523, 31
        %s526 = smul.addr %s525, 8
        %s527 = scalar_lea.vmem %s1, %s526
        %s528 = smul.u32 16, %s24
      $region76: #{gch_fin_forward.1} parent=67 // pred_fallthru
        _
      // Predicated region
      $region77: #{gch_fin_forward.1} parent=67 // pred_check
        %p529 = pneg %p96
      $region78: #{gch_fin_forward.1} parent=67 // pred_check_branch
        %531 = sbr.rel (%p529) target = $region80
      $region79: #{gch_fin_forward.1} parent=67 // pred_region
        %s532 = smul.u32 16, %s24
        %p533 = scmp.lt.s32.totalorder %s532, 31
        %s534 = scalar_select %p533, %s532, 31
        %s535 = smul.addr %s534, 8
        %s536 = scalar_lea.vmem %s2, %s535
        %s537 = smul.u32 16, %s24
      $region80: #{gch_fin_forward.1} parent=67 // pred_fallthru
        _
      // Predicated region
      $region81: #{gch_fin_forward.1} parent=67 // pred_check
        %p538 = pneg %p122
      $region82: #{gch_fin_forward.1} parent=67 // pred_check_branch
        %540 = sbr.rel (%p538) target = $region84
      $region83: #{gch_fin_forward.1} parent=67 // pred_region
        %s541 = smul.u32 24, %s24
        %p542 = scmp.lt.s32.totalorder %s541, 47
        %s543 = scalar_select %p542, %s541, 47
        %s544 = smul.addr %s543, 4
        %s545 = smul.addr %s544, 8
        %s546 = scalar_lea.vmem %s3, %s545
        %s547 = smul.u32 24, %s24
      $region84: #{gch_fin_forward.1} parent=67 // pred_fallthru
        _
      // Predicated region
      $region85: #{gch_fin_forward.1} parent=67 // pred_check
        %p548 = pneg %p148
      $region86: #{gch_fin_forward.1} parent=67 // pred_check_branch
        %550 = sbr.rel (%p548) target = $region88
      $region87: #{gch_fin_forward.1} parent=67 // pred_region
        %s551 = smul.u32 24, %s24
        %p552 = scmp.lt.s32.totalorder %s551, 47
        %s553 = scalar_select %p552, %s551, 47
        %s554 = smul.addr %s553, 2
        %s555 = smul.addr %s554, 8
        %s556 = scalar_lea.vmem %s4, %s555
        %s557 = smul.u32 24, %s24
      $region88: #{gch_fin_forward.1} parent=67 // pred_fallthru
        _
    $region68: #{gch_fin_forward.1} parent=5 // pred_fallthru
      _
    %p558 = scmp.le.s32.totalorder 1, %s24
    %p559 = scmp.lt.s32.totalorder %s24, 3
    %p560 = pnand %p558, %p559
    %p561 = pneg %p560
    // Predicated region
    $region89: #{gch_fin_forward.1} parent=5 // pred_check
      _
    $region90: #{gch_fin_forward.1} parent=5 // pred_check_branch
      %563 = sbr.rel (%p560) target = $region92
    $region91: #{gch_fin_forward.1} parent=5 // pred_region
      %s564 = ssub.s32 %s24, 1
      %s565 = smul.u32 16, %s29
      %p566 = scmp.lt.s32.totalorder %s565, 31
      %s567 = scalar_select %p566, %s565, 31
      %s568 = smul.addr %s567, 8
      %s569 = scalar_lea.vmem %s0, %s568
      %p570 = pneg %p50
      %p571 = pneg %p47
      %s572 = smul.u32 16, %s29
      %p573 = scmp.lt.s32.totalorder %s572, 31
      %s574 = scalar_select %p573, %s572, 31
      %s575 = smul.addr %s574, 8
      %s576 = scalar_lea.vmem %s1, %s575
      %p577 = pneg %p76
      %p578 = pneg %p73
      %s579 = smul.u32 16, %s29
      %p580 = scmp.lt.s32.totalorder %s579, 31
      %s581 = scalar_select %p580, %s579, 31
      %s582 = smul.addr %s581, 8
      %s583 = scalar_lea.vmem %s2, %s582
      %p584 = pneg %p102
      %p585 = pneg %p99
      %s586 = smul.u32 24, %s29
      %p587 = scmp.lt.s32.totalorder %s586, 47
      %s588 = scalar_select %p587, %s586, 47
      %s589 = smul.addr %s588, 4
      %s590 = smul.addr %s589, 8
      %s591 = scalar_lea.vmem %s3, %s590
      %p592 = pneg %p128
      %p593 = pneg %p125
      %s594 = smul.u32 24, %s29
      %p595 = scmp.lt.s32.totalorder %s594, 47
      %s596 = scalar_select %p595, %s594, 47
      %s597 = smul.addr %s596, 2
      %s598 = smul.addr %s597, 8
      %s599 = scalar_lea.vmem %s4, %s598
      %p600 = pneg %p154
      %p601 = pneg %p151
      %p602 = pneg %p175
      %p603 = pneg %p172
      %p604 = pneg %p196
      %p605 = pneg %p193
      %p606 = pneg %p217
      %p607 = pneg %p214
      %p608 = pneg %p238
      %p609 = pneg %p235
      %p610 = pneg %p259
      %p611 = pneg %p256
      %p612 = pneg %p280
      %p613 = pneg %p277
      %p614 = pneg %p301
      %p615 = pneg %p298
      %p616 = pneg %p322
      %p617 = pneg %p319
      %p618 = pneg %p343
      %p619 = pneg %p340
      %p620 = pneg %p364
      %p621 = pneg %p361
      %p622 = pneg %p385
      %p623 = pneg %p382
      %p624 = pneg %p406
      %p625 = pneg %p403
      %p626 = pneg %p427
      %p627 = pneg %p424
      %p628 = pneg %p453
      %p629 = pneg %p450
      %p630 = scmp.lt.s32.totalorder %s29, 1
      %s631 = scalar_select %p630, %s29, 1
      %s632 = smul.addr %s631, 8
      %s633 = scalar_lea.vmem %s18, %s632
      %s634 = smul.u32 16, %s29
      %p635 = scmp.lt.s32.totalorder %s634, 31
      %s636 = scalar_select %p635, %s634, 31
      %s637 = smul.addr %s636, 8
      %s638 = scalar_lea.vmem %s0, %s637
      %s639 = smul.u32 16, %s29
      %s640 = smul.u32 16, %s29
      %p641 = scmp.lt.s32.totalorder %s640, 31
      %s642 = scalar_select %p641, %s640, 31
      %s643 = smul.addr %s642, 8
      %s644 = scalar_lea.vmem %s1, %s643
      %s645 = smul.u32 16, %s29
      %s646 = smul.u32 16, %s29
      %p647 = scmp.lt.s32.totalorder %s646, 31
      %s648 = scalar_select %p647, %s646, 31
      %s649 = smul.addr %s648, 8
      %s650 = scalar_lea.vmem %s2, %s649
      %s651 = smul.u32 16, %s29
      %s652 = smul.u32 24, %s29
      %p653 = scmp.lt.s32.totalorder %s652, 47
      %s654 = scalar_select %p653, %s652, 47
      %s655 = smul.addr %s654, 4
      %s656 = smul.addr %s655, 8
      %s657 = scalar_lea.vmem %s3, %s656
      %s658 = smul.u32 24, %s29
      %s659 = smul.u32 24, %s29
      %p660 = scmp.lt.s32.totalorder %s659, 47
      %s661 = scalar_select %p660, %s659, 47
      %s662 = smul.addr %s661, 2
      %s663 = smul.addr %s662, 8
      %s664 = scalar_lea.vmem %s4, %s663
      %s665 = smul.u32 24, %s29
      %p666 = scmp.lt.s32.totalorder %s29, 1
      %s667 = scalar_select %p666, %s29, 1
      %s668 = smul.addr %s667, 8
      %s669 = scalar_lea.vmem %s18, %s668
      %v670 = vld [vmem:[%s17] sm:$0x1]
      %v671 = vld [vmem:[%s17 + $0x1] sm:$0x1]
      %v672 = vld [vmem:[%s17 + $0x2] sm:$0x3]
      %v673 = vld [vmem:[%s17 + $0x4] sm:$0x3]
      %v674 = vld [vmem:[%s17 + $0x6] sm:$0x1]
      %v675 = vld [vmem:[%s17 + $0x7] sm:$0x1]
      %v676 = vld [vmem:[%s17 + $0x8] sm:$0x1]
      %v677 = vld [vmem:[%s644] sm:$0xff]
      %v678 = vld [vmem:[%s644 + $0x8] sm:$0xff]
      %v679 = vld [vmem:[%s644 + $0x10] sm:$0xff]
      %v680 = vld [vmem:[%s644 + $0x18] sm:$0xff]
      %v681 = vld [vmem:[%s644 + $0x20] sm:$0xff]
      %v682 = vld [vmem:[%s644 + $0x28] sm:$0xff]
      %v683 = vld [vmem:[%s644 + $0x30] sm:$0xff]
      %v684 = vld [vmem:[%s644 + $0x38] sm:$0xff]
      %v685 = vld [vmem:[%s644 + $0x40] sm:$0xff]
      %v686 = vld [vmem:[%s644 + $0x48] sm:$0xff]
      %v687 = vld [vmem:[%s644 + $0x50] sm:$0xff]
      %v688 = vld [vmem:[%s644 + $0x58] sm:$0xff]
      %v689 = vld [vmem:[%s644 + $0x60] sm:$0xff]
      %v690 = vld [vmem:[%s644 + $0x68] sm:$0xff]
      %v691 = vld [vmem:[%s644 + $0x70] sm:$0xff]
      %v692 = vld [vmem:[%s644 + $0x78] sm:$0xff]
      %v693 = vld [vmem:[%s650] sm:$0xff]
      %v694 = vld [vmem:[%s650 + $0x8] sm:$0xff]
      %v695 = vld [vmem:[%s650 + $0x10] sm:$0xff]
      %v696 = vld [vmem:[%s650 + $0x18] sm:$0xff]
      %v697 = vld [vmem:[%s650 + $0x20] sm:$0xff]
      %v698 = vld [vmem:[%s650 + $0x28] sm:$0xff]
      %v699 = vld [vmem:[%s650 + $0x30] sm:$0xff]
      %v700 = vld [vmem:[%s650 + $0x38] sm:$0xff]
      %v701 = vld [vmem:[%s650 + $0x40] sm:$0xff]
      %v702 = vld [vmem:[%s650 + $0x48] sm:$0xff]
      %v703 = vld [vmem:[%s650 + $0x50] sm:$0xff]
      %v704 = vld [vmem:[%s650 + $0x58] sm:$0xff]
      %v705 = vld [vmem:[%s650 + $0x60] sm:$0xff]
      %v706 = vld [vmem:[%s650 + $0x68] sm:$0xff]
      %v707 = vld [vmem:[%s650 + $0x70] sm:$0xff]
      %v708 = vld [vmem:[%s650 + $0x78] sm:$0xff]
      %v709 = vld [vmem:[%s638] sm:$0xff]
      %v710 = vld [vmem:[%s638 + $0x8] sm:$0xff]
      %v711 = vld [vmem:[%s638 + $0x10] sm:$0xff]
      %v712 = vld [vmem:[%s638 + $0x18] sm:$0xff]
      %v713 = vld [vmem:[%s638 + $0x20] sm:$0xff]
      %v714 = vld [vmem:[%s638 + $0x28] sm:$0xff]
      %v715 = vld [vmem:[%s638 + $0x30] sm:$0xff]
      %v716 = vld [vmem:[%s638 + $0x38] sm:$0xff]
      %v717 = vld [vmem:[%s638 + $0x40] sm:$0xff]
      %v718 = vld [vmem:[%s638 + $0x48] sm:$0xff]
      %v719 = vld [vmem:[%s638 + $0x50] sm:$0xff]
      %v720 = vld [vmem:[%s638 + $0x58] sm:$0xff]
      %v721 = vld [vmem:[%s638 + $0x60] sm:$0xff]
      %v722 = vld [vmem:[%s638 + $0x68] sm:$0xff]
      %v723 = vld [vmem:[%s638 + $0x70] sm:$0xff]
      %v724 = vld [vmem:[%s638 + $0x78] sm:$0xff]
      %725 = vmatprep.subr.mxu0 0.0
      %726 = vmatpush1.msra.mxu0 %v709
      %727 = vmatprep.subr.mxu0 0.0
      %728 = vmatpush1.msra.mxu0 %v710
      %729 = vmatprep.subr.mxu0 0.0
      %730 = vmatpush1.msra.mxu0 %v711
      %731 = vmatprep.subr.mxu0 0.0
      %732 = vmatpush1.msra.mxu0 %v712
      %733 = vmatprep.subr.mxu0 0.0
      %734 = vmatpush1.msra.mxu0 %v713
      %735 = vmatprep.subr.mxu0 0.0
      %736 = vmatpush1.msra.mxu0 %v714
      %737 = vmatprep.subr.mxu0 0.0
      %738 = vmatpush1.msra.mxu0 %v715
      %739 = vmatprep.subr.mxu0 0.0
      %740 = vmatpush1.msra.mxu0 %v716
      %741 = vmatprep.subr.mxu0 0.0
      %742 = vmatpush1.msra.mxu0 %v717
      %743 = vmatprep.subr.mxu0 0.0
      %744 = vmatpush1.msra.mxu0 %v718
      %745 = vmatprep.subr.mxu0 0.0
      %746 = vmatpush1.msra.mxu0 %v719
      %747 = vmatprep.subr.mxu0 0.0
      %748 = vmatpush1.msra.mxu0 %v720
      %749 = vmatprep.subr.mxu0 0.0
      %750 = vmatpush1.msra.mxu0 %v721
      %751 = vmatprep.subr.mxu0 0.0
      %752 = vmatpush1.msra.mxu0 %v722
      %753 = vmatprep.subr.mxu0 0.0
      %754 = vmatpush1.msra.mxu0 %v723
      %755 = vmatprep.subr.mxu0 0.0
      %756 = vmatpush1.msra.mxu0 %v724
      %757 = vmatprep.subr.mxu0 0.0
      %758 = vmatpush1.msra.mxu0 0.0
      %759 = vmatprep.subr.mxu0 0.0
      %760 = vmatpush1.msra.mxu0 0.0
      %761 = vmatprep.subr.mxu0 0.0
      %762 = vmatpush1.msra.mxu0 0.0
      %763 = vmatprep.subr.mxu0 0.0
      %764 = vmatpush1.msra.mxu0 0.0
      %765 = vmatprep.subr.mxu0 0.0
      %766 = vmatpush1.msra.mxu0 0.0
      %767 = vmatprep.subr.mxu0 0.0
      %768 = vmatpush1.msra.mxu0 0.0
      %769 = vmatprep.subr.mxu0 0.0
      %770 = vmatpush1.msra.mxu0 0.0
      %771 = vmatprep.subr.mxu0 0.0
      %772 = vmatpush1.msra.mxu0 0.0
      %773 = vmatprep.subr.mxu0 0.0
      %774 = vmatpush1.msra.mxu0 0.0
      %775 = vmatprep.subr.mxu0 0.0
      %776 = vmatpush1.msra.mxu0 0.0
      %777 = vmatprep.subr.mxu0 0.0
      %778 = vmatpush1.msra.mxu0 0.0
      %779 = vmatprep.subr.mxu0 0.0
      %780 = vmatpush1.msra.mxu0 0.0
      %781 = vmatprep.subr.mxu0 0.0
      %782 = vmatpush1.msra.mxu0 0.0
      %783 = vmatprep.subr.mxu0 0.0
      %784 = vmatpush1.msra.mxu0 0.0
      %785 = vmatprep.subr.mxu0 0.0
      %786 = vmatpush1.msra.mxu0 0.0
      %787 = vmatprep.subr.mxu0 0.0
      %788 = vmatpush1.msra.mxu0 0.0
      %789 = vmatprep.mubr.f32.mxu0 0.0
      %790 = vmatmul.mubr.f32.gmra.mrb[0].mxu0 %v677
      %v791 = vpop.f32.mrb[0].mxu0
      %v792 = vadd.f32 0.0, %v791
      %v793 = vpop.f32.mrb[0].mxu0
      %794 = vmatprep.mubr.f32.mxu0 0.0
      %795 = vmatmul.mubr.f32.gmra.mrb[0].mxu0 %v678
      %v796 = vpop.f32.mrb[0].mxu0
      %v797 = vadd.f32 0.0, %v796
      %v798 = vpop.f32.mrb[0].mxu0
      %799 = vmatprep.mubr.f32.mxu0 0.0
      %800 = vmatmul.mubr.f32.gmra.mrb[0].mxu0 %v679
      %v801 = vpop.f32.mrb[0].mxu0
      %v802 = vadd.f32 0.0, %v801
      %v803 = vpop.f32.mrb[0].mxu0
      %804 = vmatprep.mubr.f32.mxu0 0.0
      %805 = vmatmul.mubr.f32.gmra.mrb[0].mxu0 %v680
      %v806 = vpop.f32.mrb[0].mxu0
      %v807 = vadd.f32 0.0, %v806
      %v808 = vpop.f32.mrb[0].mxu0
      %809 = vmatprep.mubr.f32.mxu0 0.0
      %810 = vmatmul.mubr.f32.gmra.mrb[0].mxu0 %v681
      %v811 = vpop.f32.mrb[0].mxu0
      %v812 = vadd.f32 0.0, %v811
      %v813 = vpop.f32.mrb[0].mxu0
      %814 = vmatprep.mubr.f32.mxu0 0.0
      %815 = vmatmul.mubr.f32.gmra.mrb[0].mxu0 %v682
      %v816 = vpop.f32.mrb[0].mxu0
      %v817 = vadd.f32 0.0, %v816
      %v818 = vpop.f32.mrb[0].mxu0
      %819 = vmatprep.mubr.f32.mxu0 0.0
      %820 = vmatmul.mubr.f32.gmra.mrb[0].mxu0 %v683
      %v821 = vpop.f32.mrb[0].mxu0
      %v822 = vadd.f32 0.0, %v821
      %v823 = vpop.f32.mrb[0].mxu0
      %824 = vmatprep.mubr.f32.mxu0 0.0
      %825 = vmatmul.mubr.f32.gmra.mrb[0].mxu0 %v684
      %v826 = vpop.f32.mrb[0].mxu0
      %v827 = vadd.f32 0.0, %v826
      %v828 = vpop.f32.mrb[0].mxu0
      %829 = vmatprep.mubr.f32.mxu0 0.0
      %830 = vmatmul.mubr.f32.gmra.mrb[0].mxu0 %v685
      %v831 = vpop.f32.mrb[0].mxu0
      %v832 = vadd.f32 0.0, %v831
      %v833 = vpop.f32.mrb[0].mxu0
      %834 = vmatprep.mubr.f32.mxu0 0.0
      %835 = vmatmul.mubr.f32.gmra.mrb[0].mxu0 %v686
      %v836 = vpop.f32.mrb[0].mxu0
      %v837 = vadd.f32 0.0, %v836
      %v838 = vpop.f32.mrb[0].mxu0
      %839 = vmatprep.mubr.f32.mxu0 0.0
      %840 = vmatmul.mubr.f32.gmra.mrb[0].mxu0 %v687
      %v841 = vpop.f32.mrb[0].mxu0
      %v842 = vadd.f32 0.0, %v841
      %v843 = vpop.f32.mrb[0].mxu0
      %844 = vmatprep.mubr.f32.mxu0 0.0
      %845 = vmatmul.mubr.f32.gmra.mrb[0].mxu0 %v688
      %v846 = vpop.f32.mrb[0].mxu0
      %v847 = vadd.f32 0.0, %v846
      %v848 = vpop.f32.mrb[0].mxu0
      %849 = vmatprep.mubr.f32.mxu0 0.0
      %850 = vmatmul.mubr.f32.gmra.mrb[0].mxu0 %v689
      %v851 = vpop.f32.mrb[0].mxu0
      %v852 = vadd.f32 0.0, %v851
      %v853 = vpop.f32.mrb[0].mxu0
      %854 = vmatprep.mubr.f32.mxu0 0.0
      %855 = vmatmul.mubr.f32.gmra.mrb[0].mxu0 %v690
      %v856 = vpop.f32.mrb[0].mxu0
      %v857 = vadd.f32 0.0, %v856
      %v858 = vpop.f32.mrb[0].mxu0
      %859 = vmatprep.mubr.f32.mxu0 0.0
      %860 = vmatmul.mubr.f32.gmra.mrb[0].mxu0 %v691
      %v861 = vpop.f32.mrb[0].mxu0
      %v862 = vadd.f32 0.0, %v861
      %v863 = vpop.f32.mrb[0].mxu0
      %864 = vmatprep.mubr.f32.mxu0 0.0
      %865 = vmatmul.mubr.f32.gmra.mrb[0].mxu0 %v692
      %v866 = vpop.f32.mrb[0].mxu0
      %v867 = vadd.f32 0.0, %v866
      %v868 = vpop.f32.mrb[0].mxu0
      %869 = vdwg.mxu0
      %v870 = vld [vmem:[%s8] sm:$0xff]
      %v871 = vld [vmem:[%s8 + $0x8] sm:$0xff]
      %v872 = vld [vmem:[%s8 + $0x10] sm:$0xff]
      %v873 = vld [vmem:[%s8 + $0x18] sm:$0xff]
      %v874 = vld [vmem:[%s8 + $0x20] sm:$0xff]
      %v875 = vld [vmem:[%s9] sm:$0xff]
      %vm876 = vcmask 64512
      %v878 = vsel %vm876, %v693, 0
      %v881 = vsel %vm876, %v694, 0
      %v884 = vsel %vm876, %v695, 0
      %v887 = vsel %vm876, %v696, 0
      %v890 = vsel %vm876, %v697, 0
      %v893 = vsel %vm876, %v698, 0
      %v896 = vsel %vm876, %v699, 0
      %v899 = vsel %vm876, %v700, 0
      %v902 = vsel %vm876, %v701, 0
      %v905 = vsel %vm876, %v702, 0
      %v908 = vsel %vm876, %v703, 0
      %v911 = vsel %vm876, %v704, 0
      %v914 = vsel %vm876, %v705, 0
      %v917 = vsel %vm876, %v706, 0
      %v920 = vsel %vm876, %v707, 0
      %v923 = vsel %vm876, %v708, 0
      %925 = vmatprep.subr.mxu0 0.0
      %926 = vmatpush1.msra.mxu0 %v875
      %927 = vmatprep.subr.mxu0 0.0
      %928 = vmatpush1.msra.mxu0 0.0
      %929 = vmatprep.subr.mxu0 0.0
      %930 = vmatpush1.msra.mxu0 0.0
      %931 = vmatprep.subr.mxu0 0.0
      %932 = vmatpush1.msra.mxu0 0.0
      %933 = vmatprep.subr.mxu0 0.0
      %934 = vmatpush1.msra.mxu0 0.0
      %935 = vmatprep.subr.mxu0 0.0
      %936 = vmatpush1.msra.mxu0 0.0
      %937 = vmatprep.subr.mxu0 0.0
      %938 = vmatpush1.msra.mxu0 0.0
      %939 = vmatprep.subr.mxu0 0.0
      %940 = vmatpush1.msra.mxu0 0.0
      %941 = vmatprep.subr.mxu0 0.0
      %942 = vmatpush1.msra.mxu0 0.0
      %943 = vmatprep.subr.mxu0 0.0
      %944 = vmatpush1.msra.mxu0 0.0
      %945 = vmatprep.subr.mxu0 0.0
      %946 = vmatpush1.msra.mxu0 0.0
      %947 = vmatprep.subr.mxu0 0.0
      %948 = vmatpush1.msra.mxu0 0.0
      %949 = vmatprep.subr.mxu0 0.0
      %950 = vmatpush1.msra.mxu0 0.0
      %951 = vmatprep.subr.mxu0 0.0
      %952 = vmatpush1.msra.mxu0 0.0
      %953 = vmatprep.subr.mxu0 0.0
      %954 = vmatpush1.msra.mxu0 0.0
      %955 = vmatprep.subr.mxu0 0.0
      %956 = vmatpush1.msra.mxu0 0.0
      %957 = vmatprep.subr.mxu0 0.0
      %958 = vmatpush1.msra.mxu0 0.0
      %959 = vmatprep.subr.mxu0 0.0
      %960 = vmatpush1.msra.mxu0 0.0
      %961 = vmatprep.subr.mxu0 0.0
      %962 = vmatpush1.msra.mxu0 0.0
      %963 = vmatprep.subr.mxu0 0.0
      %964 = vmatpush1.msra.mxu0 0.0
      %965 = vmatprep.subr.mxu0 0.0
      %966 = vmatpush1.msra.mxu0 0.0
      %967 = vmatprep.subr.mxu0 0.0
      %968 = vmatpush1.msra.mxu0 0.0
      %969 = vmatprep.subr.mxu0 0.0
      %970 = vmatpush1.msra.mxu0 0.0
      %971 = vmatprep.subr.mxu0 0.0
      %972 = vmatpush1.msra.mxu0 0.0
      %973 = vmatprep.subr.mxu0 0.0
      %974 = vmatpush1.msra.mxu0 0.0
      %975 = vmatprep.subr.mxu0 0.0
      %976 = vmatpush1.msra.mxu0 0.0
      %977 = vmatprep.subr.mxu0 0.0
      %978 = vmatpush1.msra.mxu0 0.0
      %979 = vmatprep.subr.mxu0 0.0
      %980 = vmatpush1.msra.mxu0 0.0
      %981 = vmatprep.subr.mxu0 0.0
      %982 = vmatpush1.msra.mxu0 0.0
      %983 = vmatprep.subr.mxu0 0.0
      %984 = vmatpush1.msra.mxu0 0.0
      %985 = vmatprep.subr.mxu0 0.0
      %986 = vmatpush1.msra.mxu0 0.0
      %987 = vmatprep.subr.mxu0 0.0
      %988 = vmatpush1.msra.mxu0 0.0
      %989 = vmatprep.mubr.f32.mxu0 0.0
      %990 = vmatmul.mubr.f32.gmra.mrb[0].mxu0 %v878
      %v991 = vpop.f32.mrb[0].mxu0
      %v992 = vadd.f32 0.0, %v991
      %v993 = vpop.f32.mrb[0].mxu0
      %994 = vmatprep.mubr.f32.mxu0 0.0
      %995 = vmatmul.mubr.f32.gmra.mrb[0].mxu0 %v881
      %v996 = vpop.f32.mrb[0].mxu0
      %v997 = vadd.f32 0.0, %v996
      %v998 = vpop.f32.mrb[0].mxu0
      %999 = vmatprep.mubr.f32.mxu0 0.0
      %1000 = vmatmul.mubr.f32.gmra.mrb[0].mxu0 %v884
      %v1001 = vpop.f32.mrb[0].mxu0
      %v1002 = vadd.f32 0.0, %v1001
      %v1003 = vpop.f32.mrb[0].mxu0
      %1004 = vmatprep.mubr.f32.mxu0 0.0
      %1005 = vmatmul.mubr.f32.gmra.mrb[0].mxu0 %v887
      %v1006 = vpop.f32.mrb[0].mxu0
      %v1007 = vadd.f32 0.0, %v1006
      %v1008 = vpop.f32.mrb[0].mxu0
      %1009 = vmatprep.mubr.f32.mxu0 0.0
      %1010 = vmatmul.mubr.f32.gmra.mrb[0].mxu0 %v890
      %v1011 = vpop.f32.mrb[0].mxu0
      %v1012 = vadd.f32 0.0, %v1011
      %v1013 = vpop.f32.mrb[0].mxu0
      %1014 = vmatprep.mubr.f32.mxu0 0.0
      %1015 = vmatmul.mubr.f32.gmra.mrb[0].mxu0 %v893
      %v1016 = vpop.f32.mrb[0].mxu0
      %v1017 = vadd.f32 0.0, %v1016
      %v1018 = vpop.f32.mrb[0].mxu0
      %1019 = vmatprep.mubr.f32.mxu0 0.0
      %1020 = vmatmul.mubr.f32.gmra.mrb[0].mxu0 %v896
      %v1021 = vpop.f32.mrb[0].mxu0
      %v1022 = vadd.f32 0.0, %v1021
      %v1023 = vpop.f32.mrb[0].mxu0
      %1024 = vmatprep.mubr.f32.mxu0 0.0
      %1025 = vmatmul.mubr.f32.gmra.mrb[0].mxu0 %v899
      %v1026 = vpop.f32.mrb[0].mxu0
      %v1027 = vadd.f32 0.0, %v1026
      %v1028 = vpop.f32.mrb[0].mxu0
      %1029 = vmatprep.mubr.f32.mxu0 0.0
      %1030 = vmatmul.mubr.f32.gmra.mrb[0].mxu0 %v902
      %v1031 = vpop.f32.mrb[0].mxu0
      %v1032 = vadd.f32 0.0, %v1031
      %v1033 = vpop.f32.mrb[0].mxu0
      %1034 = vmatprep.mubr.f32.mxu0 0.0
      %1035 = vmatmul.mubr.f32.gmra.mrb[0].mxu0 %v905
      %v1036 = vpop.f32.mrb[0].mxu0
      %v1037 = vadd.f32 0.0, %v1036
      %v1038 = vpop.f32.mrb[0].mxu0
      %1039 = vmatprep.mubr.f32.mxu0 0.0
      %1040 = vmatmul.mubr.f32.gmra.mrb[0].mxu0 %v908
      %v1041 = vpop.f32.mrb[0].mxu0
      %v1042 = vadd.f32 0.0, %v1041
      %v1043 = vpop.f32.mrb[0].mxu0
      %1044 = vmatprep.mubr.f32.mxu0 0.0
      %1045 = vmatmul.mubr.f32.gmra.mrb[0].mxu0 %v911
      %v1046 = vpop.f32.mrb[0].mxu0
      %v1047 = vadd.f32 0.0, %v1046
      %v1048 = vpop.f32.mrb[0].mxu0
      %1049 = vmatprep.mubr.f32.mxu0 0.0
      %1050 = vmatmul.mubr.f32.gmra.mrb[0].mxu0 %v914
      %v1051 = vpop.f32.mrb[0].mxu0
      %v1052 = vadd.f32 0.0, %v1051
      %v1053 = vpop.f32.mrb[0].mxu0
      %1054 = vmatprep.mubr.f32.mxu0 0.0
      %1055 = vmatmul.mubr.f32.gmra.mrb[0].mxu0 %v917
      %v1056 = vpop.f32.mrb[0].mxu0
      %v1057 = vadd.f32 0.0, %v1056
      %v1058 = vpop.f32.mrb[0].mxu0
      %1059 = vmatprep.mubr.f32.mxu0 0.0
      %1060 = vmatmul.mubr.f32.gmra.mrb[0].mxu0 %v920
      %v1061 = vpop.f32.mrb[0].mxu0
      %v1062 = vadd.f32 0.0, %v1061
      %v1063 = vpop.f32.mrb[0].mxu0
      %1064 = vmatprep.mubr.f32.mxu0 0.0
      %1065 = vmatmul.mubr.f32.gmra.mrb[0].mxu0 %v923
      %v1066 = vpop.f32.mrb[0].mxu0
      %v1067 = vadd.f32 0.0, %v1066
      %v1068 = vpop.f32.mrb[0].mxu0
      %1069 = vdwg.mxu0
      %vm1070 = vcmask 326656
      %v1072 = vsel %vm1070, %v792, 0
      %v1075 = vsel %vm1070, %v797, 0
      %v1078 = vsel %vm1070, %v802, 0
      %v1081 = vsel %vm1070, %v807, 0
      %v1084 = vsel %vm1070, %v812, 0
      %v1087 = vsel %vm1070, %v817, 0
      %v1090 = vsel %vm1070, %v822, 0
      %v1093 = vsel %vm1070, %v827, 0
      %v1096 = vsel %vm1070, %v832, 0
      %v1099 = vsel %vm1070, %v837, 0
      %v1102 = vsel %vm1070, %v842, 0
      %v1105 = vsel %vm1070, %v847, 0
      %v1108 = vsel %vm1070, %v852, 0
      %v1111 = vsel %vm1070, %v857, 0
      %v1114 = vsel %vm1070, %v862, 0
      %v1117 = vsel %vm1070, %v867, 0
      %1119 = vmatprep.subr.mxu0 0.0
      %1120 = vmatpush1.msra.mxu0 %v870
      %1121 = vmatprep.subr.mxu0 0.0
      %1122 = vmatpush1.msra.mxu0 %v871
      %1123 = vmatprep.subr.mxu0 0.0
      %1124 = vmatpush1.msra.mxu0 %v872
      %1125 = vmatprep.subr.mxu0 0.0
      %1126 = vmatpush1.msra.mxu0 %v873
      %1127 = vmatprep.subr.mxu0 0.0
      %1128 = vmatpush1.msra.mxu0 %v874
      %1129 = vmatprep.subr.mxu0 0.0
      %1130 = vmatpush1.msra.mxu0 0.0
      %1131 = vmatprep.subr.mxu0 0.0
      %1132 = vmatpush1.msra.mxu0 0.0
      %1133 = vmatprep.subr.mxu0 0.0
      %1134 = vmatpush1.msra.mxu0 0.0
      %1135 = vmatprep.subr.mxu0 0.0
      %1136 = vmatpush1.msra.mxu0 0.0
      %1137 = vmatprep.subr.mxu0 0.0
      %1138 = vmatpush1.msra.mxu0 0.0
      %1139 = vmatprep.subr.mxu0 0.0
      %1140 = vmatpush1.msra.mxu0 0.0
      %1141 = vmatprep.subr.mxu0 0.0
      %1142 = vmatpush1.msra.mxu0 0.0
      %1143 = vmatprep.subr.mxu0 0.0
      %1144 = vmatpush1.msra.mxu0 0.0
      %1145 = vmatprep.subr.mxu0 0.0
      %1146 = vmatpush1.msra.mxu0 0.0
      %1147 = vmatprep.subr.mxu0 0.0
      %1148 = vmatpush1.msra.mxu0 0.0
      %1149 = vmatprep.subr.mxu0 0.0
      %1150 = vmatpush1.msra.mxu0 0.0
      %1151 = vmatprep.subr.mxu0 0.0
      %1152 = vmatpush1.msra.mxu0 0.0
      %1153 = vmatprep.subr.mxu0 0.0
      %1154 = vmatpush1.msra.mxu0 0.0
      %1155 = vmatprep.subr.mxu0 0.0
      %1156 = vmatpush1.msra.mxu0 0.0
      %1157 = vmatprep.subr.mxu0 0.0
      %1158 = vmatpush1.msra.mxu0 0.0
      %1159 = vmatprep.subr.mxu0 0.0
      %1160 = vmatpush1.msra.mxu0 0.0
      %1161 = vmatprep.subr.mxu0 0.0
      %1162 = vmatpush1.msra.mxu0 0.0
      %1163 = vmatprep.subr.mxu0 0.0
      %1164 = vmatpush1.msra.mxu0 0.0
      %1165 = vmatprep.subr.mxu0 0.0
      %1166 = vmatpush1.msra.mxu0 0.0
      %1167 = vmatprep.subr.mxu0 0.0
      %1168 = vmatpush1.msra.mxu0 0.0
      %1169 = vmatprep.subr.mxu0 0.0
      %1170 = vmatpush1.msra.mxu0 0.0
      %1171 = vmatprep.subr.mxu0 0.0
      %1172 = vmatpush1.msra.mxu0 0.0
      %1173 = vmatprep.subr.mxu0 0.0
      %1174 = vmatpush1.msra.mxu0 0.0
      %1175 = vmatprep.subr.mxu0 0.0
      %1176 = vmatpush1.msra.mxu0 0.0
      %1177 = vmatprep.subr.mxu0 0.0
      %1178 = vmatpush1.msra.mxu0 0.0
      %1179 = vmatprep.subr.mxu0 0.0
      %1180 = vmatpush1.msra.mxu0 0.0
      %1181 = vmatprep.subr.mxu0 0.0
      %1182 = vmatpush1.msra.mxu0 0.0
      %1183 = vmatprep.mubr.f32.mxu0 0.0
      %1184 = vmatmul.mubr.f32.gmra.mrb[0].mxu0 %v1072
      %v1185 = vpop.f32.mrb[0].mxu0
      %v1186 = vadd.f32 %v992, %v1185
      %v1187 = vpop.f32.mrb[0].mxu0
      %1188 = vmatprep.mubr.f32.mxu0 0.0
      %1189 = vmatmul.mubr.f32.gmra.mrb[0].mxu0 %v1075
      %v1190 = vpop.f32.mrb[0].mxu0
      %v1191 = vadd.f32 %v997, %v1190
      %v1192 = vpop.f32.mrb[0].mxu0
      %1193 = vmatprep.mubr.f32.mxu0 0.0
      %1194 = vmatmul.mubr.f32.gmra.mrb[0].mxu0 %v1078
      %v1195 = vpop.f32.mrb[0].mxu0
      %v1196 = vadd.f32 %v1002, %v1195
      %v1197 = vpop.f32.mrb[0].mxu0
      %1198 = vmatprep.mubr.f32.mxu0 0.0
      %1199 = vmatmul.mubr.f32.gmra.mrb[0].mxu0 %v1081
      %v1200 = vpop.f32.mrb[0].mxu0
      %v1201 = vadd.f32 %v1007, %v1200
      %v1202 = vpop.f32.mrb[0].mxu0
      %1203 = vmatprep.mubr.f32.mxu0 0.0
      %1204 = vmatmul.mubr.f32.gmra.mrb[0].mxu0 %v1084
      %v1205 = vpop.f32.mrb[0].mxu0
      %v1206 = vadd.f32 %v1012, %v1205
      %v1207 = vpop.f32.mrb[0].mxu0
      %1208 = vmatprep.mubr.f32.mxu0 0.0
      %1209 = vmatmul.mubr.f32.gmra.mrb[0].mxu0 %v1087
      %v1210 = vpop.f32.mrb[0].mxu0
      %v1211 = vadd.f32 %v1017, %v1210
      %v1212 = vpop.f32.mrb[0].mxu0
      %1213 = vmatprep.mubr.f32.mxu0 0.0
      %1214 = vmatmul.mubr.f32.gmra.mrb[0].mxu0 %v1090
      %v1215 = vpop.f32.mrb[0].mxu0
      %v1216 = vadd.f32 %v1022, %v1215
      %v1217 = vpop.f32.mrb[0].mxu0
      %1218 = vmatprep.mubr.f32.mxu0 0.0
      %1219 = vmatmul.mubr.f32.gmra.mrb[0].mxu0 %v1093
      %v1220 = vpop.f32.mrb[0].mxu0
      %v1221 = vadd.f32 %v1027, %v1220
      %v1222 = vpop.f32.mrb[0].mxu0
      %1223 = vmatprep.mubr.f32.mxu0 0.0
      %1224 = vmatmul.mubr.f32.gmra.mrb[0].mxu0 %v1096
      %v1225 = vpop.f32.mrb[0].mxu0
      %v1226 = vadd.f32 %v1032, %v1225
      %v1227 = vpop.f32.mrb[0].mxu0
      %1228 = vmatprep.mubr.f32.mxu0 0.0
      %1229 = vmatmul.mubr.f32.gmra.mrb[0].mxu0 %v1099
      %v1230 = vpop.f32.mrb[0].mxu0
      %v1231 = vadd.f32 %v1037, %v1230
      %v1232 = vpop.f32.mrb[0].mxu0
      %1233 = vmatprep.mubr.f32.mxu0 0.0
      %1234 = vmatmul.mubr.f32.gmra.mrb[0].mxu0 %v1102
      %v1235 = vpop.f32.mrb[0].mxu0
      %v1236 = vadd.f32 %v1042, %v1235
      %v1237 = vpop.f32.mrb[0].mxu0
      %1238 = vmatprep.mubr.f32.mxu0 0.0
      %1239 = vmatmul.mubr.f32.gmra.mrb[0].mxu0 %v1105
      %v1240 = vpop.f32.mrb[0].mxu0
      %v1241 = vadd.f32 %v1047, %v1240
      %v1242 = vpop.f32.mrb[0].mxu0
      %1243 = vmatprep.mubr.f32.mxu0 0.0
      %1244 = vmatmul.mubr.f32.gmra.mrb[0].mxu0 %v1108
      %v1245 = vpop.f32.mrb[0].mxu0
      %v1246 = vadd.f32 %v1052, %v1245
      %v1247 = vpop.f32.mrb[0].mxu0
      %1248 = vmatprep.mubr.f32.mxu0 0.0
      %1249 = vmatmul.mubr.f32.gmra.mrb[0].mxu0 %v1111
      %v1250 = vpop.f32.mrb[0].mxu0
      %v1251 = vadd.f32 %v1057, %v1250
      %v1252 = vpop.f32.mrb[0].mxu0
      %1253 = vmatprep.mubr.f32.mxu0 0.0
      %1254 = vmatmul.mubr.f32.gmra.mrb[0].mxu0 %v1114
      %v1255 = vpop.f32.mrb[0].mxu0
      %v1256 = vadd.f32 %v1062, %v1255
      %v1257 = vpop.f32.mrb[0].mxu0
      %1258 = vmatprep.mubr.f32.mxu0 0.0
      %1259 = vmatmul.mubr.f32.gmra.mrb[0].mxu0 %v1117
      %v1260 = vpop.f32.mrb[0].mxu0
      %v1261 = vadd.f32 %v1067, %v1260
      %v1262 = vpop.f32.mrb[0].mxu0
      %1263 = vdwg.mxu0
      %v1265 = vlaneseq
      %v1266 = vshrl.u32 %v1265, 7
      %v1267 = vsub.s32 0, %v1266
      %v1268 = vrot.slane %v670, %v1267
      %v1270 = vadd.f32 %v1186, %v1268
      %v1271 = vadd.f32 %v1191, %v1268
      %v1272 = vadd.f32 %v1196, %v1268
      %v1273 = vadd.f32 %v1201, %v1268
      %v1274 = vadd.f32 %v1206, %v1268
      %v1275 = vadd.f32 %v1211, %v1268
      %v1276 = vadd.f32 %v1216, %v1268
      %v1277 = vadd.f32 %v1221, %v1268
      %v1278 = vadd.f32 %v1226, %v1268
      %v1279 = vadd.f32 %v1231, %v1268
      %v1280 = vadd.f32 %v1236, %v1268
      %v1281 = vadd.f32 %v1241, %v1268
      %v1282 = vadd.f32 %v1246, %v1268
      %v1283 = vadd.f32 %v1251, %v1268
      %v1284 = vadd.f32 %v1256, %v1268
      %v1285 = vadd.f32 %v1261, %v1268
      %v1286 = vmax.f32 %v1270, 0.0
      %v1287 = vmax.f32 %v1271, 0.0
      %v1288 = vmax.f32 %v1272, 0.0
      %v1289 = vmax.f32 %v1273, 0.0
      %v1290 = vmax.f32 %v1274, 0.0
      %v1291 = vmax.f32 %v1275, 0.0
      %v1292 = vmax.f32 %v1276, 0.0
      %v1293 = vmax.f32 %v1277, 0.0
      %v1294 = vmax.f32 %v1278, 0.0
      %v1295 = vmax.f32 %v1279, 0.0
      %v1296 = vmax.f32 %v1280, 0.0
      %v1297 = vmax.f32 %v1281, 0.0
      %v1298 = vmax.f32 %v1282, 0.0
      %v1299 = vmax.f32 %v1283, 0.0
      %v1300 = vmax.f32 %v1284, 0.0
      %v1301 = vmax.f32 %v1285, 0.0
      %1302 = vmatprep.subr.mxu0 0.0
      %1303 = vmatpush1.msra.mxu0 %v1286
      %1304 = vmatprep.subr.mxu0 0.0
      %1305 = vmatpush1.msra.mxu0 %v1287
      %1306 = vmatprep.subr.mxu0 0.0
      %1307 = vmatpush1.msra.mxu0 %v1288
      %1308 = vmatprep.subr.mxu0 0.0
      %1309 = vmatpush1.msra.mxu0 %v1289
      %1310 = vmatprep.subr.mxu0 0.0
      %1311 = vmatpush1.msra.mxu0 %v1290
      %1312 = vmatprep.subr.mxu0 0.0
      %1313 = vmatpush1.msra.mxu0 %v1291
      %1314 = vmatprep.subr.mxu0 0.0
      %1315 = vmatpush1.msra.mxu0 %v1292
      %1316 = vmatprep.subr.mxu0 0.0
      %1317 = vmatpush1.msra.mxu0 %v1293
      %1318 = vmatprep.subr.mxu0 0.0
      %1319 = vmatpush1.msra.mxu0 %v1294
      %1320 = vmatprep.subr.mxu0 0.0
      %1321 = vmatpush1.msra.mxu0 %v1295
      %1322 = vmatprep.subr.mxu0 0.0
      %1323 = vmatpush1.msra.mxu0 %v1296
      %1324 = vmatprep.subr.mxu0 0.0
      %1325 = vmatpush1.msra.mxu0 %v1297
      %1326 = vmatprep.subr.mxu0 0.0
      %1327 = vmatpush1.msra.mxu0 %v1298
      %1328 = vmatprep.subr.mxu0 0.0
      %1329 = vmatpush1.msra.mxu0 %v1299
      %1330 = vmatprep.subr.mxu0 0.0
      %1331 = vmatpush1.msra.mxu0 %v1300
      %1332 = vmatprep.subr.mxu0 0.0
      %1333 = vmatpush1.msra.mxu0 %v1301
      %1334 = vmatprep.subr.mxu0 0.0
      %1335 = vmatpush1.msra.mxu0 0.0
      %1336 = vmatprep.subr.mxu0 0.0
      %1337 = vmatpush1.msra.mxu0 0.0
      %1338 = vmatprep.subr.mxu0 0.0
      %1339 = vmatpush1.msra.mxu0 0.0
      %1340 = vmatprep.subr.mxu0 0.0
      %1341 = vmatpush1.msra.mxu0 0.0
      %1342 = vmatprep.subr.mxu0 0.0
      %1343 = vmatpush1.msra.mxu0 0.0
      %1344 = vmatprep.subr.mxu0 0.0
      %1345 = vmatpush1.msra.mxu0 0.0
      %1346 = vmatprep.subr.mxu0 0.0
      %1347 = vmatpush1.msra.mxu0 0.0
      %1348 = vmatprep.subr.mxu0 0.0
      %1349 = vmatpush1.msra.mxu0 0.0
      %1350 = vmatprep.subr.mxu0 0.0
      %1351 = vmatpush1.msra.mxu0 0.0
      %1352 = vmatprep.subr.mxu0 0.0
      %1353 = vmatpush1.msra.mxu0 0.0
      %1354 = vmatprep.subr.mxu0 0.0
      %1355 = vmatpush1.msra.mxu0 0.0
      %1356 = vmatprep.subr.mxu0 0.0
      %1357 = vmatpush1.msra.mxu0 0.0
      %1358 = vmatprep.subr.mxu0 0.0
      %1359 = vmatpush1.msra.mxu0 0.0
      %1360 = vmatprep.subr.mxu0 0.0
      %1361 = vmatpush1.msra.mxu0 0.0
      %1362 = vmatprep.subr.mxu0 0.0
      %1363 = vmatpush1.msra.mxu0 0.0
      %1364 = vmatprep.subr.mxu0 0.0
      %1365 = vmatpush1.msra.mxu0 0.0
      %1366 = vmatprep.mubr.f32.mxu0 0.0
      %1367 = vmatmul.mubr.f32.gmra.mrb[0].mxu0 %v677
      %v1368 = vpop.f32.mrb[0].mxu0
      %v1369 = vadd.f32 0.0, %v1368
      %v1370 = vpop.f32.mrb[0].mxu0
      %1371 = vmatprep.mubr.f32.mxu0 0.0
      %1372 = vmatmul.mubr.f32.gmra.mrb[0].mxu0 %v678
      %v1373 = vpop.f32.mrb[0].mxu0
      %v1374 = vadd.f32 0.0, %v1373
      %v1375 = vpop.f32.mrb[0].mxu0
      %1376 = vmatprep.mubr.f32.mxu0 0.0
      %1377 = vmatmul.mubr.f32.gmra.mrb[0].mxu0 %v679
      %v1378 = vpop.f32.mrb[0].mxu0
      %v1379 = vadd.f32 0.0, %v1378
      %v1380 = vpop.f32.mrb[0].mxu0
      %1381 = vmatprep.mubr.f32.mxu0 0.0
      %1382 = vmatmul.mubr.f32.gmra.mrb[0].mxu0 %v680
      %v1383 = vpop.f32.mrb[0].mxu0
      %v1384 = vadd.f32 0.0, %v1383
      %v1385 = vpop.f32.mrb[0].mxu0
      %1386 = vmatprep.mubr.f32.mxu0 0.0
      %1387 = vmatmul.mubr.f32.gmra.mrb[0].mxu0 %v681
      %v1388 = vpop.f32.mrb[0].mxu0
      %v1389 = vadd.f32 0.0, %v1388
      %v1390 = vpop.f32.mrb[0].mxu0
      %1391 = vmatprep.mubr.f32.mxu0 0.0
      %1392 = vmatmul.mubr.f32.gmra.mrb[0].mxu0 %v682
      %v1393 = vpop.f32.mrb[0].mxu0
      %v1394 = vadd.f32 0.0, %v1393
      %v1395 = vpop.f32.mrb[0].mxu0
      %1396 = vmatprep.mubr.f32.mxu0 0.0
      %1397 = vmatmul.mubr.f32.gmra.mrb[0].mxu0 %v683
      %v1398 = vpop.f32.mrb[0].mxu0
      %v1399 = vadd.f32 0.0, %v1398
      %v1400 = vpop.f32.mrb[0].mxu0
      %1401 = vmatprep.mubr.f32.mxu0 0.0
      %1402 = vmatmul.mubr.f32.gmra.mrb[0].mxu0 %v684
      %v1403 = vpop.f32.mrb[0].mxu0
      %v1404 = vadd.f32 0.0, %v1403
      %v1405 = vpop.f32.mrb[0].mxu0
      %1406 = vmatprep.mubr.f32.mxu0 0.0
      %1407 = vmatmul.mubr.f32.gmra.mrb[0].mxu0 %v685
      %v1408 = vpop.f32.mrb[0].mxu0
      %v1409 = vadd.f32 0.0, %v1408
      %v1410 = vpop.f32.mrb[0].mxu0
      %1411 = vmatprep.mubr.f32.mxu0 0.0
      %1412 = vmatmul.mubr.f32.gmra.mrb[0].mxu0 %v686
      %v1413 = vpop.f32.mrb[0].mxu0
      %v1414 = vadd.f32 0.0, %v1413
      %v1415 = vpop.f32.mrb[0].mxu0
      %1416 = vmatprep.mubr.f32.mxu0 0.0
      %1417 = vmatmul.mubr.f32.gmra.mrb[0].mxu0 %v687
      %v1418 = vpop.f32.mrb[0].mxu0
      %v1419 = vadd.f32 0.0, %v1418
      %v1420 = vpop.f32.mrb[0].mxu0
      %1421 = vmatprep.mubr.f32.mxu0 0.0
      %1422 = vmatmul.mubr.f32.gmra.mrb[0].mxu0 %v688
      %v1423 = vpop.f32.mrb[0].mxu0
      %v1424 = vadd.f32 0.0, %v1423
      %v1425 = vpop.f32.mrb[0].mxu0
      %1426 = vmatprep.mubr.f32.mxu0 0.0
      %1427 = vmatmul.mubr.f32.gmra.mrb[0].mxu0 %v689
      %v1428 = vpop.f32.mrb[0].mxu0
      %v1429 = vadd.f32 0.0, %v1428
      %v1430 = vpop.f32.mrb[0].mxu0
      %1431 = vmatprep.mubr.f32.mxu0 0.0
      %1432 = vmatmul.mubr.f32.gmra.mrb[0].mxu0 %v690
      %v1433 = vpop.f32.mrb[0].mxu0
      %v1434 = vadd.f32 0.0, %v1433
      %v1435 = vpop.f32.mrb[0].mxu0
      %1436 = vmatprep.mubr.f32.mxu0 0.0
      %1437 = vmatmul.mubr.f32.gmra.mrb[0].mxu0 %v691
      %v1438 = vpop.f32.mrb[0].mxu0
      %v1439 = vadd.f32 0.0, %v1438
      %v1440 = vpop.f32.mrb[0].mxu0
      %1441 = vmatprep.mubr.f32.mxu0 0.0
      %1442 = vmatmul.mubr.f32.gmra.mrb[0].mxu0 %v692
      %v1443 = vpop.f32.mrb[0].mxu0
      %v1444 = vadd.f32 0.0, %v1443
      %v1445 = vpop.f32.mrb[0].mxu0
      %1446 = vdwg.mxu0
      %v1447 = vld [vmem:[%s10] sm:$0xff]
      %v1448 = vld [vmem:[%s10 + $0x8] sm:$0xff]
      %v1449 = vld [vmem:[%s10 + $0x10] sm:$0xff]
      %v1450 = vld [vmem:[%s10 + $0x18] sm:$0xff]
      %v1451 = vld [vmem:[%s10 + $0x20] sm:$0xff]
      %v1452 = vld [vmem:[%s10 + $0x28] sm:$0xff]
      %v1453 = vld [vmem:[%s10 + $0x30] sm:$0xff]
      %v1454 = vld [vmem:[%s10 + $0x38] sm:$0xff]
      %v1455 = vld [vmem:[%s10 + $0x40] sm:$0xff]
      %v1456 = vld [vmem:[%s10 + $0x48] sm:$0xff]
      %v1457 = vld [vmem:[%s10 + $0x50] sm:$0xff]
      %v1458 = vld [vmem:[%s10 + $0x58] sm:$0xff]
      %v1459 = vld [vmem:[%s10 + $0x60] sm:$0xff]
      %v1460 = vld [vmem:[%s10 + $0x68] sm:$0xff]
      %v1461 = vld [vmem:[%s10 + $0x70] sm:$0xff]
      %v1462 = vld [vmem:[%s10 + $0x78] sm:$0xff]
      %v1463 = vld [vmem:[%s11] sm:$0xff]
      %1464 = vmatprep.subr.mxu0 0.0
      %1465 = vmatpush1.msra.mxu0 %v1463
      %1466 = vmatprep.subr.mxu0 0.0
      %1467 = vmatpush1.msra.mxu0 0.0
      %1468 = vmatprep.subr.mxu0 0.0
      %1469 = vmatpush1.msra.mxu0 0.0
      %1470 = vmatprep.subr.mxu0 0.0
      %1471 = vmatpush1.msra.mxu0 0.0
      %1472 = vmatprep.subr.mxu0 0.0
      %1473 = vmatpush1.msra.mxu0 0.0
      %1474 = vmatprep.subr.mxu0 0.0
      %1475 = vmatpush1.msra.mxu0 0.0
      %1476 = vmatprep.subr.mxu0 0.0
      %1477 = vmatpush1.msra.mxu0 0.0
      %1478 = vmatprep.subr.mxu0 0.0
      %1479 = vmatpush1.msra.mxu0 0.0
      %1480 = vmatprep.subr.mxu0 0.0
      %1481 = vmatpush1.msra.mxu0 0.0
      %1482 = vmatprep.subr.mxu0 0.0
      %1483 = vmatpush1.msra.mxu0 0.0
      %1484 = vmatprep.subr.mxu0 0.0
      %1485 = vmatpush1.msra.mxu0 0.0
      %1486 = vmatprep.subr.mxu0 0.0
      %1487 = vmatpush1.msra.mxu0 0.0
      %1488 = vmatprep.subr.mxu0 0.0
      %1489 = vmatpush1.msra.mxu0 0.0
      %1490 = vmatprep.subr.mxu0 0.0
      %1491 = vmatpush1.msra.mxu0 0.0
      %1492 = vmatprep.subr.mxu0 0.0
      %1493 = vmatpush1.msra.mxu0 0.0
      %1494 = vmatprep.subr.mxu0 0.0
      %1495 = vmatpush1.msra.mxu0 0.0
      %1496 = vmatprep.subr.mxu0 0.0
      %1497 = vmatpush1.msra.mxu0 0.0
      %1498 = vmatprep.subr.mxu0 0.0
      %1499 = vmatpush1.msra.mxu0 0.0
      %1500 = vmatprep.subr.mxu0 0.0
      %1501 = vmatpush1.msra.mxu0 0.0
      %1502 = vmatprep.subr.mxu0 0.0
      %1503 = vmatpush1.msra.mxu0 0.0
      %1504 = vmatprep.subr.mxu0 0.0
      %1505 = vmatpush1.msra.mxu0 0.0
      %1506 = vmatprep.subr.mxu0 0.0
      %1507 = vmatpush1.msra.mxu0 0.0
      %1508 = vmatprep.subr.mxu0 0.0
      %1509 = vmatpush1.msra.mxu0 0.0
      %1510 = vmatprep.subr.mxu0 0.0
      %1511 = vmatpush1.msra.mxu0 0.0
      %1512 = vmatprep.subr.mxu0 0.0
      %1513 = vmatpush1.msra.mxu0 0.0
      %1514 = vmatprep.subr.mxu0 0.0
      %1515 = vmatpush1.msra.mxu0 0.0
      %1516 = vmatprep.subr.mxu0 0.0
      %1517 = vmatpush1.msra.mxu0 0.0
      %1518 = vmatprep.subr.mxu0 0.0
      %1519 = vmatpush1.msra.mxu0 0.0
      %1520 = vmatprep.subr.mxu0 0.0
      %1521 = vmatpush1.msra.mxu0 0.0
      %1522 = vmatprep.subr.mxu0 0.0
      %1523 = vmatpush1.msra.mxu0 0.0
      %1524 = vmatprep.subr.mxu0 0.0
      %1525 = vmatpush1.msra.mxu0 0.0
      %1526 = vmatprep.subr.mxu0 0.0
      %1527 = vmatpush1.msra.mxu0 0.0
      %1528 = vmatprep.mubr.f32.mxu0 0.0
      %1529 = vmatmul.mubr.f32.gmra.mrb[0].mxu0 %v878
      %v1530 = vpop.f32.mrb[0].mxu0
      %v1531 = vadd.f32 0.0, %v1530
      %v1532 = vpop.f32.mrb[0].mxu0
      %1533 = vmatprep.mubr.f32.mxu0 0.0
      %1534 = vmatmul.mubr.f32.gmra.mrb[0].mxu0 %v881
      %v1535 = vpop.f32.mrb[0].mxu0
      %v1536 = vadd.f32 0.0, %v1535
      %v1537 = vpop.f32.mrb[0].mxu0
      %1538 = vmatprep.mubr.f32.mxu0 0.0
      %1539 = vmatmul.mubr.f32.gmra.mrb[0].mxu0 %v884
      %v1540 = vpop.f32.mrb[0].mxu0
      %v1541 = vadd.f32 0.0, %v1540
      %v1542 = vpop.f32.mrb[0].mxu0
      %1543 = vmatprep.mubr.f32.mxu0 0.0
      %1544 = vmatmul.mubr.f32.gmra.mrb[0].mxu0 %v887
      %v1545 = vpop.f32.mrb[0].mxu0
      %v1546 = vadd.f32 0.0, %v1545
      %v1547 = vpop.f32.mrb[0].mxu0
      %1548 = vmatprep.mubr.f32.mxu0 0.0
      %1549 = vmatmul.mubr.f32.gmra.mrb[0].mxu0 %v890
      %v1550 = vpop.f32.mrb[0].mxu0
      %v1551 = vadd.f32 0.0, %v1550
      %v1552 = vpop.f32.mrb[0].mxu0
      %1553 = vmatprep.mubr.f32.mxu0 0.0
      %1554 = vmatmul.mubr.f32.gmra.mrb[0].mxu0 %v893
      %v1555 = vpop.f32.mrb[0].mxu0
      %v1556 = vadd.f32 0.0, %v1555
      %v1557 = vpop.f32.mrb[0].mxu0
      %1558 = vmatprep.mubr.f32.mxu0 0.0
      %1559 = vmatmul.mubr.f32.gmra.mrb[0].mxu0 %v896
      %v1560 = vpop.f32.mrb[0].mxu0
      %v1561 = vadd.f32 0.0, %v1560
      %v1562 = vpop.f32.mrb[0].mxu0
      %1563 = vmatprep.mubr.f32.mxu0 0.0
      %1564 = vmatmul.mubr.f32.gmra.mrb[0].mxu0 %v899
      %v1565 = vpop.f32.mrb[0].mxu0
      %v1566 = vadd.f32 0.0, %v1565
      %v1567 = vpop.f32.mrb[0].mxu0
      %1568 = vmatprep.mubr.f32.mxu0 0.0
      %1569 = vmatmul.mubr.f32.gmra.mrb[0].mxu0 %v902
      %v1570 = vpop.f32.mrb[0].mxu0
      %v1571 = vadd.f32 0.0, %v1570
      %v1572 = vpop.f32.mrb[0].mxu0
      %1573 = vmatprep.mubr.f32.mxu0 0.0
      %1574 = vmatmul.mubr.f32.gmra.mrb[0].mxu0 %v905
      %v1575 = vpop.f32.mrb[0].mxu0
      %v1576 = vadd.f32 0.0, %v1575
      %v1577 = vpop.f32.mrb[0].mxu0
      %1578 = vmatprep.mubr.f32.mxu0 0.0
      %1579 = vmatmul.mubr.f32.gmra.mrb[0].mxu0 %v908
      %v1580 = vpop.f32.mrb[0].mxu0
      %v1581 = vadd.f32 0.0, %v1580
      %v1582 = vpop.f32.mrb[0].mxu0
      %1583 = vmatprep.mubr.f32.mxu0 0.0
      %1584 = vmatmul.mubr.f32.gmra.mrb[0].mxu0 %v911
      %v1585 = vpop.f32.mrb[0].mxu0
      %v1586 = vadd.f32 0.0, %v1585
      %v1587 = vpop.f32.mrb[0].mxu0
      %1588 = vmatprep.mubr.f32.mxu0 0.0
      %1589 = vmatmul.mubr.f32.gmra.mrb[0].mxu0 %v914
      %v1590 = vpop.f32.mrb[0].mxu0
      %v1591 = vadd.f32 0.0, %v1590
      %v1592 = vpop.f32.mrb[0].mxu0
      %1593 = vmatprep.mubr.f32.mxu0 0.0
      %1594 = vmatmul.mubr.f32.gmra.mrb[0].mxu0 %v917
      %v1595 = vpop.f32.mrb[0].mxu0
      %v1596 = vadd.f32 0.0, %v1595
      %v1597 = vpop.f32.mrb[0].mxu0
      %1598 = vmatprep.mubr.f32.mxu0 0.0
      %1599 = vmatmul.mubr.f32.gmra.mrb[0].mxu0 %v920
      %v1600 = vpop.f32.mrb[0].mxu0
      %v1601 = vadd.f32 0.0, %v1600
      %v1602 = vpop.f32.mrb[0].mxu0
      %1603 = vmatprep.mubr.f32.mxu0 0.0
      %1604 = vmatmul.mubr.f32.gmra.mrb[0].mxu0 %v923
      %v1605 = vpop.f32.mrb[0].mxu0
      %v1606 = vadd.f32 0.0, %v1605
      %v1607 = vpop.f32.mrb[0].mxu0
      %1608 = vdwg.mxu0
      %1609 = vmatprep.subr.mxu0 0.0
      %1610 = vmatpush1.msra.mxu0 %v1447
      %1611 = vmatprep.subr.mxu0 0.0
      %1612 = vmatpush1.msra.mxu0 %v1448
      %1613 = vmatprep.subr.mxu0 0.0
      %1614 = vmatpush1.msra.mxu0 %v1449
      %1615 = vmatprep.subr.mxu0 0.0
      %1616 = vmatpush1.msra.mxu0 %v1450
      %1617 = vmatprep.subr.mxu0 0.0
      %1618 = vmatpush1.msra.mxu0 %v1451
      %1619 = vmatprep.subr.mxu0 0.0
      %1620 = vmatpush1.msra.mxu0 %v1452
      %1621 = vmatprep.subr.mxu0 0.0
      %1622 = vmatpush1.msra.mxu0 %v1453
      %1623 = vmatprep.subr.mxu0 0.0
      %1624 = vmatpush1.msra.mxu0 %v1454
      %1625 = vmatprep.subr.mxu0 0.0
      %1626 = vmatpush1.msra.mxu0 %v1455
      %1627 = vmatprep.subr.mxu0 0.0
      %1628 = vmatpush1.msra.mxu0 %v1456
      %1629 = vmatprep.subr.mxu0 0.0
      %1630 = vmatpush1.msra.mxu0 %v1457
      %1631 = vmatprep.subr.mxu0 0.0
      %1632 = vmatpush1.msra.mxu0 %v1458
      %1633 = vmatprep.subr.mxu0 0.0
      %1634 = vmatpush1.msra.mxu0 %v1459
      %1635 = vmatprep.subr.mxu0 0.0
      %1636 = vmatpush1.msra.mxu0 %v1460
      %1637 = vmatprep.subr.mxu0 0.0
      %1638 = vmatpush1.msra.mxu0 %v1461
      %1639 = vmatprep.subr.mxu0 0.0
      %1640 = vmatpush1.msra.mxu0 %v1462
      %1641 = vmatprep.subr.mxu0 0.0
      %1642 = vmatpush1.msra.mxu0 0.0
      %1643 = vmatprep.subr.mxu0 0.0
      %1644 = vmatpush1.msra.mxu0 0.0
      %1645 = vmatprep.subr.mxu0 0.0
      %1646 = vmatpush1.msra.mxu0 0.0
      %1647 = vmatprep.subr.mxu0 0.0
      %1648 = vmatpush1.msra.mxu0 0.0
      %1649 = vmatprep.subr.mxu0 0.0
      %1650 = vmatpush1.msra.mxu0 0.0
      %1651 = vmatprep.subr.mxu0 0.0
      %1652 = vmatpush1.msra.mxu0 0.0
      %1653 = vmatprep.subr.mxu0 0.0
      %1654 = vmatpush1.msra.mxu0 0.0
      %1655 = vmatprep.subr.mxu0 0.0
      %1656 = vmatpush1.msra.mxu0 0.0
      %1657 = vmatprep.subr.mxu0 0.0
      %1658 = vmatpush1.msra.mxu0 0.0
      %1659 = vmatprep.subr.mxu0 0.0
      %1660 = vmatpush1.msra.mxu0 0.0
      %1661 = vmatprep.subr.mxu0 0.0
      %1662 = vmatpush1.msra.mxu0 0.0
      %1663 = vmatprep.subr.mxu0 0.0
      %1664 = vmatpush1.msra.mxu0 0.0
      %1665 = vmatprep.subr.mxu0 0.0
      %1666 = vmatpush1.msra.mxu0 0.0
      %1667 = vmatprep.subr.mxu0 0.0
      %1668 = vmatpush1.msra.mxu0 0.0
      %1669 = vmatprep.subr.mxu0 0.0
      %1670 = vmatpush1.msra.mxu0 0.0
      %1671 = vmatprep.subr.mxu0 0.0
      %1672 = vmatpush1.msra.mxu0 0.0
      %1673 = vmatprep.mubr.f32.mxu0 0.0
      %1674 = vmatmul.mubr.f32.gmra.mrb[0].mxu0 %v1369
      %v1675 = vpop.f32.mrb[0].mxu0
      %v1676 = vadd.f32 %v1531, %v1675
      %v1677 = vpop.f32.mrb[0].mxu0
      %1678 = vmatprep.mubr.f32.mxu0 0.0
      %1679 = vmatmul.mubr.f32.gmra.mrb[0].mxu0 %v1374
      %v1680 = vpop.f32.mrb[0].mxu0
      %v1681 = vadd.f32 %v1536, %v1680
      %v1682 = vpop.f32.mrb[0].mxu0
      %1683 = vmatprep.mubr.f32.mxu0 0.0
      %1684 = vmatmul.mubr.f32.gmra.mrb[0].mxu0 %v1379
      %v1685 = vpop.f32.mrb[0].mxu0
      %v1686 = vadd.f32 %v1541, %v1685
      %v1687 = vpop.f32.mrb[0].mxu0
      %1688 = vmatprep.mubr.f32.mxu0 0.0
      %1689 = vmatmul.mubr.f32.gmra.mrb[0].mxu0 %v1384
      %v1690 = vpop.f32.mrb[0].mxu0
      %v1691 = vadd.f32 %v1546, %v1690
      %v1692 = vpop.f32.mrb[0].mxu0
      %1693 = vmatprep.mubr.f32.mxu0 0.0
      %1694 = vmatmul.mubr.f32.gmra.mrb[0].mxu0 %v1389
      %v1695 = vpop.f32.mrb[0].mxu0
      %v1696 = vadd.f32 %v1551, %v1695
      %v1697 = vpop.f32.mrb[0].mxu0
      %1698 = vmatprep.mubr.f32.mxu0 0.0
      %1699 = vmatmul.mubr.f32.gmra.mrb[0].mxu0 %v1394
      %v1700 = vpop.f32.mrb[0].mxu0
      %v1701 = vadd.f32 %v1556, %v1700
      %v1702 = vpop.f32.mrb[0].mxu0
      %1703 = vmatprep.mubr.f32.mxu0 0.0
      %1704 = vmatmul.mubr.f32.gmra.mrb[0].mxu0 %v1399
      %v1705 = vpop.f32.mrb[0].mxu0
      %v1706 = vadd.f32 %v1561, %v1705
      %v1707 = vpop.f32.mrb[0].mxu0
      %1708 = vmatprep.mubr.f32.mxu0 0.0
      %1709 = vmatmul.mubr.f32.gmra.mrb[0].mxu0 %v1404
      %v1710 = vpop.f32.mrb[0].mxu0
      %v1711 = vadd.f32 %v1566, %v1710
      %v1712 = vpop.f32.mrb[0].mxu0
      %1713 = vmatprep.mubr.f32.mxu0 0.0
      %1714 = vmatmul.mubr.f32.gmra.mrb[0].mxu0 %v1409
      %v1715 = vpop.f32.mrb[0].mxu0
      %v1716 = vadd.f32 %v1571, %v1715
      %v1717 = vpop.f32.mrb[0].mxu0
      %1718 = vmatprep.mubr.f32.mxu0 0.0
      %1719 = vmatmul.mubr.f32.gmra.mrb[0].mxu0 %v1414
      %v1720 = vpop.f32.mrb[0].mxu0
      %v1721 = vadd.f32 %v1576, %v1720
      %v1722 = vpop.f32.mrb[0].mxu0
      %1723 = vmatprep.mubr.f32.mxu0 0.0
      %1724 = vmatmul.mubr.f32.gmra.mrb[0].mxu0 %v1419
      %v1725 = vpop.f32.mrb[0].mxu0
      %v1726 = vadd.f32 %v1581, %v1725
      %v1727 = vpop.f32.mrb[0].mxu0
      %1728 = vmatprep.mubr.f32.mxu0 0.0
      %1729 = vmatmul.mubr.f32.gmra.mrb[0].mxu0 %v1424
      %v1730 = vpop.f32.mrb[0].mxu0
      %v1731 = vadd.f32 %v1586, %v1730
      %v1732 = vpop.f32.mrb[0].mxu0
      %1733 = vmatprep.mubr.f32.mxu0 0.0
      %1734 = vmatmul.mubr.f32.gmra.mrb[0].mxu0 %v1429
      %v1735 = vpop.f32.mrb[0].mxu0
      %v1736 = vadd.f32 %v1591, %v1735
      %v1737 = vpop.f32.mrb[0].mxu0
      %1738 = vmatprep.mubr.f32.mxu0 0.0
      %1739 = vmatmul.mubr.f32.gmra.mrb[0].mxu0 %v1434
      %v1740 = vpop.f32.mrb[0].mxu0
      %v1741 = vadd.f32 %v1596, %v1740
      %v1742 = vpop.f32.mrb[0].mxu0
      %1743 = vmatprep.mubr.f32.mxu0 0.0
      %1744 = vmatmul.mubr.f32.gmra.mrb[0].mxu0 %v1439
      %v1745 = vpop.f32.mrb[0].mxu0
      %v1746 = vadd.f32 %v1601, %v1745
      %v1747 = vpop.f32.mrb[0].mxu0
      %1748 = vmatprep.mubr.f32.mxu0 0.0
      %1749 = vmatmul.mubr.f32.gmra.mrb[0].mxu0 %v1444
      %v1750 = vpop.f32.mrb[0].mxu0
      %v1751 = vadd.f32 %v1606, %v1750
      %v1752 = vpop.f32.mrb[0].mxu0
      %1753 = vdwg.mxu0
      %v1755 = vlaneseq
      %v1756 = vshrl.u32 %v1755, 7
      %v1757 = vsub.s32 0, %v1756
      %v1758 = vrot.slane %v671, %v1757
      %v1760 = vadd.f32 %v1676, %v1758
      %v1761 = vadd.f32 %v1681, %v1758
      %v1762 = vadd.f32 %v1686, %v1758
      %v1763 = vadd.f32 %v1691, %v1758
      %v1764 = vadd.f32 %v1696, %v1758
      %v1765 = vadd.f32 %v1701, %v1758
      %v1766 = vadd.f32 %v1706, %v1758
      %v1767 = vadd.f32 %v1711, %v1758
      %v1768 = vadd.f32 %v1716, %v1758
      %v1769 = vadd.f32 %v1721, %v1758
      %v1770 = vadd.f32 %v1726, %v1758
      %v1771 = vadd.f32 %v1731, %v1758
      %v1772 = vadd.f32 %v1736, %v1758
      %v1773 = vadd.f32 %v1741, %v1758
      %v1774 = vadd.f32 %v1746, %v1758
      %v1775 = vadd.f32 %v1751, %v1758
      %v1776 = vmax.f32 %v1760, 0.0
      %v1777 = vmax.f32 %v1761, 0.0
      %v1778 = vmax.f32 %v1762, 0.0
      %v1779 = vmax.f32 %v1763, 0.0
      %v1780 = vmax.f32 %v1764, 0.0
      %v1781 = vmax.f32 %v1765, 0.0
      %v1782 = vmax.f32 %v1766, 0.0
      %v1783 = vmax.f32 %v1767, 0.0
      %v1784 = vmax.f32 %v1768, 0.0
      %v1785 = vmax.f32 %v1769, 0.0
      %v1786 = vmax.f32 %v1770, 0.0
      %v1787 = vmax.f32 %v1771, 0.0
      %v1788 = vmax.f32 %v1772, 0.0
      %v1789 = vmax.f32 %v1773, 0.0
      %v1790 = vmax.f32 %v1774, 0.0
      %v1791 = vmax.f32 %v1775, 0.0
      %v1792 = vld [vmem:[%s664] sm:$0xff]
      %v1793 = vld [vmem:[%s664 + $0x8] sm:$0xff]
      %v1794 = vld [vmem:[%s664 + $0x10] sm:$0xff]
      %v1795 = vld [vmem:[%s664 + $0x18] sm:$0xff]
      %v1796 = vld [vmem:[%s664 + $0x20] sm:$0xff]
      %v1797 = vld [vmem:[%s664 + $0x28] sm:$0xff]
      %v1798 = vld [vmem:[%s664 + $0x30] sm:$0xff]
      %v1799 = vld [vmem:[%s664 + $0x38] sm:$0xff]
      %v1800 = vld [vmem:[%s664 + $0x40] sm:$0xff]
      %v1801 = vld [vmem:[%s664 + $0x48] sm:$0xff]
      %v1802 = vld [vmem:[%s664 + $0x50] sm:$0xff]
      %v1803 = vld [vmem:[%s664 + $0x58] sm:$0xff]
      %v1804 = vld [vmem:[%s664 + $0x60] sm:$0xff]
      %v1805 = vld [vmem:[%s664 + $0x68] sm:$0xff]
      %v1806 = vld [vmem:[%s664 + $0x70] sm:$0xff]
      %v1807 = vld [vmem:[%s664 + $0x78] sm:$0xff]
      %v1808 = vld [vmem:[%s664 + $0x80] sm:$0xff]
      %v1809 = vld [vmem:[%s664 + $0x88] sm:$0xff]
      %v1810 = vld [vmem:[%s664 + $0x90] sm:$0xff]
      %v1811 = vld [vmem:[%s664 + $0x98] sm:$0xff]
      %v1812 = vld [vmem:[%s664 + $0xa0] sm:$0xff]
      %v1813 = vld [vmem:[%s664 + $0xa8] sm:$0xff]
      %v1814 = vld [vmem:[%s664 + $0xb0] sm:$0xff]
      %v1815 = vld [vmem:[%s664 + $0xb8] sm:$0xff]
      %v1816 = vld [vmem:[%s664 + $0xc0] sm:$0xff]
      %v1817 = vld [vmem:[%s664 + $0xc8] sm:$0xff]
      %v1818 = vld [vmem:[%s664 + $0xd0] sm:$0xff]
      %v1819 = vld [vmem:[%s664 + $0xd8] sm:$0xff]
      %v1820 = vld [vmem:[%s664 + $0xe0] sm:$0xff]
      %v1821 = vld [vmem:[%s664 + $0xe8] sm:$0xff]
      %v1822 = vld [vmem:[%s664 + $0xf0] sm:$0xff]
      %v1823 = vld [vmem:[%s664 + $0xf8] sm:$0xff]
      %v1824 = vld [vmem:[%s664 + $0x100] sm:$0xff]
      %v1825 = vld [vmem:[%s664 + $0x108] sm:$0xff]
      %v1826 = vld [vmem:[%s664 + $0x110] sm:$0xff]
      %v1827 = vld [vmem:[%s664 + $0x118] sm:$0xff]
      %v1828 = vld [vmem:[%s664 + $0x120] sm:$0xff]
      %v1829 = vld [vmem:[%s664 + $0x128] sm:$0xff]
      %v1830 = vld [vmem:[%s664 + $0x130] sm:$0xff]
      %v1831 = vld [vmem:[%s664 + $0x138] sm:$0xff]
      %v1832 = vld [vmem:[%s664 + $0x140] sm:$0xff]
      %v1833 = vld [vmem:[%s664 + $0x148] sm:$0xff]
      %v1834 = vld [vmem:[%s664 + $0x150] sm:$0xff]
      %v1835 = vld [vmem:[%s664 + $0x158] sm:$0xff]
      %v1836 = vld [vmem:[%s664 + $0x160] sm:$0xff]
      %v1837 = vld [vmem:[%s664 + $0x168] sm:$0xff]
      %v1838 = vld [vmem:[%s664 + $0x170] sm:$0xff]
      %v1839 = vld [vmem:[%s664 + $0x178] sm:$0xff]
      %v1840 = vld [vmem:[%s657] sm:$0xff]
      %v1841 = vld [vmem:[%s657 + $0x8] sm:$0xff]
      %v1842 = vld [vmem:[%s657 + $0x10] sm:$0xff]
      %v1843 = vld [vmem:[%s657 + $0x18] sm:$0xff]
      %v1844 = vld [vmem:[%s657 + $0x20] sm:$0xff]
      %v1845 = vld [vmem:[%s657 + $0x28] sm:$0xff]
      %v1846 = vld [vmem:[%s657 + $0x30] sm:$0xff]
      %v1847 = vld [vmem:[%s657 + $0x38] sm:$0xff]
      %v1848 = vld [vmem:[%s657 + $0x40] sm:$0xff]
      %v1849 = vld [vmem:[%s657 + $0x48] sm:$0xff]
      %v1850 = vld [vmem:[%s657 + $0x50] sm:$0xff]
      %v1851 = vld [vmem:[%s657 + $0x58] sm:$0xff]
      %v1852 = vld [vmem:[%s657 + $0x60] sm:$0xff]
      %v1853 = vld [vmem:[%s657 + $0x68] sm:$0xff]
      %v1854 = vld [vmem:[%s657 + $0x70] sm:$0xff]
      %v1855 = vld [vmem:[%s657 + $0x78] sm:$0xff]
      %v1856 = vld [vmem:[%s657 + $0x80] sm:$0xff]
      %v1857 = vld [vmem:[%s657 + $0x88] sm:$0xff]
      %v1858 = vld [vmem:[%s657 + $0x90] sm:$0xff]
      %v1859 = vld [vmem:[%s657 + $0x98] sm:$0xff]
      %v1860 = vld [vmem:[%s657 + $0xa0] sm:$0xff]
      %v1861 = vld [vmem:[%s657 + $0xa8] sm:$0xff]
      %v1862 = vld [vmem:[%s657 + $0xb0] sm:$0xff]
      %v1863 = vld [vmem:[%s657 + $0xb8] sm:$0xff]
      %v1864 = vld [vmem:[%s657 + $0xc0] sm:$0xff]
      %v1865 = vld [vmem:[%s657 + $0xc8] sm:$0xff]
      %v1866 = vld [vmem:[%s657 + $0xd0] sm:$0xff]
      %v1867 = vld [vmem:[%s657 + $0xd8] sm:$0xff]
      %v1868 = vld [vmem:[%s657 + $0xe0] sm:$0xff]
      %v1869 = vld [vmem:[%s657 + $0xe8] sm:$0xff]
      %v1870 = vld [vmem:[%s657 + $0xf0] sm:$0xff]
      %v1871 = vld [vmem:[%s657 + $0xf8] sm:$0xff]
      %v1872 = vld [vmem:[%s657 + $0x100] sm:$0xff]
      %v1873 = vld [vmem:[%s657 + $0x108] sm:$0xff]
      %v1874 = vld [vmem:[%s657 + $0x110] sm:$0xff]
      %v1875 = vld [vmem:[%s657 + $0x118] sm:$0xff]
      %v1876 = vld [vmem:[%s657 + $0x120] sm:$0xff]
      %v1877 = vld [vmem:[%s657 + $0x128] sm:$0xff]
      %v1878 = vld [vmem:[%s657 + $0x130] sm:$0xff]
      %v1879 = vld [vmem:[%s657 + $0x138] sm:$0xff]
      %v1880 = vld [vmem:[%s657 + $0x140] sm:$0xff]
      %v1881 = vld [vmem:[%s657 + $0x148] sm:$0xff]
      %v1882 = vld [vmem:[%s657 + $0x150] sm:$0xff]
      %v1883 = vld [vmem:[%s657 + $0x158] sm:$0xff]
      %v1884 = vld [vmem:[%s657 + $0x160] sm:$0xff]
      %v1885 = vld [vmem:[%s657 + $0x168] sm:$0xff]
      %v1886 = vld [vmem:[%s657 + $0x170] sm:$0xff]
      %v1887 = vld [vmem:[%s657 + $0x178] sm:$0xff]
      %v1888 = vld [vmem:[%s657 + $0x180] sm:$0xff]
      %v1889 = vld [vmem:[%s657 + $0x188] sm:$0xff]
      %v1890 = vld [vmem:[%s657 + $0x190] sm:$0xff]
      %v1891 = vld [vmem:[%s657 + $0x198] sm:$0xff]
      %v1892 = vld [vmem:[%s657 + $0x1a0] sm:$0xff]
      %v1893 = vld [vmem:[%s657 + $0x1a8] sm:$0xff]
      %v1894 = vld [vmem:[%s657 + $0x1b0] sm:$0xff]
      %v1895 = vld [vmem:[%s657 + $0x1b8] sm:$0xff]
      %v1896 = vld [vmem:[%s657 + $0x1c0] sm:$0xff]
      %v1897 = vld [vmem:[%s657 + $0x1c8] sm:$0xff]
      %v1898 = vld [vmem:[%s657 + $0x1d0] sm:$0xff]
      %v1899 = vld [vmem:[%s657 + $0x1d8] sm:$0xff]
      %v1900 = vld [vmem:[%s657 + $0x1e0] sm:$0xff]
      %v1901 = vld [vmem:[%s657 + $0x1e8] sm:$0xff]
      %v1902 = vld [vmem:[%s657 + $0x1f0] sm:$0xff]
      %v1903 = vld [vmem:[%s657 + $0x1f8] sm:$0xff]
      %v1904 = vld [vmem:[%s657 + $0x200] sm:$0xff]
      %v1905 = vld [vmem:[%s657 + $0x208] sm:$0xff]
      %v1906 = vld [vmem:[%s657 + $0x210] sm:$0xff]
      %v1907 = vld [vmem:[%s657 + $0x218] sm:$0xff]
      %v1908 = vld [vmem:[%s657 + $0x220] sm:$0xff]
      %v1909 = vld [vmem:[%s657 + $0x228] sm:$0xff]
      %v1910 = vld [vmem:[%s657 + $0x230] sm:$0xff]
      %v1911 = vld [vmem:[%s657 + $0x238] sm:$0xff]
      %v1912 = vld [vmem:[%s657 + $0x240] sm:$0xff]
      %v1913 = vld [vmem:[%s657 + $0x248] sm:$0xff]
      %v1914 = vld [vmem:[%s657 + $0x250] sm:$0xff]
      %v1915 = vld [vmem:[%s657 + $0x258] sm:$0xff]
      %v1916 = vld [vmem:[%s657 + $0x260] sm:$0xff]
      %v1917 = vld [vmem:[%s657 + $0x268] sm:$0xff]
      %v1918 = vld [vmem:[%s657 + $0x270] sm:$0xff]
      %v1919 = vld [vmem:[%s657 + $0x278] sm:$0xff]
      %v1920 = vld [vmem:[%s657 + $0x280] sm:$0xff]
      %v1921 = vld [vmem:[%s657 + $0x288] sm:$0xff]
      %v1922 = vld [vmem:[%s657 + $0x290] sm:$0xff]
      %v1923 = vld [vmem:[%s657 + $0x298] sm:$0xff]
      %v1924 = vld [vmem:[%s657 + $0x2a0] sm:$0xff]
      %v1925 = vld [vmem:[%s657 + $0x2a8] sm:$0xff]
      %v1926 = vld [vmem:[%s657 + $0x2b0] sm:$0xff]
      %v1927 = vld [vmem:[%s657 + $0x2b8] sm:$0xff]
      %v1928 = vld [vmem:[%s657 + $0x2c0] sm:$0xff]
      %v1929 = vld [vmem:[%s657 + $0x2c8] sm:$0xff]
      %v1930 = vld [vmem:[%s657 + $0x2d0] sm:$0xff]
      %v1931 = vld [vmem:[%s657 + $0x2d8] sm:$0xff]
      %v1932 = vld [vmem:[%s657 + $0x2e0] sm:$0xff]
      %v1933 = vld [vmem:[%s657 + $0x2e8] sm:$0xff]
      %v1934 = vld [vmem:[%s657 + $0x2f0] sm:$0xff]
      %v1935 = vld [vmem:[%s657 + $0x2f8] sm:$0xff]
      %v1936 = vld [vmem:[%s12] sm:$0xff]
      %v1937 = vld [vmem:[%s12 + $0x8] sm:$0xff]
      %v1938 = vld [vmem:[%s12 + $0x10] sm:$0xff]
      %v1939 = vld [vmem:[%s12 + $0x18] sm:$0xff]
      %v1940 = vld [vmem:[%s12 + $0x20] sm:$0xff]
      %v1941 = vld [vmem:[%s12 + $0x28] sm:$0xff]
      %v1942 = vld [vmem:[%s12 + $0x30] sm:$0xff]
      %v1943 = vld [vmem:[%s12 + $0x38] sm:$0xff]
      %v1944 = vld [vmem:[%s12 + $0x40] sm:$0xff]
      %v1945 = vld [vmem:[%s12 + $0x48] sm:$0xff]
      %v1946 = vld [vmem:[%s12 + $0x50] sm:$0xff]
      %v1947 = vld [vmem:[%s12 + $0x58] sm:$0xff]
      %v1948 = vld [vmem:[%s12 + $0x60] sm:$0xff]
      %v1949 = vld [vmem:[%s12 + $0x68] sm:$0xff]
      %v1950 = vld [vmem:[%s12 + $0x70] sm:$0xff]
      %v1951 = vld [vmem:[%s12 + $0x78] sm:$0xff]
      %v1952 = vld [vmem:[%s12 + $0x80] sm:$0xff]
      %v1953 = vld [vmem:[%s12 + $0x88] sm:$0xff]
      %v1954 = vld [vmem:[%s12 + $0x90] sm:$0xff]
      %v1955 = vld [vmem:[%s12 + $0x98] sm:$0xff]
      %v1956 = vld [vmem:[%s12 + $0xa0] sm:$0xff]
      %v1957 = vld [vmem:[%s12 + $0xa8] sm:$0xff]
      %v1958 = vld [vmem:[%s12 + $0xb0] sm:$0xff]
      %v1959 = vld [vmem:[%s12 + $0xb8] sm:$0xff]
      %v1960 = vld [vmem:[%s12 + $0xc0] sm:$0xff]
      %v1961 = vld [vmem:[%s12 + $0xc8] sm:$0xff]
      %v1962 = vld [vmem:[%s12 + $0xd0] sm:$0xff]
      %v1963 = vld [vmem:[%s12 + $0xd8] sm:$0xff]
      %v1964 = vld [vmem:[%s12 + $0xe0] sm:$0xff]
      %v1965 = vld [vmem:[%s12 + $0xe8] sm:$0xff]
      %v1966 = vld [vmem:[%s12 + $0xf0] sm:$0xff]
      %v1967 = vld [vmem:[%s12 + $0xf8] sm:$0xff]
      %v1968 = vld [vmem:[%s12 + $0x100] sm:$0xff]
      %v1969 = vld [vmem:[%s12 + $0x108] sm:$0xff]
      %v1970 = vld [vmem:[%s12 + $0x110] sm:$0xff]
      %v1971 = vld [vmem:[%s12 + $0x118] sm:$0xff]
      %v1972 = vld [vmem:[%s12 + $0x120] sm:$0xff]
      %v1973 = vld [vmem:[%s12 + $0x128] sm:$0xff]
      %v1974 = vld [vmem:[%s12 + $0x130] sm:$0xff]
      %v1975 = vld [vmem:[%s12 + $0x138] sm:$0xff]
      %v1976 = vld [vmem:[%s12 + $0x140] sm:$0xff]
      %v1977 = vld [vmem:[%s12 + $0x148] sm:$0xff]
      %v1978 = vld [vmem:[%s12 + $0x150] sm:$0xff]
      %v1979 = vld [vmem:[%s12 + $0x158] sm:$0xff]
      %v1980 = vld [vmem:[%s12 + $0x160] sm:$0xff]
      %v1981 = vld [vmem:[%s12 + $0x168] sm:$0xff]
      %v1982 = vld [vmem:[%s12 + $0x170] sm:$0xff]
      %v1983 = vld [vmem:[%s12 + $0x178] sm:$0xff]
      %v1984 = vld [vmem:[%s12 + $0x180] sm:$0xff]
      %v1985 = vld [vmem:[%s12 + $0x188] sm:$0xff]
      %v1986 = vld [vmem:[%s12 + $0x190] sm:$0xff]
      %v1987 = vld [vmem:[%s12 + $0x198] sm:$0xff]
      %v1988 = vld [vmem:[%s12 + $0x1a0] sm:$0xff]
      %v1989 = vld [vmem:[%s12 + $0x1a8] sm:$0xff]
      %v1990 = vld [vmem:[%s12 + $0x1b0] sm:$0xff]
      %v1991 = vld [vmem:[%s12 + $0x1b8] sm:$0xff]
      %v1992 = vld [vmem:[%s12 + $0x1c0] sm:$0xff]
      %v1993 = vld [vmem:[%s12 + $0x1c8] sm:$0xff]
      %v1994 = vld [vmem:[%s12 + $0x1d0] sm:$0xff]
      %v1995 = vld [vmem:[%s12 + $0x1d8] sm:$0xff]
      %v1996 = vld [vmem:[%s12 + $0x1e0] sm:$0xff]
      %v1997 = vld [vmem:[%s12 + $0x1e8] sm:$0xff]
      %v1998 = vld [vmem:[%s12 + $0x1f0] sm:$0xff]
      %v1999 = vld [vmem:[%s12 + $0x1f8] sm:$0xff]
      %v2000 = vld [vmem:[%s12 + $0x200] sm:$0xff]
      %v2001 = vld [vmem:[%s12 + $0x208] sm:$0xff]
      %v2002 = vld [vmem:[%s12 + $0x210] sm:$0xff]
      %v2003 = vld [vmem:[%s12 + $0x218] sm:$0xff]
      %v2004 = vld [vmem:[%s12 + $0x220] sm:$0xff]
      %v2005 = vld [vmem:[%s12 + $0x228] sm:$0xff]
      %v2006 = vld [vmem:[%s12 + $0x230] sm:$0xff]
      %v2007 = vld [vmem:[%s12 + $0x238] sm:$0xff]
      %v2008 = vld [vmem:[%s12 + $0x240] sm:$0xff]
      %v2009 = vld [vmem:[%s12 + $0x248] sm:$0xff]
      %v2010 = vld [vmem:[%s12 + $0x250] sm:$0xff]
      %v2011 = vld [vmem:[%s12 + $0x258] sm:$0xff]
      %v2012 = vld [vmem:[%s12 + $0x260] sm:$0xff]
      %v2013 = vld [vmem:[%s12 + $0x268] sm:$0xff]
      %v2014 = vld [vmem:[%s12 + $0x270] sm:$0xff]
      %v2015 = vld [vmem:[%s12 + $0x278] sm:$0xff]
      %v2016 = vld [vmem:[%s12 + $0x280] sm:$0xff]
      %v2017 = vld [vmem:[%s12 + $0x288] sm:$0xff]
      %v2018 = vld [vmem:[%s12 + $0x290] sm:$0xff]
      %v2019 = vld [vmem:[%s12 + $0x298] sm:$0xff]
      %v2020 = vld [vmem:[%s12 + $0x2a0] sm:$0xff]
      %v2021 = vld [vmem:[%s12 + $0x2a8] sm:$0xff]
      %v2022 = vld [vmem:[%s12 + $0x2b0] sm:$0xff]
      %v2023 = vld [vmem:[%s12 + $0x2b8] sm:$0xff]
      %v2024 = vld [vmem:[%s12 + $0x2c0] sm:$0xff]
      %v2025 = vld [vmem:[%s12 + $0x2c8] sm:$0xff]
      %v2026 = vld [vmem:[%s12 + $0x2d0] sm:$0xff]
      %v2027 = vld [vmem:[%s12 + $0x2d8] sm:$0xff]
      %v2028 = vld [vmem:[%s12 + $0x2e0] sm:$0xff]
      %v2029 = vld [vmem:[%s12 + $0x2e8] sm:$0xff]
      %v2030 = vld [vmem:[%s12 + $0x2f0] sm:$0xff]
      %v2031 = vld [vmem:[%s12 + $0x2f8] sm:$0xff]
      %v2032 = vld [vmem:[%s12 + $0x300] sm:$0xff]
      %v2033 = vld [vmem:[%s12 + $0x308] sm:$0xff]
      %v2034 = vld [vmem:[%s12 + $0x310] sm:$0xff]
      %v2035 = vld [vmem:[%s12 + $0x318] sm:$0xff]
      %v2036 = vld [vmem:[%s12 + $0x320] sm:$0xff]
      %v2037 = vld [vmem:[%s12 + $0x328] sm:$0xff]
      %v2038 = vld [vmem:[%s12 + $0x330] sm:$0xff]
      %v2039 = vld [vmem:[%s12 + $0x338] sm:$0xff]
      %v2040 = vld [vmem:[%s12 + $0x340] sm:$0xff]
      %v2041 = vld [vmem:[%s12 + $0x348] sm:$0xff]
      %v2042 = vld [vmem:[%s12 + $0x350] sm:$0xff]
      %v2043 = vld [vmem:[%s12 + $0x358] sm:$0xff]
      %v2044 = vld [vmem:[%s12 + $0x360] sm:$0xff]
      %v2045 = vld [vmem:[%s12 + $0x368] sm:$0xff]
      %v2046 = vld [vmem:[%s12 + $0x370] sm:$0xff]
      %v2047 = vld [vmem:[%s12 + $0x378] sm:$0xff]
      %v2048 = vld [vmem:[%s12 + $0x380] sm:$0xff]
      %v2049 = vld [vmem:[%s12 + $0x388] sm:$0xff]
      %v2050 = vld [vmem:[%s12 + $0x390] sm:$0xff]
      %v2051 = vld [vmem:[%s12 + $0x398] sm:$0xff]
      %v2052 = vld [vmem:[%s12 + $0x3a0] sm:$0xff]
      %v2053 = vld [vmem:[%s12 + $0x3a8] sm:$0xff]
      %v2054 = vld [vmem:[%s12 + $0x3b0] sm:$0xff]
      %v2055 = vld [vmem:[%s12 + $0x3b8] sm:$0xff]
      %vm2056 = vcmask 785408
      %v2058 = vsel %vm2056, %v1843, 0
      %v2061 = vsel %vm2056, %v1847, 0
      %v2064 = vsel %vm2056, %v1851, 0
      %v2067 = vsel %vm2056, %v1855, 0
      %v2070 = vsel %vm2056, %v1859, 0
      %v2073 = vsel %vm2056, %v1863, 0
      %v2076 = vsel %vm2056, %v1867, 0
      %v2079 = vsel %vm2056, %v1871, 0
      %v2082 = vsel %vm2056, %v1875, 0
      %v2085 = vsel %vm2056, %v1879, 0
      %v2088 = vsel %vm2056, %v1883, 0
      %v2091 = vsel %vm2056, %v1887, 0
      %v2094 = vsel %vm2056, %v1891, 0
      %v2097 = vsel %vm2056, %v1895, 0
      %v2100 = vsel %vm2056, %v1899, 0
      %v2103 = vsel %vm2056, %v1903, 0
      %v2106 = vsel %vm2056, %v1907, 0
      %v2109 = vsel %vm2056, %v1911, 0
      %v2112 = vsel %vm2056, %v1915, 0
      %v2115 = vsel %vm2056, %v1919, 0
      %v2118 = vsel %vm2056, %v1923, 0
      %v2121 = vsel %vm2056, %v1927, 0
      %v2124 = vsel %vm2056, %v1931, 0
      %v2127 = vsel %vm2056, %v1935, 0
      %2129 = vmatprep.subr.mxu0 %v1937
      %2130 = vmatpush1.msra.mxu0 %v1936
      %2131 = vmatprep.subr.mxu0 %v1939
      %2132 = vmatpush1.msra.mxu0 %v1938
      %2133 = vmatprep.subr.mxu0 %v1941
      %2134 = vmatpush1.msra.mxu0 %v1940
      %2135 = vmatprep.subr.mxu0 %v1943
      %2136 = vmatpush1.msra.mxu0 %v1942
      %2137 = vmatprep.subr.mxu0 %v1945
      %2138 = vmatpush1.msra.mxu0 %v1944
      %2139 = vmatprep.subr.mxu0 %v1947
      %2140 = vmatpush1.msra.mxu0 %v1946
      %2141 = vmatprep.subr.mxu0 %v1949
      %2142 = vmatpush1.msra.mxu0 %v1948
      %2143 = vmatprep.subr.mxu0 %v1951
      %2144 = vmatpush1.msra.mxu0 %v1950
      %2145 = vmatprep.subr.mxu0 %v1953
      %2146 = vmatpush1.msra.mxu0 %v1952
      %2147 = vmatprep.subr.mxu0 %v1955
      %2148 = vmatpush1.msra.mxu0 %v1954
      %2149 = vmatprep.subr.mxu0 %v1957
      %2150 = vmatpush1.msra.mxu0 %v1956
      %2151 = vmatprep.subr.mxu0 %v1959
      %2152 = vmatpush1.msra.mxu0 %v1958
      %2153 = vmatprep.subr.mxu0 %v1961
      %2154 = vmatpush1.msra.mxu0 %v1960
      %2155 = vmatprep.subr.mxu0 %v1963
      %2156 = vmatpush1.msra.mxu0 %v1962
      %2157 = vmatprep.subr.mxu0 %v1965
      %2158 = vmatpush1.msra.mxu0 %v1964
      %2159 = vmatprep.subr.mxu0 %v1967
      %2160 = vmatpush1.msra.mxu0 %v1966
      %2161 = vmatprep.subr.mxu0 %v1969
      %2162 = vmatpush1.msra.mxu0 %v1968
      %2163 = vmatprep.subr.mxu0 %v1971
      %2164 = vmatpush1.msra.mxu0 %v1970
      %2165 = vmatprep.subr.mxu0 %v1973
      %2166 = vmatpush1.msra.mxu0 %v1972
      %2167 = vmatprep.subr.mxu0 %v1975
      %2168 = vmatpush1.msra.mxu0 %v1974
      %2169 = vmatprep.subr.mxu0 %v1977
      %2170 = vmatpush1.msra.mxu0 %v1976
      %2171 = vmatprep.subr.mxu0 %v1979
      %2172 = vmatpush1.msra.mxu0 %v1978
      %2173 = vmatprep.subr.mxu0 %v1981
      %2174 = vmatpush1.msra.mxu0 %v1980
      %2175 = vmatprep.subr.mxu0 %v1983
      %2176 = vmatpush1.msra.mxu0 %v1982
      %2177 = vmatprep.subr.mxu0 %v1985
      %2178 = vmatpush1.msra.mxu0 %v1984
      %2179 = vmatprep.subr.mxu0 %v1987
      %2180 = vmatpush1.msra.mxu0 %v1986
      %2181 = vmatprep.subr.mxu0 %v1989
      %2182 = vmatpush1.msra.mxu0 %v1988
      %2183 = vmatprep.subr.mxu0 %v1991
      %2184 = vmatpush1.msra.mxu0 %v1990
      %2185 = vmatprep.subr.mxu0 %v1993
      %2186 = vmatpush1.msra.mxu0 %v1992
      %2187 = vmatprep.subr.mxu0 %v1995
      %2188 = vmatpush1.msra.mxu0 %v1994
      %2189 = vmatprep.subr.mxu0 %v1997
      %2190 = vmatpush1.msra.mxu0 %v1996
      %2191 = vmatprep.subr.mxu0 %v1999
      %2192 = vmatpush1.msra.mxu0 %v1998
      %2193 = vmatprep.mubr.f32.mxu0 %v1841
      %2194 = vmatmul.mubr.f32.gmra.mrb[0].mxu0 %v1840
      %v2195 = vpop.f32.mrb[0].mxu0
      %v2196 = vadd.f32 0.0, %v2195
      %v2197 = vpop.f32.mrb[0].mxu0
      %v2198 = vadd.f32 0.0, %v2197
      %2199 = vmatprep.mubr.f32.mxu0 %v1845
      %2200 = vmatmul.mubr.f32.gmra.mrb[0].mxu0 %v1844
      %v2201 = vpop.f32.mrb[0].mxu0
      %v2202 = vadd.f32 0.0, %v2201
      %v2203 = vpop.f32.mrb[0].mxu0
      %v2204 = vadd.f32 0.0, %v2203
      %2205 = vmatprep.mubr.f32.mxu0 %v1849
      %2206 = vmatmul.mubr.f32.gmra.mrb[0].mxu0 %v1848
      %v2207 = vpop.f32.mrb[0].mxu0
      %v2208 = vadd.f32 0.0, %v2207
      %v2209 = vpop.f32.mrb[0].mxu0
      %v2210 = vadd.f32 0.0, %v2209
      %2211 = vmatprep.mubr.f32.mxu0 %v1853
      %2212 = vmatmul.mubr.f32.gmra.mrb[0].mxu0 %v1852
      %v2213 = vpop.f32.mrb[0].mxu0
      %v2214 = vadd.f32 0.0, %v2213
      %v2215 = vpop.f32.mrb[0].mxu0
      %v2216 = vadd.f32 0.0, %v2215
      %2217 = vmatprep.mubr.f32.mxu0 %v1857
      %2218 = vmatmul.mubr.f32.gmra.mrb[0].mxu0 %v1856
      %v2219 = vpop.f32.mrb[0].mxu0
      %v2220 = vadd.f32 0.0, %v2219
      %v2221 = vpop.f32.mrb[0].mxu0
      %v2222 = vadd.f32 0.0, %v2221
      %2223 = vmatprep.mubr.f32.mxu0 %v1861
      %2224 = vmatmul.mubr.f32.gmra.mrb[0].mxu0 %v1860
      %v2225 = vpop.f32.mrb[0].mxu0
      %v2226 = vadd.f32 0.0, %v2225
      %v2227 = vpop.f32.mrb[0].mxu0
      %v2228 = vadd.f32 0.0, %v2227
      %2229 = vmatprep.mubr.f32.mxu0 %v1865
      %2230 = vmatmul.mubr.f32.gmra.mrb[0].mxu0 %v1864
      %v2231 = vpop.f32.mrb[0].mxu0
      %v2232 = vadd.f32 0.0, %v2231
      %v2233 = vpop.f32.mrb[0].mxu0
      %v2234 = vadd.f32 0.0, %v2233
      %2235 = vmatprep.mubr.f32.mxu0 %v1869
      %2236 = vmatmul.mubr.f32.gmra.mrb[0].mxu0 %v1868
      %v2237 = vpop.f32.mrb[0].mxu0
      %v2238 = vadd.f32 0.0, %v2237
      %v2239 = vpop.f32.mrb[0].mxu0
      %v2240 = vadd.f32 0.0, %v2239
      %2241 = vmatprep.mubr.f32.mxu0 %v1873
      %2242 = vmatmul.mubr.f32.gmra.mrb[0].mxu0 %v1872
      %v2243 = vpop.f32.mrb[0].mxu0
      %v2244 = vadd.f32 0.0, %v2243
      %v2245 = vpop.f32.mrb[0].mxu0
      %v2246 = vadd.f32 0.0, %v2245
      %2247 = vmatprep.mubr.f32.mxu0 %v1877
      %2248 = vmatmul.mubr.f32.gmra.mrb[0].mxu0 %v1876
      %v2249 = vpop.f32.mrb[0].mxu0
      %v2250 = vadd.f32 0.0, %v2249
      %v2251 = vpop.f32.mrb[0].mxu0
      %v2252 = vadd.f32 0.0, %v2251
      %2253 = vmatprep.mubr.f32.mxu0 %v1881
      %2254 = vmatmul.mubr.f32.gmra.mrb[0].mxu0 %v1880
      %v2255 = vpop.f32.mrb[0].mxu0
      %v2256 = vadd.f32 0.0, %v2255
      %v2257 = vpop.f32.mrb[0].mxu0
      %v2258 = vadd.f32 0.0, %v2257
      %2259 = vmatprep.mubr.f32.mxu0 %v1885
      %2260 = vmatmul.mubr.f32.gmra.mrb[0].mxu0 %v1884
      %v2261 = vpop.f32.mrb[0].mxu0
      %v2262 = vadd.f32 0.0, %v2261
      %v2263 = vpop.f32.mrb[0].mxu0
      %v2264 = vadd.f32 0.0, %v2263
      %2265 = vmatprep.mubr.f32.mxu0 %v1889
      %2266 = vmatmul.mubr.f32.gmra.mrb[0].mxu0 %v1888
      %v2267 = vpop.f32.mrb[0].mxu0
      %v2268 = vadd.f32 0.0, %v2267
      %v2269 = vpop.f32.mrb[0].mxu0
      %v2270 = vadd.f32 0.0, %v2269
      %2271 = vmatprep.mubr.f32.mxu0 %v1893
      %2272 = vmatmul.mubr.f32.gmra.mrb[0].mxu0 %v1892
      %v2273 = vpop.f32.mrb[0].mxu0
      %v2274 = vadd.f32 0.0, %v2273
      %v2275 = vpop.f32.mrb[0].mxu0
      %v2276 = vadd.f32 0.0, %v2275
      %2277 = vmatprep.mubr.f32.mxu0 %v1897
      %2278 = vmatmul.mubr.f32.gmra.mrb[0].mxu0 %v1896
      %v2279 = vpop.f32.mrb[0].mxu0
      %v2280 = vadd.f32 0.0, %v2279
      %v2281 = vpop.f32.mrb[0].mxu0
      %v2282 = vadd.f32 0.0, %v2281
      %2283 = vmatprep.mubr.f32.mxu0 %v1901
      %2284 = vmatmul.mubr.f32.gmra.mrb[0].mxu0 %v1900
      %v2285 = vpop.f32.mrb[0].mxu0
      %v2286 = vadd.f32 0.0, %v2285
      %v2287 = vpop.f32.mrb[0].mxu0
      %v2288 = vadd.f32 0.0, %v2287
      %2289 = vmatprep.mubr.f32.mxu0 %v1905
      %2290 = vmatmul.mubr.f32.gmra.mrb[0].mxu0 %v1904
      %v2291 = vpop.f32.mrb[0].mxu0
      %v2292 = vadd.f32 0.0, %v2291
      %v2293 = vpop.f32.mrb[0].mxu0
      %v2294 = vadd.f32 0.0, %v2293
      %2295 = vmatprep.mubr.f32.mxu0 %v1909
      %2296 = vmatmul.mubr.f32.gmra.mrb[0].mxu0 %v1908
      %v2297 = vpop.f32.mrb[0].mxu0
      %v2298 = vadd.f32 0.0, %v2297
      %v2299 = vpop.f32.mrb[0].mxu0
      %v2300 = vadd.f32 0.0, %v2299
      %2301 = vmatprep.mubr.f32.mxu0 %v1913
      %2302 = vmatmul.mubr.f32.gmra.mrb[0].mxu0 %v1912
      %v2303 = vpop.f32.mrb[0].mxu0
      %v2304 = vadd.f32 0.0, %v2303
      %v2305 = vpop.f32.mrb[0].mxu0
      %v2306 = vadd.f32 0.0, %v2305
      %2307 = vmatprep.mubr.f32.mxu0 %v1917
      %2308 = vmatmul.mubr.f32.gmra.mrb[0].mxu0 %v1916
      %v2309 = vpop.f32.mrb[0].mxu0
      %v2310 = vadd.f32 0.0, %v2309
      %v2311 = vpop.f32.mrb[0].mxu0
      %v2312 = vadd.f32 0.0, %v2311
      %2313 = vmatprep.mubr.f32.mxu0 %v1921
      %2314 = vmatmul.mubr.f32.gmra.mrb[0].mxu0 %v1920
      %v2315 = vpop.f32.mrb[0].mxu0
      %v2316 = vadd.f32 0.0, %v2315
      %v2317 = vpop.f32.mrb[0].mxu0
      %v2318 = vadd.f32 0.0, %v2317
      %2319 = vmatprep.mubr.f32.mxu0 %v1925
      %2320 = vmatmul.mubr.f32.gmra.mrb[0].mxu0 %v1924
      %v2321 = vpop.f32.mrb[0].mxu0
      %v2322 = vadd.f32 0.0, %v2321
      %v2323 = vpop.f32.mrb[0].mxu0
      %v2324 = vadd.f32 0.0, %v2323
      %2325 = vmatprep.mubr.f32.mxu0 %v1929
      %2326 = vmatmul.mubr.f32.gmra.mrb[0].mxu0 %v1928
      %v2327 = vpop.f32.mrb[0].mxu0
      %v2328 = vadd.f32 0.0, %v2327
      %v2329 = vpop.f32.mrb[0].mxu0
      %v2330 = vadd.f32 0.0, %v2329
      %2331 = vmatprep.mubr.f32.mxu0 %v1933
      %2332 = vmatmul.mubr.f32.gmra.mrb[0].mxu0 %v1932
      %v2333 = vpop.f32.mrb[0].mxu0
      %v2334 = vadd.f32 0.0, %v2333
      %v2335 = vpop.f32.mrb[0].mxu0
      %v2336 = vadd.f32 0.0, %v2335
      %2337 = vdwg.mxu0
      %2338 = vmatprep.subr.mxu0 %v2001
      %2339 = vmatpush1.msra.mxu0 %v2000
      %2340 = vmatprep.subr.mxu0 %v2003
      %2341 = vmatpush1.msra.mxu0 %v2002
      %2342 = vmatprep.subr.mxu0 %v2005
      %2343 = vmatpush1.msra.mxu0 %v2004
      %2344 = vmatprep.subr.mxu0 %v2007
      %2345 = vmatpush1.msra.mxu0 %v2006
      %2346 = vmatprep.subr.mxu0 %v2009
      %2347 = vmatpush1.msra.mxu0 %v2008
      %2348 = vmatprep.subr.mxu0 %v2011
      %2349 = vmatpush1.msra.mxu0 %v2010
      %2350 = vmatprep.subr.mxu0 %v2013
      %2351 = vmatpush1.msra.mxu0 %v2012
      %2352 = vmatprep.subr.mxu0 %v2015
      %2353 = vmatpush1.msra.mxu0 %v2014
      %2354 = vmatprep.subr.mxu0 %v2017
      %2355 = vmatpush1.msra.mxu0 %v2016
      %2356 = vmatprep.subr.mxu0 %v2019
      %2357 = vmatpush1.msra.mxu0 %v2018
      %2358 = vmatprep.subr.mxu0 %v2021
      %2359 = vmatpush1.msra.mxu0 %v2020
      %2360 = vmatprep.subr.mxu0 %v2023
      %2361 = vmatpush1.msra.mxu0 %v2022
      %2362 = vmatprep.subr.mxu0 %v2025
      %2363 = vmatpush1.msra.mxu0 %v2024
      %2364 = vmatprep.subr.mxu0 %v2027
      %2365 = vmatpush1.msra.mxu0 %v2026
      %2366 = vmatprep.subr.mxu0 %v2029
      %2367 = vmatpush1.msra.mxu0 %v2028
      %2368 = vmatprep.subr.mxu0 %v2031
      %2369 = vmatpush1.msra.mxu0 %v2030
      %2370 = vmatprep.subr.mxu0 %v2033
      %2371 = vmatpush1.msra.mxu0 %v2032
      %2372 = vmatprep.subr.mxu0 %v2035
      %2373 = vmatpush1.msra.mxu0 %v2034
      %2374 = vmatprep.subr.mxu0 %v2037
      %2375 = vmatpush1.msra.mxu0 %v2036
      %2376 = vmatprep.subr.mxu0 %v2039
      %2377 = vmatpush1.msra.mxu0 %v2038
      %2378 = vmatprep.subr.mxu0 %v2041
      %2379 = vmatpush1.msra.mxu0 %v2040
      %2380 = vmatprep.subr.mxu0 %v2043
      %2381 = vmatpush1.msra.mxu0 %v2042
      %2382 = vmatprep.subr.mxu0 %v2045
      %2383 = vmatpush1.msra.mxu0 %v2044
      %2384 = vmatprep.subr.mxu0 %v2047
      %2385 = vmatpush1.msra.mxu0 %v2046
      %2386 = vmatprep.subr.mxu0 %v2049
      %2387 = vmatpush1.msra.mxu0 %v2048
      %2388 = vmatprep.subr.mxu0 %v2051
      %2389 = vmatpush1.msra.mxu0 %v2050
      %2390 = vmatprep.subr.mxu0 %v2053
      %2391 = vmatpush1.msra.mxu0 %v2052
      %2392 = vmatprep.subr.mxu0 %v2055
      %2393 = vmatpush1.msra.mxu0 %v2054
      %2394 = vmatprep.subr.mxu0 0.0
      %2395 = vmatpush1.msra.mxu0 0.0
      %2396 = vmatprep.subr.mxu0 0.0
      %2397 = vmatpush1.msra.mxu0 0.0
      %2398 = vmatprep.subr.mxu0 0.0
      %2399 = vmatpush1.msra.mxu0 0.0
      %2400 = vmatprep.subr.mxu0 0.0
      %2401 = vmatpush1.msra.mxu0 0.0
      %2402 = vmatprep.mubr.f32.mxu0 %v2058
      %2403 = vmatmul.mubr.f32.gmra.mrb[0].mxu0 %v1842
      %v2404 = vpop.f32.mrb[0].mxu0
      %v2405 = vadd.f32 %v2196, %v2404
      %v2406 = vpop.f32.mrb[0].mxu0
      %v2407 = vadd.f32 %v2198, %v2406
      %2408 = vmatprep.mubr.f32.mxu0 %v2061
      %2409 = vmatmul.mubr.f32.gmra.mrb[0].mxu0 %v1846
      %v2410 = vpop.f32.mrb[0].mxu0
      %v2411 = vadd.f32 %v2202, %v2410
      %v2412 = vpop.f32.mrb[0].mxu0
      %v2413 = vadd.f32 %v2204, %v2412
      %2414 = vmatprep.mubr.f32.mxu0 %v2064
      %2415 = vmatmul.mubr.f32.gmra.mrb[0].mxu0 %v1850
      %v2416 = vpop.f32.mrb[0].mxu0
      %v2417 = vadd.f32 %v2208, %v2416
      %v2418 = vpop.f32.mrb[0].mxu0
      %v2419 = vadd.f32 %v2210, %v2418
      %2420 = vmatprep.mubr.f32.mxu0 %v2067
      %2421 = vmatmul.mubr.f32.gmra.mrb[0].mxu0 %v1854
      %v2422 = vpop.f32.mrb[0].mxu0
      %v2423 = vadd.f32 %v2214, %v2422
      %v2424 = vpop.f32.mrb[0].mxu0
      %v2425 = vadd.f32 %v2216, %v2424
      %2426 = vmatprep.mubr.f32.mxu0 %v2070
      %2427 = vmatmul.mubr.f32.gmra.mrb[0].mxu0 %v1858
      %v2428 = vpop.f32.mrb[0].mxu0
      %v2429 = vadd.f32 %v2220, %v2428
      %v2430 = vpop.f32.mrb[0].mxu0
      %v2431 = vadd.f32 %v2222, %v2430
      %2432 = vmatprep.mubr.f32.mxu0 %v2073
      %2433 = vmatmul.mubr.f32.gmra.mrb[0].mxu0 %v1862
      %v2434 = vpop.f32.mrb[0].mxu0
      %v2435 = vadd.f32 %v2226, %v2434
      %v2436 = vpop.f32.mrb[0].mxu0
      %v2437 = vadd.f32 %v2228, %v2436
      %2438 = vmatprep.mubr.f32.mxu0 %v2076
      %2439 = vmatmul.mubr.f32.gmra.mrb[0].mxu0 %v1866
      %v2440 = vpop.f32.mrb[0].mxu0
      %v2441 = vadd.f32 %v2232, %v2440
      %v2442 = vpop.f32.mrb[0].mxu0
      %v2443 = vadd.f32 %v2234, %v2442
      %2444 = vmatprep.mubr.f32.mxu0 %v2079
      %2445 = vmatmul.mubr.f32.gmra.mrb[0].mxu0 %v1870
      %v2446 = vpop.f32.mrb[0].mxu0
      %v2447 = vadd.f32 %v2238, %v2446
      %v2448 = vpop.f32.mrb[0].mxu0
      %v2449 = vadd.f32 %v2240, %v2448
      %2450 = vmatprep.mubr.f32.mxu0 %v2082
      %2451 = vmatmul.mubr.f32.gmra.mrb[0].mxu0 %v1874
      %v2452 = vpop.f32.mrb[0].mxu0
      %v2453 = vadd.f32 %v2244, %v2452
      %v2454 = vpop.f32.mrb[0].mxu0
      %v2455 = vadd.f32 %v2246, %v2454
      %2456 = vmatprep.mubr.f32.mxu0 %v2085
      %2457 = vmatmul.mubr.f32.gmra.mrb[0].mxu0 %v1878
      %v2458 = vpop.f32.mrb[0].mxu0
      %v2459 = vadd.f32 %v2250, %v2458
      %v2460 = vpop.f32.mrb[0].mxu0
      %v2461 = vadd.f32 %v2252, %v2460
      %2462 = vmatprep.mubr.f32.mxu0 %v2088
      %2463 = vmatmul.mubr.f32.gmra.mrb[0].mxu0 %v1882
      %v2464 = vpop.f32.mrb[0].mxu0
      %v2465 = vadd.f32 %v2256, %v2464
      %v2466 = vpop.f32.mrb[0].mxu0
      %v2467 = vadd.f32 %v2258, %v2466
      %2468 = vmatprep.mubr.f32.mxu0 %v2091
      %2469 = vmatmul.mubr.f32.gmra.mrb[0].mxu0 %v1886
      %v2470 = vpop.f32.mrb[0].mxu0
      %v2471 = vadd.f32 %v2262, %v2470
      %v2472 = vpop.f32.mrb[0].mxu0
      %v2473 = vadd.f32 %v2264, %v2472
      %2474 = vmatprep.mubr.f32.mxu0 %v2094
      %2475 = vmatmul.mubr.f32.gmra.mrb[0].mxu0 %v1890
      %v2476 = vpop.f32.mrb[0].mxu0
      %v2477 = vadd.f32 %v2268, %v2476
      %v2478 = vpop.f32.mrb[0].mxu0
      %v2479 = vadd.f32 %v2270, %v2478
      %2480 = vmatprep.mubr.f32.mxu0 %v2097
      %2481 = vmatmul.mubr.f32.gmra.mrb[0].mxu0 %v1894
      %v2482 = vpop.f32.mrb[0].mxu0
      %v2483 = vadd.f32 %v2274, %v2482
      %v2484 = vpop.f32.mrb[0].mxu0
      %v2485 = vadd.f32 %v2276, %v2484
      %2486 = vmatprep.mubr.f32.mxu0 %v2100
      %2487 = vmatmul.mubr.f32.gmra.mrb[0].mxu0 %v1898
      %v2488 = vpop.f32.mrb[0].mxu0
      %v2489 = vadd.f32 %v2280, %v2488
      %v2490 = vpop.f32.mrb[0].mxu0
      %v2491 = vadd.f32 %v2282, %v2490
      %2492 = vmatprep.mubr.f32.mxu0 %v2103
      %2493 = vmatmul.mubr.f32.gmra.mrb[0].mxu0 %v1902
      %v2494 = vpop.f32.mrb[0].mxu0
      %v2495 = vadd.f32 %v2286, %v2494
      %v2496 = vpop.f32.mrb[0].mxu0
      %v2497 = vadd.f32 %v2288, %v2496
      %2498 = vmatprep.mubr.f32.mxu0 %v2106
      %2499 = vmatmul.mubr.f32.gmra.mrb[0].mxu0 %v1906
      %v2500 = vpop.f32.mrb[0].mxu0
      %v2501 = vadd.f32 %v2292, %v2500
      %v2502 = vpop.f32.mrb[0].mxu0
      %v2503 = vadd.f32 %v2294, %v2502
      %2504 = vmatprep.mubr.f32.mxu0 %v2109
      %2505 = vmatmul.mubr.f32.gmra.mrb[0].mxu0 %v1910
      %v2506 = vpop.f32.mrb[0].mxu0
      %v2507 = vadd.f32 %v2298, %v2506
      %v2508 = vpop.f32.mrb[0].mxu0
      %v2509 = vadd.f32 %v2300, %v2508
      %2510 = vmatprep.mubr.f32.mxu0 %v2112
      %2511 = vmatmul.mubr.f32.gmra.mrb[0].mxu0 %v1914
      %v2512 = vpop.f32.mrb[0].mxu0
      %v2513 = vadd.f32 %v2304, %v2512
      %v2514 = vpop.f32.mrb[0].mxu0
      %v2515 = vadd.f32 %v2306, %v2514
      %2516 = vmatprep.mubr.f32.mxu0 %v2115
      %2517 = vmatmul.mubr.f32.gmra.mrb[0].mxu0 %v1918
      %v2518 = vpop.f32.mrb[0].mxu0
      %v2519 = vadd.f32 %v2310, %v2518
      %v2520 = vpop.f32.mrb[0].mxu0
      %v2521 = vadd.f32 %v2312, %v2520
      %2522 = vmatprep.mubr.f32.mxu0 %v2118
      %2523 = vmatmul.mubr.f32.gmra.mrb[0].mxu0 %v1922
      %v2524 = vpop.f32.mrb[0].mxu0
      %v2525 = vadd.f32 %v2316, %v2524
      %v2526 = vpop.f32.mrb[0].mxu0
      %v2527 = vadd.f32 %v2318, %v2526
      %2528 = vmatprep.mubr.f32.mxu0 %v2121
      %2529 = vmatmul.mubr.f32.gmra.mrb[0].mxu0 %v1926
      %v2530 = vpop.f32.mrb[0].mxu0
      %v2531 = vadd.f32 %v2322, %v2530
      %v2532 = vpop.f32.mrb[0].mxu0
      %v2533 = vadd.f32 %v2324, %v2532
      %2534 = vmatprep.mubr.f32.mxu0 %v2124
      %2535 = vmatmul.mubr.f32.gmra.mrb[0].mxu0 %v1930
      %v2536 = vpop.f32.mrb[0].mxu0
      %v2537 = vadd.f32 %v2328, %v2536
      %v2538 = vpop.f32.mrb[0].mxu0
      %v2539 = vadd.f32 %v2330, %v2538
      %2540 = vmatprep.mubr.f32.mxu0 %v2127
      %2541 = vmatmul.mubr.f32.gmra.mrb[0].mxu0 %v1934
      %v2542 = vpop.f32.mrb[0].mxu0
      %v2543 = vadd.f32 %v2334, %v2542
      %v2544 = vpop.f32.mrb[0].mxu0
      %v2545 = vadd.f32 %v2336, %v2544
      %2546 = vdwg.mxu0
      %v2548 = vlaneseq
      %v2549 = vshrl.u32 %v2548, 7
      %v2550 = vsub.s32 0, %v2549
      %v2551 = vrot.slane %v672, %v2550
      %v2552 = vlaneseq
      %v2553 = vshrl.u32 %v2552, 7
      %v2554 = vsub.s32 1, %v2553
      %v2555 = vrot.slane %v672, %v2554
      %v2558 = vmul.f32 %v2405, %v2551
      %v2559 = vmul.f32 %v2407, %v2555
      %v2560 = vmul.f32 %v2411, %v2551
      %v2561 = vmul.f32 %v2413, %v2555
      %v2562 = vmul.f32 %v2417, %v2551
      %v2563 = vmul.f32 %v2419, %v2555
      %v2564 = vmul.f32 %v2423, %v2551
      %v2565 = vmul.f32 %v2425, %v2555
      %v2566 = vmul.f32 %v2429, %v2551
      %v2567 = vmul.f32 %v2431, %v2555
      %v2568 = vmul.f32 %v2435, %v2551
      %v2569 = vmul.f32 %v2437, %v2555
      %v2570 = vmul.f32 %v2441, %v2551
      %v2571 = vmul.f32 %v2443, %v2555
      %v2572 = vmul.f32 %v2447, %v2551
      %v2573 = vmul.f32 %v2449, %v2555
      %v2574 = vmul.f32 %v2453, %v2551
      %v2575 = vmul.f32 %v2455, %v2555
      %v2576 = vmul.f32 %v2459, %v2551
      %v2577 = vmul.f32 %v2461, %v2555
      %v2578 = vmul.f32 %v2465, %v2551
      %v2579 = vmul.f32 %v2467, %v2555
      %v2580 = vmul.f32 %v2471, %v2551
      %v2581 = vmul.f32 %v2473, %v2555
      %v2582 = vmul.f32 %v2477, %v2551
      %v2583 = vmul.f32 %v2479, %v2555
      %v2584 = vmul.f32 %v2483, %v2551
      %v2585 = vmul.f32 %v2485, %v2555
      %v2586 = vmul.f32 %v2489, %v2551
      %v2587 = vmul.f32 %v2491, %v2555
      %v2588 = vmul.f32 %v2495, %v2551
      %v2589 = vmul.f32 %v2497, %v2555
      %v2590 = vmul.f32 %v2501, %v2551
      %v2591 = vmul.f32 %v2503, %v2555
      %v2592 = vmul.f32 %v2507, %v2551
      %v2593 = vmul.f32 %v2509, %v2555
      %v2594 = vmul.f32 %v2513, %v2551
      %v2595 = vmul.f32 %v2515, %v2555
      %v2596 = vmul.f32 %v2519, %v2551
      %v2597 = vmul.f32 %v2521, %v2555
      %v2598 = vmul.f32 %v2525, %v2551
      %v2599 = vmul.f32 %v2527, %v2555
      %v2600 = vmul.f32 %v2531, %v2551
      %v2601 = vmul.f32 %v2533, %v2555
      %v2602 = vmul.f32 %v2537, %v2551
      %v2603 = vmul.f32 %v2539, %v2555
      %v2604 = vmul.f32 %v2543, %v2551
      %v2605 = vmul.f32 %v2545, %v2555
      %v2606 = vadd.f32 %v2558, %v2559
      %2607 = vadd.xlane.f32.xlu0 %v2606
      %v2608 = vpop.xlane.xlu0 %2607
      %v2609 = vadd.f32 %v2560, %v2561
      %2610 = vadd.xlane.f32.xlu0 %v2609
      %v2611 = vpop.xlane.xlu0 %2610
      %v2612 = vadd.f32 %v2562, %v2563
      %2613 = vadd.xlane.f32.xlu0 %v2612
      %v2614 = vpop.xlane.xlu0 %2613
      %v2615 = vadd.f32 %v2564, %v2565
      %2616 = vadd.xlane.f32.xlu0 %v2615
      %v2617 = vpop.xlane.xlu0 %2616
      %v2618 = vadd.f32 %v2566, %v2567
      %2619 = vadd.xlane.f32.xlu0 %v2618
      %v2620 = vpop.xlane.xlu0 %2619
      %v2621 = vadd.f32 %v2568, %v2569
      %2622 = vadd.xlane.f32.xlu0 %v2621
      %v2623 = vpop.xlane.xlu0 %2622
      %v2624 = vadd.f32 %v2570, %v2571
      %2625 = vadd.xlane.f32.xlu0 %v2624
      %v2626 = vpop.xlane.xlu0 %2625
      %v2627 = vadd.f32 %v2572, %v2573
      %2628 = vadd.xlane.f32.xlu0 %v2627
      %v2629 = vpop.xlane.xlu0 %2628
      %v2630 = vadd.f32 %v2574, %v2575
      %2631 = vadd.xlane.f32.xlu0 %v2630
      %v2632 = vpop.xlane.xlu0 %2631
      %v2633 = vadd.f32 %v2576, %v2577
      %2634 = vadd.xlane.f32.xlu0 %v2633
      %v2635 = vpop.xlane.xlu0 %2634
      %v2636 = vadd.f32 %v2578, %v2579
      %2637 = vadd.xlane.f32.xlu0 %v2636
      %v2638 = vpop.xlane.xlu0 %2637
      %v2639 = vadd.f32 %v2580, %v2581
      %2640 = vadd.xlane.f32.xlu0 %v2639
      %v2641 = vpop.xlane.xlu0 %2640
      %v2642 = vadd.f32 %v2582, %v2583
      %2643 = vadd.xlane.f32.xlu0 %v2642
      %v2644 = vpop.xlane.xlu0 %2643
      %v2645 = vadd.f32 %v2584, %v2585
      %2646 = vadd.xlane.f32.xlu0 %v2645
      %v2647 = vpop.xlane.xlu0 %2646
      %v2648 = vadd.f32 %v2586, %v2587
      %2649 = vadd.xlane.f32.xlu0 %v2648
      %v2650 = vpop.xlane.xlu0 %2649
      %v2651 = vadd.f32 %v2588, %v2589
      %2652 = vadd.xlane.f32.xlu0 %v2651
      %v2653 = vpop.xlane.xlu0 %2652
      %v2654 = vadd.f32 %v2590, %v2591
      %2655 = vadd.xlane.f32.xlu0 %v2654
      %v2656 = vpop.xlane.xlu0 %2655
      %v2657 = vadd.f32 %v2592, %v2593
      %2658 = vadd.xlane.f32.xlu0 %v2657
      %v2659 = vpop.xlane.xlu0 %2658
      %v2660 = vadd.f32 %v2594, %v2595
      %2661 = vadd.xlane.f32.xlu0 %v2660
      %v2662 = vpop.xlane.xlu0 %2661
      %v2663 = vadd.f32 %v2596, %v2597
      %2664 = vadd.xlane.f32.xlu0 %v2663
      %v2665 = vpop.xlane.xlu0 %2664
      %v2666 = vadd.f32 %v2598, %v2599
      %2667 = vadd.xlane.f32.xlu0 %v2666
      %v2668 = vpop.xlane.xlu0 %2667
      %v2669 = vadd.f32 %v2600, %v2601
      %2670 = vadd.xlane.f32.xlu0 %v2669
      %v2671 = vpop.xlane.xlu0 %2670
      %v2672 = vadd.f32 %v2602, %v2603
      %2673 = vadd.xlane.f32.xlu0 %v2672
      %v2674 = vpop.xlane.xlu0 %2673
      %v2675 = vadd.f32 %v2604, %v2605
      %2676 = vadd.xlane.f32.xlu0 %v2675
      %v2677 = vpop.xlane.xlu0 %2676
      %v2679 = vlaneseq
      %v2680 = vshrl.u32 %v2679, 7
      %v2681 = vsub.s32 0, %v2680
      %v2682 = vrot.slane %v673, %v2681
      %v2683 = vlaneseq
      %v2684 = vshrl.u32 %v2683, 7
      %v2685 = vsub.s32 1, %v2684
      %v2686 = vrot.slane %v673, %v2685
      %2689 = vmatprep.subr.mxu0 %v2407
      %2690 = vmatpush1.xpose.msra.mxu0 %v2405
      %2691 = vmatprep.subr.mxu0 %v2413
      %2692 = vmatpush1.xpose.msra.mxu0 %v2411
      %2693 = vmatprep.subr.mxu0 %v2419
      %2694 = vmatpush1.xpose.msra.mxu0 %v2417
      %2695 = vmatprep.subr.mxu0 %v2425
      %2696 = vmatpush1.xpose.msra.mxu0 %v2423
      %2697 = vmatprep.subr.mxu0 %v2431
      %2698 = vmatpush1.xpose.msra.mxu0 %v2429
      %2699 = vmatprep.subr.mxu0 %v2437
      %2700 = vmatpush1.xpose.msra.mxu0 %v2435
      %2701 = vmatprep.subr.mxu0 %v2443
      %2702 = vmatpush1.xpose.msra.mxu0 %v2441
      %2703 = vmatprep.subr.mxu0 %v2449
      %2704 = vmatpush1.xpose.msra.mxu0 %v2447
      %2705 = vmatprep.subr.mxu0 %v2455
      %2706 = vmatpush1.xpose.msra.mxu0 %v2453
      %2707 = vmatprep.subr.mxu0 %v2461
      %2708 = vmatpush1.xpose.msra.mxu0 %v2459
      %2709 = vmatprep.subr.mxu0 %v2467
      %2710 = vmatpush1.xpose.msra.mxu0 %v2465
      %2711 = vmatprep.subr.mxu0 %v2473
      %2712 = vmatpush1.xpose.msra.mxu0 %v2471
      %2713 = vmatprep.subr.mxu0 %v2479
      %2714 = vmatpush1.xpose.msra.mxu0 %v2477
      %2715 = vmatprep.subr.mxu0 %v2485
      %2716 = vmatpush1.xpose.msra.mxu0 %v2483
      %2717 = vmatprep.subr.mxu0 %v2491
      %2718 = vmatpush1.xpose.msra.mxu0 %v2489
      %2719 = vmatprep.subr.mxu0 %v2497
      %2720 = vmatpush1.xpose.msra.mxu0 %v2495
      %2721 = vmatprep.subr.mxu0 %v2503
      %2722 = vmatpush1.xpose.msra.mxu0 %v2501
      %2723 = vmatprep.subr.mxu0 %v2509
      %2724 = vmatpush1.xpose.msra.mxu0 %v2507
      %2725 = vmatprep.subr.mxu0 %v2515
      %2726 = vmatpush1.xpose.msra.mxu0 %v2513
      %2727 = vmatprep.subr.mxu0 %v2521
      %2728 = vmatpush1.xpose.msra.mxu0 %v2519
      %2729 = vmatprep.subr.mxu0 %v2527
      %2730 = vmatpush1.xpose.msra.mxu0 %v2525
      %2731 = vmatprep.subr.mxu0 %v2533
      %2732 = vmatpush1.xpose.msra.mxu0 %v2531
      %2733 = vmatprep.subr.mxu0 %v2539
      %2734 = vmatpush1.xpose.msra.mxu0 %v2537
      %2735 = vmatprep.subr.mxu0 %v2545
      %2736 = vmatpush1.xpose.msra.mxu0 %v2543
      %2737 = vmatprep.subr.mxu0 0.0
      %2738 = vmatpush1.xpose.msra.mxu0 0.0
      %2739 = vmatprep.subr.mxu0 0.0
      %2740 = vmatpush1.xpose.msra.mxu0 0.0
      %2741 = vmatprep.subr.mxu0 0.0
      %2742 = vmatpush1.xpose.msra.mxu0 0.0
      %2743 = vmatprep.subr.mxu0 0.0
      %2744 = vmatpush1.xpose.msra.mxu0 0.0
      %2745 = vmatprep.subr.mxu0 0.0
      %2746 = vmatpush1.xpose.msra.mxu0 0.0
      %2747 = vmatprep.subr.mxu0 0.0
      %2748 = vmatpush1.xpose.msra.mxu0 0.0
      %2749 = vmatprep.subr.mxu0 0.0
      %2750 = vmatpush1.xpose.msra.mxu0 0.0
      %2751 = vmatprep.subr.mxu0 0.0
      %2752 = vmatpush1.xpose.msra.mxu0 0.0
      %2753 = vmatprep.mubr.f32.mxu0 %v2686
      %2754 = vmatmul.mubr.f32.gmra.mrb[0].mxu0 %v2682
      %v2755 = vpop.f32.mrb[0].mxu0
      %v2756 = vadd.f32 0.0, %v2755
      %v2757 = vpop.f32.mrb[0].mxu0
      %v2758 = vadd.f32 0.0, %v2757
      %2759 = vdwg.mxu0
      %v2760 = vlaneseq
      %v2761 = vshrl.u32 %v2760, 7
      %v2762 = vsub.s32 0, %v2761
      %v2763 = vrot.slane %v2756, %v2762
      %v2764 = vlaneseq
      %v2765 = vshrl.u32 %v2764, 7
      %v2766 = vsub.s32 0, %v2765
      %v2767 = vrot.slane %v2758, %v2766
      %v2768 = vadd.f32 %v2608, %v2763
      %v2769 = vadd.f32 %v2608, %v2767
      %v2770 = vadd.f32 %v2611, %v2763
      %v2771 = vadd.f32 %v2611, %v2767
      %v2772 = vadd.f32 %v2614, %v2763
      %v2773 = vadd.f32 %v2614, %v2767
      %v2774 = vadd.f32 %v2617, %v2763
      %v2775 = vadd.f32 %v2617, %v2767
      %v2776 = vadd.f32 %v2620, %v2763
      %v2777 = vadd.f32 %v2620, %v2767
      %v2778 = vadd.f32 %v2623, %v2763
      %v2779 = vadd.f32 %v2623, %v2767
      %v2780 = vadd.f32 %v2626, %v2763
      %v2781 = vadd.f32 %v2626, %v2767
      %v2782 = vadd.f32 %v2629, %v2763
      %v2783 = vadd.f32 %v2629, %v2767
      %v2784 = vadd.f32 %v2632, %v2763
      %v2785 = vadd.f32 %v2632, %v2767
      %v2786 = vadd.f32 %v2635, %v2763
      %v2787 = vadd.f32 %v2635, %v2767
      %v2788 = vadd.f32 %v2638, %v2763
      %v2789 = vadd.f32 %v2638, %v2767
      %v2790 = vadd.f32 %v2641, %v2763
      %v2791 = vadd.f32 %v2641, %v2767
      %v2792 = vadd.f32 %v2644, %v2763
      %v2793 = vadd.f32 %v2644, %v2767
      %v2794 = vadd.f32 %v2647, %v2763
      %v2795 = vadd.f32 %v2647, %v2767
      %v2796 = vadd.f32 %v2650, %v2763
      %v2797 = vadd.f32 %v2650, %v2767
      %v2798 = vadd.f32 %v2653, %v2763
      %v2799 = vadd.f32 %v2653, %v2767
      %v2800 = vadd.f32 %v2656, %v2763
      %v2801 = vadd.f32 %v2656, %v2767
      %v2802 = vadd.f32 %v2659, %v2763
      %v2803 = vadd.f32 %v2659, %v2767
      %v2804 = vadd.f32 %v2662, %v2763
      %v2805 = vadd.f32 %v2662, %v2767
      %v2806 = vadd.f32 %v2665, %v2763
      %v2807 = vadd.f32 %v2665, %v2767
      %v2808 = vadd.f32 %v2668, %v2763
      %v2809 = vadd.f32 %v2668, %v2767
      %v2810 = vadd.f32 %v2671, %v2763
      %v2811 = vadd.f32 %v2671, %v2767
      %v2812 = vadd.f32 %v2674, %v2763
      %v2813 = vadd.f32 %v2674, %v2767
      %v2814 = vadd.f32 %v2677, %v2763
      %v2815 = vadd.f32 %v2677, %v2767
      %vm2816 = vcmp.gt.f32.partialorder %v2768, 0.0
      %vm2817 = vcmp.gt.f32.partialorder %v2769, 0.0
      %vm2818 = vcmp.gt.f32.partialorder %v2770, 0.0
      %vm2819 = vcmp.gt.f32.partialorder %v2771, 0.0
      %vm2820 = vcmp.gt.f32.partialorder %v2772, 0.0
      %vm2821 = vcmp.gt.f32.partialorder %v2773, 0.0
      %vm2822 = vcmp.gt.f32.partialorder %v2774, 0.0
      %vm2823 = vcmp.gt.f32.partialorder %v2775, 0.0
      %vm2824 = vcmp.gt.f32.partialorder %v2776, 0.0
      %vm2825 = vcmp.gt.f32.partialorder %v2777, 0.0
      %vm2826 = vcmp.gt.f32.partialorder %v2778, 0.0
      %vm2827 = vcmp.gt.f32.partialorder %v2779, 0.0
      %vm2828 = vcmp.gt.f32.partialorder %v2780, 0.0
      %vm2829 = vcmp.gt.f32.partialorder %v2781, 0.0
      %vm2830 = vcmp.gt.f32.partialorder %v2782, 0.0
      %vm2831 = vcmp.gt.f32.partialorder %v2783, 0.0
      %vm2832 = vcmp.gt.f32.partialorder %v2784, 0.0
      %vm2833 = vcmp.gt.f32.partialorder %v2785, 0.0
      %vm2834 = vcmp.gt.f32.partialorder %v2786, 0.0
      %vm2835 = vcmp.gt.f32.partialorder %v2787, 0.0
      %vm2836 = vcmp.gt.f32.partialorder %v2788, 0.0
      %vm2837 = vcmp.gt.f32.partialorder %v2789, 0.0
      %vm2838 = vcmp.gt.f32.partialorder %v2790, 0.0
      %vm2839 = vcmp.gt.f32.partialorder %v2791, 0.0
      %vm2840 = vcmp.gt.f32.partialorder %v2792, 0.0
      %vm2841 = vcmp.gt.f32.partialorder %v2793, 0.0
      %vm2842 = vcmp.gt.f32.partialorder %v2794, 0.0
      %vm2843 = vcmp.gt.f32.partialorder %v2795, 0.0
      %vm2844 = vcmp.gt.f32.partialorder %v2796, 0.0
      %vm2845 = vcmp.gt.f32.partialorder %v2797, 0.0
      %vm2846 = vcmp.gt.f32.partialorder %v2798, 0.0
      %vm2847 = vcmp.gt.f32.partialorder %v2799, 0.0
      %vm2848 = vcmp.gt.f32.partialorder %v2800, 0.0
      %vm2849 = vcmp.gt.f32.partialorder %v2801, 0.0
      %vm2850 = vcmp.gt.f32.partialorder %v2802, 0.0
      %vm2851 = vcmp.gt.f32.partialorder %v2803, 0.0
      %vm2852 = vcmp.gt.f32.partialorder %v2804, 0.0
      %vm2853 = vcmp.gt.f32.partialorder %v2805, 0.0
      %vm2854 = vcmp.gt.f32.partialorder %v2806, 0.0
      %vm2855 = vcmp.gt.f32.partialorder %v2807, 0.0
      %vm2856 = vcmp.gt.f32.partialorder %v2808, 0.0
      %vm2857 = vcmp.gt.f32.partialorder %v2809, 0.0
      %vm2858 = vcmp.gt.f32.partialorder %v2810, 0.0
      %vm2859 = vcmp.gt.f32.partialorder %v2811, 0.0
      %vm2860 = vcmp.gt.f32.partialorder %v2812, 0.0
      %vm2861 = vcmp.gt.f32.partialorder %v2813, 0.0
      %vm2862 = vcmp.gt.f32.partialorder %v2814, 0.0
      %vm2863 = vcmp.gt.f32.partialorder %v2815, 0.0
      %v2864 = vmul.f32 %v2768, 0.2
      %v2865 = vmul.f32 %v2769, 0.2
      %v2866 = vmul.f32 %v2770, 0.2
      %v2867 = vmul.f32 %v2771, 0.2
      %v2868 = vmul.f32 %v2772, 0.2
      %v2869 = vmul.f32 %v2773, 0.2
      %v2870 = vmul.f32 %v2774, 0.2
      %v2871 = vmul.f32 %v2775, 0.2
      %v2872 = vmul.f32 %v2776, 0.2
      %v2873 = vmul.f32 %v2777, 0.2
      %v2874 = vmul.f32 %v2778, 0.2
      %v2875 = vmul.f32 %v2779, 0.2
      %v2876 = vmul.f32 %v2780, 0.2
      %v2877 = vmul.f32 %v2781, 0.2
      %v2878 = vmul.f32 %v2782, 0.2
      %v2879 = vmul.f32 %v2783, 0.2
      %v2880 = vmul.f32 %v2784, 0.2
      %v2881 = vmul.f32 %v2785, 0.2
      %v2882 = vmul.f32 %v2786, 0.2
      %v2883 = vmul.f32 %v2787, 0.2
      %v2884 = vmul.f32 %v2788, 0.2
      %v2885 = vmul.f32 %v2789, 0.2
      %v2886 = vmul.f32 %v2790, 0.2
      %v2887 = vmul.f32 %v2791, 0.2
      %v2888 = vmul.f32 %v2792, 0.2
      %v2889 = vmul.f32 %v2793, 0.2
      %v2890 = vmul.f32 %v2794, 0.2
      %v2891 = vmul.f32 %v2795, 0.2
      %v2892 = vmul.f32 %v2796, 0.2
      %v2893 = vmul.f32 %v2797, 0.2
      %v2894 = vmul.f32 %v2798, 0.2
      %v2895 = vmul.f32 %v2799, 0.2
      %v2896 = vmul.f32 %v2800, 0.2
      %v2897 = vmul.f32 %v2801, 0.2
      %v2898 = vmul.f32 %v2802, 0.2
      %v2899 = vmul.f32 %v2803, 0.2
      %v2900 = vmul.f32 %v2804, 0.2
      %v2901 = vmul.f32 %v2805, 0.2
      %v2902 = vmul.f32 %v2806, 0.2
      %v2903 = vmul.f32 %v2807, 0.2
      %v2904 = vmul.f32 %v2808, 0.2
      %v2905 = vmul.f32 %v2809, 0.2
      %v2906 = vmul.f32 %v2810, 0.2
      %v2907 = vmul.f32 %v2811, 0.2
      %v2908 = vmul.f32 %v2812, 0.2
      %v2909 = vmul.f32 %v2813, 0.2
      %v2910 = vmul.f32 %v2814, 0.2
      %v2911 = vmul.f32 %v2815, 0.2
      %v2912 = vsel %vm2816, %v2768, %v2864
      %v2913 = vsel %vm2817, %v2769, %v2865
      %v2914 = vsel %vm2818, %v2770, %v2866
      %v2915 = vsel %vm2819, %v2771, %v2867
      %v2916 = vsel %vm2820, %v2772, %v2868
      %v2917 = vsel %vm2821, %v2773, %v2869
      %v2918 = vsel %vm2822, %v2774, %v2870
      %v2919 = vsel %vm2823, %v2775, %v2871
      %v2920 = vsel %vm2824, %v2776, %v2872
      %v2921 = vsel %vm2825, %v2777, %v2873
      %v2922 = vsel %vm2826, %v2778, %v2874
      %v2923 = vsel %vm2827, %v2779, %v2875
      %v2924 = vsel %vm2828, %v2780, %v2876
      %v2925 = vsel %vm2829, %v2781, %v2877
      %v2926 = vsel %vm2830, %v2782, %v2878
      %v2927 = vsel %vm2831, %v2783, %v2879
      %v2928 = vsel %vm2832, %v2784, %v2880
      %v2929 = vsel %vm2833, %v2785, %v2881
      %v2930 = vsel %vm2834, %v2786, %v2882
      %v2931 = vsel %vm2835, %v2787, %v2883
      %v2932 = vsel %vm2836, %v2788, %v2884
      %v2933 = vsel %vm2837, %v2789, %v2885
      %v2934 = vsel %vm2838, %v2790, %v2886
      %v2935 = vsel %vm2839, %v2791, %v2887
      %v2936 = vsel %vm2840, %v2792, %v2888
      %v2937 = vsel %vm2841, %v2793, %v2889
      %v2938 = vsel %vm2842, %v2794, %v2890
      %v2939 = vsel %vm2843, %v2795, %v2891
      %v2940 = vsel %vm2844, %v2796, %v2892
      %v2941 = vsel %vm2845, %v2797, %v2893
      %v2942 = vsel %vm2846, %v2798, %v2894
      %v2943 = vsel %vm2847, %v2799, %v2895
      %v2944 = vsel %vm2848, %v2800, %v2896
      %v2945 = vsel %vm2849, %v2801, %v2897
      %v2946 = vsel %vm2850, %v2802, %v2898
      %v2947 = vsel %vm2851, %v2803, %v2899
      %v2948 = vsel %vm2852, %v2804, %v2900
      %v2949 = vsel %vm2853, %v2805, %v2901
      %v2950 = vsel %vm2854, %v2806, %v2902
      %v2951 = vsel %vm2855, %v2807, %v2903
      %v2952 = vsel %vm2856, %v2808, %v2904
      %v2953 = vsel %vm2857, %v2809, %v2905
      %v2954 = vsel %vm2858, %v2810, %v2906
      %v2955 = vsel %vm2859, %v2811, %v2907
      %v2956 = vsel %vm2860, %v2812, %v2908
      %v2957 = vsel %vm2861, %v2813, %v2909
      %v2958 = vsel %vm2862, %v2814, %v2910
      %v2959 = vsel %vm2863, %v2815, %v2911
      %vm2960 = vcmp.gt.f32.partialorder %v1792, 0.0
      %vm2961 = vcmp.gt.f32.partialorder %v1793, 0.0
      %vm2962 = vcmp.gt.f32.partialorder %v1794, 0.0
      %vm2963 = vcmp.gt.f32.partialorder %v1795, 0.0
      %vm2964 = vcmp.gt.f32.partialorder %v1796, 0.0
      %vm2965 = vcmp.gt.f32.partialorder %v1797, 0.0
      %vm2966 = vcmp.gt.f32.partialorder %v1798, 0.0
      %vm2967 = vcmp.gt.f32.partialorder %v1799, 0.0
      %vm2968 = vcmp.gt.f32.partialorder %v1800, 0.0
      %vm2969 = vcmp.gt.f32.partialorder %v1801, 0.0
      %vm2970 = vcmp.gt.f32.partialorder %v1802, 0.0
      %vm2971 = vcmp.gt.f32.partialorder %v1803, 0.0
      %vm2972 = vcmp.gt.f32.partialorder %v1804, 0.0
      %vm2973 = vcmp.gt.f32.partialorder %v1805, 0.0
      %vm2974 = vcmp.gt.f32.partialorder %v1806, 0.0
      %vm2975 = vcmp.gt.f32.partialorder %v1807, 0.0
      %vm2976 = vcmp.gt.f32.partialorder %v1808, 0.0
      %vm2977 = vcmp.gt.f32.partialorder %v1809, 0.0
      %vm2978 = vcmp.gt.f32.partialorder %v1810, 0.0
      %vm2979 = vcmp.gt.f32.partialorder %v1811, 0.0
      %vm2980 = vcmp.gt.f32.partialorder %v1812, 0.0
      %vm2981 = vcmp.gt.f32.partialorder %v1813, 0.0
      %vm2982 = vcmp.gt.f32.partialorder %v1814, 0.0
      %vm2983 = vcmp.gt.f32.partialorder %v1815, 0.0
      %vm2984 = vcmp.gt.f32.partialorder %v1816, 0.0
      %vm2985 = vcmp.gt.f32.partialorder %v1817, 0.0
      %vm2986 = vcmp.gt.f32.partialorder %v1818, 0.0
      %vm2987 = vcmp.gt.f32.partialorder %v1819, 0.0
      %vm2988 = vcmp.gt.f32.partialorder %v1820, 0.0
      %vm2989 = vcmp.gt.f32.partialorder %v1821, 0.0
      %vm2990 = vcmp.gt.f32.partialorder %v1822, 0.0
      %vm2991 = vcmp.gt.f32.partialorder %v1823, 0.0
      %vm2992 = vcmp.gt.f32.partialorder %v1824, 0.0
      %vm2993 = vcmp.gt.f32.partialorder %v1825, 0.0
      %vm2994 = vcmp.gt.f32.partialorder %v1826, 0.0
      %vm2995 = vcmp.gt.f32.partialorder %v1827, 0.0
      %vm2996 = vcmp.gt.f32.partialorder %v1828, 0.0
      %vm2997 = vcmp.gt.f32.partialorder %v1829, 0.0
      %vm2998 = vcmp.gt.f32.partialorder %v1830, 0.0
      %vm2999 = vcmp.gt.f32.partialorder %v1831, 0.0
      %vm3000 = vcmp.gt.f32.partialorder %v1832, 0.0
      %vm3001 = vcmp.gt.f32.partialorder %v1833, 0.0
      %vm3002 = vcmp.gt.f32.partialorder %v1834, 0.0
      %vm3003 = vcmp.gt.f32.partialorder %v1835, 0.0
      %vm3004 = vcmp.gt.f32.partialorder %v1836, 0.0
      %vm3005 = vcmp.gt.f32.partialorder %v1837, 0.0
      %vm3006 = vcmp.gt.f32.partialorder %v1838, 0.0
      %vm3007 = vcmp.gt.f32.partialorder %v1839, 0.0
      %v3008 = vsel %vm2960, %v2912, -1e+30
      %v3009 = vsel %vm2961, %v2913, -1e+30
      %v3010 = vsel %vm2962, %v2914, -1e+30
      %v3011 = vsel %vm2963, %v2915, -1e+30
      %v3012 = vsel %vm2964, %v2916, -1e+30
      %v3013 = vsel %vm2965, %v2917, -1e+30
      %v3014 = vsel %vm2966, %v2918, -1e+30
      %v3015 = vsel %vm2967, %v2919, -1e+30
      %v3016 = vsel %vm2968, %v2920, -1e+30
      %v3017 = vsel %vm2969, %v2921, -1e+30
      %v3018 = vsel %vm2970, %v2922, -1e+30
      %v3019 = vsel %vm2971, %v2923, -1e+30
      %v3020 = vsel %vm2972, %v2924, -1e+30
      %v3021 = vsel %vm2973, %v2925, -1e+30
      %v3022 = vsel %vm2974, %v2926, -1e+30
      %v3023 = vsel %vm2975, %v2927, -1e+30
      %v3024 = vsel %vm2976, %v2928, -1e+30
      %v3025 = vsel %vm2977, %v2929, -1e+30
      %v3026 = vsel %vm2978, %v2930, -1e+30
      %v3027 = vsel %vm2979, %v2931, -1e+30
      %v3028 = vsel %vm2980, %v2932, -1e+30
      %v3029 = vsel %vm2981, %v2933, -1e+30
      %v3030 = vsel %vm2982, %v2934, -1e+30
      %v3031 = vsel %vm2983, %v2935, -1e+30
      %v3032 = vsel %vm2984, %v2936, -1e+30
      %v3033 = vsel %vm2985, %v2937, -1e+30
      %v3034 = vsel %vm2986, %v2938, -1e+30
      %v3035 = vsel %vm2987, %v2939, -1e+30
      %v3036 = vsel %vm2988, %v2940, -1e+30
      %v3037 = vsel %vm2989, %v2941, -1e+30
      %v3038 = vsel %vm2990, %v2942, -1e+30
      %v3039 = vsel %vm2991, %v2943, -1e+30
      %v3040 = vsel %vm2992, %v2944, -1e+30
      %v3041 = vsel %vm2993, %v2945, -1e+30
      %v3042 = vsel %vm2994, %v2946, -1e+30
      %v3043 = vsel %vm2995, %v2947, -1e+30
      %v3044 = vsel %vm2996, %v2948, -1e+30
      %v3045 = vsel %vm2997, %v2949, -1e+30
      %v3046 = vsel %vm2998, %v2950, -1e+30
      %v3047 = vsel %vm2999, %v2951, -1e+30
      %v3048 = vsel %vm3000, %v2952, -1e+30
      %v3049 = vsel %vm3001, %v2953, -1e+30
      %v3050 = vsel %vm3002, %v2954, -1e+30
      %v3051 = vsel %vm3003, %v2955, -1e+30
      %v3052 = vsel %vm3004, %v2956, -1e+30
      %v3053 = vsel %vm3005, %v2957, -1e+30
      %v3054 = vsel %vm3006, %v2958, -1e+30
      %v3055 = vsel %vm3007, %v2959, -1e+30
      %vm3056 = vcmask 523264
      %v3057 = vsel %vm3056, %v3009, -inf
      %v3058 = vmax.f32 %v3008, %v3057
      %3059 = vmax.xlane.f32.xlu0 %v3058
      %v3060 = vpop.xlane.xlu0 %3059
      %v3061 = vsel %vm3056, %v3011, -inf
      %v3062 = vmax.f32 %v3010, %v3061
      %3063 = vmax.xlane.f32.xlu0 %v3062
      %v3064 = vpop.xlane.xlu0 %3063
      %v3065 = vsel %vm3056, %v3013, -inf
      %v3066 = vmax.f32 %v3012, %v3065
      %3067 = vmax.xlane.f32.xlu0 %v3066
      %v3068 = vpop.xlane.xlu0 %3067
      %v3069 = vsel %vm3056, %v3015, -inf
      %v3070 = vmax.f32 %v3014, %v3069
      %3071 = vmax.xlane.f32.xlu0 %v3070
      %v3072 = vpop.xlane.xlu0 %3071
      %v3073 = vsel %vm3056, %v3017, -inf
      %v3074 = vmax.f32 %v3016, %v3073
      %3075 = vmax.xlane.f32.xlu0 %v3074
      %v3076 = vpop.xlane.xlu0 %3075
      %v3077 = vsel %vm3056, %v3019, -inf
      %v3078 = vmax.f32 %v3018, %v3077
      %3079 = vmax.xlane.f32.xlu0 %v3078
      %v3080 = vpop.xlane.xlu0 %3079
      %v3081 = vsel %vm3056, %v3021, -inf
      %v3082 = vmax.f32 %v3020, %v3081
      %3083 = vmax.xlane.f32.xlu0 %v3082
      %v3084 = vpop.xlane.xlu0 %3083
      %v3085 = vsel %vm3056, %v3023, -inf
      %v3086 = vmax.f32 %v3022, %v3085
      %3087 = vmax.xlane.f32.xlu0 %v3086
      %v3088 = vpop.xlane.xlu0 %3087
      %v3089 = vsel %vm3056, %v3025, -inf
      %v3090 = vmax.f32 %v3024, %v3089
      %3091 = vmax.xlane.f32.xlu0 %v3090
      %v3092 = vpop.xlane.xlu0 %3091
      %v3093 = vsel %vm3056, %v3027, -inf
      %v3094 = vmax.f32 %v3026, %v3093
      %3095 = vmax.xlane.f32.xlu0 %v3094
      %v3096 = vpop.xlane.xlu0 %3095
      %v3097 = vsel %vm3056, %v3029, -inf
      %v3098 = vmax.f32 %v3028, %v3097
      %3099 = vmax.xlane.f32.xlu0 %v3098
      %v3100 = vpop.xlane.xlu0 %3099
      %v3101 = vsel %vm3056, %v3031, -inf
      %v3102 = vmax.f32 %v3030, %v3101
      %3103 = vmax.xlane.f32.xlu0 %v3102
      %v3104 = vpop.xlane.xlu0 %3103
      %v3105 = vsel %vm3056, %v3033, -inf
      %v3106 = vmax.f32 %v3032, %v3105
      %3107 = vmax.xlane.f32.xlu0 %v3106
      %v3108 = vpop.xlane.xlu0 %3107
      %v3109 = vsel %vm3056, %v3035, -inf
      %v3110 = vmax.f32 %v3034, %v3109
      %3111 = vmax.xlane.f32.xlu0 %v3110
      %v3112 = vpop.xlane.xlu0 %3111
      %v3113 = vsel %vm3056, %v3037, -inf
      %v3114 = vmax.f32 %v3036, %v3113
      %3115 = vmax.xlane.f32.xlu0 %v3114
      %v3116 = vpop.xlane.xlu0 %3115
      %v3117 = vsel %vm3056, %v3039, -inf
      %v3118 = vmax.f32 %v3038, %v3117
      %3119 = vmax.xlane.f32.xlu0 %v3118
      %v3120 = vpop.xlane.xlu0 %3119
      %v3121 = vsel %vm3056, %v3041, -inf
      %v3122 = vmax.f32 %v3040, %v3121
      %3123 = vmax.xlane.f32.xlu0 %v3122
      %v3124 = vpop.xlane.xlu0 %3123
      %v3125 = vsel %vm3056, %v3043, -inf
      %v3126 = vmax.f32 %v3042, %v3125
      %3127 = vmax.xlane.f32.xlu0 %v3126
      %v3128 = vpop.xlane.xlu0 %3127
      %v3129 = vsel %vm3056, %v3045, -inf
      %v3130 = vmax.f32 %v3044, %v3129
      %3131 = vmax.xlane.f32.xlu0 %v3130
      %v3132 = vpop.xlane.xlu0 %3131
      %v3133 = vsel %vm3056, %v3047, -inf
      %v3134 = vmax.f32 %v3046, %v3133
      %3135 = vmax.xlane.f32.xlu0 %v3134
      %v3136 = vpop.xlane.xlu0 %3135
      %v3137 = vsel %vm3056, %v3049, -inf
      %v3138 = vmax.f32 %v3048, %v3137
      %3139 = vmax.xlane.f32.xlu0 %v3138
      %v3140 = vpop.xlane.xlu0 %3139
      %v3141 = vsel %vm3056, %v3051, -inf
      %v3142 = vmax.f32 %v3050, %v3141
      %3143 = vmax.xlane.f32.xlu0 %v3142
      %v3144 = vpop.xlane.xlu0 %3143
      %v3145 = vsel %vm3056, %v3053, -inf
      %v3146 = vmax.f32 %v3052, %v3145
      %3147 = vmax.xlane.f32.xlu0 %v3146
      %v3148 = vpop.xlane.xlu0 %3147
      %v3149 = vsel %vm3056, %v3055, -inf
      %v3150 = vmax.f32 %v3054, %v3149
      %3151 = vmax.xlane.f32.xlu0 %v3150
      %v3152 = vpop.xlane.xlu0 %3151
      %v3153 = vsub.f32 %v3008, %v3060
      %v3154 = vsub.f32 %v3009, %v3060
      %v3155 = vsub.f32 %v3010, %v3064
      %v3156 = vsub.f32 %v3011, %v3064
      %v3157 = vsub.f32 %v3012, %v3068
      %v3158 = vsub.f32 %v3013, %v3068
      %v3159 = vsub.f32 %v3014, %v3072
      %v3160 = vsub.f32 %v3015, %v3072
      %v3161 = vsub.f32 %v3016, %v3076
      %v3162 = vsub.f32 %v3017, %v3076
      %v3163 = vsub.f32 %v3018, %v3080
      %v3164 = vsub.f32 %v3019, %v3080
      %v3165 = vsub.f32 %v3020, %v3084
      %v3166 = vsub.f32 %v3021, %v3084
      %v3167 = vsub.f32 %v3022, %v3088
      %v3168 = vsub.f32 %v3023, %v3088
      %v3169 = vsub.f32 %v3024, %v3092
      %v3170 = vsub.f32 %v3025, %v3092
      %v3171 = vsub.f32 %v3026, %v3096
      %v3172 = vsub.f32 %v3027, %v3096
      %v3173 = vsub.f32 %v3028, %v3100
      %v3174 = vsub.f32 %v3029, %v3100
      %v3175 = vsub.f32 %v3030, %v3104
      %v3176 = vsub.f32 %v3031, %v3104
      %v3177 = vsub.f32 %v3032, %v3108
      %v3178 = vsub.f32 %v3033, %v3108
      %v3179 = vsub.f32 %v3034, %v3112
      %v3180 = vsub.f32 %v3035, %v3112
      %v3181 = vsub.f32 %v3036, %v3116
      %v3182 = vsub.f32 %v3037, %v3116
      %v3183 = vsub.f32 %v3038, %v3120
      %v3184 = vsub.f32 %v3039, %v3120
      %v3185 = vsub.f32 %v3040, %v3124
      %v3186 = vsub.f32 %v3041, %v3124
      %v3187 = vsub.f32 %v3042, %v3128
      %v3188 = vsub.f32 %v3043, %v3128
      %v3189 = vsub.f32 %v3044, %v3132
      %v3190 = vsub.f32 %v3045, %v3132
      %v3191 = vsub.f32 %v3046, %v3136
      %v3192 = vsub.f32 %v3047, %v3136
      %v3193 = vsub.f32 %v3048, %v3140
      %v3194 = vsub.f32 %v3049, %v3140
      %v3195 = vsub.f32 %v3050, %v3144
      %v3196 = vsub.f32 %v3051, %v3144
      %v3197 = vsub.f32 %v3052, %v3148
      %v3198 = vsub.f32 %v3053, %v3148
      %v3199 = vsub.f32 %v3054, %v3152
      %v3200 = vsub.f32 %v3055, %v3152
      %v3201 = vmul.f32 %v3153, 1.442695
      %v3202 = vpow.pop %v3201
      %v3203 = vmul.f32 %v3154, 1.442695
      %v3204 = vpow.pop %v3203
      %v3205 = vmul.f32 %v3155, 1.442695
      %v3206 = vpow.pop %v3205
      %v3207 = vmul.f32 %v3156, 1.442695
      %v3208 = vpow.pop %v3207
      %v3209 = vmul.f32 %v3157, 1.442695
      %v3210 = vpow.pop %v3209
      %v3211 = vmul.f32 %v3158, 1.442695
      %v3212 = vpow.pop %v3211
      %v3213 = vmul.f32 %v3159, 1.442695
      %v3214 = vpow.pop %v3213
      %v3215 = vmul.f32 %v3160, 1.442695
      %v3216 = vpow.pop %v3215
      %v3217 = vmul.f32 %v3161, 1.442695
      %v3218 = vpow.pop %v3217
      %v3219 = vmul.f32 %v3162, 1.442695
      %v3220 = vpow.pop %v3219
      %v3221 = vmul.f32 %v3163, 1.442695
      %v3222 = vpow.pop %v3221
      %v3223 = vmul.f32 %v3164, 1.442695
      %v3224 = vpow.pop %v3223
      %v3225 = vmul.f32 %v3165, 1.442695
      %v3226 = vpow.pop %v3225
      %v3227 = vmul.f32 %v3166, 1.442695
      %v3228 = vpow.pop %v3227
      %v3229 = vmul.f32 %v3167, 1.442695
      %v3230 = vpow.pop %v3229
      %v3231 = vmul.f32 %v3168, 1.442695
      %v3232 = vpow.pop %v3231
      %v3233 = vmul.f32 %v3169, 1.442695
      %v3234 = vpow.pop %v3233
      %v3235 = vmul.f32 %v3170, 1.442695
      %v3236 = vpow.pop %v3235
      %v3237 = vmul.f32 %v3171, 1.442695
      %v3238 = vpow.pop %v3237
      %v3239 = vmul.f32 %v3172, 1.442695
      %v3240 = vpow.pop %v3239
      %v3241 = vmul.f32 %v3173, 1.442695
      %v3242 = vpow.pop %v3241
      %v3243 = vmul.f32 %v3174, 1.442695
      %v3244 = vpow.pop %v3243
      %v3245 = vmul.f32 %v3175, 1.442695
      %v3246 = vpow.pop %v3245
      %v3247 = vmul.f32 %v3176, 1.442695
      %v3248 = vpow.pop %v3247
      %v3249 = vmul.f32 %v3177, 1.442695
      %v3250 = vpow.pop %v3249
      %v3251 = vmul.f32 %v3178, 1.442695
      %v3252 = vpow.pop %v3251
      %v3253 = vmul.f32 %v3179, 1.442695
      %v3254 = vpow.pop %v3253
      %v3255 = vmul.f32 %v3180, 1.442695
      %v3256 = vpow.pop %v3255
      %v3257 = vmul.f32 %v3181, 1.442695
      %v3258 = vpow.pop %v3257
      %v3259 = vmul.f32 %v3182, 1.442695
      %v3260 = vpow.pop %v3259
      %v3261 = vmul.f32 %v3183, 1.442695
      %v3262 = vpow.pop %v3261
      %v3263 = vmul.f32 %v3184, 1.442695
      %v3264 = vpow.pop %v3263
      %v3265 = vmul.f32 %v3185, 1.442695
      %v3266 = vpow.pop %v3265
      %v3267 = vmul.f32 %v3186, 1.442695
      %v3268 = vpow.pop %v3267
      %v3269 = vmul.f32 %v3187, 1.442695
      %v3270 = vpow.pop %v3269
      %v3271 = vmul.f32 %v3188, 1.442695
      %v3272 = vpow.pop %v3271
      %v3273 = vmul.f32 %v3189, 1.442695
      %v3274 = vpow.pop %v3273
      %v3275 = vmul.f32 %v3190, 1.442695
      %v3276 = vpow.pop %v3275
      %v3277 = vmul.f32 %v3191, 1.442695
      %v3278 = vpow.pop %v3277
      %v3279 = vmul.f32 %v3192, 1.442695
      %v3280 = vpow.pop %v3279
      %v3281 = vmul.f32 %v3193, 1.442695
      %v3282 = vpow.pop %v3281
      %v3283 = vmul.f32 %v3194, 1.442695
      %v3284 = vpow.pop %v3283
      %v3285 = vmul.f32 %v3195, 1.442695
      %v3286 = vpow.pop %v3285
      %v3287 = vmul.f32 %v3196, 1.442695
      %v3288 = vpow.pop %v3287
      %v3289 = vmul.f32 %v3197, 1.442695
      %v3290 = vpow.pop %v3289
      %v3291 = vmul.f32 %v3198, 1.442695
      %v3292 = vpow.pop %v3291
      %v3293 = vmul.f32 %v3199, 1.442695
      %v3294 = vpow.pop %v3293
      %v3295 = vmul.f32 %v3200, 1.442695
      %v3296 = vpow.pop %v3295
      %v3297 = vsel %vm3056, %v3204, 0.0
      %v3298 = vadd.f32 %v3202, %v3297
      %3299 = vadd.xlane.f32.xlu0 %v3298
      %v3300 = vpop.xlane.xlu0 %3299
      %v3301 = vsel %vm3056, %v3208, 0.0
      %v3302 = vadd.f32 %v3206, %v3301
      %3303 = vadd.xlane.f32.xlu0 %v3302
      %v3304 = vpop.xlane.xlu0 %3303
      %v3305 = vsel %vm3056, %v3212, 0.0
      %v3306 = vadd.f32 %v3210, %v3305
      %3307 = vadd.xlane.f32.xlu0 %v3306
      %v3308 = vpop.xlane.xlu0 %3307
      %v3309 = vsel %vm3056, %v3216, 0.0
      %v3310 = vadd.f32 %v3214, %v3309
      %3311 = vadd.xlane.f32.xlu0 %v3310
      %v3312 = vpop.xlane.xlu0 %3311
      %v3313 = vsel %vm3056, %v3220, 0.0
      %v3314 = vadd.f32 %v3218, %v3313
      %3315 = vadd.xlane.f32.xlu0 %v3314
      %v3316 = vpop.xlane.xlu0 %3315
      %v3317 = vsel %vm3056, %v3224, 0.0
      %v3318 = vadd.f32 %v3222, %v3317
      %3319 = vadd.xlane.f32.xlu0 %v3318
      %v3320 = vpop.xlane.xlu0 %3319
      %v3321 = vsel %vm3056, %v3228, 0.0
      %v3322 = vadd.f32 %v3226, %v3321
      %3323 = vadd.xlane.f32.xlu0 %v3322
      %v3324 = vpop.xlane.xlu0 %3323
      %v3325 = vsel %vm3056, %v3232, 0.0
      %v3326 = vadd.f32 %v3230, %v3325
      %3327 = vadd.xlane.f32.xlu0 %v3326
      %v3328 = vpop.xlane.xlu0 %3327
      %v3329 = vsel %vm3056, %v3236, 0.0
      %v3330 = vadd.f32 %v3234, %v3329
      %3331 = vadd.xlane.f32.xlu0 %v3330
      %v3332 = vpop.xlane.xlu0 %3331
      %v3333 = vsel %vm3056, %v3240, 0.0
      %v3334 = vadd.f32 %v3238, %v3333
      %3335 = vadd.xlane.f32.xlu0 %v3334
      %v3336 = vpop.xlane.xlu0 %3335
      %v3337 = vsel %vm3056, %v3244, 0.0
      %v3338 = vadd.f32 %v3242, %v3337
      %3339 = vadd.xlane.f32.xlu0 %v3338
      %v3340 = vpop.xlane.xlu0 %3339
      %v3341 = vsel %vm3056, %v3248, 0.0
      %v3342 = vadd.f32 %v3246, %v3341
      %3343 = vadd.xlane.f32.xlu0 %v3342
      %v3344 = vpop.xlane.xlu0 %3343
      %v3345 = vsel %vm3056, %v3252, 0.0
      %v3346 = vadd.f32 %v3250, %v3345
      %3347 = vadd.xlane.f32.xlu0 %v3346
      %v3348 = vpop.xlane.xlu0 %3347
      %v3349 = vsel %vm3056, %v3256, 0.0
      %v3350 = vadd.f32 %v3254, %v3349
      %3351 = vadd.xlane.f32.xlu0 %v3350
      %v3352 = vpop.xlane.xlu0 %3351
      %v3353 = vsel %vm3056, %v3260, 0.0
      %v3354 = vadd.f32 %v3258, %v3353
      %3355 = vadd.xlane.f32.xlu0 %v3354
      %v3356 = vpop.xlane.xlu0 %3355
      %v3357 = vsel %vm3056, %v3264, 0.0
      %v3358 = vadd.f32 %v3262, %v3357
      %3359 = vadd.xlane.f32.xlu0 %v3358
      %v3360 = vpop.xlane.xlu0 %3359
      %v3361 = vsel %vm3056, %v3268, 0.0
      %v3362 = vadd.f32 %v3266, %v3361
      %3363 = vadd.xlane.f32.xlu0 %v3362
      %v3364 = vpop.xlane.xlu0 %3363
      %v3365 = vsel %vm3056, %v3272, 0.0
      %v3366 = vadd.f32 %v3270, %v3365
      %3367 = vadd.xlane.f32.xlu0 %v3366
      %v3368 = vpop.xlane.xlu0 %3367
      %v3369 = vsel %vm3056, %v3276, 0.0
      %v3370 = vadd.f32 %v3274, %v3369
      %3371 = vadd.xlane.f32.xlu0 %v3370
      %v3372 = vpop.xlane.xlu0 %3371
      %v3373 = vsel %vm3056, %v3280, 0.0
      %v3374 = vadd.f32 %v3278, %v3373
      %3375 = vadd.xlane.f32.xlu0 %v3374
      %v3376 = vpop.xlane.xlu0 %3375
      %v3377 = vsel %vm3056, %v3284, 0.0
      %v3378 = vadd.f32 %v3282, %v3377
      %3379 = vadd.xlane.f32.xlu0 %v3378
      %v3380 = vpop.xlane.xlu0 %3379
      %v3381 = vsel %vm3056, %v3288, 0.0
      %v3382 = vadd.f32 %v3286, %v3381
      %3383 = vadd.xlane.f32.xlu0 %v3382
      %v3384 = vpop.xlane.xlu0 %3383
      %v3385 = vsel %vm3056, %v3292, 0.0
      %v3386 = vadd.f32 %v3290, %v3385
      %3387 = vadd.xlane.f32.xlu0 %v3386
      %v3388 = vpop.xlane.xlu0 %3387
      %v3389 = vsel %vm3056, %v3296, 0.0
      %v3390 = vadd.f32 %v3294, %v3389
      %3391 = vadd.xlane.f32.xlu0 %v3390
      %v3392 = vpop.xlane.xlu0 %3391
      %v3393 = vrcp.pop %v3300
      %v3394 = vrcp.pop %v3304
      %v3395 = vrcp.pop %v3308
      %v3396 = vrcp.pop %v3312
      %v3397 = vrcp.pop %v3316
      %v3398 = vrcp.pop %v3320
      %v3399 = vrcp.pop %v3324
      %v3400 = vrcp.pop %v3328
      %v3401 = vrcp.pop %v3332
      %v3402 = vrcp.pop %v3336
      %v3403 = vrcp.pop %v3340
      %v3404 = vrcp.pop %v3344
      %v3405 = vrcp.pop %v3348
      %v3406 = vrcp.pop %v3352
      %v3407 = vrcp.pop %v3356
      %v3408 = vrcp.pop %v3360
      %v3409 = vrcp.pop %v3364
      %v3410 = vrcp.pop %v3368
      %v3411 = vrcp.pop %v3372
      %v3412 = vrcp.pop %v3376
      %v3413 = vrcp.pop %v3380
      %v3414 = vrcp.pop %v3384
      %v3415 = vrcp.pop %v3388
      %v3416 = vrcp.pop %v3392
      %v3417 = vmul.f32 %v3202, %v3393
      %v3418 = vmul.f32 %v3204, %v3393
      %v3419 = vmul.f32 %v3206, %v3394
      %v3420 = vmul.f32 %v3208, %v3394
      %v3421 = vmul.f32 %v3210, %v3395
      %v3422 = vmul.f32 %v3212, %v3395
      %v3423 = vmul.f32 %v3214, %v3396
      %v3424 = vmul.f32 %v3216, %v3396
      %v3425 = vmul.f32 %v3218, %v3397
      %v3426 = vmul.f32 %v3220, %v3397
      %v3427 = vmul.f32 %v3222, %v3398
      %v3428 = vmul.f32 %v3224, %v3398
      %v3429 = vmul.f32 %v3226, %v3399
      %v3430 = vmul.f32 %v3228, %v3399
      %v3431 = vmul.f32 %v3230, %v3400
      %v3432 = vmul.f32 %v3232, %v3400
      %v3433 = vmul.f32 %v3234, %v3401
      %v3434 = vmul.f32 %v3236, %v3401
      %v3435 = vmul.f32 %v3238, %v3402
      %v3436 = vmul.f32 %v3240, %v3402
      %v3437 = vmul.f32 %v3242, %v3403
      %v3438 = vmul.f32 %v3244, %v3403
      %v3439 = vmul.f32 %v3246, %v3404
      %v3440 = vmul.f32 %v3248, %v3404
      %v3441 = vmul.f32 %v3250, %v3405
      %v3442 = vmul.f32 %v3252, %v3405
      %v3443 = vmul.f32 %v3254, %v3406
      %v3444 = vmul.f32 %v3256, %v3406
      %v3445 = vmul.f32 %v3258, %v3407
      %v3446 = vmul.f32 %v3260, %v3407
      %v3447 = vmul.f32 %v3262, %v3408
      %v3448 = vmul.f32 %v3264, %v3408
      %v3449 = vmul.f32 %v3266, %v3409
      %v3450 = vmul.f32 %v3268, %v3409
      %v3451 = vmul.f32 %v3270, %v3410
      %v3452 = vmul.f32 %v3272, %v3410
      %v3453 = vmul.f32 %v3274, %v3411
      %v3454 = vmul.f32 %v3276, %v3411
      %v3455 = vmul.f32 %v3278, %v3412
      %v3456 = vmul.f32 %v3280, %v3412
      %v3457 = vmul.f32 %v3282, %v3413
      %v3458 = vmul.f32 %v3284, %v3413
      %v3459 = vmul.f32 %v3286, %v3414
      %v3460 = vmul.f32 %v3288, %v3414
      %v3461 = vmul.f32 %v3290, %v3415
      %v3462 = vmul.f32 %v3292, %v3415
      %v3463 = vmul.f32 %v3294, %v3416
      %v3464 = vmul.f32 %v3296, %v3416
      %v3466 = vsel %vm3056, %v3418, 0
      %v3469 = vsel %vm3056, %v3420, 0
      %v3472 = vsel %vm3056, %v3422, 0
      %v3475 = vsel %vm3056, %v3424, 0
      %v3478 = vsel %vm3056, %v3426, 0
      %v3481 = vsel %vm3056, %v3428, 0
      %v3484 = vsel %vm3056, %v3430, 0
      %v3487 = vsel %vm3056, %v3432, 0
      %v3490 = vsel %vm3056, %v3434, 0
      %v3493 = vsel %vm3056, %v3436, 0
      %v3496 = vsel %vm3056, %v3438, 0
      %v3499 = vsel %vm3056, %v3440, 0
      %v3502 = vsel %vm3056, %v3442, 0
      %v3505 = vsel %vm3056, %v3444, 0
      %v3508 = vsel %vm3056, %v3446, 0
      %v3511 = vsel %vm3056, %v3448, 0
      %v3514 = vsel %vm3056, %v3450, 0
      %v3517 = vsel %vm3056, %v3452, 0
      %v3520 = vsel %vm3056, %v3454, 0
      %v3523 = vsel %vm3056, %v3456, 0
      %v3526 = vsel %vm3056, %v3458, 0
      %v3529 = vsel %vm3056, %v3460, 0
      %v3532 = vsel %vm3056, %v3462, 0
      %v3535 = vsel %vm3056, %v3464, 0
      %3537 = vmatprep.subr.mxu0 %v2407
      %3538 = vmatpush1.msra.mxu0 %v2405
      %3539 = vmatprep.subr.mxu0 %v2413
      %3540 = vmatpush1.msra.mxu0 %v2411
      %3541 = vmatprep.subr.mxu0 %v2419
      %3542 = vmatpush1.msra.mxu0 %v2417
      %3543 = vmatprep.subr.mxu0 %v2425
      %3544 = vmatpush1.msra.mxu0 %v2423
      %3545 = vmatprep.subr.mxu0 %v2431
      %3546 = vmatpush1.msra.mxu0 %v2429
      %3547 = vmatprep.subr.mxu0 %v2437
      %3548 = vmatpush1.msra.mxu0 %v2435
      %3549 = vmatprep.subr.mxu0 %v2443
      %3550 = vmatpush1.msra.mxu0 %v2441
      %3551 = vmatprep.subr.mxu0 %v2449
      %3552 = vmatpush1.msra.mxu0 %v2447
      %3553 = vmatprep.subr.mxu0 %v2455
      %3554 = vmatpush1.msra.mxu0 %v2453
      %3555 = vmatprep.subr.mxu0 %v2461
      %3556 = vmatpush1.msra.mxu0 %v2459
      %3557 = vmatprep.subr.mxu0 %v2467
      %3558 = vmatpush1.msra.mxu0 %v2465
      %3559 = vmatprep.subr.mxu0 %v2473
      %3560 = vmatpush1.msra.mxu0 %v2471
      %3561 = vmatprep.subr.mxu0 %v2479
      %3562 = vmatpush1.msra.mxu0 %v2477
      %3563 = vmatprep.subr.mxu0 %v2485
      %3564 = vmatpush1.msra.mxu0 %v2483
      %3565 = vmatprep.subr.mxu0 %v2491
      %3566 = vmatpush1.msra.mxu0 %v2489
      %3567 = vmatprep.subr.mxu0 %v2497
      %3568 = vmatpush1.msra.mxu0 %v2495
      %3569 = vmatprep.subr.mxu0 %v2503
      %3570 = vmatpush1.msra.mxu0 %v2501
      %3571 = vmatprep.subr.mxu0 %v2509
      %3572 = vmatpush1.msra.mxu0 %v2507
      %3573 = vmatprep.subr.mxu0 %v2515
      %3574 = vmatpush1.msra.mxu0 %v2513
      %3575 = vmatprep.subr.mxu0 %v2521
      %3576 = vmatpush1.msra.mxu0 %v2519
      %3577 = vmatprep.subr.mxu0 %v2527
      %3578 = vmatpush1.msra.mxu0 %v2525
      %3579 = vmatprep.subr.mxu0 %v2533
      %3580 = vmatpush1.msra.mxu0 %v2531
      %3581 = vmatprep.subr.mxu0 %v2539
      %3582 = vmatpush1.msra.mxu0 %v2537
      %3583 = vmatprep.subr.mxu0 %v2545
      %3584 = vmatpush1.msra.mxu0 %v2543
      %3585 = vmatprep.subr.mxu0 0.0
      %3586 = vmatpush1.msra.mxu0 0.0
      %3587 = vmatprep.subr.mxu0 0.0
      %3588 = vmatpush1.msra.mxu0 0.0
      %3589 = vmatprep.subr.mxu0 0.0
      %3590 = vmatpush1.msra.mxu0 0.0
      %3591 = vmatprep.subr.mxu0 0.0
      %3592 = vmatpush1.msra.mxu0 0.0
      %3593 = vmatprep.subr.mxu0 0.0
      %3594 = vmatpush1.msra.mxu0 0.0
      %3595 = vmatprep.subr.mxu0 0.0
      %3596 = vmatpush1.msra.mxu0 0.0
      %3597 = vmatprep.subr.mxu0 0.0
      %3598 = vmatpush1.msra.mxu0 0.0
      %3599 = vmatprep.subr.mxu0 0.0
      %3600 = vmatpush1.msra.mxu0 0.0
      %3601 = vmatprep.mubr.f32.mxu0 %v3466
      %3602 = vmatmul.mubr.f32.gmra.mrb[0].mxu0 %v3417
      %v3603 = vpop.f32.mrb[0].mxu0
      %v3604 = vadd.f32 0.0, %v3603
      %v3605 = vpop.f32.mrb[0].mxu0
      %v3606 = vadd.f32 0.0, %v3605
      %3607 = vmatprep.mubr.f32.mxu0 %v3469
      %3608 = vmatmul.mubr.f32.gmra.mrb[0].mxu0 %v3419
      %v3609 = vpop.f32.mrb[0].mxu0
      %v3610 = vadd.f32 0.0, %v3609
      %v3611 = vpop.f32.mrb[0].mxu0
      %v3612 = vadd.f32 0.0, %v3611
      %3613 = vmatprep.mubr.f32.mxu0 %v3472
      %3614 = vmatmul.mubr.f32.gmra.mrb[0].mxu0 %v3421
      %v3615 = vpop.f32.mrb[0].mxu0
      %v3616 = vadd.f32 0.0, %v3615
      %v3617 = vpop.f32.mrb[0].mxu0
      %v3618 = vadd.f32 0.0, %v3617
      %3619 = vmatprep.mubr.f32.mxu0 %v3475
      %3620 = vmatmul.mubr.f32.gmra.mrb[0].mxu0 %v3423
      %v3621 = vpop.f32.mrb[0].mxu0
      %v3622 = vadd.f32 0.0, %v3621
      %v3623 = vpop.f32.mrb[0].mxu0
      %v3624 = vadd.f32 0.0, %v3623
      %3625 = vmatprep.mubr.f32.mxu0 %v3478
      %3626 = vmatmul.mubr.f32.gmra.mrb[0].mxu0 %v3425
      %v3627 = vpop.f32.mrb[0].mxu0
      %v3628 = vadd.f32 0.0, %v3627
      %v3629 = vpop.f32.mrb[0].mxu0
      %v3630 = vadd.f32 0.0, %v3629
      %3631 = vmatprep.mubr.f32.mxu0 %v3481
      %3632 = vmatmul.mubr.f32.gmra.mrb[0].mxu0 %v3427
      %v3633 = vpop.f32.mrb[0].mxu0
      %v3634 = vadd.f32 0.0, %v3633
      %v3635 = vpop.f32.mrb[0].mxu0
      %v3636 = vadd.f32 0.0, %v3635
      %3637 = vmatprep.mubr.f32.mxu0 %v3484
      %3638 = vmatmul.mubr.f32.gmra.mrb[0].mxu0 %v3429
      %v3639 = vpop.f32.mrb[0].mxu0
      %v3640 = vadd.f32 0.0, %v3639
      %v3641 = vpop.f32.mrb[0].mxu0
      %v3642 = vadd.f32 0.0, %v3641
      %3643 = vmatprep.mubr.f32.mxu0 %v3487
      %3644 = vmatmul.mubr.f32.gmra.mrb[0].mxu0 %v3431
      %v3645 = vpop.f32.mrb[0].mxu0
      %v3646 = vadd.f32 0.0, %v3645
      %v3647 = vpop.f32.mrb[0].mxu0
      %v3648 = vadd.f32 0.0, %v3647
      %3649 = vmatprep.mubr.f32.mxu0 %v3490
      %3650 = vmatmul.mubr.f32.gmra.mrb[0].mxu0 %v3433
      %v3651 = vpop.f32.mrb[0].mxu0
      %v3652 = vadd.f32 0.0, %v3651
      %v3653 = vpop.f32.mrb[0].mxu0
      %v3654 = vadd.f32 0.0, %v3653
      %3655 = vmatprep.mubr.f32.mxu0 %v3493
      %3656 = vmatmul.mubr.f32.gmra.mrb[0].mxu0 %v3435
      %v3657 = vpop.f32.mrb[0].mxu0
      %v3658 = vadd.f32 0.0, %v3657
      %v3659 = vpop.f32.mrb[0].mxu0
      %v3660 = vadd.f32 0.0, %v3659
      %3661 = vmatprep.mubr.f32.mxu0 %v3496
      %3662 = vmatmul.mubr.f32.gmra.mrb[0].mxu0 %v3437
      %v3663 = vpop.f32.mrb[0].mxu0
      %v3664 = vadd.f32 0.0, %v3663
      %v3665 = vpop.f32.mrb[0].mxu0
      %v3666 = vadd.f32 0.0, %v3665
      %3667 = vmatprep.mubr.f32.mxu0 %v3499
      %3668 = vmatmul.mubr.f32.gmra.mrb[0].mxu0 %v3439
      %v3669 = vpop.f32.mrb[0].mxu0
      %v3670 = vadd.f32 0.0, %v3669
      %v3671 = vpop.f32.mrb[0].mxu0
      %v3672 = vadd.f32 0.0, %v3671
      %3673 = vmatprep.mubr.f32.mxu0 %v3502
      %3674 = vmatmul.mubr.f32.gmra.mrb[0].mxu0 %v3441
      %v3675 = vpop.f32.mrb[0].mxu0
      %v3676 = vadd.f32 0.0, %v3675
      %v3677 = vpop.f32.mrb[0].mxu0
      %v3678 = vadd.f32 0.0, %v3677
      %3679 = vmatprep.mubr.f32.mxu0 %v3505
      %3680 = vmatmul.mubr.f32.gmra.mrb[0].mxu0 %v3443
      %v3681 = vpop.f32.mrb[0].mxu0
      %v3682 = vadd.f32 0.0, %v3681
      %v3683 = vpop.f32.mrb[0].mxu0
      %v3684 = vadd.f32 0.0, %v3683
      %3685 = vmatprep.mubr.f32.mxu0 %v3508
      %3686 = vmatmul.mubr.f32.gmra.mrb[0].mxu0 %v3445
      %v3687 = vpop.f32.mrb[0].mxu0
      %v3688 = vadd.f32 0.0, %v3687
      %v3689 = vpop.f32.mrb[0].mxu0
      %v3690 = vadd.f32 0.0, %v3689
      %3691 = vmatprep.mubr.f32.mxu0 %v3511
      %3692 = vmatmul.mubr.f32.gmra.mrb[0].mxu0 %v3447
      %v3693 = vpop.f32.mrb[0].mxu0
      %v3694 = vadd.f32 0.0, %v3693
      %v3695 = vpop.f32.mrb[0].mxu0
      %v3696 = vadd.f32 0.0, %v3695
      %3697 = vmatprep.mubr.f32.mxu0 %v3514
      %3698 = vmatmul.mubr.f32.gmra.mrb[0].mxu0 %v3449
      %v3699 = vpop.f32.mrb[0].mxu0
      %v3700 = vadd.f32 0.0, %v3699
      %v3701 = vpop.f32.mrb[0].mxu0
      %v3702 = vadd.f32 0.0, %v3701
      %3703 = vmatprep.mubr.f32.mxu0 %v3517
      %3704 = vmatmul.mubr.f32.gmra.mrb[0].mxu0 %v3451
      %v3705 = vpop.f32.mrb[0].mxu0
      %v3706 = vadd.f32 0.0, %v3705
      %v3707 = vpop.f32.mrb[0].mxu0
      %v3708 = vadd.f32 0.0, %v3707
      %3709 = vmatprep.mubr.f32.mxu0 %v3520
      %3710 = vmatmul.mubr.f32.gmra.mrb[0].mxu0 %v3453
      %v3711 = vpop.f32.mrb[0].mxu0
      %v3712 = vadd.f32 0.0, %v3711
      %v3713 = vpop.f32.mrb[0].mxu0
      %v3714 = vadd.f32 0.0, %v3713
      %3715 = vmatprep.mubr.f32.mxu0 %v3523
      %3716 = vmatmul.mubr.f32.gmra.mrb[0].mxu0 %v3455
      %v3717 = vpop.f32.mrb[0].mxu0
      %v3718 = vadd.f32 0.0, %v3717
      %v3719 = vpop.f32.mrb[0].mxu0
      %v3720 = vadd.f32 0.0, %v3719
      %3721 = vmatprep.mubr.f32.mxu0 %v3526
      %3722 = vmatmul.mubr.f32.gmra.mrb[0].mxu0 %v3457
      %v3723 = vpop.f32.mrb[0].mxu0
      %v3724 = vadd.f32 0.0, %v3723
      %v3725 = vpop.f32.mrb[0].mxu0
      %v3726 = vadd.f32 0.0, %v3725
      %3727 = vmatprep.mubr.f32.mxu0 %v3529
      %3728 = vmatmul.mubr.f32.gmra.mrb[0].mxu0 %v3459
      %v3729 = vpop.f32.mrb[0].mxu0
      %v3730 = vadd.f32 0.0, %v3729
      %v3731 = vpop.f32.mrb[0].mxu0
      %v3732 = vadd.f32 0.0, %v3731
      %3733 = vmatprep.mubr.f32.mxu0 %v3532
      %3734 = vmatmul.mubr.f32.gmra.mrb[0].mxu0 %v3461
      %v3735 = vpop.f32.mrb[0].mxu0
      %v3736 = vadd.f32 0.0, %v3735
      %v3737 = vpop.f32.mrb[0].mxu0
      %v3738 = vadd.f32 0.0, %v3737
      %3739 = vmatprep.mubr.f32.mxu0 %v3535
      %3740 = vmatmul.mubr.f32.gmra.mrb[0].mxu0 %v3463
      %v3741 = vpop.f32.mrb[0].mxu0
      %v3742 = vadd.f32 0.0, %v3741
      %v3743 = vpop.f32.mrb[0].mxu0
      %v3744 = vadd.f32 0.0, %v3743
      %3745 = vdwg.mxu0
      %v3746 = vmax.f32 %v3604, 0.0
      %v3747 = vmax.f32 %v3606, 0.0
      %v3748 = vmax.f32 %v3610, 0.0
      %v3749 = vmax.f32 %v3612, 0.0
      %v3750 = vmax.f32 %v3616, 0.0
      %v3751 = vmax.f32 %v3618, 0.0
      %v3752 = vmax.f32 %v3622, 0.0
      %v3753 = vmax.f32 %v3624, 0.0
      %v3754 = vmax.f32 %v3628, 0.0
      %v3755 = vmax.f32 %v3630, 0.0
      %v3756 = vmax.f32 %v3634, 0.0
      %v3757 = vmax.f32 %v3636, 0.0
      %v3758 = vmax.f32 %v3640, 0.0
      %v3759 = vmax.f32 %v3642, 0.0
      %v3760 = vmax.f32 %v3646, 0.0
      %v3761 = vmax.f32 %v3648, 0.0
      %v3762 = vmax.f32 %v3652, 0.0
      %v3763 = vmax.f32 %v3654, 0.0
      %v3764 = vmax.f32 %v3658, 0.0
      %v3765 = vmax.f32 %v3660, 0.0
      %v3766 = vmax.f32 %v3664, 0.0
      %v3767 = vmax.f32 %v3666, 0.0
      %v3768 = vmax.f32 %v3670, 0.0
      %v3769 = vmax.f32 %v3672, 0.0
      %v3770 = vmax.f32 %v3676, 0.0
      %v3771 = vmax.f32 %v3678, 0.0
      %v3772 = vmax.f32 %v3682, 0.0
      %v3773 = vmax.f32 %v3684, 0.0
      %v3774 = vmax.f32 %v3688, 0.0
      %v3775 = vmax.f32 %v3690, 0.0
      %v3776 = vmax.f32 %v3694, 0.0
      %v3777 = vmax.f32 %v3696, 0.0
      %v3778 = vmax.f32 %v3700, 0.0
      %v3779 = vmax.f32 %v3702, 0.0
      %v3780 = vmax.f32 %v3706, 0.0
      %v3781 = vmax.f32 %v3708, 0.0
      %v3782 = vmax.f32 %v3712, 0.0
      %v3783 = vmax.f32 %v3714, 0.0
      %v3784 = vmax.f32 %v3718, 0.0
      %v3785 = vmax.f32 %v3720, 0.0
      %v3786 = vmax.f32 %v3724, 0.0
      %v3787 = vmax.f32 %v3726, 0.0
      %v3788 = vmax.f32 %v3730, 0.0
      %v3789 = vmax.f32 %v3732, 0.0
      %v3790 = vmax.f32 %v3736, 0.0
      %v3791 = vmax.f32 %v3738, 0.0
      %v3792 = vmax.f32 %v3742, 0.0
      %v3793 = vmax.f32 %v3744, 0.0
      %v3794 = vld [vmem:[%s13] sm:$0xff]
      %v3795 = vld [vmem:[%s13 + $0x8] sm:$0xff]
      %v3796 = vld [vmem:[%s13 + $0x10] sm:$0xff]
      %v3797 = vld [vmem:[%s13 + $0x18] sm:$0xff]
      %v3798 = vld [vmem:[%s13 + $0x20] sm:$0xff]
      %v3799 = vld [vmem:[%s13 + $0x28] sm:$0xff]
      %v3800 = vld [vmem:[%s13 + $0x30] sm:$0xff]
      %v3801 = vld [vmem:[%s13 + $0x38] sm:$0xff]
      %v3802 = vld [vmem:[%s13 + $0x40] sm:$0xff]
      %v3803 = vld [vmem:[%s13 + $0x48] sm:$0xff]
      %v3804 = vld [vmem:[%s13 + $0x50] sm:$0xff]
      %v3805 = vld [vmem:[%s13 + $0x58] sm:$0xff]
      %v3806 = vld [vmem:[%s13 + $0x60] sm:$0xff]
      %v3807 = vld [vmem:[%s13 + $0x68] sm:$0xff]
      %v3808 = vld [vmem:[%s13 + $0x70] sm:$0xff]
      %v3809 = vld [vmem:[%s13 + $0x78] sm:$0xff]
      %v3810 = vld [vmem:[%s13 + $0x80] sm:$0xff]
      %v3811 = vld [vmem:[%s13 + $0x88] sm:$0xff]
      %v3812 = vld [vmem:[%s13 + $0x90] sm:$0xff]
      %v3813 = vld [vmem:[%s13 + $0x98] sm:$0xff]
      %v3814 = vld [vmem:[%s13 + $0xa0] sm:$0xff]
      %v3815 = vld [vmem:[%s13 + $0xa8] sm:$0xff]
      %v3816 = vld [vmem:[%s13 + $0xb0] sm:$0xff]
      %v3817 = vld [vmem:[%s13 + $0xb8] sm:$0xff]
      %v3818 = vld [vmem:[%s13 + $0xc0] sm:$0xff]
      %v3819 = vld [vmem:[%s13 + $0xc8] sm:$0xff]
      %v3820 = vld [vmem:[%s13 + $0xd0] sm:$0xff]
      %v3821 = vld [vmem:[%s13 + $0xd8] sm:$0xff]
      %v3822 = vld [vmem:[%s13 + $0xe0] sm:$0xff]
      %v3823 = vld [vmem:[%s13 + $0xe8] sm:$0xff]
      %v3824 = vld [vmem:[%s13 + $0xf0] sm:$0xff]
      %v3825 = vld [vmem:[%s13 + $0xf8] sm:$0xff]
      %3826 = vmatprep.subr.mxu0 0.0
      %3827 = vmatpush1.msra.mxu0 %v3794
      %3828 = vmatprep.subr.mxu0 0.0
      %3829 = vmatpush1.msra.mxu0 %v3795
      %3830 = vmatprep.subr.mxu0 0.0
      %3831 = vmatpush1.msra.mxu0 %v3796
      %3832 = vmatprep.subr.mxu0 0.0
      %3833 = vmatpush1.msra.mxu0 %v3797
      %3834 = vmatprep.subr.mxu0 0.0
      %3835 = vmatpush1.msra.mxu0 %v3798
      %3836 = vmatprep.subr.mxu0 0.0
      %3837 = vmatpush1.msra.mxu0 %v3799
      %3838 = vmatprep.subr.mxu0 0.0
      %3839 = vmatpush1.msra.mxu0 %v3800
      %3840 = vmatprep.subr.mxu0 0.0
      %3841 = vmatpush1.msra.mxu0 %v3801
      %3842 = vmatprep.subr.mxu0 0.0
      %3843 = vmatpush1.msra.mxu0 %v3802
      %3844 = vmatprep.subr.mxu0 0.0
      %3845 = vmatpush1.msra.mxu0 %v3803
      %3846 = vmatprep.subr.mxu0 0.0
      %3847 = vmatpush1.msra.mxu0 %v3804
      %3848 = vmatprep.subr.mxu0 0.0
      %3849 = vmatpush1.msra.mxu0 %v3805
      %3850 = vmatprep.subr.mxu0 0.0
      %3851 = vmatpush1.msra.mxu0 %v3806
      %3852 = vmatprep.subr.mxu0 0.0
      %3853 = vmatpush1.msra.mxu0 %v3807
      %3854 = vmatprep.subr.mxu0 0.0
      %3855 = vmatpush1.msra.mxu0 %v3808
      %3856 = vmatprep.subr.mxu0 0.0
      %3857 = vmatpush1.msra.mxu0 %v3809
      %3858 = vmatprep.subr.mxu0 0.0
      %3859 = vmatpush1.msra.mxu0 %v3810
      %3860 = vmatprep.subr.mxu0 0.0
      %3861 = vmatpush1.msra.mxu0 %v3811
      %3862 = vmatprep.subr.mxu0 0.0
      %3863 = vmatpush1.msra.mxu0 %v3812
      %3864 = vmatprep.subr.mxu0 0.0
      %3865 = vmatpush1.msra.mxu0 %v3813
      %3866 = vmatprep.subr.mxu0 0.0
      %3867 = vmatpush1.msra.mxu0 %v3814
      %3868 = vmatprep.subr.mxu0 0.0
      %3869 = vmatpush1.msra.mxu0 %v3815
      %3870 = vmatprep.subr.mxu0 0.0
      %3871 = vmatpush1.msra.mxu0 %v3816
      %3872 = vmatprep.subr.mxu0 0.0
      %3873 = vmatpush1.msra.mxu0 %v3817
      %3874 = vmatprep.subr.mxu0 0.0
      %3875 = vmatpush1.msra.mxu0 %v3818
      %3876 = vmatprep.subr.mxu0 0.0
      %3877 = vmatpush1.msra.mxu0 %v3819
      %3878 = vmatprep.subr.mxu0 0.0
      %3879 = vmatpush1.msra.mxu0 %v3820
      %3880 = vmatprep.subr.mxu0 0.0
      %3881 = vmatpush1.msra.mxu0 %v3821
      %3882 = vmatprep.subr.mxu0 0.0
      %3883 = vmatpush1.msra.mxu0 %v3822
      %3884 = vmatprep.subr.mxu0 0.0
      %3885 = vmatpush1.msra.mxu0 %v3823
      %3886 = vmatprep.subr.mxu0 0.0
      %3887 = vmatpush1.msra.mxu0 %v3824
      %3888 = vmatprep.subr.mxu0 0.0
      %3889 = vmatpush1.msra.mxu0 %v3825
      %3890 = vmatprep.mubr.f32.mxu0 %v3747
      %3891 = vmatmul.mubr.f32.gmra.mrb[0].mxu0 %v3746
      %v3892 = vpop.f32.mrb[0].mxu0
      %v3893 = vadd.f32 0.0, %v3892
      %v3894 = vpop.f32.mrb[0].mxu0
      %3895 = vmatprep.mubr.f32.mxu0 %v3749
      %3896 = vmatmul.mubr.f32.gmra.mrb[0].mxu0 %v3748
      %v3897 = vpop.f32.mrb[0].mxu0
      %v3898 = vadd.f32 0.0, %v3897
      %v3899 = vpop.f32.mrb[0].mxu0
      %3900 = vmatprep.mubr.f32.mxu0 %v3751
      %3901 = vmatmul.mubr.f32.gmra.mrb[0].mxu0 %v3750
      %v3902 = vpop.f32.mrb[0].mxu0
      %v3903 = vadd.f32 0.0, %v3902
      %v3904 = vpop.f32.mrb[0].mxu0
      %3905 = vmatprep.mubr.f32.mxu0 %v3753
      %3906 = vmatmul.mubr.f32.gmra.mrb[0].mxu0 %v3752
      %v3907 = vpop.f32.mrb[0].mxu0
      %v3908 = vadd.f32 0.0, %v3907
      %v3909 = vpop.f32.mrb[0].mxu0
      %3910 = vmatprep.mubr.f32.mxu0 %v3755
      %3911 = vmatmul.mubr.f32.gmra.mrb[0].mxu0 %v3754
      %v3912 = vpop.f32.mrb[0].mxu0
      %v3913 = vadd.f32 0.0, %v3912
      %v3914 = vpop.f32.mrb[0].mxu0
      %3915 = vmatprep.mubr.f32.mxu0 %v3757
      %3916 = vmatmul.mubr.f32.gmra.mrb[0].mxu0 %v3756
      %v3917 = vpop.f32.mrb[0].mxu0
      %v3918 = vadd.f32 0.0, %v3917
      %v3919 = vpop.f32.mrb[0].mxu0
      %3920 = vmatprep.mubr.f32.mxu0 %v3759
      %3921 = vmatmul.mubr.f32.gmra.mrb[0].mxu0 %v3758
      %v3922 = vpop.f32.mrb[0].mxu0
      %v3923 = vadd.f32 0.0, %v3922
      %v3924 = vpop.f32.mrb[0].mxu0
      %3925 = vmatprep.mubr.f32.mxu0 %v3761
      %3926 = vmatmul.mubr.f32.gmra.mrb[0].mxu0 %v3760
      %v3927 = vpop.f32.mrb[0].mxu0
      %v3928 = vadd.f32 0.0, %v3927
      %v3929 = vpop.f32.mrb[0].mxu0
      %3930 = vmatprep.mubr.f32.mxu0 %v3763
      %3931 = vmatmul.mubr.f32.gmra.mrb[0].mxu0 %v3762
      %v3932 = vpop.f32.mrb[0].mxu0
      %v3933 = vadd.f32 0.0, %v3932
      %v3934 = vpop.f32.mrb[0].mxu0
      %3935 = vmatprep.mubr.f32.mxu0 %v3765
      %3936 = vmatmul.mubr.f32.gmra.mrb[0].mxu0 %v3764
      %v3937 = vpop.f32.mrb[0].mxu0
      %v3938 = vadd.f32 0.0, %v3937
      %v3939 = vpop.f32.mrb[0].mxu0
      %3940 = vmatprep.mubr.f32.mxu0 %v3767
      %3941 = vmatmul.mubr.f32.gmra.mrb[0].mxu0 %v3766
      %v3942 = vpop.f32.mrb[0].mxu0
      %v3943 = vadd.f32 0.0, %v3942
      %v3944 = vpop.f32.mrb[0].mxu0
      %3945 = vmatprep.mubr.f32.mxu0 %v3769
      %3946 = vmatmul.mubr.f32.gmra.mrb[0].mxu0 %v3768
      %v3947 = vpop.f32.mrb[0].mxu0
      %v3948 = vadd.f32 0.0, %v3947
      %v3949 = vpop.f32.mrb[0].mxu0
      %3950 = vmatprep.mubr.f32.mxu0 %v3771
      %3951 = vmatmul.mubr.f32.gmra.mrb[0].mxu0 %v3770
      %v3952 = vpop.f32.mrb[0].mxu0
      %v3953 = vadd.f32 0.0, %v3952
      %v3954 = vpop.f32.mrb[0].mxu0
      %3955 = vmatprep.mubr.f32.mxu0 %v3773
      %3956 = vmatmul.mubr.f32.gmra.mrb[0].mxu0 %v3772
      %v3957 = vpop.f32.mrb[0].mxu0
      %v3958 = vadd.f32 0.0, %v3957
      %v3959 = vpop.f32.mrb[0].mxu0
      %3960 = vmatprep.mubr.f32.mxu0 %v3775
      %3961 = vmatmul.mubr.f32.gmra.mrb[0].mxu0 %v3774
      %v3962 = vpop.f32.mrb[0].mxu0
      %v3963 = vadd.f32 0.0, %v3962
      %v3964 = vpop.f32.mrb[0].mxu0
      %3965 = vmatprep.mubr.f32.mxu0 %v3777
      %3966 = vmatmul.mubr.f32.gmra.mrb[0].mxu0 %v3776
      %v3967 = vpop.f32.mrb[0].mxu0
      %v3968 = vadd.f32 0.0, %v3967
      %v3969 = vpop.f32.mrb[0].mxu0
      %3970 = vmatprep.mubr.f32.mxu0 %v3779
      %3971 = vmatmul.mubr.f32.gmra.mrb[0].mxu0 %v3778
      %v3972 = vpop.f32.mrb[0].mxu0
      %v3973 = vadd.f32 0.0, %v3972
      %v3974 = vpop.f32.mrb[0].mxu0
      %3975 = vmatprep.mubr.f32.mxu0 %v3781
      %3976 = vmatmul.mubr.f32.gmra.mrb[0].mxu0 %v3780
      %v3977 = vpop.f32.mrb[0].mxu0
      %v3978 = vadd.f32 0.0, %v3977
      %v3979 = vpop.f32.mrb[0].mxu0
      %3980 = vmatprep.mubr.f32.mxu0 %v3783
      %3981 = vmatmul.mubr.f32.gmra.mrb[0].mxu0 %v3782
      %v3982 = vpop.f32.mrb[0].mxu0
      %v3983 = vadd.f32 0.0, %v3982
      %v3984 = vpop.f32.mrb[0].mxu0
      %3985 = vmatprep.mubr.f32.mxu0 %v3785
      %3986 = vmatmul.mubr.f32.gmra.mrb[0].mxu0 %v3784
      %v3987 = vpop.f32.mrb[0].mxu0
      %v3988 = vadd.f32 0.0, %v3987
      %v3989 = vpop.f32.mrb[0].mxu0
      %3990 = vmatprep.mubr.f32.mxu0 %v3787
      %3991 = vmatmul.mubr.f32.gmra.mrb[0].mxu0 %v3786
      %v3992 = vpop.f32.mrb[0].mxu0
      %v3993 = vadd.f32 0.0, %v3992
      %v3994 = vpop.f32.mrb[0].mxu0
      %3995 = vmatprep.mubr.f32.mxu0 %v3789
      %3996 = vmatmul.mubr.f32.gmra.mrb[0].mxu0 %v3788
      %v3997 = vpop.f32.mrb[0].mxu0
      %v3998 = vadd.f32 0.0, %v3997
      %v3999 = vpop.f32.mrb[0].mxu0
      %4000 = vmatprep.mubr.f32.mxu0 %v3791
      %4001 = vmatmul.mubr.f32.gmra.mrb[0].mxu0 %v3790
      %v4002 = vpop.f32.mrb[0].mxu0
      %v4003 = vadd.f32 0.0, %v4002
      %v4004 = vpop.f32.mrb[0].mxu0
      %4005 = vmatprep.mubr.f32.mxu0 %v3793
      %4006 = vmatmul.mubr.f32.gmra.mrb[0].mxu0 %v3792
      %v4007 = vpop.f32.mrb[0].mxu0
      %v4008 = vadd.f32 0.0, %v4007
      %v4009 = vpop.f32.mrb[0].mxu0
      %4010 = vdwg.mxu0
      %v4012 = vlaneseq
      %v4013 = vshrl.u32 %v4012, 7
      %v4014 = vsub.s32 0, %v4013
      %v4015 = vrot.slane %v674, %v4014
      %v4017 = vmul.f32 %v3893, %v4015
      %v4018 = vmul.f32 %v3898, %v4015
      %v4019 = vmul.f32 %v3903, %v4015
      %v4020 = vmul.f32 %v3908, %v4015
      %v4021 = vmul.f32 %v3913, %v4015
      %v4022 = vmul.f32 %v3918, %v4015
      %v4023 = vmul.f32 %v3923, %v4015
      %v4024 = vmul.f32 %v3928, %v4015
      %v4025 = vmul.f32 %v3933, %v4015
      %v4026 = vmul.f32 %v3938, %v4015
      %v4027 = vmul.f32 %v3943, %v4015
      %v4028 = vmul.f32 %v3948, %v4015
      %v4029 = vmul.f32 %v3953, %v4015
      %v4030 = vmul.f32 %v3958, %v4015
      %v4031 = vmul.f32 %v3963, %v4015
      %v4032 = vmul.f32 %v3968, %v4015
      %v4033 = vmul.f32 %v3973, %v4015
      %v4034 = vmul.f32 %v3978, %v4015
      %v4035 = vmul.f32 %v3983, %v4015
      %v4036 = vmul.f32 %v3988, %v4015
      %v4037 = vmul.f32 %v3993, %v4015
      %v4038 = vmul.f32 %v3998, %v4015
      %v4039 = vmul.f32 %v4003, %v4015
      %v4040 = vmul.f32 %v4008, %v4015
      %4041 = vadd.xlane.f32.xlu0 %v4017
      %v4042 = vpop.xlane.xlu0 %4041
      %4043 = vadd.xlane.f32.xlu0 %v4018
      %v4044 = vpop.xlane.xlu0 %4043
      %4045 = vadd.xlane.f32.xlu0 %v4019
      %v4046 = vpop.xlane.xlu0 %4045
      %4047 = vadd.xlane.f32.xlu0 %v4020
      %v4048 = vpop.xlane.xlu0 %4047
      %4049 = vadd.xlane.f32.xlu0 %v4021
      %v4050 = vpop.xlane.xlu0 %4049
      %4051 = vadd.xlane.f32.xlu0 %v4022
      %v4052 = vpop.xlane.xlu0 %4051
      %4053 = vadd.xlane.f32.xlu0 %v4023
      %v4054 = vpop.xlane.xlu0 %4053
      %4055 = vadd.xlane.f32.xlu0 %v4024
      %v4056 = vpop.xlane.xlu0 %4055
      %4057 = vadd.xlane.f32.xlu0 %v4025
      %v4058 = vpop.xlane.xlu0 %4057
      %4059 = vadd.xlane.f32.xlu0 %v4026
      %v4060 = vpop.xlane.xlu0 %4059
      %4061 = vadd.xlane.f32.xlu0 %v4027
      %v4062 = vpop.xlane.xlu0 %4061
      %4063 = vadd.xlane.f32.xlu0 %v4028
      %v4064 = vpop.xlane.xlu0 %4063
      %4065 = vadd.xlane.f32.xlu0 %v4029
      %v4066 = vpop.xlane.xlu0 %4065
      %4067 = vadd.xlane.f32.xlu0 %v4030
      %v4068 = vpop.xlane.xlu0 %4067
      %4069 = vadd.xlane.f32.xlu0 %v4031
      %v4070 = vpop.xlane.xlu0 %4069
      %4071 = vadd.xlane.f32.xlu0 %v4032
      %v4072 = vpop.xlane.xlu0 %4071
      %4073 = vadd.xlane.f32.xlu0 %v4033
      %v4074 = vpop.xlane.xlu0 %4073
      %4075 = vadd.xlane.f32.xlu0 %v4034
      %v4076 = vpop.xlane.xlu0 %4075
      %4077 = vadd.xlane.f32.xlu0 %v4035
      %v4078 = vpop.xlane.xlu0 %4077
      %4079 = vadd.xlane.f32.xlu0 %v4036
      %v4080 = vpop.xlane.xlu0 %4079
      %4081 = vadd.xlane.f32.xlu0 %v4037
      %v4082 = vpop.xlane.xlu0 %4081
      %4083 = vadd.xlane.f32.xlu0 %v4038
      %v4084 = vpop.xlane.xlu0 %4083
      %4085 = vadd.xlane.f32.xlu0 %v4039
      %v4086 = vpop.xlane.xlu0 %4085
      %4087 = vadd.xlane.f32.xlu0 %v4040
      %v4088 = vpop.xlane.xlu0 %4087
      %4089 = vmatprep.subr.mxu0 0.0
      %4090 = vmatpush1.xpose.msra.mxu0 %v3893
      %4091 = vmatprep.subr.mxu0 0.0
      %4092 = vmatpush1.xpose.msra.mxu0 %v3898
      %4093 = vmatprep.subr.mxu0 0.0
      %4094 = vmatpush1.xpose.msra.mxu0 %v3903
      %4095 = vmatprep.subr.mxu0 0.0
      %4096 = vmatpush1.xpose.msra.mxu0 %v3908
      %4097 = vmatprep.subr.mxu0 0.0
      %4098 = vmatpush1.xpose.msra.mxu0 %v3913
      %4099 = vmatprep.subr.mxu0 0.0
      %4100 = vmatpush1.xpose.msra.mxu0 %v3918
      %4101 = vmatprep.subr.mxu0 0.0
      %4102 = vmatpush1.xpose.msra.mxu0 %v3923
      %4103 = vmatprep.subr.mxu0 0.0
      %4104 = vmatpush1.xpose.msra.mxu0 %v3928
      %4105 = vmatprep.subr.mxu0 0.0
      %4106 = vmatpush1.xpose.msra.mxu0 %v3933
      %4107 = vmatprep.subr.mxu0 0.0
      %4108 = vmatpush1.xpose.msra.mxu0 %v3938
      %4109 = vmatprep.subr.mxu0 0.0
      %4110 = vmatpush1.xpose.msra.mxu0 %v3943
      %4111 = vmatprep.subr.mxu0 0.0
      %4112 = vmatpush1.xpose.msra.mxu0 %v3948
      %4113 = vmatprep.subr.mxu0 0.0
      %4114 = vmatpush1.xpose.msra.mxu0 %v3953
      %4115 = vmatprep.subr.mxu0 0.0
      %4116 = vmatpush1.xpose.msra.mxu0 %v3958
      %4117 = vmatprep.subr.mxu0 0.0
      %4118 = vmatpush1.xpose.msra.mxu0 %v3963
      %4119 = vmatprep.subr.mxu0 0.0
      %4120 = vmatpush1.xpose.msra.mxu0 %v3968
      %4121 = vmatprep.subr.mxu0 0.0
      %4122 = vmatpush1.xpose.msra.mxu0 %v3973
      %4123 = vmatprep.subr.mxu0 0.0
      %4124 = vmatpush1.xpose.msra.mxu0 %v3978
      %4125 = vmatprep.subr.mxu0 0.0
      %4126 = vmatpush1.xpose.msra.mxu0 %v3983
      %4127 = vmatprep.subr.mxu0 0.0
      %4128 = vmatpush1.xpose.msra.mxu0 %v3988
      %4129 = vmatprep.subr.mxu0 0.0
      %4130 = vmatpush1.xpose.msra.mxu0 %v3993
      %4131 = vmatprep.subr.mxu0 0.0
      %4132 = vmatpush1.xpose.msra.mxu0 %v3998
      %4133 = vmatprep.subr.mxu0 0.0
      %4134 = vmatpush1.xpose.msra.mxu0 %v4003
      %4135 = vmatprep.subr.mxu0 0.0
      %4136 = vmatpush1.xpose.msra.mxu0 %v4008
      %4137 = vmatprep.subr.mxu0 0.0
      %4138 = vmatpush1.xpose.msra.mxu0 0.0
      %4139 = vmatprep.subr.mxu0 0.0
      %4140 = vmatpush1.xpose.msra.mxu0 0.0
      %4141 = vmatprep.subr.mxu0 0.0
      %4142 = vmatpush1.xpose.msra.mxu0 0.0
      %4143 = vmatprep.subr.mxu0 0.0
      %4144 = vmatpush1.xpose.msra.mxu0 0.0
      %4145 = vmatprep.subr.mxu0 0.0
      %4146 = vmatpush1.xpose.msra.mxu0 0.0
      %4147 = vmatprep.subr.mxu0 0.0
      %4148 = vmatpush1.xpose.msra.mxu0 0.0
      %4149 = vmatprep.subr.mxu0 0.0
      %4150 = vmatpush1.xpose.msra.mxu0 0.0
      %4151 = vmatprep.subr.mxu0 0.0
      %4152 = vmatpush1.xpose.msra.mxu0 0.0
      %4153 = vmatprep.mubr.f32.mxu0 0.0
      %4154 = vmatmul.mubr.f32.gmra.mrb[0].mxu0 %v675
      %v4155 = vpop.f32.mrb[0].mxu0
      %v4156 = vadd.f32 0.0, %v4155
      %v4157 = vpop.f32.mrb[0].mxu0
      %v4158 = vadd.f32 0.0, %v4157
      %4159 = vdwg.mxu0
      %v4160 = vlaneseq
      %v4161 = vshrl.u32 %v4160, 7
      %v4162 = vsub.s32 0, %v4161
      %v4163 = vrot.slane %v4156, %v4162
      %v4164 = vlaneseq
      %v4165 = vshrl.u32 %v4164, 7
      %v4166 = vsub.s32 0, %v4165
      %v4167 = vrot.slane %v4158, %v4166
      %v4168 = vadd.f32 %v4042, %v4163
      %v4169 = vadd.f32 %v4042, %v4167
      %v4170 = vadd.f32 %v4044, %v4163
      %v4171 = vadd.f32 %v4044, %v4167
      %v4172 = vadd.f32 %v4046, %v4163
      %v4173 = vadd.f32 %v4046, %v4167
      %v4174 = vadd.f32 %v4048, %v4163
      %v4175 = vadd.f32 %v4048, %v4167
      %v4176 = vadd.f32 %v4050, %v4163
      %v4177 = vadd.f32 %v4050, %v4167
      %v4178 = vadd.f32 %v4052, %v4163
      %v4179 = vadd.f32 %v4052, %v4167
      %v4180 = vadd.f32 %v4054, %v4163
      %v4181 = vadd.f32 %v4054, %v4167
      %v4182 = vadd.f32 %v4056, %v4163
      %v4183 = vadd.f32 %v4056, %v4167
      %v4184 = vadd.f32 %v4058, %v4163
      %v4185 = vadd.f32 %v4058, %v4167
      %v4186 = vadd.f32 %v4060, %v4163
      %v4187 = vadd.f32 %v4060, %v4167
      %v4188 = vadd.f32 %v4062, %v4163
      %v4189 = vadd.f32 %v4062, %v4167
      %v4190 = vadd.f32 %v4064, %v4163
      %v4191 = vadd.f32 %v4064, %v4167
      %v4192 = vadd.f32 %v4066, %v4163
      %v4193 = vadd.f32 %v4066, %v4167
      %v4194 = vadd.f32 %v4068, %v4163
      %v4195 = vadd.f32 %v4068, %v4167
      %v4196 = vadd.f32 %v4070, %v4163
      %v4197 = vadd.f32 %v4070, %v4167
      %v4198 = vadd.f32 %v4072, %v4163
      %v4199 = vadd.f32 %v4072, %v4167
      %v4200 = vadd.f32 %v4074, %v4163
      %v4201 = vadd.f32 %v4074, %v4167
      %v4202 = vadd.f32 %v4076, %v4163
      %v4203 = vadd.f32 %v4076, %v4167
      %v4204 = vadd.f32 %v4078, %v4163
      %v4205 = vadd.f32 %v4078, %v4167
      %v4206 = vadd.f32 %v4080, %v4163
      %v4207 = vadd.f32 %v4080, %v4167
      %v4208 = vadd.f32 %v4082, %v4163
      %v4209 = vadd.f32 %v4082, %v4167
      %v4210 = vadd.f32 %v4084, %v4163
      %v4211 = vadd.f32 %v4084, %v4167
      %v4212 = vadd.f32 %v4086, %v4163
      %v4213 = vadd.f32 %v4086, %v4167
      %v4214 = vadd.f32 %v4088, %v4163
      %v4215 = vadd.f32 %v4088, %v4167
      %vm4216 = vcmp.gt.f32.partialorder %v4168, 0.0
      %vm4217 = vcmp.gt.f32.partialorder %v4169, 0.0
      %vm4218 = vcmp.gt.f32.partialorder %v4170, 0.0
      %vm4219 = vcmp.gt.f32.partialorder %v4171, 0.0
      %vm4220 = vcmp.gt.f32.partialorder %v4172, 0.0
      %vm4221 = vcmp.gt.f32.partialorder %v4173, 0.0
      %vm4222 = vcmp.gt.f32.partialorder %v4174, 0.0
      %vm4223 = vcmp.gt.f32.partialorder %v4175, 0.0
      %vm4224 = vcmp.gt.f32.partialorder %v4176, 0.0
      %vm4225 = vcmp.gt.f32.partialorder %v4177, 0.0
      %vm4226 = vcmp.gt.f32.partialorder %v4178, 0.0
      %vm4227 = vcmp.gt.f32.partialorder %v4179, 0.0
      %vm4228 = vcmp.gt.f32.partialorder %v4180, 0.0
      %vm4229 = vcmp.gt.f32.partialorder %v4181, 0.0
      %vm4230 = vcmp.gt.f32.partialorder %v4182, 0.0
      %vm4231 = vcmp.gt.f32.partialorder %v4183, 0.0
      %vm4232 = vcmp.gt.f32.partialorder %v4184, 0.0
      %vm4233 = vcmp.gt.f32.partialorder %v4185, 0.0
      %vm4234 = vcmp.gt.f32.partialorder %v4186, 0.0
      %vm4235 = vcmp.gt.f32.partialorder %v4187, 0.0
      %vm4236 = vcmp.gt.f32.partialorder %v4188, 0.0
      %vm4237 = vcmp.gt.f32.partialorder %v4189, 0.0
      %vm4238 = vcmp.gt.f32.partialorder %v4190, 0.0
      %vm4239 = vcmp.gt.f32.partialorder %v4191, 0.0
      %vm4240 = vcmp.gt.f32.partialorder %v4192, 0.0
      %vm4241 = vcmp.gt.f32.partialorder %v4193, 0.0
      %vm4242 = vcmp.gt.f32.partialorder %v4194, 0.0
      %vm4243 = vcmp.gt.f32.partialorder %v4195, 0.0
      %vm4244 = vcmp.gt.f32.partialorder %v4196, 0.0
      %vm4245 = vcmp.gt.f32.partialorder %v4197, 0.0
      %vm4246 = vcmp.gt.f32.partialorder %v4198, 0.0
      %vm4247 = vcmp.gt.f32.partialorder %v4199, 0.0
      %vm4248 = vcmp.gt.f32.partialorder %v4200, 0.0
      %vm4249 = vcmp.gt.f32.partialorder %v4201, 0.0
      %vm4250 = vcmp.gt.f32.partialorder %v4202, 0.0
      %vm4251 = vcmp.gt.f32.partialorder %v4203, 0.0
      %vm4252 = vcmp.gt.f32.partialorder %v4204, 0.0
      %vm4253 = vcmp.gt.f32.partialorder %v4205, 0.0
      %vm4254 = vcmp.gt.f32.partialorder %v4206, 0.0
      %vm4255 = vcmp.gt.f32.partialorder %v4207, 0.0
      %vm4256 = vcmp.gt.f32.partialorder %v4208, 0.0
      %vm4257 = vcmp.gt.f32.partialorder %v4209, 0.0
      %vm4258 = vcmp.gt.f32.partialorder %v4210, 0.0
      %vm4259 = vcmp.gt.f32.partialorder %v4211, 0.0
      %vm4260 = vcmp.gt.f32.partialorder %v4212, 0.0
      %vm4261 = vcmp.gt.f32.partialorder %v4213, 0.0
      %vm4262 = vcmp.gt.f32.partialorder %v4214, 0.0
      %vm4263 = vcmp.gt.f32.partialorder %v4215, 0.0
      %v4264 = vmul.f32 %v4168, 0.2
      %v4265 = vmul.f32 %v4169, 0.2
      %v4266 = vmul.f32 %v4170, 0.2
      %v4267 = vmul.f32 %v4171, 0.2
      %v4268 = vmul.f32 %v4172, 0.2
      %v4269 = vmul.f32 %v4173, 0.2
      %v4270 = vmul.f32 %v4174, 0.2
      %v4271 = vmul.f32 %v4175, 0.2
      %v4272 = vmul.f32 %v4176, 0.2
      %v4273 = vmul.f32 %v4177, 0.2
      %v4274 = vmul.f32 %v4178, 0.2
      %v4275 = vmul.f32 %v4179, 0.2
      %v4276 = vmul.f32 %v4180, 0.2
      %v4277 = vmul.f32 %v4181, 0.2
      %v4278 = vmul.f32 %v4182, 0.2
      %v4279 = vmul.f32 %v4183, 0.2
      %v4280 = vmul.f32 %v4184, 0.2
      %v4281 = vmul.f32 %v4185, 0.2
      %v4282 = vmul.f32 %v4186, 0.2
      %v4283 = vmul.f32 %v4187, 0.2
      %v4284 = vmul.f32 %v4188, 0.2
      %v4285 = vmul.f32 %v4189, 0.2
      %v4286 = vmul.f32 %v4190, 0.2
      %v4287 = vmul.f32 %v4191, 0.2
      %v4288 = vmul.f32 %v4192, 0.2
      %v4289 = vmul.f32 %v4193, 0.2
      %v4290 = vmul.f32 %v4194, 0.2
      %v4291 = vmul.f32 %v4195, 0.2
      %v4292 = vmul.f32 %v4196, 0.2
      %v4293 = vmul.f32 %v4197, 0.2
      %v4294 = vmul.f32 %v4198, 0.2
      %v4295 = vmul.f32 %v4199, 0.2
      %v4296 = vmul.f32 %v4200, 0.2
      %v4297 = vmul.f32 %v4201, 0.2
      %v4298 = vmul.f32 %v4202, 0.2
      %v4299 = vmul.f32 %v4203, 0.2
      %v4300 = vmul.f32 %v4204, 0.2
      %v4301 = vmul.f32 %v4205, 0.2
      %v4302 = vmul.f32 %v4206, 0.2
      %v4303 = vmul.f32 %v4207, 0.2
      %v4304 = vmul.f32 %v4208, 0.2
      %v4305 = vmul.f32 %v4209, 0.2
      %v4306 = vmul.f32 %v4210, 0.2
      %v4307 = vmul.f32 %v4211, 0.2
      %v4308 = vmul.f32 %v4212, 0.2
      %v4309 = vmul.f32 %v4213, 0.2
      %v4310 = vmul.f32 %v4214, 0.2
      %v4311 = vmul.f32 %v4215, 0.2
      %v4312 = vsel %vm4216, %v4168, %v4264
      %v4313 = vsel %vm4217, %v4169, %v4265
      %v4314 = vsel %vm4218, %v4170, %v4266
      %v4315 = vsel %vm4219, %v4171, %v4267
      %v4316 = vsel %vm4220, %v4172, %v4268
      %v4317 = vsel %vm4221, %v4173, %v4269
      %v4318 = vsel %vm4222, %v4174, %v4270
      %v4319 = vsel %vm4223, %v4175, %v4271
      %v4320 = vsel %vm4224, %v4176, %v4272
      %v4321 = vsel %vm4225, %v4177, %v4273
      %v4322 = vsel %vm4226, %v4178, %v4274
      %v4323 = vsel %vm4227, %v4179, %v4275
      %v4324 = vsel %vm4228, %v4180, %v4276
      %v4325 = vsel %vm4229, %v4181, %v4277
      %v4326 = vsel %vm4230, %v4182, %v4278
      %v4327 = vsel %vm4231, %v4183, %v4279
      %v4328 = vsel %vm4232, %v4184, %v4280
      %v4329 = vsel %vm4233, %v4185, %v4281
      %v4330 = vsel %vm4234, %v4186, %v4282
      %v4331 = vsel %vm4235, %v4187, %v4283
      %v4332 = vsel %vm4236, %v4188, %v4284
      %v4333 = vsel %vm4237, %v4189, %v4285
      %v4334 = vsel %vm4238, %v4190, %v4286
      %v4335 = vsel %vm4239, %v4191, %v4287
      %v4336 = vsel %vm4240, %v4192, %v4288
      %v4337 = vsel %vm4241, %v4193, %v4289
      %v4338 = vsel %vm4242, %v4194, %v4290
      %v4339 = vsel %vm4243, %v4195, %v4291
      %v4340 = vsel %vm4244, %v4196, %v4292
      %v4341 = vsel %vm4245, %v4197, %v4293
      %v4342 = vsel %vm4246, %v4198, %v4294
      %v4343 = vsel %vm4247, %v4199, %v4295
      %v4344 = vsel %vm4248, %v4200, %v4296
      %v4345 = vsel %vm4249, %v4201, %v4297
      %v4346 = vsel %vm4250, %v4202, %v4298
      %v4347 = vsel %vm4251, %v4203, %v4299
      %v4348 = vsel %vm4252, %v4204, %v4300
      %v4349 = vsel %vm4253, %v4205, %v4301
      %v4350 = vsel %vm4254, %v4206, %v4302
      %v4351 = vsel %vm4255, %v4207, %v4303
      %v4352 = vsel %vm4256, %v4208, %v4304
      %v4353 = vsel %vm4257, %v4209, %v4305
      %v4354 = vsel %vm4258, %v4210, %v4306
      %v4355 = vsel %vm4259, %v4211, %v4307
      %v4356 = vsel %vm4260, %v4212, %v4308
      %v4357 = vsel %vm4261, %v4213, %v4309
      %v4358 = vsel %vm4262, %v4214, %v4310
      %v4359 = vsel %vm4263, %v4215, %v4311
      %v4360 = vsel %vm2960, %v4312, -1e+30
      %v4361 = vsel %vm2961, %v4313, -1e+30
      %v4362 = vsel %vm2962, %v4314, -1e+30
      %v4363 = vsel %vm2963, %v4315, -1e+30
      %v4364 = vsel %vm2964, %v4316, -1e+30
      %v4365 = vsel %vm2965, %v4317, -1e+30
      %v4366 = vsel %vm2966, %v4318, -1e+30
      %v4367 = vsel %vm2967, %v4319, -1e+30
      %v4368 = vsel %vm2968, %v4320, -1e+30
      %v4369 = vsel %vm2969, %v4321, -1e+30
      %v4370 = vsel %vm2970, %v4322, -1e+30
      %v4371 = vsel %vm2971, %v4323, -1e+30
      %v4372 = vsel %vm2972, %v4324, -1e+30
      %v4373 = vsel %vm2973, %v4325, -1e+30
      %v4374 = vsel %vm2974, %v4326, -1e+30
      %v4375 = vsel %vm2975, %v4327, -1e+30
      %v4376 = vsel %vm2976, %v4328, -1e+30
      %v4377 = vsel %vm2977, %v4329, -1e+30
      %v4378 = vsel %vm2978, %v4330, -1e+30
      %v4379 = vsel %vm2979, %v4331, -1e+30
      %v4380 = vsel %vm2980, %v4332, -1e+30
      %v4381 = vsel %vm2981, %v4333, -1e+30
      %v4382 = vsel %vm2982, %v4334, -1e+30
      %v4383 = vsel %vm2983, %v4335, -1e+30
      %v4384 = vsel %vm2984, %v4336, -1e+30
      %v4385 = vsel %vm2985, %v4337, -1e+30
      %v4386 = vsel %vm2986, %v4338, -1e+30
      %v4387 = vsel %vm2987, %v4339, -1e+30
      %v4388 = vsel %vm2988, %v4340, -1e+30
      %v4389 = vsel %vm2989, %v4341, -1e+30
      %v4390 = vsel %vm2990, %v4342, -1e+30
      %v4391 = vsel %vm2991, %v4343, -1e+30
      %v4392 = vsel %vm2992, %v4344, -1e+30
      %v4393 = vsel %vm2993, %v4345, -1e+30
      %v4394 = vsel %vm2994, %v4346, -1e+30
      %v4395 = vsel %vm2995, %v4347, -1e+30
      %v4396 = vsel %vm2996, %v4348, -1e+30
      %v4397 = vsel %vm2997, %v4349, -1e+30
      %v4398 = vsel %vm2998, %v4350, -1e+30
      %v4399 = vsel %vm2999, %v4351, -1e+30
      %v4400 = vsel %vm3000, %v4352, -1e+30
      %v4401 = vsel %vm3001, %v4353, -1e+30
      %v4402 = vsel %vm3002, %v4354, -1e+30
      %v4403 = vsel %vm3003, %v4355, -1e+30
      %v4404 = vsel %vm3004, %v4356, -1e+30
      %v4405 = vsel %vm3005, %v4357, -1e+30
      %v4406 = vsel %vm3006, %v4358, -1e+30
      %v4407 = vsel %vm3007, %v4359, -1e+30
      %v4408 = vsel %vm3056, %v4361, -inf
      %v4409 = vmax.f32 %v4360, %v4408
      %4410 = vmax.xlane.f32.xlu0 %v4409
      %v4411 = vpop.xlane.xlu0 %4410
      %v4412 = vsel %vm3056, %v4363, -inf
      %v4413 = vmax.f32 %v4362, %v4412
      %4414 = vmax.xlane.f32.xlu0 %v4413
      %v4415 = vpop.xlane.xlu0 %4414
      %v4416 = vsel %vm3056, %v4365, -inf
      %v4417 = vmax.f32 %v4364, %v4416
      %4418 = vmax.xlane.f32.xlu0 %v4417
      %v4419 = vpop.xlane.xlu0 %4418
      %v4420 = vsel %vm3056, %v4367, -inf
      %v4421 = vmax.f32 %v4366, %v4420
      %4422 = vmax.xlane.f32.xlu0 %v4421
      %v4423 = vpop.xlane.xlu0 %4422
      %v4424 = vsel %vm3056, %v4369, -inf
      %v4425 = vmax.f32 %v4368, %v4424
      %4426 = vmax.xlane.f32.xlu0 %v4425
      %v4427 = vpop.xlane.xlu0 %4426
      %v4428 = vsel %vm3056, %v4371, -inf
      %v4429 = vmax.f32 %v4370, %v4428
      %4430 = vmax.xlane.f32.xlu0 %v4429
      %v4431 = vpop.xlane.xlu0 %4430
      %v4432 = vsel %vm3056, %v4373, -inf
      %v4433 = vmax.f32 %v4372, %v4432
      %4434 = vmax.xlane.f32.xlu0 %v4433
      %v4435 = vpop.xlane.xlu0 %4434
      %v4436 = vsel %vm3056, %v4375, -inf
      %v4437 = vmax.f32 %v4374, %v4436
      %4438 = vmax.xlane.f32.xlu0 %v4437
      %v4439 = vpop.xlane.xlu0 %4438
      %v4440 = vsel %vm3056, %v4377, -inf
      %v4441 = vmax.f32 %v4376, %v4440
      %4442 = vmax.xlane.f32.xlu0 %v4441
      %v4443 = vpop.xlane.xlu0 %4442
      %v4444 = vsel %vm3056, %v4379, -inf
      %v4445 = vmax.f32 %v4378, %v4444
      %4446 = vmax.xlane.f32.xlu0 %v4445
      %v4447 = vpop.xlane.xlu0 %4446
      %v4448 = vsel %vm3056, %v4381, -inf
      %v4449 = vmax.f32 %v4380, %v4448
      %4450 = vmax.xlane.f32.xlu0 %v4449
      %v4451 = vpop.xlane.xlu0 %4450
      %v4452 = vsel %vm3056, %v4383, -inf
      %v4453 = vmax.f32 %v4382, %v4452
      %4454 = vmax.xlane.f32.xlu0 %v4453
      %v4455 = vpop.xlane.xlu0 %4454
      %v4456 = vsel %vm3056, %v4385, -inf
      %v4457 = vmax.f32 %v4384, %v4456
      %4458 = vmax.xlane.f32.xlu0 %v4457
      %v4459 = vpop.xlane.xlu0 %4458
      %v4460 = vsel %vm3056, %v4387, -inf
      %v4461 = vmax.f32 %v4386, %v4460
      %4462 = vmax.xlane.f32.xlu0 %v4461
      %v4463 = vpop.xlane.xlu0 %4462
      %v4464 = vsel %vm3056, %v4389, -inf
      %v4465 = vmax.f32 %v4388, %v4464
      %4466 = vmax.xlane.f32.xlu0 %v4465
      %v4467 = vpop.xlane.xlu0 %4466
      %v4468 = vsel %vm3056, %v4391, -inf
      %v4469 = vmax.f32 %v4390, %v4468
      %4470 = vmax.xlane.f32.xlu0 %v4469
      %v4471 = vpop.xlane.xlu0 %4470
      %v4472 = vsel %vm3056, %v4393, -inf
      %v4473 = vmax.f32 %v4392, %v4472
      %4474 = vmax.xlane.f32.xlu0 %v4473
      %v4475 = vpop.xlane.xlu0 %4474
      %v4476 = vsel %vm3056, %v4395, -inf
      %v4477 = vmax.f32 %v4394, %v4476
      %4478 = vmax.xlane.f32.xlu0 %v4477
      %v4479 = vpop.xlane.xlu0 %4478
      %v4480 = vsel %vm3056, %v4397, -inf
      %v4481 = vmax.f32 %v4396, %v4480
      %4482 = vmax.xlane.f32.xlu0 %v4481
      %v4483 = vpop.xlane.xlu0 %4482
      %v4484 = vsel %vm3056, %v4399, -inf
      %v4485 = vmax.f32 %v4398, %v4484
      %4486 = vmax.xlane.f32.xlu0 %v4485
      %v4487 = vpop.xlane.xlu0 %4486
      %v4488 = vsel %vm3056, %v4401, -inf
      %v4489 = vmax.f32 %v4400, %v4488
      %4490 = vmax.xlane.f32.xlu0 %v4489
      %v4491 = vpop.xlane.xlu0 %4490
      %v4492 = vsel %vm3056, %v4403, -inf
      %v4493 = vmax.f32 %v4402, %v4492
      %4494 = vmax.xlane.f32.xlu0 %v4493
      %v4495 = vpop.xlane.xlu0 %4494
      %v4496 = vsel %vm3056, %v4405, -inf
      %v4497 = vmax.f32 %v4404, %v4496
      %4498 = vmax.xlane.f32.xlu0 %v4497
      %v4499 = vpop.xlane.xlu0 %4498
      %v4500 = vsel %vm3056, %v4407, -inf
      %v4501 = vmax.f32 %v4406, %v4500
      %4502 = vmax.xlane.f32.xlu0 %v4501
      %v4503 = vpop.xlane.xlu0 %4502
      %v4504 = vsub.f32 %v4360, %v4411
      %v4505 = vsub.f32 %v4361, %v4411
      %v4506 = vsub.f32 %v4362, %v4415
      %v4507 = vsub.f32 %v4363, %v4415
      %v4508 = vsub.f32 %v4364, %v4419
      %v4509 = vsub.f32 %v4365, %v4419
      %v4510 = vsub.f32 %v4366, %v4423
      %v4511 = vsub.f32 %v4367, %v4423
      %v4512 = vsub.f32 %v4368, %v4427
      %v4513 = vsub.f32 %v4369, %v4427
      %v4514 = vsub.f32 %v4370, %v4431
      %v4515 = vsub.f32 %v4371, %v4431
      %v4516 = vsub.f32 %v4372, %v4435
      %v4517 = vsub.f32 %v4373, %v4435
      %v4518 = vsub.f32 %v4374, %v4439
      %v4519 = vsub.f32 %v4375, %v4439
      %v4520 = vsub.f32 %v4376, %v4443
      %v4521 = vsub.f32 %v4377, %v4443
      %v4522 = vsub.f32 %v4378, %v4447
      %v4523 = vsub.f32 %v4379, %v4447
      %v4524 = vsub.f32 %v4380, %v4451
      %v4525 = vsub.f32 %v4381, %v4451
      %v4526 = vsub.f32 %v4382, %v4455
      %v4527 = vsub.f32 %v4383, %v4455
      %v4528 = vsub.f32 %v4384, %v4459
      %v4529 = vsub.f32 %v4385, %v4459
      %v4530 = vsub.f32 %v4386, %v4463
      %v4531 = vsub.f32 %v4387, %v4463
      %v4532 = vsub.f32 %v4388, %v4467
      %v4533 = vsub.f32 %v4389, %v4467
      %v4534 = vsub.f32 %v4390, %v4471
      %v4535 = vsub.f32 %v4391, %v4471
      %v4536 = vsub.f32 %v4392, %v4475
      %v4537 = vsub.f32 %v4393, %v4475
      %v4538 = vsub.f32 %v4394, %v4479
      %v4539 = vsub.f32 %v4395, %v4479
      %v4540 = vsub.f32 %v4396, %v4483
      %v4541 = vsub.f32 %v4397, %v4483
      %v4542 = vsub.f32 %v4398, %v4487
      %v4543 = vsub.f32 %v4399, %v4487
      %v4544 = vsub.f32 %v4400, %v4491
      %v4545 = vsub.f32 %v4401, %v4491
      %v4546 = vsub.f32 %v4402, %v4495
      %v4547 = vsub.f32 %v4403, %v4495
      %v4548 = vsub.f32 %v4404, %v4499
      %v4549 = vsub.f32 %v4405, %v4499
      %v4550 = vsub.f32 %v4406, %v4503
      %v4551 = vsub.f32 %v4407, %v4503
      %v4552 = vmul.f32 %v4504, 1.442695
      %v4553 = vpow.pop %v4552
      %v4554 = vmul.f32 %v4505, 1.442695
      %v4555 = vpow.pop %v4554
      %v4556 = vmul.f32 %v4506, 1.442695
      %v4557 = vpow.pop %v4556
      %v4558 = vmul.f32 %v4507, 1.442695
      %v4559 = vpow.pop %v4558
      %v4560 = vmul.f32 %v4508, 1.442695
      %v4561 = vpow.pop %v4560
      %v4562 = vmul.f32 %v4509, 1.442695
      %v4563 = vpow.pop %v4562
      %v4564 = vmul.f32 %v4510, 1.442695
      %v4565 = vpow.pop %v4564
      %v4566 = vmul.f32 %v4511, 1.442695
      %v4567 = vpow.pop %v4566
      %v4568 = vmul.f32 %v4512, 1.442695
      %v4569 = vpow.pop %v4568
      %v4570 = vmul.f32 %v4513, 1.442695
      %v4571 = vpow.pop %v4570
      %v4572 = vmul.f32 %v4514, 1.442695
      %v4573 = vpow.pop %v4572
      %v4574 = vmul.f32 %v4515, 1.442695
      %v4575 = vpow.pop %v4574
      %v4576 = vmul.f32 %v4516, 1.442695
      %v4577 = vpow.pop %v4576
      %v4578 = vmul.f32 %v4517, 1.442695
      %v4579 = vpow.pop %v4578
      %v4580 = vmul.f32 %v4518, 1.442695
      %v4581 = vpow.pop %v4580
      %v4582 = vmul.f32 %v4519, 1.442695
      %v4583 = vpow.pop %v4582
      %v4584 = vmul.f32 %v4520, 1.442695
      %v4585 = vpow.pop %v4584
      %v4586 = vmul.f32 %v4521, 1.442695
      %v4587 = vpow.pop %v4586
      %v4588 = vmul.f32 %v4522, 1.442695
      %v4589 = vpow.pop %v4588
      %v4590 = vmul.f32 %v4523, 1.442695
      %v4591 = vpow.pop %v4590
      %v4592 = vmul.f32 %v4524, 1.442695
      %v4593 = vpow.pop %v4592
      %v4594 = vmul.f32 %v4525, 1.442695
      %v4595 = vpow.pop %v4594
      %v4596 = vmul.f32 %v4526, 1.442695
      %v4597 = vpow.pop %v4596
      %v4598 = vmul.f32 %v4527, 1.442695
      %v4599 = vpow.pop %v4598
      %v4600 = vmul.f32 %v4528, 1.442695
      %v4601 = vpow.pop %v4600
      %v4602 = vmul.f32 %v4529, 1.442695
      %v4603 = vpow.pop %v4602
      %v4604 = vmul.f32 %v4530, 1.442695
      %v4605 = vpow.pop %v4604
      %v4606 = vmul.f32 %v4531, 1.442695
      %v4607 = vpow.pop %v4606
      %v4608 = vmul.f32 %v4532, 1.442695
      %v4609 = vpow.pop %v4608
      %v4610 = vmul.f32 %v4533, 1.442695
      %v4611 = vpow.pop %v4610
      %v4612 = vmul.f32 %v4534, 1.442695
      %v4613 = vpow.pop %v4612
      %v4614 = vmul.f32 %v4535, 1.442695
      %v4615 = vpow.pop %v4614
      %v4616 = vmul.f32 %v4536, 1.442695
      %v4617 = vpow.pop %v4616
      %v4618 = vmul.f32 %v4537, 1.442695
      %v4619 = vpow.pop %v4618
      %v4620 = vmul.f32 %v4538, 1.442695
      %v4621 = vpow.pop %v4620
      %v4622 = vmul.f32 %v4539, 1.442695
      %v4623 = vpow.pop %v4622
      %v4624 = vmul.f32 %v4540, 1.442695
      %v4625 = vpow.pop %v4624
      %v4626 = vmul.f32 %v4541, 1.442695
      %v4627 = vpow.pop %v4626
      %v4628 = vmul.f32 %v4542, 1.442695
      %v4629 = vpow.pop %v4628
      %v4630 = vmul.f32 %v4543, 1.442695
      %v4631 = vpow.pop %v4630
      %v4632 = vmul.f32 %v4544, 1.442695
      %v4633 = vpow.pop %v4632
      %v4634 = vmul.f32 %v4545, 1.442695
      %v4635 = vpow.pop %v4634
      %v4636 = vmul.f32 %v4546, 1.442695
      %v4637 = vpow.pop %v4636
      %v4638 = vmul.f32 %v4547, 1.442695
      %v4639 = vpow.pop %v4638
      %v4640 = vmul.f32 %v4548, 1.442695
      %v4641 = vpow.pop %v4640
      %v4642 = vmul.f32 %v4549, 1.442695
      %v4643 = vpow.pop %v4642
      %v4644 = vmul.f32 %v4550, 1.442695
      %v4645 = vpow.pop %v4644
      %v4646 = vmul.f32 %v4551, 1.442695
      %v4647 = vpow.pop %v4646
      %v4648 = vsel %vm3056, %v4555, 0.0
      %v4649 = vadd.f32 %v4553, %v4648
      %4650 = vadd.xlane.f32.xlu0 %v4649
      %v4651 = vpop.xlane.xlu0 %4650
      %v4652 = vsel %vm3056, %v4559, 0.0
      %v4653 = vadd.f32 %v4557, %v4652
      %4654 = vadd.xlane.f32.xlu0 %v4653
      %v4655 = vpop.xlane.xlu0 %4654
      %v4656 = vsel %vm3056, %v4563, 0.0
      %v4657 = vadd.f32 %v4561, %v4656
      %4658 = vadd.xlane.f32.xlu0 %v4657
      %v4659 = vpop.xlane.xlu0 %4658
      %v4660 = vsel %vm3056, %v4567, 0.0
      %v4661 = vadd.f32 %v4565, %v4660
      %4662 = vadd.xlane.f32.xlu0 %v4661
      %v4663 = vpop.xlane.xlu0 %4662
      %v4664 = vsel %vm3056, %v4571, 0.0
      %v4665 = vadd.f32 %v4569, %v4664
      %4666 = vadd.xlane.f32.xlu0 %v4665
      %v4667 = vpop.xlane.xlu0 %4666
      %v4668 = vsel %vm3056, %v4575, 0.0
      %v4669 = vadd.f32 %v4573, %v4668
      %4670 = vadd.xlane.f32.xlu0 %v4669
      %v4671 = vpop.xlane.xlu0 %4670
      %v4672 = vsel %vm3056, %v4579, 0.0
      %v4673 = vadd.f32 %v4577, %v4672
      %4674 = vadd.xlane.f32.xlu0 %v4673
      %v4675 = vpop.xlane.xlu0 %4674
      %v4676 = vsel %vm3056, %v4583, 0.0
      %v4677 = vadd.f32 %v4581, %v4676
      %4678 = vadd.xlane.f32.xlu0 %v4677
      %v4679 = vpop.xlane.xlu0 %4678
      %v4680 = vsel %vm3056, %v4587, 0.0
      %v4681 = vadd.f32 %v4585, %v4680
      %4682 = vadd.xlane.f32.xlu0 %v4681
      %v4683 = vpop.xlane.xlu0 %4682
      %v4684 = vsel %vm3056, %v4591, 0.0
      %v4685 = vadd.f32 %v4589, %v4684
      %4686 = vadd.xlane.f32.xlu0 %v4685
      %v4687 = vpop.xlane.xlu0 %4686
      %v4688 = vsel %vm3056, %v4595, 0.0
      %v4689 = vadd.f32 %v4593, %v4688
      %4690 = vadd.xlane.f32.xlu0 %v4689
      %v4691 = vpop.xlane.xlu0 %4690
      %v4692 = vsel %vm3056, %v4599, 0.0
      %v4693 = vadd.f32 %v4597, %v4692
      %4694 = vadd.xlane.f32.xlu0 %v4693
      %v4695 = vpop.xlane.xlu0 %4694
      %v4696 = vsel %vm3056, %v4603, 0.0
      %v4697 = vadd.f32 %v4601, %v4696
      %4698 = vadd.xlane.f32.xlu0 %v4697
      %v4699 = vpop.xlane.xlu0 %4698
      %v4700 = vsel %vm3056, %v4607, 0.0
      %v4701 = vadd.f32 %v4605, %v4700
      %4702 = vadd.xlane.f32.xlu0 %v4701
      %v4703 = vpop.xlane.xlu0 %4702
      %v4704 = vsel %vm3056, %v4611, 0.0
      %v4705 = vadd.f32 %v4609, %v4704
      %4706 = vadd.xlane.f32.xlu0 %v4705
      %v4707 = vpop.xlane.xlu0 %4706
      %v4708 = vsel %vm3056, %v4615, 0.0
      %v4709 = vadd.f32 %v4613, %v4708
      %4710 = vadd.xlane.f32.xlu0 %v4709
      %v4711 = vpop.xlane.xlu0 %4710
      %v4712 = vsel %vm3056, %v4619, 0.0
      %v4713 = vadd.f32 %v4617, %v4712
      %4714 = vadd.xlane.f32.xlu0 %v4713
      %v4715 = vpop.xlane.xlu0 %4714
      %v4716 = vsel %vm3056, %v4623, 0.0
      %v4717 = vadd.f32 %v4621, %v4716
      %4718 = vadd.xlane.f32.xlu0 %v4717
      %v4719 = vpop.xlane.xlu0 %4718
      %v4720 = vsel %vm3056, %v4627, 0.0
      %v4721 = vadd.f32 %v4625, %v4720
      %4722 = vadd.xlane.f32.xlu0 %v4721
      %v4723 = vpop.xlane.xlu0 %4722
      %v4724 = vsel %vm3056, %v4631, 0.0
      %v4725 = vadd.f32 %v4629, %v4724
      %4726 = vadd.xlane.f32.xlu0 %v4725
      %v4727 = vpop.xlane.xlu0 %4726
      %v4728 = vsel %vm3056, %v4635, 0.0
      %v4729 = vadd.f32 %v4633, %v4728
      %4730 = vadd.xlane.f32.xlu0 %v4729
      %v4731 = vpop.xlane.xlu0 %4730
      %v4732 = vsel %vm3056, %v4639, 0.0
      %v4733 = vadd.f32 %v4637, %v4732
      %4734 = vadd.xlane.f32.xlu0 %v4733
      %v4735 = vpop.xlane.xlu0 %4734
      %v4736 = vsel %vm3056, %v4643, 0.0
      %v4737 = vadd.f32 %v4641, %v4736
      %4738 = vadd.xlane.f32.xlu0 %v4737
      %v4739 = vpop.xlane.xlu0 %4738
      %v4740 = vsel %vm3056, %v4647, 0.0
      %v4741 = vadd.f32 %v4645, %v4740
      %4742 = vadd.xlane.f32.xlu0 %v4741
      %v4743 = vpop.xlane.xlu0 %4742
      %v4744 = vrcp.pop %v4651
      %v4745 = vrcp.pop %v4655
      %v4746 = vrcp.pop %v4659
      %v4747 = vrcp.pop %v4663
      %v4748 = vrcp.pop %v4667
      %v4749 = vrcp.pop %v4671
      %v4750 = vrcp.pop %v4675
      %v4751 = vrcp.pop %v4679
      %v4752 = vrcp.pop %v4683
      %v4753 = vrcp.pop %v4687
      %v4754 = vrcp.pop %v4691
      %v4755 = vrcp.pop %v4695
      %v4756 = vrcp.pop %v4699
      %v4757 = vrcp.pop %v4703
      %v4758 = vrcp.pop %v4707
      %v4759 = vrcp.pop %v4711
      %v4760 = vrcp.pop %v4715
      %v4761 = vrcp.pop %v4719
      %v4762 = vrcp.pop %v4723
      %v4763 = vrcp.pop %v4727
      %v4764 = vrcp.pop %v4731
      %v4765 = vrcp.pop %v4735
      %v4766 = vrcp.pop %v4739
      %v4767 = vrcp.pop %v4743
      %v4768 = vmul.f32 %v4553, %v4744
      %v4769 = vmul.f32 %v4555, %v4744
      %v4770 = vmul.f32 %v4557, %v4745
      %v4771 = vmul.f32 %v4559, %v4745
      %v4772 = vmul.f32 %v4561, %v4746
      %v4773 = vmul.f32 %v4563, %v4746
      %v4774 = vmul.f32 %v4565, %v4747
      %v4775 = vmul.f32 %v4567, %v4747
      %v4776 = vmul.f32 %v4569, %v4748
      %v4777 = vmul.f32 %v4571, %v4748
      %v4778 = vmul.f32 %v4573, %v4749
      %v4779 = vmul.f32 %v4575, %v4749
      %v4780 = vmul.f32 %v4577, %v4750
      %v4781 = vmul.f32 %v4579, %v4750
      %v4782 = vmul.f32 %v4581, %v4751
      %v4783 = vmul.f32 %v4583, %v4751
      %v4784 = vmul.f32 %v4585, %v4752
      %v4785 = vmul.f32 %v4587, %v4752
      %v4786 = vmul.f32 %v4589, %v4753
      %v4787 = vmul.f32 %v4591, %v4753
      %v4788 = vmul.f32 %v4593, %v4754
      %v4789 = vmul.f32 %v4595, %v4754
      %v4790 = vmul.f32 %v4597, %v4755
      %v4791 = vmul.f32 %v4599, %v4755
      %v4792 = vmul.f32 %v4601, %v4756
      %v4793 = vmul.f32 %v4603, %v4756
      %v4794 = vmul.f32 %v4605, %v4757
      %v4795 = vmul.f32 %v4607, %v4757
      %v4796 = vmul.f32 %v4609, %v4758
      %v4797 = vmul.f32 %v4611, %v4758
      %v4798 = vmul.f32 %v4613, %v4759
      %v4799 = vmul.f32 %v4615, %v4759
      %v4800 = vmul.f32 %v4617, %v4760
      %v4801 = vmul.f32 %v4619, %v4760
      %v4802 = vmul.f32 %v4621, %v4761
      %v4803 = vmul.f32 %v4623, %v4761
      %v4804 = vmul.f32 %v4625, %v4762
      %v4805 = vmul.f32 %v4627, %v4762
      %v4806 = vmul.f32 %v4629, %v4763
      %v4807 = vmul.f32 %v4631, %v4763
      %v4808 = vmul.f32 %v4633, %v4764
      %v4809 = vmul.f32 %v4635, %v4764
      %v4810 = vmul.f32 %v4637, %v4765
      %v4811 = vmul.f32 %v4639, %v4765
      %v4812 = vmul.f32 %v4641, %v4766
      %v4813 = vmul.f32 %v4643, %v4766
      %v4814 = vmul.f32 %v4645, %v4767
      %v4815 = vmul.f32 %v4647, %v4767
      %v4817 = vsel %vm3056, %v4769, 0
      %v4820 = vsel %vm3056, %v4771, 0
      %v4823 = vsel %vm3056, %v4773, 0
      %v4826 = vsel %vm3056, %v4775, 0
      %v4829 = vsel %vm3056, %v4777, 0
      %v4832 = vsel %vm3056, %v4779, 0
      %v4835 = vsel %vm3056, %v4781, 0
      %v4838 = vsel %vm3056, %v4783, 0
      %v4841 = vsel %vm3056, %v4785, 0
      %v4844 = vsel %vm3056, %v4787, 0
      %v4847 = vsel %vm3056, %v4789, 0
      %v4850 = vsel %vm3056, %v4791, 0
      %v4853 = vsel %vm3056, %v4793, 0
      %v4856 = vsel %vm3056, %v4795, 0
      %v4859 = vsel %vm3056, %v4797, 0
      %v4862 = vsel %vm3056, %v4799, 0
      %v4865 = vsel %vm3056, %v4801, 0
      %v4868 = vsel %vm3056, %v4803, 0
      %v4871 = vsel %vm3056, %v4805, 0
      %v4874 = vsel %vm3056, %v4807, 0
      %v4877 = vsel %vm3056, %v4809, 0
      %v4880 = vsel %vm3056, %v4811, 0
      %v4883 = vsel %vm3056, %v4813, 0
      %v4886 = vsel %vm3056, %v4815, 0
      %4888 = vmatprep.subr.mxu0 0.0
      %4889 = vmatpush1.msra.mxu0 %v3893
      %4890 = vmatprep.subr.mxu0 0.0
      %4891 = vmatpush1.msra.mxu0 %v3898
      %4892 = vmatprep.subr.mxu0 0.0
      %4893 = vmatpush1.msra.mxu0 %v3903
      %4894 = vmatprep.subr.mxu0 0.0
      %4895 = vmatpush1.msra.mxu0 %v3908
      %4896 = vmatprep.subr.mxu0 0.0
      %4897 = vmatpush1.msra.mxu0 %v3913
      %4898 = vmatprep.subr.mxu0 0.0
      %4899 = vmatpush1.msra.mxu0 %v3918
      %4900 = vmatprep.subr.mxu0 0.0
      %4901 = vmatpush1.msra.mxu0 %v3923
      %4902 = vmatprep.subr.mxu0 0.0
      %4903 = vmatpush1.msra.mxu0 %v3928
      %4904 = vmatprep.subr.mxu0 0.0
      %4905 = vmatpush1.msra.mxu0 %v3933
      %4906 = vmatprep.subr.mxu0 0.0
      %4907 = vmatpush1.msra.mxu0 %v3938
      %4908 = vmatprep.subr.mxu0 0.0
      %4909 = vmatpush1.msra.mxu0 %v3943
      %4910 = vmatprep.subr.mxu0 0.0
      %4911 = vmatpush1.msra.mxu0 %v3948
      %4912 = vmatprep.subr.mxu0 0.0
      %4913 = vmatpush1.msra.mxu0 %v3953
      %4914 = vmatprep.subr.mxu0 0.0
      %4915 = vmatpush1.msra.mxu0 %v3958
      %4916 = vmatprep.subr.mxu0 0.0
      %4917 = vmatpush1.msra.mxu0 %v3963
      %4918 = vmatprep.subr.mxu0 0.0
      %4919 = vmatpush1.msra.mxu0 %v3968
      %4920 = vmatprep.subr.mxu0 0.0
      %4921 = vmatpush1.msra.mxu0 %v3973
      %4922 = vmatprep.subr.mxu0 0.0
      %4923 = vmatpush1.msra.mxu0 %v3978
      %4924 = vmatprep.subr.mxu0 0.0
      %4925 = vmatpush1.msra.mxu0 %v3983
      %4926 = vmatprep.subr.mxu0 0.0
      %4927 = vmatpush1.msra.mxu0 %v3988
      %4928 = vmatprep.subr.mxu0 0.0
      %4929 = vmatpush1.msra.mxu0 %v3993
      %4930 = vmatprep.subr.mxu0 0.0
      %4931 = vmatpush1.msra.mxu0 %v3998
      %4932 = vmatprep.subr.mxu0 0.0
      %4933 = vmatpush1.msra.mxu0 %v4003
      %4934 = vmatprep.subr.mxu0 0.0
      %4935 = vmatpush1.msra.mxu0 %v4008
      %4936 = vmatprep.subr.mxu0 0.0
      %4937 = vmatpush1.msra.mxu0 0.0
      %4938 = vmatprep.subr.mxu0 0.0
      %4939 = vmatpush1.msra.mxu0 0.0
      %4940 = vmatprep.subr.mxu0 0.0
      %4941 = vmatpush1.msra.mxu0 0.0
      %4942 = vmatprep.subr.mxu0 0.0
      %4943 = vmatpush1.msra.mxu0 0.0
      %4944 = vmatprep.subr.mxu0 0.0
      %4945 = vmatpush1.msra.mxu0 0.0
      %4946 = vmatprep.subr.mxu0 0.0
      %4947 = vmatpush1.msra.mxu0 0.0
      %4948 = vmatprep.subr.mxu0 0.0
      %4949 = vmatpush1.msra.mxu0 0.0
      %4950 = vmatprep.subr.mxu0 0.0
      %4951 = vmatpush1.msra.mxu0 0.0
      %4952 = vmatprep.mubr.f32.mxu0 %v4817
      %4953 = vmatmul.mubr.f32.gmra.mrb[0].mxu0 %v4768
      %v4954 = vpop.f32.mrb[0].mxu0
      %v4955 = vadd.f32 0.0, %v4954
      %v4956 = vpop.f32.mrb[0].mxu0
      %4957 = vmatprep.mubr.f32.mxu0 %v4820
      %4958 = vmatmul.mubr.f32.gmra.mrb[0].mxu0 %v4770
      %v4959 = vpop.f32.mrb[0].mxu0
      %v4960 = vadd.f32 0.0, %v4959
      %v4961 = vpop.f32.mrb[0].mxu0
      %4962 = vmatprep.mubr.f32.mxu0 %v4823
      %4963 = vmatmul.mubr.f32.gmra.mrb[0].mxu0 %v4772
      %v4964 = vpop.f32.mrb[0].mxu0
      %v4965 = vadd.f32 0.0, %v4964
      %v4966 = vpop.f32.mrb[0].mxu0
      %4967 = vmatprep.mubr.f32.mxu0 %v4826
      %4968 = vmatmul.mubr.f32.gmra.mrb[0].mxu0 %v4774
      %v4969 = vpop.f32.mrb[0].mxu0
      %v4970 = vadd.f32 0.0, %v4969
      %v4971 = vpop.f32.mrb[0].mxu0
      %4972 = vmatprep.mubr.f32.mxu0 %v4829
      %4973 = vmatmul.mubr.f32.gmra.mrb[0].mxu0 %v4776
      %v4974 = vpop.f32.mrb[0].mxu0
      %v4975 = vadd.f32 0.0, %v4974
      %v4976 = vpop.f32.mrb[0].mxu0
      %4977 = vmatprep.mubr.f32.mxu0 %v4832
      %4978 = vmatmul.mubr.f32.gmra.mrb[0].mxu0 %v4778
      %v4979 = vpop.f32.mrb[0].mxu0
      %v4980 = vadd.f32 0.0, %v4979
      %v4981 = vpop.f32.mrb[0].mxu0
      %4982 = vmatprep.mubr.f32.mxu0 %v4835
      %4983 = vmatmul.mubr.f32.gmra.mrb[0].mxu0 %v4780
      %v4984 = vpop.f32.mrb[0].mxu0
      %v4985 = vadd.f32 0.0, %v4984
      %v4986 = vpop.f32.mrb[0].mxu0
      %4987 = vmatprep.mubr.f32.mxu0 %v4838
      %4988 = vmatmul.mubr.f32.gmra.mrb[0].mxu0 %v4782
      %v4989 = vpop.f32.mrb[0].mxu0
      %v4990 = vadd.f32 0.0, %v4989
      %v4991 = vpop.f32.mrb[0].mxu0
      %4992 = vmatprep.mubr.f32.mxu0 %v4841
      %4993 = vmatmul.mubr.f32.gmra.mrb[0].mxu0 %v4784
      %v4994 = vpop.f32.mrb[0].mxu0
      %v4995 = vadd.f32 0.0, %v4994
      %v4996 = vpop.f32.mrb[0].mxu0
      %4997 = vmatprep.mubr.f32.mxu0 %v4844
      %4998 = vmatmul.mubr.f32.gmra.mrb[0].mxu0 %v4786
      %v4999 = vpop.f32.mrb[0].mxu0
      %v5000 = vadd.f32 0.0, %v4999
      %v5001 = vpop.f32.mrb[0].mxu0
      %5002 = vmatprep.mubr.f32.mxu0 %v4847
      %5003 = vmatmul.mubr.f32.gmra.mrb[0].mxu0 %v4788
      %v5004 = vpop.f32.mrb[0].mxu0
      %v5005 = vadd.f32 0.0, %v5004
      %v5006 = vpop.f32.mrb[0].mxu0
      %5007 = vmatprep.mubr.f32.mxu0 %v4850
      %5008 = vmatmul.mubr.f32.gmra.mrb[0].mxu0 %v4790
      %v5009 = vpop.f32.mrb[0].mxu0
      %v5010 = vadd.f32 0.0, %v5009
      %v5011 = vpop.f32.mrb[0].mxu0
      %5012 = vmatprep.mubr.f32.mxu0 %v4853
      %5013 = vmatmul.mubr.f32.gmra.mrb[0].mxu0 %v4792
      %v5014 = vpop.f32.mrb[0].mxu0
      %v5015 = vadd.f32 0.0, %v5014
      %v5016 = vpop.f32.mrb[0].mxu0
      %5017 = vmatprep.mubr.f32.mxu0 %v4856
      %5018 = vmatmul.mubr.f32.gmra.mrb[0].mxu0 %v4794
      %v5019 = vpop.f32.mrb[0].mxu0
      %v5020 = vadd.f32 0.0, %v5019
      %v5021 = vpop.f32.mrb[0].mxu0
      %5022 = vmatprep.mubr.f32.mxu0 %v4859
      %5023 = vmatmul.mubr.f32.gmra.mrb[0].mxu0 %v4796
      %v5024 = vpop.f32.mrb[0].mxu0
      %v5025 = vadd.f32 0.0, %v5024
      %v5026 = vpop.f32.mrb[0].mxu0
      %5027 = vmatprep.mubr.f32.mxu0 %v4862
      %5028 = vmatmul.mubr.f32.gmra.mrb[0].mxu0 %v4798
      %v5029 = vpop.f32.mrb[0].mxu0
      %v5030 = vadd.f32 0.0, %v5029
      %v5031 = vpop.f32.mrb[0].mxu0
      %5032 = vmatprep.mubr.f32.mxu0 %v4865
      %5033 = vmatmul.mubr.f32.gmra.mrb[0].mxu0 %v4800
      %v5034 = vpop.f32.mrb[0].mxu0
      %v5035 = vadd.f32 0.0, %v5034
      %v5036 = vpop.f32.mrb[0].mxu0
      %5037 = vmatprep.mubr.f32.mxu0 %v4868
      %5038 = vmatmul.mubr.f32.gmra.mrb[0].mxu0 %v4802
      %v5039 = vpop.f32.mrb[0].mxu0
      %v5040 = vadd.f32 0.0, %v5039
      %v5041 = vpop.f32.mrb[0].mxu0
      %5042 = vmatprep.mubr.f32.mxu0 %v4871
      %5043 = vmatmul.mubr.f32.gmra.mrb[0].mxu0 %v4804
      %v5044 = vpop.f32.mrb[0].mxu0
      %v5045 = vadd.f32 0.0, %v5044
      %v5046 = vpop.f32.mrb[0].mxu0
      %5047 = vmatprep.mubr.f32.mxu0 %v4874
      %5048 = vmatmul.mubr.f32.gmra.mrb[0].mxu0 %v4806
      %v5049 = vpop.f32.mrb[0].mxu0
      %v5050 = vadd.f32 0.0, %v5049
      %v5051 = vpop.f32.mrb[0].mxu0
      %5052 = vmatprep.mubr.f32.mxu0 %v4877
      %5053 = vmatmul.mubr.f32.gmra.mrb[0].mxu0 %v4808
      %v5054 = vpop.f32.mrb[0].mxu0
      %v5055 = vadd.f32 0.0, %v5054
      %v5056 = vpop.f32.mrb[0].mxu0
      %5057 = vmatprep.mubr.f32.mxu0 %v4880
      %5058 = vmatmul.mubr.f32.gmra.mrb[0].mxu0 %v4810
      %v5059 = vpop.f32.mrb[0].mxu0
      %v5060 = vadd.f32 0.0, %v5059
      %v5061 = vpop.f32.mrb[0].mxu0
      %5062 = vmatprep.mubr.f32.mxu0 %v4883
      %5063 = vmatmul.mubr.f32.gmra.mrb[0].mxu0 %v4812
      %v5064 = vpop.f32.mrb[0].mxu0
      %v5065 = vadd.f32 0.0, %v5064
      %v5066 = vpop.f32.mrb[0].mxu0
      %5067 = vmatprep.mubr.f32.mxu0 %v4886
      %5068 = vmatmul.mubr.f32.gmra.mrb[0].mxu0 %v4814
      %v5069 = vpop.f32.mrb[0].mxu0
      %v5070 = vadd.f32 0.0, %v5069
      %v5071 = vpop.f32.mrb[0].mxu0
      %5072 = vdwg.mxu0
      %v5073 = vmax.f32 %v4955, 0.0
      %v5074 = vmax.f32 %v4960, 0.0
      %v5075 = vmax.f32 %v4965, 0.0
      %v5076 = vmax.f32 %v4970, 0.0
      %v5077 = vmax.f32 %v4975, 0.0
      %v5078 = vmax.f32 %v4980, 0.0
      %v5079 = vmax.f32 %v4985, 0.0
      %v5080 = vmax.f32 %v4990, 0.0
      %v5081 = vmax.f32 %v4995, 0.0
      %v5082 = vmax.f32 %v5000, 0.0
      %v5083 = vmax.f32 %v5005, 0.0
      %v5084 = vmax.f32 %v5010, 0.0
      %v5085 = vmax.f32 %v5015, 0.0
      %v5086 = vmax.f32 %v5020, 0.0
      %v5087 = vmax.f32 %v5025, 0.0
      %v5088 = vmax.f32 %v5030, 0.0
      %v5089 = vmax.f32 %v5035, 0.0
      %v5090 = vmax.f32 %v5040, 0.0
      %v5091 = vmax.f32 %v5045, 0.0
      %v5092 = vmax.f32 %v5050, 0.0
      %v5093 = vmax.f32 %v5055, 0.0
      %v5094 = vmax.f32 %v5060, 0.0
      %v5095 = vmax.f32 %v5065, 0.0
      %v5096 = vmax.f32 %v5070, 0.0
      %v5097 = vld [vmem:[%s14] sm:$0xff]
      %v5098 = vld [vmem:[%s14 + $0x8] sm:$0xff]
      %v5099 = vld [vmem:[%s14 + $0x10] sm:$0xff]
      %v5100 = vld [vmem:[%s14 + $0x18] sm:$0xff]
      %v5101 = vld [vmem:[%s14 + $0x20] sm:$0xff]
      %v5102 = vld [vmem:[%s14 + $0x28] sm:$0xff]
      %v5103 = vld [vmem:[%s14 + $0x30] sm:$0xff]
      %v5104 = vld [vmem:[%s14 + $0x38] sm:$0xff]
      %v5105 = vld [vmem:[%s14 + $0x40] sm:$0xff]
      %v5106 = vld [vmem:[%s14 + $0x48] sm:$0xff]
      %v5107 = vld [vmem:[%s14 + $0x50] sm:$0xff]
      %v5108 = vld [vmem:[%s14 + $0x58] sm:$0xff]
      %v5109 = vld [vmem:[%s14 + $0x60] sm:$0xff]
      %v5110 = vld [vmem:[%s14 + $0x68] sm:$0xff]
      %v5111 = vld [vmem:[%s14 + $0x70] sm:$0xff]
      %v5112 = vld [vmem:[%s14 + $0x78] sm:$0xff]
      %5113 = vmatprep.subr.mxu0 0.0
      %5114 = vmatpush1.msra.mxu0 %v5097
      %5115 = vmatprep.subr.mxu0 0.0
      %5116 = vmatpush1.msra.mxu0 %v5098
      %5117 = vmatprep.subr.mxu0 0.0
      %5118 = vmatpush1.msra.mxu0 %v5099
      %5119 = vmatprep.subr.mxu0 0.0
      %5120 = vmatpush1.msra.mxu0 %v5100
      %5121 = vmatprep.subr.mxu0 0.0
      %5122 = vmatpush1.msra.mxu0 %v5101
      %5123 = vmatprep.subr.mxu0 0.0
      %5124 = vmatpush1.msra.mxu0 %v5102
      %5125 = vmatprep.subr.mxu0 0.0
      %5126 = vmatpush1.msra.mxu0 %v5103
      %5127 = vmatprep.subr.mxu0 0.0
      %5128 = vmatpush1.msra.mxu0 %v5104
      %5129 = vmatprep.subr.mxu0 0.0
      %5130 = vmatpush1.msra.mxu0 %v5105
      %5131 = vmatprep.subr.mxu0 0.0
      %5132 = vmatpush1.msra.mxu0 %v5106
      %5133 = vmatprep.subr.mxu0 0.0
      %5134 = vmatpush1.msra.mxu0 %v5107
      %5135 = vmatprep.subr.mxu0 0.0
      %5136 = vmatpush1.msra.mxu0 %v5108
      %5137 = vmatprep.subr.mxu0 0.0
      %5138 = vmatpush1.msra.mxu0 %v5109
      %5139 = vmatprep.subr.mxu0 0.0
      %5140 = vmatpush1.msra.mxu0 %v5110
      %5141 = vmatprep.subr.mxu0 0.0
      %5142 = vmatpush1.msra.mxu0 %v5111
      %5143 = vmatprep.subr.mxu0 0.0
      %5144 = vmatpush1.msra.mxu0 %v5112
      %5145 = vmatprep.subr.mxu0 0.0
      %5146 = vmatpush1.msra.mxu0 0.0
      %5147 = vmatprep.subr.mxu0 0.0
      %5148 = vmatpush1.msra.mxu0 0.0
      %5149 = vmatprep.subr.mxu0 0.0
      %5150 = vmatpush1.msra.mxu0 0.0
      %5151 = vmatprep.subr.mxu0 0.0
      %5152 = vmatpush1.msra.mxu0 0.0
      %5153 = vmatprep.subr.mxu0 0.0
      %5154 = vmatpush1.msra.mxu0 0.0
      %5155 = vmatprep.subr.mxu0 0.0
      %5156 = vmatpush1.msra.mxu0 0.0
      %5157 = vmatprep.subr.mxu0 0.0
      %5158 = vmatpush1.msra.mxu0 0.0
      %5159 = vmatprep.subr.mxu0 0.0
      %5160 = vmatpush1.msra.mxu0 0.0
      %5161 = vmatprep.subr.mxu0 0.0
      %5162 = vmatpush1.msra.mxu0 0.0
      %5163 = vmatprep.subr.mxu0 0.0
      %5164 = vmatpush1.msra.mxu0 0.0
      %5165 = vmatprep.subr.mxu0 0.0
      %5166 = vmatpush1.msra.mxu0 0.0
      %5167 = vmatprep.subr.mxu0 0.0
      %5168 = vmatpush1.msra.mxu0 0.0
      %5169 = vmatprep.subr.mxu0 0.0
      %5170 = vmatpush1.msra.mxu0 0.0
      %5171 = vmatprep.subr.mxu0 0.0
      %5172 = vmatpush1.msra.mxu0 0.0
      %5173 = vmatprep.subr.mxu0 0.0
      %5174 = vmatpush1.msra.mxu0 0.0
      %5175 = vmatprep.subr.mxu0 0.0
      %5176 = vmatpush1.msra.mxu0 0.0
      %5177 = vmatprep.mubr.f32.mxu0 0.0
      %5178 = vmatmul.mubr.f32.gmra.mrb[0].mxu0 %v1776
      %v5179 = vpop.f32.mrb[0].mxu0
      %v5180 = vadd.f32 0.0, %v5179
      %v5181 = vpop.f32.mrb[0].mxu0
      %5182 = vmatprep.mubr.f32.mxu0 0.0
      %5183 = vmatmul.mubr.f32.gmra.mrb[0].mxu0 %v1777
      %v5184 = vpop.f32.mrb[0].mxu0
      %v5185 = vadd.f32 0.0, %v5184
      %v5186 = vpop.f32.mrb[0].mxu0
      %5187 = vmatprep.mubr.f32.mxu0 0.0
      %5188 = vmatmul.mubr.f32.gmra.mrb[0].mxu0 %v1778
      %v5189 = vpop.f32.mrb[0].mxu0
      %v5190 = vadd.f32 0.0, %v5189
      %v5191 = vpop.f32.mrb[0].mxu0
      %5192 = vmatprep.mubr.f32.mxu0 0.0
      %5193 = vmatmul.mubr.f32.gmra.mrb[0].mxu0 %v1779
      %v5194 = vpop.f32.mrb[0].mxu0
      %v5195 = vadd.f32 0.0, %v5194
      %v5196 = vpop.f32.mrb[0].mxu0
      %5197 = vmatprep.mubr.f32.mxu0 0.0
      %5198 = vmatmul.mubr.f32.gmra.mrb[0].mxu0 %v1780
      %v5199 = vpop.f32.mrb[0].mxu0
      %v5200 = vadd.f32 0.0, %v5199
      %v5201 = vpop.f32.mrb[0].mxu0
      %5202 = vmatprep.mubr.f32.mxu0 0.0
      %5203 = vmatmul.mubr.f32.gmra.mrb[0].mxu0 %v1781
      %v5204 = vpop.f32.mrb[0].mxu0
      %v5205 = vadd.f32 0.0, %v5204
      %v5206 = vpop.f32.mrb[0].mxu0
      %5207 = vmatprep.mubr.f32.mxu0 0.0
      %5208 = vmatmul.mubr.f32.gmra.mrb[0].mxu0 %v1782
      %v5209 = vpop.f32.mrb[0].mxu0
      %v5210 = vadd.f32 0.0, %v5209
      %v5211 = vpop.f32.mrb[0].mxu0
      %5212 = vmatprep.mubr.f32.mxu0 0.0
      %5213 = vmatmul.mubr.f32.gmra.mrb[0].mxu0 %v1783
      %v5214 = vpop.f32.mrb[0].mxu0
      %v5215 = vadd.f32 0.0, %v5214
      %v5216 = vpop.f32.mrb[0].mxu0
      %5217 = vmatprep.mubr.f32.mxu0 0.0
      %5218 = vmatmul.mubr.f32.gmra.mrb[0].mxu0 %v1784
      %v5219 = vpop.f32.mrb[0].mxu0
      %v5220 = vadd.f32 0.0, %v5219
      %v5221 = vpop.f32.mrb[0].mxu0
      %5222 = vmatprep.mubr.f32.mxu0 0.0
      %5223 = vmatmul.mubr.f32.gmra.mrb[0].mxu0 %v1785
      %v5224 = vpop.f32.mrb[0].mxu0
      %v5225 = vadd.f32 0.0, %v5224
      %v5226 = vpop.f32.mrb[0].mxu0
      %5227 = vmatprep.mubr.f32.mxu0 0.0
      %5228 = vmatmul.mubr.f32.gmra.mrb[0].mxu0 %v1786
      %v5229 = vpop.f32.mrb[0].mxu0
      %v5230 = vadd.f32 0.0, %v5229
      %v5231 = vpop.f32.mrb[0].mxu0
      %5232 = vmatprep.mubr.f32.mxu0 0.0
      %5233 = vmatmul.mubr.f32.gmra.mrb[0].mxu0 %v1787
      %v5234 = vpop.f32.mrb[0].mxu0
      %v5235 = vadd.f32 0.0, %v5234
      %v5236 = vpop.f32.mrb[0].mxu0
      %5237 = vmatprep.mubr.f32.mxu0 0.0
      %5238 = vmatmul.mubr.f32.gmra.mrb[0].mxu0 %v1788
      %v5239 = vpop.f32.mrb[0].mxu0
      %v5240 = vadd.f32 0.0, %v5239
      %v5241 = vpop.f32.mrb[0].mxu0
      %5242 = vmatprep.mubr.f32.mxu0 0.0
      %5243 = vmatmul.mubr.f32.gmra.mrb[0].mxu0 %v1789
      %v5244 = vpop.f32.mrb[0].mxu0
      %v5245 = vadd.f32 0.0, %v5244
      %v5246 = vpop.f32.mrb[0].mxu0
      %5247 = vmatprep.mubr.f32.mxu0 0.0
      %5248 = vmatmul.mubr.f32.gmra.mrb[0].mxu0 %v1790
      %v5249 = vpop.f32.mrb[0].mxu0
      %v5250 = vadd.f32 0.0, %v5249
      %v5251 = vpop.f32.mrb[0].mxu0
      %5252 = vmatprep.mubr.f32.mxu0 0.0
      %5253 = vmatmul.mubr.f32.gmra.mrb[0].mxu0 %v1791
      %v5254 = vpop.f32.mrb[0].mxu0
      %v5255 = vadd.f32 0.0, %v5254
      %v5256 = vpop.f32.mrb[0].mxu0
      %5257 = vdwg.mxu0
      %5258 = vmatprep.subr.mxu0 0.0
      %5259 = vmatpush1.xpose.msra.mxu0 %v5073
      %5260 = vmatprep.subr.mxu0 0.0
      %5261 = vmatpush1.xpose.msra.mxu0 %v5074
      %5262 = vmatprep.subr.mxu0 0.0
      %5263 = vmatpush1.xpose.msra.mxu0 %v5075
      %5264 = vmatprep.subr.mxu0 0.0
      %5265 = vmatpush1.xpose.msra.mxu0 %v5076
      %5266 = vmatprep.subr.mxu0 0.0
      %5267 = vmatpush1.xpose.msra.mxu0 %v5077
      %5268 = vmatprep.subr.mxu0 0.0
      %5269 = vmatpush1.xpose.msra.mxu0 %v5078
      %5270 = vmatprep.subr.mxu0 0.0
      %5271 = vmatpush1.xpose.msra.mxu0 %v5079
      %5272 = vmatprep.subr.mxu0 0.0
      %5273 = vmatpush1.xpose.msra.mxu0 %v5080
      %5274 = vmatprep.subr.mxu0 0.0
      %5275 = vmatpush1.xpose.msra.mxu0 %v5081
      %5276 = vmatprep.subr.mxu0 0.0
      %5277 = vmatpush1.xpose.msra.mxu0 %v5082
      %5278 = vmatprep.subr.mxu0 0.0
      %5279 = vmatpush1.xpose.msra.mxu0 %v5083
      %5280 = vmatprep.subr.mxu0 0.0
      %5281 = vmatpush1.xpose.msra.mxu0 %v5084
      %5282 = vmatprep.subr.mxu0 0.0
      %5283 = vmatpush1.xpose.msra.mxu0 %v5085
      %5284 = vmatprep.subr.mxu0 0.0
      %5285 = vmatpush1.xpose.msra.mxu0 %v5086
      %5286 = vmatprep.subr.mxu0 0.0
      %5287 = vmatpush1.xpose.msra.mxu0 %v5087
      %5288 = vmatprep.subr.mxu0 0.0
      %5289 = vmatpush1.xpose.msra.mxu0 %v5088
      %5290 = vmatprep.subr.mxu0 0.0
      %5291 = vmatpush1.xpose.msra.mxu0 %v5089
      %5292 = vmatprep.subr.mxu0 0.0
      %5293 = vmatpush1.xpose.msra.mxu0 %v5090
      %5294 = vmatprep.subr.mxu0 0.0
      %5295 = vmatpush1.xpose.msra.mxu0 %v5091
      %5296 = vmatprep.subr.mxu0 0.0
      %5297 = vmatpush1.xpose.msra.mxu0 %v5092
      %5298 = vmatprep.subr.mxu0 0.0
      %5299 = vmatpush1.xpose.msra.mxu0 %v5093
      %5300 = vmatprep.subr.mxu0 0.0
      %5301 = vmatpush1.xpose.msra.mxu0 %v5094
      %5302 = vmatprep.subr.mxu0 0.0
      %5303 = vmatpush1.xpose.msra.mxu0 %v5095
      %5304 = vmatprep.subr.mxu0 0.0
      %5305 = vmatpush1.xpose.msra.mxu0 %v5096
      %5306 = vmatprep.subr.mxu0 0.0
      %5307 = vmatpush1.xpose.msra.mxu0 0.0
      %5308 = vmatprep.subr.mxu0 0.0
      %5309 = vmatpush1.xpose.msra.mxu0 0.0
      %5310 = vmatprep.subr.mxu0 0.0
      %5311 = vmatpush1.xpose.msra.mxu0 0.0
      %5312 = vmatprep.subr.mxu0 0.0
      %5313 = vmatpush1.xpose.msra.mxu0 0.0
      %5314 = vmatprep.subr.mxu0 0.0
      %5315 = vmatpush1.xpose.msra.mxu0 0.0
      %5316 = vmatprep.subr.mxu0 0.0
      %5317 = vmatpush1.xpose.msra.mxu0 0.0
      %5318 = vmatprep.subr.mxu0 0.0
      %5319 = vmatpush1.xpose.msra.mxu0 0.0
      %5320 = vmatprep.subr.mxu0 0.0
      %5321 = vmatpush1.xpose.msra.mxu0 0.0
      %5322 = vmatprep.mubr.f32.mxu0 0.0
      %5323 = vmatmul.mubr.f32.gmra.mrb[0].mxu0 %v5180
      %v5324 = vpop.f32.mrb[0].mxu0
      %v5325 = vadd.f32 0.0, %v5324
      %v5326 = vpop.f32.mrb[0].mxu0
      %v5327 = vadd.f32 0.0, %v5326
      %5328 = vmatprep.mubr.f32.mxu0 0.0
      %5329 = vmatmul.mubr.f32.gmra.mrb[0].mxu0 %v5185
      %v5330 = vpop.f32.mrb[0].mxu0
      %v5331 = vadd.f32 0.0, %v5330
      %v5332 = vpop.f32.mrb[0].mxu0
      %v5333 = vadd.f32 0.0, %v5332
      %5334 = vmatprep.mubr.f32.mxu0 0.0
      %5335 = vmatmul.mubr.f32.gmra.mrb[0].mxu0 %v5190
      %v5336 = vpop.f32.mrb[0].mxu0
      %v5337 = vadd.f32 0.0, %v5336
      %v5338 = vpop.f32.mrb[0].mxu0
      %v5339 = vadd.f32 0.0, %v5338
      %5340 = vmatprep.mubr.f32.mxu0 0.0
      %5341 = vmatmul.mubr.f32.gmra.mrb[0].mxu0 %v5195
      %v5342 = vpop.f32.mrb[0].mxu0
      %v5343 = vadd.f32 0.0, %v5342
      %v5344 = vpop.f32.mrb[0].mxu0
      %v5345 = vadd.f32 0.0, %v5344
      %5346 = vmatprep.mubr.f32.mxu0 0.0
      %5347 = vmatmul.mubr.f32.gmra.mrb[0].mxu0 %v5200
      %v5348 = vpop.f32.mrb[0].mxu0
      %v5349 = vadd.f32 0.0, %v5348
      %v5350 = vpop.f32.mrb[0].mxu0
      %v5351 = vadd.f32 0.0, %v5350
      %5352 = vmatprep.mubr.f32.mxu0 0.0
      %5353 = vmatmul.mubr.f32.gmra.mrb[0].mxu0 %v5205
      %v5354 = vpop.f32.mrb[0].mxu0
      %v5355 = vadd.f32 0.0, %v5354
      %v5356 = vpop.f32.mrb[0].mxu0
      %v5357 = vadd.f32 0.0, %v5356
      %5358 = vmatprep.mubr.f32.mxu0 0.0
      %5359 = vmatmul.mubr.f32.gmra.mrb[0].mxu0 %v5210
      %v5360 = vpop.f32.mrb[0].mxu0
      %v5361 = vadd.f32 0.0, %v5360
      %v5362 = vpop.f32.mrb[0].mxu0
      %v5363 = vadd.f32 0.0, %v5362
      %5364 = vmatprep.mubr.f32.mxu0 0.0
      %5365 = vmatmul.mubr.f32.gmra.mrb[0].mxu0 %v5215
      %v5366 = vpop.f32.mrb[0].mxu0
      %v5367 = vadd.f32 0.0, %v5366
      %v5368 = vpop.f32.mrb[0].mxu0
      %v5369 = vadd.f32 0.0, %v5368
      %5370 = vmatprep.mubr.f32.mxu0 0.0
      %5371 = vmatmul.mubr.f32.gmra.mrb[0].mxu0 %v5220
      %v5372 = vpop.f32.mrb[0].mxu0
      %v5373 = vadd.f32 0.0, %v5372
      %v5374 = vpop.f32.mrb[0].mxu0
      %v5375 = vadd.f32 0.0, %v5374
      %5376 = vmatprep.mubr.f32.mxu0 0.0
      %5377 = vmatmul.mubr.f32.gmra.mrb[0].mxu0 %v5225
      %v5378 = vpop.f32.mrb[0].mxu0
      %v5379 = vadd.f32 0.0, %v5378
      %v5380 = vpop.f32.mrb[0].mxu0
      %v5381 = vadd.f32 0.0, %v5380
      %5382 = vmatprep.mubr.f32.mxu0 0.0
      %5383 = vmatmul.mubr.f32.gmra.mrb[0].mxu0 %v5230
      %v5384 = vpop.f32.mrb[0].mxu0
      %v5385 = vadd.f32 0.0, %v5384
      %v5386 = vpop.f32.mrb[0].mxu0
      %v5387 = vadd.f32 0.0, %v5386
      %5388 = vmatprep.mubr.f32.mxu0 0.0
      %5389 = vmatmul.mubr.f32.gmra.mrb[0].mxu0 %v5235
      %v5390 = vpop.f32.mrb[0].mxu0
      %v5391 = vadd.f32 0.0, %v5390
      %v5392 = vpop.f32.mrb[0].mxu0
      %v5393 = vadd.f32 0.0, %v5392
      %5394 = vmatprep.mubr.f32.mxu0 0.0
      %5395 = vmatmul.mubr.f32.gmra.mrb[0].mxu0 %v5240
      %v5396 = vpop.f32.mrb[0].mxu0
      %v5397 = vadd.f32 0.0, %v5396
      %v5398 = vpop.f32.mrb[0].mxu0
      %v5399 = vadd.f32 0.0, %v5398
      %5400 = vmatprep.mubr.f32.mxu0 0.0
      %5401 = vmatmul.mubr.f32.gmra.mrb[0].mxu0 %v5245
      %v5402 = vpop.f32.mrb[0].mxu0
      %v5403 = vadd.f32 0.0, %v5402
      %v5404 = vpop.f32.mrb[0].mxu0
      %v5405 = vadd.f32 0.0, %v5404
      %5406 = vmatprep.mubr.f32.mxu0 0.0
      %5407 = vmatmul.mubr.f32.gmra.mrb[0].mxu0 %v5250
      %v5408 = vpop.f32.mrb[0].mxu0
      %v5409 = vadd.f32 0.0, %v5408
      %v5410 = vpop.f32.mrb[0].mxu0
      %v5411 = vadd.f32 0.0, %v5410
      %5412 = vmatprep.mubr.f32.mxu0 0.0
      %5413 = vmatmul.mubr.f32.gmra.mrb[0].mxu0 %v5255
      %v5414 = vpop.f32.mrb[0].mxu0
      %v5415 = vadd.f32 0.0, %v5414
      %v5416 = vpop.f32.mrb[0].mxu0
      %v5417 = vadd.f32 0.0, %v5416
      %5418 = vdwg.mxu0
      %v5419 = vtanh.pop %v5325
      %v5420 = vtanh.pop %v5327
      %v5421 = vtanh.pop %v5331
      %v5422 = vtanh.pop %v5333
      %v5423 = vtanh.pop %v5337
      %v5424 = vtanh.pop %v5339
      %v5425 = vtanh.pop %v5343
      %v5426 = vtanh.pop %v5345
      %v5427 = vtanh.pop %v5349
      %v5428 = vtanh.pop %v5351
      %v5429 = vtanh.pop %v5355
      %v5430 = vtanh.pop %v5357
      %v5431 = vtanh.pop %v5361
      %v5432 = vtanh.pop %v5363
      %v5433 = vtanh.pop %v5367
      %v5434 = vtanh.pop %v5369
      %v5435 = vtanh.pop %v5373
      %v5436 = vtanh.pop %v5375
      %v5437 = vtanh.pop %v5379
      %v5438 = vtanh.pop %v5381
      %v5439 = vtanh.pop %v5385
      %v5440 = vtanh.pop %v5387
      %v5441 = vtanh.pop %v5391
      %v5442 = vtanh.pop %v5393
      %v5443 = vtanh.pop %v5397
      %v5444 = vtanh.pop %v5399
      %v5445 = vtanh.pop %v5403
      %v5446 = vtanh.pop %v5405
      %v5447 = vtanh.pop %v5409
      %v5448 = vtanh.pop %v5411
      %v5449 = vtanh.pop %v5415
      %v5450 = vtanh.pop %v5417
      %v5451 = vld [vmem:[%s5] sm:$0xff]
      %v5452 = vld [vmem:[%s5 + $0x8] sm:$0xff]
      %v5453 = vld [vmem:[%s5 + $0x10] sm:$0xff]
      %v5454 = vld [vmem:[%s5 + $0x18] sm:$0xff]
      %v5455 = vld [vmem:[%s5 + $0x20] sm:$0xff]
      %v5456 = vld [vmem:[%s5 + $0x28] sm:$0xff]
      %v5457 = vld [vmem:[%s5 + $0x30] sm:$0xff]
      %v5458 = vld [vmem:[%s5 + $0x38] sm:$0xff]
      %v5459 = vld [vmem:[%s5 + $0x40] sm:$0xff]
      %v5460 = vld [vmem:[%s5 + $0x48] sm:$0xff]
      %v5461 = vld [vmem:[%s5 + $0x50] sm:$0xff]
      %v5462 = vld [vmem:[%s5 + $0x58] sm:$0xff]
      %v5463 = vld [vmem:[%s5 + $0x60] sm:$0xff]
      %v5464 = vld [vmem:[%s5 + $0x68] sm:$0xff]
      %v5465 = vld [vmem:[%s5 + $0x70] sm:$0xff]
      %v5466 = vld [vmem:[%s5 + $0x78] sm:$0xff]
      %v5467 = vld [vmem:[%s5 + $0x80] sm:$0xff]
      %v5468 = vld [vmem:[%s5 + $0x88] sm:$0xff]
      %v5469 = vld [vmem:[%s5 + $0x90] sm:$0xff]
      %v5470 = vld [vmem:[%s5 + $0x98] sm:$0xff]
      %v5471 = vld [vmem:[%s5 + $0xa0] sm:$0xff]
      %v5472 = vld [vmem:[%s5 + $0xa8] sm:$0xff]
      %v5473 = vld [vmem:[%s5 + $0xb0] sm:$0xff]
      %v5474 = vld [vmem:[%s5 + $0xb8] sm:$0xff]
      %v5475 = vld [vmem:[%s5 + $0xc0] sm:$0xff]
      %v5476 = vld [vmem:[%s5 + $0xc8] sm:$0xff]
      %v5477 = vld [vmem:[%s5 + $0xd0] sm:$0xff]
      %v5478 = vld [vmem:[%s5 + $0xd8] sm:$0xff]
      %v5479 = vld [vmem:[%s5 + $0xe0] sm:$0xff]
      %v5480 = vld [vmem:[%s5 + $0xe8] sm:$0xff]
      %v5481 = vld [vmem:[%s5 + $0xf0] sm:$0xff]
      %v5482 = vld [vmem:[%s5 + $0xf8] sm:$0xff]
      %v5483 = vmul.f32 %v5419, %v5451
      %v5484 = vmul.f32 %v5420, %v5452
      %v5485 = vmul.f32 %v5421, %v5453
      %v5486 = vmul.f32 %v5422, %v5454
      %v5487 = vmul.f32 %v5423, %v5455
      %v5488 = vmul.f32 %v5424, %v5456
      %v5489 = vmul.f32 %v5425, %v5457
      %v5490 = vmul.f32 %v5426, %v5458
      %v5491 = vmul.f32 %v5427, %v5459
      %v5492 = vmul.f32 %v5428, %v5460
      %v5493 = vmul.f32 %v5429, %v5461
      %v5494 = vmul.f32 %v5430, %v5462
      %v5495 = vmul.f32 %v5431, %v5463
      %v5496 = vmul.f32 %v5432, %v5464
      %v5497 = vmul.f32 %v5433, %v5465
      %v5498 = vmul.f32 %v5434, %v5466
      %v5499 = vmul.f32 %v5435, %v5467
      %v5500 = vmul.f32 %v5436, %v5468
      %v5501 = vmul.f32 %v5437, %v5469
      %v5502 = vmul.f32 %v5438, %v5470
      %v5503 = vmul.f32 %v5439, %v5471
      %v5504 = vmul.f32 %v5440, %v5472
      %v5505 = vmul.f32 %v5441, %v5473
      %v5506 = vmul.f32 %v5442, %v5474
      %v5507 = vmul.f32 %v5443, %v5475
      %v5508 = vmul.f32 %v5444, %v5476
      %v5509 = vmul.f32 %v5445, %v5477
      %v5510 = vmul.f32 %v5446, %v5478
      %v5511 = vmul.f32 %v5447, %v5479
      %v5512 = vmul.f32 %v5448, %v5480
      %v5513 = vmul.f32 %v5449, %v5481
      %v5514 = vmul.f32 %v5450, %v5482
      %v5515 = vsel %vm3056, %v5484, 0.0
      %v5516 = vadd.f32 %v5483, %v5515
      %5517 = vadd.xlane.f32.xlu0 %v5516
      %v5518 = vpop.xlane.xlu0 %5517
      %v5519 = vsel %vm3056, %v5486, 0.0
      %v5520 = vadd.f32 %v5485, %v5519
      %5521 = vadd.xlane.f32.xlu0 %v5520
      %v5522 = vpop.xlane.xlu0 %5521
      %v5523 = vsel %vm3056, %v5488, 0.0
      %v5524 = vadd.f32 %v5487, %v5523
      %5525 = vadd.xlane.f32.xlu0 %v5524
      %v5526 = vpop.xlane.xlu0 %5525
      %v5527 = vsel %vm3056, %v5490, 0.0
      %v5528 = vadd.f32 %v5489, %v5527
      %5529 = vadd.xlane.f32.xlu0 %v5528
      %v5530 = vpop.xlane.xlu0 %5529
      %v5531 = vsel %vm3056, %v5492, 0.0
      %v5532 = vadd.f32 %v5491, %v5531
      %5533 = vadd.xlane.f32.xlu0 %v5532
      %v5534 = vpop.xlane.xlu0 %5533
      %v5535 = vsel %vm3056, %v5494, 0.0
      %v5536 = vadd.f32 %v5493, %v5535
      %5537 = vadd.xlane.f32.xlu0 %v5536
      %v5538 = vpop.xlane.xlu0 %5537
      %v5539 = vsel %vm3056, %v5496, 0.0
      %v5540 = vadd.f32 %v5495, %v5539
      %5541 = vadd.xlane.f32.xlu0 %v5540
      %v5542 = vpop.xlane.xlu0 %5541
      %v5543 = vsel %vm3056, %v5498, 0.0
      %v5544 = vadd.f32 %v5497, %v5543
      %5545 = vadd.xlane.f32.xlu0 %v5544
      %v5546 = vpop.xlane.xlu0 %5545
      %v5547 = vsel %vm3056, %v5500, 0.0
      %v5548 = vadd.f32 %v5499, %v5547
      %5549 = vadd.xlane.f32.xlu0 %v5548
      %v5550 = vpop.xlane.xlu0 %5549
      %v5551 = vsel %vm3056, %v5502, 0.0
      %v5552 = vadd.f32 %v5501, %v5551
      %5553 = vadd.xlane.f32.xlu0 %v5552
      %v5554 = vpop.xlane.xlu0 %5553
      %v5555 = vsel %vm3056, %v5504, 0.0
      %v5556 = vadd.f32 %v5503, %v5555
      %5557 = vadd.xlane.f32.xlu0 %v5556
      %v5558 = vpop.xlane.xlu0 %5557
      %v5559 = vsel %vm3056, %v5506, 0.0
      %v5560 = vadd.f32 %v5505, %v5559
      %5561 = vadd.xlane.f32.xlu0 %v5560
      %v5562 = vpop.xlane.xlu0 %5561
      %v5563 = vsel %vm3056, %v5508, 0.0
      %v5564 = vadd.f32 %v5507, %v5563
      %5565 = vadd.xlane.f32.xlu0 %v5564
      %v5566 = vpop.xlane.xlu0 %5565
      %v5567 = vsel %vm3056, %v5510, 0.0
      %v5568 = vadd.f32 %v5509, %v5567
      %5569 = vadd.xlane.f32.xlu0 %v5568
      %v5570 = vpop.xlane.xlu0 %5569
      %v5571 = vsel %vm3056, %v5512, 0.0
      %v5572 = vadd.f32 %v5511, %v5571
      %5573 = vadd.xlane.f32.xlu0 %v5572
      %v5574 = vpop.xlane.xlu0 %5573
      %v5575 = vsel %vm3056, %v5514, 0.0
      %v5576 = vadd.f32 %v5513, %v5575
      %5577 = vadd.xlane.f32.xlu0 %v5576
      %v5578 = vpop.xlane.xlu0 %5577
      %v5579 = vmul.f32 %v5518, 0.041666668
      %v5580 = vmul.f32 %v5522, 0.041666668
      %v5581 = vmul.f32 %v5526, 0.041666668
      %v5582 = vmul.f32 %v5530, 0.041666668
      %v5583 = vmul.f32 %v5534, 0.041666668
      %v5584 = vmul.f32 %v5538, 0.041666668
      %v5585 = vmul.f32 %v5542, 0.041666668
      %v5586 = vmul.f32 %v5546, 0.041666668
      %v5587 = vmul.f32 %v5550, 0.041666668
      %v5588 = vmul.f32 %v5554, 0.041666668
      %v5589 = vmul.f32 %v5558, 0.041666668
      %v5590 = vmul.f32 %v5562, 0.041666668
      %v5591 = vmul.f32 %v5566, 0.041666668
      %v5592 = vmul.f32 %v5570, 0.041666668
      %v5593 = vmul.f32 %v5574, 0.041666668
      %v5594 = vmul.f32 %v5578, 0.041666668
      %v5595 = vadd.f32 %v5483, %v5485
      %v5596 = vadd.f32 %v5595, %v5487
      %v5597 = vadd.f32 %v5596, %v5489
      %v5598 = vadd.f32 %v5597, %v5491
      %v5599 = vadd.f32 %v5598, %v5493
      %v5600 = vadd.f32 %v5599, %v5495
      %v5601 = vadd.f32 %v5600, %v5497
      %v5602 = vadd.f32 %v5601, %v5499
      %v5603 = vadd.f32 %v5602, %v5501
      %v5604 = vadd.f32 %v5603, %v5503
      %v5605 = vadd.f32 %v5604, %v5505
      %v5606 = vadd.f32 %v5605, %v5507
      %v5607 = vadd.f32 %v5606, %v5509
      %v5608 = vadd.f32 %v5607, %v5511
      %v5609 = vadd.f32 %v5608, %v5513
      %v5610 = vrot.slane %v5609, 4
      %v5611 = vadd.f32 %v5609, %v5610
      %v5612 = vrot.slane %v5611, 2
      %v5613 = vadd.f32 %v5611, %v5612
      %v5614 = vrot.slane %v5613, 1
      %v5615 = vadd.f32 %v5613, %v5614
      %v5616 = vadd.f32 %v5515, %v5519
      %v5617 = vadd.f32 %v5616, %v5523
      %v5618 = vadd.f32 %v5617, %v5527
      %v5619 = vadd.f32 %v5618, %v5531
      %v5620 = vadd.f32 %v5619, %v5535
      %v5621 = vadd.f32 %v5620, %v5539
      %v5622 = vadd.f32 %v5621, %v5543
      %v5623 = vadd.f32 %v5622, %v5547
      %v5624 = vadd.f32 %v5623, %v5551
      %v5625 = vadd.f32 %v5624, %v5555
      %v5626 = vadd.f32 %v5625, %v5559
      %v5627 = vadd.f32 %v5626, %v5563
      %v5628 = vadd.f32 %v5627, %v5567
      %v5629 = vadd.f32 %v5628, %v5571
      %v5630 = vadd.f32 %v5629, %v5575
      %v5631 = vrot.slane %v5630, 4
      %v5632 = vadd.f32 %v5630, %v5631
      %v5633 = vrot.slane %v5632, 2
      %v5634 = vadd.f32 %v5632, %v5633
      %v5635 = vrot.slane %v5634, 1
      %v5636 = vadd.f32 %v5634, %v5635
      %v5637 = vmul.f32 %v5615, 0.0625
      %v5638 = vmul.f32 %v5636, 0.0625
      %v5639 = vld [vmem:[%s6] sm:$0xff]
      %v5640 = vld [vmem:[%s7] sm:$0xff]
      %v5641 = vld [vmem:[%s7 + $0x8] sm:$0xff]
      %v5642 = vmul.f32 %v5579, 1.442695
      %v5643 = vpow.pop %v5642
      %v5644 = vmul.f32 %v5580, 1.442695
      %v5645 = vpow.pop %v5644
      %v5646 = vmul.f32 %v5581, 1.442695
      %v5647 = vpow.pop %v5646
      %v5648 = vmul.f32 %v5582, 1.442695
      %v5649 = vpow.pop %v5648
      %v5650 = vmul.f32 %v5583, 1.442695
      %v5651 = vpow.pop %v5650
      %v5652 = vmul.f32 %v5584, 1.442695
      %v5653 = vpow.pop %v5652
      %v5654 = vmul.f32 %v5585, 1.442695
      %v5655 = vpow.pop %v5654
      %v5656 = vmul.f32 %v5586, 1.442695
      %v5657 = vpow.pop %v5656
      %v5658 = vmul.f32 %v5587, 1.442695
      %v5659 = vpow.pop %v5658
      %v5660 = vmul.f32 %v5588, 1.442695
      %v5661 = vpow.pop %v5660
      %v5662 = vmul.f32 %v5589, 1.442695
      %v5663 = vpow.pop %v5662
      %v5664 = vmul.f32 %v5590, 1.442695
      %v5665 = vpow.pop %v5664
      %v5666 = vmul.f32 %v5591, 1.442695
      %v5667 = vpow.pop %v5666
      %v5668 = vmul.f32 %v5592, 1.442695
      %v5669 = vpow.pop %v5668
      %v5670 = vmul.f32 %v5593, 1.442695
      %v5671 = vpow.pop %v5670
      %v5672 = vmul.f32 %v5594, 1.442695
      %v5673 = vpow.pop %v5672
      %v5674 = vmul.f32 %v5643, %v1776
      %v5675 = vmul.f32 %v5645, %v1777
      %v5676 = vmul.f32 %v5647, %v1778
      %v5677 = vmul.f32 %v5649, %v1779
      %v5678 = vmul.f32 %v5651, %v1780
      %v5679 = vmul.f32 %v5653, %v1781
      %v5680 = vmul.f32 %v5655, %v1782
      %v5681 = vmul.f32 %v5657, %v1783
      %v5682 = vmul.f32 %v5659, %v1784
      %v5683 = vmul.f32 %v5661, %v1785
      %v5684 = vmul.f32 %v5663, %v1786
      %v5685 = vmul.f32 %v5665, %v1787
      %v5686 = vmul.f32 %v5667, %v1788
      %v5687 = vmul.f32 %v5669, %v1789
      %v5688 = vmul.f32 %v5671, %v1790
      %v5689 = vmul.f32 %v5673, %v1791
      %5690 = vmatprep.subr.mxu0 0.0
      %5691 = vmatpush1.msra.mxu0 %v5674
      %5692 = vmatprep.subr.mxu0 0.0
      %5693 = vmatpush1.msra.mxu0 %v5675
      %5694 = vmatprep.subr.mxu0 0.0
      %5695 = vmatpush1.msra.mxu0 %v5676
      %5696 = vmatprep.subr.mxu0 0.0
      %5697 = vmatpush1.msra.mxu0 %v5677
      %5698 = vmatprep.subr.mxu0 0.0
      %5699 = vmatpush1.msra.mxu0 %v5678
      %5700 = vmatprep.subr.mxu0 0.0
      %5701 = vmatpush1.msra.mxu0 %v5679
      %5702 = vmatprep.subr.mxu0 0.0
      %5703 = vmatpush1.msra.mxu0 %v5680
      %5704 = vmatprep.subr.mxu0 0.0
      %5705 = vmatpush1.msra.mxu0 %v5681
      %5706 = vmatprep.subr.mxu0 0.0
      %5707 = vmatpush1.msra.mxu0 %v5682
      %5708 = vmatprep.subr.mxu0 0.0
      %5709 = vmatpush1.msra.mxu0 %v5683
      %5710 = vmatprep.subr.mxu0 0.0
      %5711 = vmatpush1.msra.mxu0 %v5684
      %5712 = vmatprep.subr.mxu0 0.0
      %5713 = vmatpush1.msra.mxu0 %v5685
      %5714 = vmatprep.subr.mxu0 0.0
      %5715 = vmatpush1.msra.mxu0 %v5686
      %5716 = vmatprep.subr.mxu0 0.0
      %5717 = vmatpush1.msra.mxu0 %v5687
      %5718 = vmatprep.subr.mxu0 0.0
      %5719 = vmatpush1.msra.mxu0 %v5688
      %5720 = vmatprep.subr.mxu0 0.0
      %5721 = vmatpush1.msra.mxu0 %v5689
      %5722 = vmatprep.subr.mxu0 0.0
      %5723 = vmatpush1.msra.mxu0 0.0
      %5724 = vmatprep.subr.mxu0 0.0
      %5725 = vmatpush1.msra.mxu0 0.0
      %5726 = vmatprep.subr.mxu0 0.0
      %5727 = vmatpush1.msra.mxu0 0.0
      %5728 = vmatprep.subr.mxu0 0.0
      %5729 = vmatpush1.msra.mxu0 0.0
      %5730 = vmatprep.subr.mxu0 0.0
      %5731 = vmatpush1.msra.mxu0 0.0
      %5732 = vmatprep.subr.mxu0 0.0
      %5733 = vmatpush1.msra.mxu0 0.0
      %5734 = vmatprep.subr.mxu0 0.0
      %5735 = vmatpush1.msra.mxu0 0.0
      %5736 = vmatprep.subr.mxu0 0.0
      %5737 = vmatpush1.msra.mxu0 0.0
      %5738 = vmatprep.subr.mxu0 0.0
      %5739 = vmatpush1.msra.mxu0 0.0
      %5740 = vmatprep.subr.mxu0 0.0
      %5741 = vmatpush1.msra.mxu0 0.0
      %5742 = vmatprep.subr.mxu0 0.0
      %5743 = vmatpush1.msra.mxu0 0.0
      %5744 = vmatprep.subr.mxu0 0.0
      %5745 = vmatpush1.msra.mxu0 0.0
      %5746 = vmatprep.subr.mxu0 0.0
      %5747 = vmatpush1.msra.mxu0 0.0
      %5748 = vmatprep.subr.mxu0 0.0
      %5749 = vmatpush1.msra.mxu0 0.0
      %5750 = vmatprep.subr.mxu0 0.0
      %5751 = vmatpush1.msra.mxu0 0.0
      %5752 = vmatprep.subr.mxu0 0.0
      %5753 = vmatpush1.msra.mxu0 0.0
      %5754 = vmatprep.mubr.f32.mxu0 0.0
      %5755 = vmatmul.mubr.f32.gmra.mrb[0].mxu0 %v5639
      %v5756 = vpop.f32.mrb[0].mxu0
      %v5757 = vadd.f32 0.0, %v5756
      %v5758 = vpop.f32.mrb[0].mxu0
      %5759 = vdwg.mxu0
      %5760 = vmatprep.subr.mxu0 0.0
      %5761 = vmatpush1.msra.mxu0 %v5643
      %5762 = vmatprep.subr.mxu0 0.0
      %5763 = vmatpush1.msra.mxu0 %v5645
      %5764 = vmatprep.subr.mxu0 0.0
      %5765 = vmatpush1.msra.mxu0 %v5647
      %5766 = vmatprep.subr.mxu0 0.0
      %5767 = vmatpush1.msra.mxu0 %v5649
      %5768 = vmatprep.subr.mxu0 0.0
      %5769 = vmatpush1.msra.mxu0 %v5651
      %5770 = vmatprep.subr.mxu0 0.0
      %5771 = vmatpush1.msra.mxu0 %v5653
      %5772 = vmatprep.subr.mxu0 0.0
      %5773 = vmatpush1.msra.mxu0 %v5655
      %5774 = vmatprep.subr.mxu0 0.0
      %5775 = vmatpush1.msra.mxu0 %v5657
      %5776 = vmatprep.subr.mxu0 0.0
      %5777 = vmatpush1.msra.mxu0 %v5659
      %5778 = vmatprep.subr.mxu0 0.0
      %5779 = vmatpush1.msra.mxu0 %v5661
      %5780 = vmatprep.subr.mxu0 0.0
      %5781 = vmatpush1.msra.mxu0 %v5663
      %5782 = vmatprep.subr.mxu0 0.0
      %5783 = vmatpush1.msra.mxu0 %v5665
      %5784 = vmatprep.subr.mxu0 0.0
      %5785 = vmatpush1.msra.mxu0 %v5667
      %5786 = vmatprep.subr.mxu0 0.0
      %5787 = vmatpush1.msra.mxu0 %v5669
      %5788 = vmatprep.subr.mxu0 0.0
      %5789 = vmatpush1.msra.mxu0 %v5671
      %5790 = vmatprep.subr.mxu0 0.0
      %5791 = vmatpush1.msra.mxu0 %v5673
      %5792 = vmatprep.subr.mxu0 0.0
      %5793 = vmatpush1.msra.mxu0 0.0
      %5794 = vmatprep.subr.mxu0 0.0
      %5795 = vmatpush1.msra.mxu0 0.0
      %5796 = vmatprep.subr.mxu0 0.0
      %5797 = vmatpush1.msra.mxu0 0.0
      %5798 = vmatprep.subr.mxu0 0.0
      %5799 = vmatpush1.msra.mxu0 0.0
      %5800 = vmatprep.subr.mxu0 0.0
      %5801 = vmatpush1.msra.mxu0 0.0
      %5802 = vmatprep.subr.mxu0 0.0
      %5803 = vmatpush1.msra.mxu0 0.0
      %5804 = vmatprep.subr.mxu0 0.0
      %5805 = vmatpush1.msra.mxu0 0.0
      %5806 = vmatprep.subr.mxu0 0.0
      %5807 = vmatpush1.msra.mxu0 0.0
      %5808 = vmatprep.subr.mxu0 0.0
      %5809 = vmatpush1.msra.mxu0 0.0
      %5810 = vmatprep.subr.mxu0 0.0
      %5811 = vmatpush1.msra.mxu0 0.0
      %5812 = vmatprep.subr.mxu0 0.0
      %5813 = vmatpush1.msra.mxu0 0.0
      %5814 = vmatprep.subr.mxu0 0.0
      %5815 = vmatpush1.msra.mxu0 0.0
      %5816 = vmatprep.subr.mxu0 0.0
      %5817 = vmatpush1.msra.mxu0 0.0
      %5818 = vmatprep.subr.mxu0 0.0
      %5819 = vmatpush1.msra.mxu0 0.0
      %5820 = vmatprep.subr.mxu0 0.0
      %5821 = vmatpush1.msra.mxu0 0.0
      %5822 = vmatprep.subr.mxu0 0.0
      %5823 = vmatpush1.msra.mxu0 0.0
      %5824 = vmatprep.mubr.f32.mxu0 0.0
      %5825 = vmatmul.mubr.f32.gmra.mrb[0].mxu0 %v5639
      %v5826 = vpop.f32.mrb[0].mxu0
      %v5827 = vadd.f32 0.0, %v5826
      %v5828 = vpop.f32.mrb[0].mxu0
      %5829 = vdwg.mxu0
      %v5830 = vrcp.pop %v5827
      %v5831 = vmul.f32 %v5757, %v5830
      %v5832 = vmul.f32 %v5637, 1.442695
      %v5833 = vpow.pop %v5832
      %v5834 = vmul.f32 %v5638, 1.442695
      %v5835 = vpow.pop %v5834
      %v5836 = vmul.f32 %v5640, %v5833
      %v5837 = vmul.f32 %v5641, %v5835
      %v5839 = vsel %vm3056, %v5837, 0
      %5841 = vmatprep.subr.mxu0 0.0
      %5842 = vmatpush1.msra.mxu0 %v5073
      %5843 = vmatprep.subr.mxu0 0.0
      %5844 = vmatpush1.msra.mxu0 %v5074
      %5845 = vmatprep.subr.mxu0 0.0
      %5846 = vmatpush1.msra.mxu0 %v5075
      %5847 = vmatprep.subr.mxu0 0.0
      %5848 = vmatpush1.msra.mxu0 %v5076
      %5849 = vmatprep.subr.mxu0 0.0
      %5850 = vmatpush1.msra.mxu0 %v5077
      %5851 = vmatprep.subr.mxu0 0.0
      %5852 = vmatpush1.msra.mxu0 %v5078
      %5853 = vmatprep.subr.mxu0 0.0
      %5854 = vmatpush1.msra.mxu0 %v5079
      %5855 = vmatprep.subr.mxu0 0.0
      %5856 = vmatpush1.msra.mxu0 %v5080
      %5857 = vmatprep.subr.mxu0 0.0
      %5858 = vmatpush1.msra.mxu0 %v5081
      %5859 = vmatprep.subr.mxu0 0.0
      %5860 = vmatpush1.msra.mxu0 %v5082
      %5861 = vmatprep.subr.mxu0 0.0
      %5862 = vmatpush1.msra.mxu0 %v5083
      %5863 = vmatprep.subr.mxu0 0.0
      %5864 = vmatpush1.msra.mxu0 %v5084
      %5865 = vmatprep.subr.mxu0 0.0
      %5866 = vmatpush1.msra.mxu0 %v5085
      %5867 = vmatprep.subr.mxu0 0.0
      %5868 = vmatpush1.msra.mxu0 %v5086
      %5869 = vmatprep.subr.mxu0 0.0
      %5870 = vmatpush1.msra.mxu0 %v5087
      %5871 = vmatprep.subr.mxu0 0.0
      %5872 = vmatpush1.msra.mxu0 %v5088
      %5873 = vmatprep.subr.mxu0 0.0
      %5874 = vmatpush1.msra.mxu0 %v5089
      %5875 = vmatprep.subr.mxu0 0.0
      %5876 = vmatpush1.msra.mxu0 %v5090
      %5877 = vmatprep.subr.mxu0 0.0
      %5878 = vmatpush1.msra.mxu0 %v5091
      %5879 = vmatprep.subr.mxu0 0.0
      %5880 = vmatpush1.msra.mxu0 %v5092
      %5881 = vmatprep.subr.mxu0 0.0
      %5882 = vmatpush1.msra.mxu0 %v5093
      %5883 = vmatprep.subr.mxu0 0.0
      %5884 = vmatpush1.msra.mxu0 %v5094
      %5885 = vmatprep.subr.mxu0 0.0
      %5886 = vmatpush1.msra.mxu0 %v5095
      %5887 = vmatprep.subr.mxu0 0.0
      %5888 = vmatpush1.msra.mxu0 %v5096
      %5889 = vmatprep.subr.mxu0 0.0
      %5890 = vmatpush1.msra.mxu0 0.0
      %5891 = vmatprep.subr.mxu0 0.0
      %5892 = vmatpush1.msra.mxu0 0.0
      %5893 = vmatprep.subr.mxu0 0.0
      %5894 = vmatpush1.msra.mxu0 0.0
      %5895 = vmatprep.subr.mxu0 0.0
      %5896 = vmatpush1.msra.mxu0 0.0
      %5897 = vmatprep.subr.mxu0 0.0
      %5898 = vmatpush1.msra.mxu0 0.0
      %5899 = vmatprep.subr.mxu0 0.0
      %5900 = vmatpush1.msra.mxu0 0.0
      %5901 = vmatprep.subr.mxu0 0.0
      %5902 = vmatpush1.msra.mxu0 0.0
      %5903 = vmatprep.subr.mxu0 0.0
      %5904 = vmatpush1.msra.mxu0 0.0
      %5905 = vmatprep.mubr.f32.mxu0 %v5839
      %5906 = vmatmul.mubr.f32.gmra.mrb[0].mxu0 %v5836
      %v5907 = vpop.f32.mrb[0].mxu0
      %v5908 = vadd.f32 0.0, %v5907
      %v5909 = vpop.f32.mrb[0].mxu0
      %5910 = vdwg.mxu0
      %v5911 = vsel %vm3056, %v5837, 0.0
      %v5912 = vadd.f32 %v5836, %v5911
      %5913 = vadd.xlane.f32.xlu0 %v5912
      %v5914 = vpop.xlane.xlu0 %5913
      %v5915 = vrcp.pop %v5914
      %v5916 = vmul.f32 %v5908, %v5915
      %v5917 = vld [vmem:[%s15] sm:$0xff]
      %v5918 = vld [vmem:[%s15 + $0x8] sm:$0xff]
      %v5919 = vld [vmem:[%s15 + $0x10] sm:$0xff]
      %v5920 = vld [vmem:[%s15 + $0x18] sm:$0xff]
      %v5921 = vld [vmem:[%s15 + $0x20] sm:$0xff]
      %v5922 = vld [vmem:[%s15 + $0x28] sm:$0xff]
      %v5923 = vld [vmem:[%s15 + $0x30] sm:$0xff]
      %v5924 = vld [vmem:[%s15 + $0x38] sm:$0xff]
      %v5925 = vld [vmem:[%s15 + $0x40] sm:$0xff]
      %v5926 = vld [vmem:[%s15 + $0x48] sm:$0xff]
      %v5927 = vld [vmem:[%s15 + $0x50] sm:$0xff]
      %v5928 = vld [vmem:[%s15 + $0x58] sm:$0xff]
      %v5929 = vld [vmem:[%s15 + $0x60] sm:$0xff]
      %v5930 = vld [vmem:[%s15 + $0x68] sm:$0xff]
      %v5931 = vld [vmem:[%s15 + $0x70] sm:$0xff]
      %v5932 = vld [vmem:[%s15 + $0x78] sm:$0xff]
      %v5933 = vld [vmem:[%s16] sm:$0xff]
      %v5934 = vld [vmem:[%s16 + $0x8] sm:$0xff]
      %v5935 = vld [vmem:[%s16 + $0x10] sm:$0xff]
      %v5936 = vld [vmem:[%s16 + $0x18] sm:$0xff]
      %v5937 = vld [vmem:[%s16 + $0x20] sm:$0xff]
      %v5938 = vld [vmem:[%s16 + $0x28] sm:$0xff]
      %v5939 = vld [vmem:[%s16 + $0x30] sm:$0xff]
      %v5940 = vld [vmem:[%s16 + $0x38] sm:$0xff]
      %v5941 = vld [vmem:[%s16 + $0x40] sm:$0xff]
      %v5942 = vld [vmem:[%s16 + $0x48] sm:$0xff]
      %v5943 = vld [vmem:[%s16 + $0x50] sm:$0xff]
      %v5944 = vld [vmem:[%s16 + $0x58] sm:$0xff]
      %v5945 = vld [vmem:[%s16 + $0x60] sm:$0xff]
      %v5946 = vld [vmem:[%s16 + $0x68] sm:$0xff]
      %v5947 = vld [vmem:[%s16 + $0x70] sm:$0xff]
      %v5948 = vld [vmem:[%s16 + $0x78] sm:$0xff]
      %5949 = vmatprep.subr.mxu0 0.0
      %5950 = vmatpush1.msra.mxu0 %v5933
      %5951 = vmatprep.subr.mxu0 0.0
      %5952 = vmatpush1.msra.mxu0 %v5934
      %5953 = vmatprep.subr.mxu0 0.0
      %5954 = vmatpush1.msra.mxu0 %v5935
      %5955 = vmatprep.subr.mxu0 0.0
      %5956 = vmatpush1.msra.mxu0 %v5936
      %5957 = vmatprep.subr.mxu0 0.0
      %5958 = vmatpush1.msra.mxu0 %v5937
      %5959 = vmatprep.subr.mxu0 0.0
      %5960 = vmatpush1.msra.mxu0 %v5938
      %5961 = vmatprep.subr.mxu0 0.0
      %5962 = vmatpush1.msra.mxu0 %v5939
      %5963 = vmatprep.subr.mxu0 0.0
      %5964 = vmatpush1.msra.mxu0 %v5940
      %5965 = vmatprep.subr.mxu0 0.0
      %5966 = vmatpush1.msra.mxu0 %v5941
      %5967 = vmatprep.subr.mxu0 0.0
      %5968 = vmatpush1.msra.mxu0 %v5942
      %5969 = vmatprep.subr.mxu0 0.0
      %5970 = vmatpush1.msra.mxu0 %v5943
      %5971 = vmatprep.subr.mxu0 0.0
      %5972 = vmatpush1.msra.mxu0 %v5944
      %5973 = vmatprep.subr.mxu0 0.0
      %5974 = vmatpush1.msra.mxu0 %v5945
      %5975 = vmatprep.subr.mxu0 0.0
      %5976 = vmatpush1.msra.mxu0 %v5946
      %5977 = vmatprep.subr.mxu0 0.0
      %5978 = vmatpush1.msra.mxu0 %v5947
      %5979 = vmatprep.subr.mxu0 0.0
      %5980 = vmatpush1.msra.mxu0 %v5948
      %5981 = vmatprep.subr.mxu0 0.0
      %5982 = vmatpush1.msra.mxu0 0.0
      %5983 = vmatprep.subr.mxu0 0.0
      %5984 = vmatpush1.msra.mxu0 0.0
      %5985 = vmatprep.subr.mxu0 0.0
      %5986 = vmatpush1.msra.mxu0 0.0
      %5987 = vmatprep.subr.mxu0 0.0
      %5988 = vmatpush1.msra.mxu0 0.0
      %5989 = vmatprep.subr.mxu0 0.0
      %5990 = vmatpush1.msra.mxu0 0.0
      %5991 = vmatprep.subr.mxu0 0.0
      %5992 = vmatpush1.msra.mxu0 0.0
      %5993 = vmatprep.subr.mxu0 0.0
      %5994 = vmatpush1.msra.mxu0 0.0
      %5995 = vmatprep.subr.mxu0 0.0
      %5996 = vmatpush1.msra.mxu0 0.0
      %5997 = vmatprep.subr.mxu0 0.0
      %5998 = vmatpush1.msra.mxu0 0.0
      %5999 = vmatprep.subr.mxu0 0.0
      %6000 = vmatpush1.msra.mxu0 0.0
      %6001 = vmatprep.subr.mxu0 0.0
      %6002 = vmatpush1.msra.mxu0 0.0
      %6003 = vmatprep.subr.mxu0 0.0
      %6004 = vmatpush1.msra.mxu0 0.0
      %6005 = vmatprep.subr.mxu0 0.0
      %6006 = vmatpush1.msra.mxu0 0.0
      %6007 = vmatprep.subr.mxu0 0.0
      %6008 = vmatpush1.msra.mxu0 0.0
      %6009 = vmatprep.subr.mxu0 0.0
      %6010 = vmatpush1.msra.mxu0 0.0
      %6011 = vmatprep.subr.mxu0 0.0
      %6012 = vmatpush1.msra.mxu0 0.0
      %6013 = vmatprep.mubr.f32.mxu0 0.0
      %6014 = vmatmul.mubr.f32.gmra.mrb[0].mxu0 %v5916
      %v6015 = vpop.f32.mrb[0].mxu0
      %v6016 = vadd.f32 0.0, %v6015
      %v6017 = vpop.f32.mrb[0].mxu0
      %6018 = vdwg.mxu0
      %6019 = vmatprep.subr.mxu0 0.0
      %6020 = vmatpush1.msra.mxu0 %v5917
      %6021 = vmatprep.subr.mxu0 0.0
      %6022 = vmatpush1.msra.mxu0 %v5918
      %6023 = vmatprep.subr.mxu0 0.0
      %6024 = vmatpush1.msra.mxu0 %v5919
      %6025 = vmatprep.subr.mxu0 0.0
      %6026 = vmatpush1.msra.mxu0 %v5920
      %6027 = vmatprep.subr.mxu0 0.0
      %6028 = vmatpush1.msra.mxu0 %v5921
      %6029 = vmatprep.subr.mxu0 0.0
      %6030 = vmatpush1.msra.mxu0 %v5922
      %6031 = vmatprep.subr.mxu0 0.0
      %6032 = vmatpush1.msra.mxu0 %v5923
      %6033 = vmatprep.subr.mxu0 0.0
      %6034 = vmatpush1.msra.mxu0 %v5924
      %6035 = vmatprep.subr.mxu0 0.0
      %6036 = vmatpush1.msra.mxu0 %v5925
      %6037 = vmatprep.subr.mxu0 0.0
      %6038 = vmatpush1.msra.mxu0 %v5926
      %6039 = vmatprep.subr.mxu0 0.0
      %6040 = vmatpush1.msra.mxu0 %v5927
      %6041 = vmatprep.subr.mxu0 0.0
      %6042 = vmatpush1.msra.mxu0 %v5928
      %6043 = vmatprep.subr.mxu0 0.0
      %6044 = vmatpush1.msra.mxu0 %v5929
      %6045 = vmatprep.subr.mxu0 0.0
      %6046 = vmatpush1.msra.mxu0 %v5930
      %6047 = vmatprep.subr.mxu0 0.0
      %6048 = vmatpush1.msra.mxu0 %v5931
      %6049 = vmatprep.subr.mxu0 0.0
      %6050 = vmatpush1.msra.mxu0 %v5932
      %6051 = vmatprep.subr.mxu0 0.0
      %6052 = vmatpush1.msra.mxu0 0.0
      %6053 = vmatprep.subr.mxu0 0.0
      %6054 = vmatpush1.msra.mxu0 0.0
      %6055 = vmatprep.subr.mxu0 0.0
      %6056 = vmatpush1.msra.mxu0 0.0
      %6057 = vmatprep.subr.mxu0 0.0
      %6058 = vmatpush1.msra.mxu0 0.0
      %6059 = vmatprep.subr.mxu0 0.0
      %6060 = vmatpush1.msra.mxu0 0.0
      %6061 = vmatprep.subr.mxu0 0.0
      %6062 = vmatpush1.msra.mxu0 0.0
      %6063 = vmatprep.subr.mxu0 0.0
      %6064 = vmatpush1.msra.mxu0 0.0
      %6065 = vmatprep.subr.mxu0 0.0
      %6066 = vmatpush1.msra.mxu0 0.0
      %6067 = vmatprep.subr.mxu0 0.0
      %6068 = vmatpush1.msra.mxu0 0.0
      %6069 = vmatprep.subr.mxu0 0.0
      %6070 = vmatpush1.msra.mxu0 0.0
      %6071 = vmatprep.subr.mxu0 0.0
      %6072 = vmatpush1.msra.mxu0 0.0
      %6073 = vmatprep.subr.mxu0 0.0
      %6074 = vmatpush1.msra.mxu0 0.0
      %6075 = vmatprep.subr.mxu0 0.0
      %6076 = vmatpush1.msra.mxu0 0.0
      %6077 = vmatprep.subr.mxu0 0.0
      %6078 = vmatpush1.msra.mxu0 0.0
      %6079 = vmatprep.subr.mxu0 0.0
      %6080 = vmatpush1.msra.mxu0 0.0
      %6081 = vmatprep.subr.mxu0 0.0
      %6082 = vmatpush1.msra.mxu0 0.0
      %6083 = vmatprep.mubr.f32.mxu0 0.0
      %6084 = vmatmul.mubr.f32.gmra.mrb[0].mxu0 %v5831
      %v6085 = vpop.f32.mrb[0].mxu0
      %v6086 = vadd.f32 %v6016, %v6085
      %v6087 = vpop.f32.mrb[0].mxu0
      %6088 = vdwg.mxu0
      %v6090 = vlaneseq
      %v6091 = vshrl.u32 %v6090, 7
      %v6092 = vsub.s32 0, %v6091
      %v6093 = vrot.slane %v676, %v6092
      %v6095 = vadd.f32 %v6086, %v6093
      %v6096 = vxor.u32 %v6095, 2147483648
      %v6097 = vmul.f32 %v6096, 1.442695
      %v6098 = vpow.pop %v6097
      %v6099 = vadd.f32 %v6098, 1.0
      %v6100 = vrcp.pop %v6099
      %v6101 = vmul.f32 1.0, %v6100
      %6102 = vst [vmem:[%s669] sm:$0xff] %v6101
      %p6103 = scmp.lt.s32.totalorder %s29, 1
      %s6104 = scalar_select %p6103, %s29, 1
      %s6105 = smul.addr %s6104, 8
      %s6106 = scalar_lea.vmem %s18, %s6105
      // Predicated region
      $region93: #{gch_fin_forward.1} parent=91 // pred_check
        %p6107 = pneg %p450
      $region94: #{gch_fin_forward.1} parent=91 // pred_check_branch
        %6109 = sbr.rel (%p6107) target = $region96
      $region95: #{gch_fin_forward.1} parent=91 // pred_region
        _
      $region96: #{gch_fin_forward.1} parent=91 // pred_fallthru
        _
    $region92: #{gch_fin_forward.1} parent=5 // pred_fallthru
      _
    %p6110 = scmp.le.s32.totalorder 2, %s24
    // Predicated region
    $region97: #{gch_fin_forward.1} parent=5 // pred_check
      %p6111 = pneg %p6110
    $region98: #{gch_fin_forward.1} parent=5 // pred_check_branch
      %6113 = sbr.rel (%p6111) target = $region100
    $region99: #{gch_fin_forward.1} parent=5 // pred_region
      %s6114 = ssub.s32 %s24, 2
      // Predicated region
      $region101: #{gch_fin_forward.1} parent=99 // pred_check
        %p6115 = pneg %p456
      $region102: #{gch_fin_forward.1} parent=99 // pred_check_branch
        %6117 = sbr.rel (%p6115) target = $region104
      $region103: #{gch_fin_forward.1} parent=99 // pred_region
        %p6118 = scmp.lt.s32.totalorder %s30, 1
        %s6119 = scalar_select %p6118, %s30, 1
        %s6120 = smul.addr %s6119, 8
        %s6121 = scalar_lea.vmem %s18, %s6120
      $region104: #{gch_fin_forward.1} parent=99 // pred_fallthru
        _
    $region100: #{gch_fin_forward.1} parent=5 // pred_fallthru
      _
  $region6: #{gch_fin_forward.1} parent=0 // loop_footer
    %s28 = sadd.s32 1, %s24
  $region7: #{gch_fin_forward.1} parent=0 // loop_footer_branch
    %23 = sbr.rel target = $region3
  $region8: #{gch_fin_forward.1} parent=0 // loop_exit
    _

</llo_original>
